<compile_context>
chip_gen: v6e
topology: v6e:2x2x1
jax: 0.10.0
libtpu: 0.0.40
codegen_flags: <defaults>
</compile_context>

<pallas_src>
import math
import jax
import jax.numpy as jnp
from jax.experimental import pallas as pl
from jax.experimental.pallas import tpu as pltpu


COUT_PAD = 128  # lane-dense output channel padding


def _round_up(x, m):
    return ((x + m - 1) // m) * m


# ------------------------------------------------------------------ kernel ---
def _make_fused_kernel(cfg, batch_tile):
    """Fused kernel for a static per-layer config.

    cfg: list of dicts with python ints H, W, HW, Cin, Cout, Mout, stride,
         pad_top, lv.
    Ref order: x, w2[L], scale[L], shift[L], sel[strided L], out[L],
               scratch xv[L], scratch im2col[L], scratch im2col_strided[strided L].
    """
    nL = len(cfg)
    nS = sum(1 for c in cfg if c["stride"] == 2)
    B = batch_tile

    def kernel(*refs):
        idx = 0
        x_ref = refs[idx]; idx += 1
        w_refs = refs[idx:idx + nL]; idx += nL
        sc_refs = refs[idx:idx + nL]; idx += nL
        sh_refs = refs[idx:idx + nL]; idx += nL
        sel_refs = refs[idx:idx + nS]; idx += nS
        o_refs = refs[idx:idx + nL]; idx += nL
        xv_refs = refs[idx:idx + nL]; idx += nL
        col_refs = refs[idx:idx + nL]; idx += nL
        colS_refs = refs[idx:idx + nS]

        cur = x_ref[...].astype(jnp.float32)          # (B*HW0, Cin0)
        si = 0
        for li, c in enumerate(cfg):
            H, W, HW = c["H"], c["W"], c["HW"]
            Cin, Cout, Mout = c["Cin"], c["Cout"], c["Mout"]
            pad_top, Lv = c["pad_top"], c["lv"]
            Mrows = B * HW

            # ---- stage activation in a vertically zero-haloed scratch -------
            xv = xv_refs[li]
            xv[pl.ds(0, pad_top), :] = jnp.zeros((pad_top, Cin), jnp.float32)
            xv[pl.ds(pad_top + Mrows, Lv - pad_top - Mrows), :] = jnp.zeros(
                (Lv - pad_top - Mrows, Cin), jnp.float32)
            xv[pl.ds(pad_top, Mrows), :] = cur

            # ---- tap-validity masks, generated in-kernel (no constants) -----
            r = jax.lax.broadcasted_iota(jnp.int32, (Mrows, 1), 0)
            p = r % HW                  # position inside the image
            j = p % W                   # column inside the image row
            okL = j >= 1                # left neighbour exists
            okR = j <= W - 2            # right neighbour exists
            okT = p >= W                # row above exists
            okB = p < HW - W            # row below exists

            # ---- im2col: 9 masked slab copies -> (Mrows, 9*Cin) -------------
            colr = col_refs[li]
            for kh in range(3):
                for kw in range(3):
                    t = kh * 3 + kw
                    off = pad_top + (kh - 1) * W + (kw - 1)
                    tap = xv[pl.ds(off, Mrows), :]          # (Mrows, Cin)
                    ok = None
                    if kh == 0:
                        ok = okT
                    elif kh == 2:
                        ok = okB
                    if kw == 0:
                        ok = okL if ok is None else (ok & okL)
                    elif kw == 2:
                        ok = okR if ok is None else (ok & okR)
                    if ok is not None:
                        tap = jnp.where(ok, tap, 0.0)
                    colr[:, t * Cin:(t + 1) * Cin] = tap

            # ---- stride-2: one hoisted 0/1 row-selection matmul per image ---
            if c["stride"] == 2:
                sel = sel_refs[si][...]                     # (Mout, HW)
                colS = colS_refs[si]
                si += 1
                for b in range(B):
                    colS[b * Mout:(b + 1) * Mout, :] = jnp.dot(
                        sel, colr[b * HW:(b + 1) * HW, :],
                        preferred_element_type=jnp.float32)
                cols = colS[...]                            # (B*Mout, 9*Cin)
            else:
                cols = colr[...]                            # (B*HW, 9*Cin)

            # ---- single fat-K conv matmul + BN(inference) + ReLU ------------
            y = jnp.dot(cols, w_refs[li][...],
                        preferred_element_type=jnp.float32)  # (B*Mout, 128)
            y = jnp.maximum(y * sc_refs[li][...] + sh_refs[li][...], 0.0)
            o_refs[li][...] = y.astype(o_refs[li].dtype)
            cur = y[:, :Cout]                # real channels feed the next layer

    return kernel


# ------------------------------------------------------------------ forward ---
def msdn_first_layer_forward(x_nchw, params, eps=1e-5, batch_tile=None):
    """Forward of MSDNFirstLayer (cifar branch): list of NCHW maps, one per scale."""
    N, C0, H0, W0 = x_nchw.shape

    # Batch-block the grid: B_tile images per step; default gives >=2 grid
    # points when N > 1 so both v7x TensorCores always have work.
    if batch_tile is None:
        batch_tile = 1 if N <= 1 else (N + 1) // 2
    B = int(batch_tile)
    grid_n = -(-N // B)
    N_pad = grid_n * B

    x = jnp.transpose(x_nchw, (0, 2, 3, 1)).astype(jnp.float32)   # NHWC
    if N_pad != N:
        x = jnp.pad(x, ((0, N_pad - N), (0, 0), (0, 0), (0, 0)))
    x_rows = x.reshape(N_pad * H0 * W0, C0)

    cfg = []
    w_list, sc_list, sh_list, sel_list = [], [], [], []
    H, W, Cin = H0, W0, C0
    for prm in params:
        stride = int(prm["stride"])
        assert stride in (1, 2)
        Cout = int(prm["w"].shape[0])
        assert Cout <= COUT_PAD
        HW = H * W

        scale = prm["gamma"] / jnp.sqrt(prm["var"] + eps)
        shift = prm["beta"] - prm["mean"] * scale
        # (Cout,Cin,3,3) -> (3,3,Cin,Cout) -> (9*Cin, Cout); row (kh*3+kw)*Cin+c
        w2 = jnp.transpose(prm["w"], (2, 3, 1, 0)).reshape(9 * Cin, Cout)
        w2 = jnp.pad(w2, ((0, 0), (0, COUT_PAD - Cout)))
        sc = jnp.pad(scale.reshape(1, Cout), ((0, 0), (0, COUT_PAD - Cout)))
        sh = jnp.pad(shift.reshape(1, Cout), ((0, 0), (0, COUT_PAD - Cout)))

        if stride == 2:
            assert H % 2 == 0 and W % 2 == 0
            Ho, Wo = H // 2, W // 2
            rows = jnp.arange(Ho * Wo, dtype=jnp.int32)
            src = 2 * (rows // Wo) * W + 2 * (rows % Wo)
            sel = jnp.zeros((Ho * Wo, HW), jnp.float32).at[rows, src].set(1.0)
            sel_list.append(sel)
        else:
            Ho, Wo = H, W

        Mrows = B * HW
        pad_top = _round_up(W + 1, 8)
        lv = _round_up(pad_top + Mrows + W + 1, 8)
        cfg.append(dict(H=H, W=W, HW=HW, Cin=Cin, Cout=Cout, stride=stride,
                        Ho=Ho, Wo=Wo, Mout=Ho * Wo, pad_top=pad_top, lv=lv))
        w_list.append(w2); sc_list.append(sc); sh_list.append(sh)
        H, W, Cin = Ho, Wo, Cout

    kernel = _make_fused_kernel(cfg, B)

    def _const_spec(shape):
        n = len(shape)
        return pl.BlockSpec(shape, lambda b: (0,) * n)

    in_specs = [pl.BlockSpec((B * H0 * W0, C0), lambda b: (b, 0))]
    args = [x_rows]
    # Constants (weights, BN scale/shift, selection matrices).  Tiny at CIFAR
    # sizes; pipeline_mode=pl.Buffered(1) would halve their VMEM if ever
    # scaled up.
    for arr in (w_list + sc_list + sh_list + sel_list):
        in_specs.append(_const_spec(tuple(arr.shape)))
        args.append(arr)

    out_shape, out_specs = [], []
    for c in cfg:
        Mo = c["Mout"]
        out_shape.append(jax.ShapeDtypeStruct((N_pad * Mo, COUT_PAD), jnp.float32))
        out_specs.append(pl.BlockSpec((B * Mo, COUT_PAD), lambda b: (b, 0)))

    scratch = []
    for c in cfg:    # vertically zero-haloed activation staging
        scratch.append(pltpu.VMEM((c["lv"], c["Cin"]), jnp.float32))
    for c in cfg:    # lane-dense im2col slabs
        scratch.append(pltpu.VMEM((B * c["HW"], 9 * c["Cin"]), jnp.float32))
    for c in cfg:    # strided im2col (stride-2 layers only)
        if c["stride"] == 2:
            scratch.append(pltpu.VMEM((B * c["Mout"], 9 * c["Cin"]), jnp.float32))

    outs = pl.pallas_call(
        kernel,
        out_shape=tuple(out_shape),
        grid_spec=pltpu.PrefetchScalarGridSpec(
            num_scalar_prefetch=0,
            grid=(grid_n,),
            in_specs=in_specs,
            out_specs=tuple(out_specs),
            scratch_shapes=scratch,
        ),
        compiler_params=pltpu.CompilerParams(
            dimension_semantics=("parallel",)),
    )(*args)

    res = []
    for o, c in zip(outs, cfg):
        y = o.reshape(N_pad, c["Ho"], c["Wo"], COUT_PAD)[:N, :, :, :c["Cout"]]
        res.append(jnp.transpose(y, (0, 3, 1, 2)))                 # NHWC -> NCHW
    return res


# --------------------------------------------------- parameter construction ---
def init_msdn_first_layer_params(key, nIn, nOut, grFactor, nScales):
    """Deterministic parameters matching MSDNFirstLayer.__init__ (cifar branch)."""
    params = []
    cin = nIn
    for i in range(nScales):
        cout = nOut * grFactor[i]
        stride = 1 if i == 0 else 2
        key, kw, kg, kb, km, kv = jax.random.split(key, 6)
        fan_in = cin * 3 * 3
        w_oihw = jax.random.normal(kw, (cout, cin, 3, 3), jnp.float32) \
                 * (1.0 / math.sqrt(fan_in))
        gamma = 1.0 + 0.1 * jax.random.normal(kg, (cout,), jnp.float32)
        beta = 0.1 * jax.random.normal(kb, (cout,), jnp.float32)
        mean = 0.1 * jax.random.normal(km, (cout,), jnp.float32)
        var = 1.0 + 0.1 * jax.random.uniform(kv, (cout,), jnp.float32)
        params.append(dict(w=w_oihw, gamma=gamma, beta=beta, mean=mean,
                           var=var, stride=stride))
        cin = cout
    return params


# ----------------------------------------------------------- pure-JAX check ---
def _ref_forward(x_nchw, params, eps=1e-5):
    x = jnp.transpose(x_nchw, (0, 2, 3, 1))
    res = []
    for p in params:
        w_hwio = jnp.transpose(p["w"], (2, 3, 1, 0))
        y = jax.lax.conv_general_dilated(
            x, w_hwio, window_strides=(p["stride"], p["stride"]),
            padding=((1, 1), (1, 1)),
            dimension_numbers=("NHWC", "HWIO", "NHWC"))
        scale = p["gamma"] / jnp.sqrt(p["var"] + eps)
        shift = p["beta"] - p["mean"] * scale
        x = jnp.maximum(y * scale + shift, 0.0)
        res.append(jnp.transpose(x, (0, 3, 1, 2)))
    return res


if __name__ == "__main__":
    # args: data='cifar10', nScales=3, grFactor=[1,2,4]; nIn=4, nOut=8
    nIn, nOut = 4, 8
    grFactor = [1, 2, 4]
    nScales = 3

    key = jax.random.PRNGKey(0)
    kx, kp = jax.random.split(key)
    x = jax.random.normal(kx, (2, nIn, 16, 16), jnp.float32)  # NCHW

    params = init_msdn_first_layer_params(kp, nIn, nOut, grFactor, nScales)

    outs = msdn_first_layer_forward(x, params)
    outs = [jax.block_until_ready(o) for o in outs]

    # expected shapes: (2, 8, 16, 16), (2, 16, 8, 8), (2, 32, 4, 4)
    expected = [(2, 8, 16, 16), (2, 16, 8, 8), (2, 32, 4, 4)]
    assert [tuple(o.shape) for o in outs] == expected, [o.shape for o in outs]

    refs = _ref_forward(x, params)
    for o, r in zip(outs, refs):
        assert jnp.allclose(o, r, atol=1e-4, rtol=1e-4), float(jnp.max(jnp.abs(o - r)))

    print("KERNEL_OK")
</pallas_src>

<mosaic_0001>
module attributes {stable_mosaic.version = 11 : i64} {
  func.func @kernel(%arg0: i32, %arg1: memref<256x4xf32, #tpu.memory_space<vmem>>, %arg2: memref<36x128xf32, #tpu.memory_space<vmem>>, %arg3: memref<72x128xf32, #tpu.memory_space<vmem>>, %arg4: memref<144x128xf32, #tpu.memory_space<vmem>>, %arg5: memref<1x128xf32, #tpu.memory_space<vmem>>, %arg6: memref<1x128xf32, #tpu.memory_space<vmem>>, %arg7: memref<1x128xf32, #tpu.memory_space<vmem>>, %arg8: memref<1x128xf32, #tpu.memory_space<vmem>>, %arg9: memref<1x128xf32, #tpu.memory_space<vmem>>, %arg10: memref<1x128xf32, #tpu.memory_space<vmem>>, %arg11: memref<64x256xf32, #tpu.memory_space<vmem>>, %arg12: memref<16x64xf32, #tpu.memory_space<vmem>>, %arg13: memref<256x128xf32, #tpu.memory_space<vmem>>, %arg14: memref<64x128xf32, #tpu.memory_space<vmem>>, %arg15: memref<16x128xf32, #tpu.memory_space<vmem>>, %arg16: memref<304x4xf32, #tpu.memory_space<vmem>>, %arg17: memref<304x8xf32, #tpu.memory_space<vmem>>, %arg18: memref<96x16xf32, #tpu.memory_space<vmem>>, %arg19: memref<256x36xf32, #tpu.memory_space<vmem>>, %arg20: memref<256x72xf32, #tpu.memory_space<vmem>>, %arg21: memref<64x144xf32, #tpu.memory_space<vmem>>, %arg22: memref<64x72xf32, #tpu.memory_space<vmem>>, %arg23: memref<16x144xf32, #tpu.memory_space<vmem>>) attributes {dimension_semantics = [#tpu.dimension_semantics<parallel>], iteration_bounds = array<i64: 2>, scalar_prefetch = 0 : i64, scratch_operands = 8 : i64, tpu.core_type = #tpu.core_type<tc>, window_params = [{transform_indices = @transform_0, window_bounds = array<i64: 256, 4>}, {pipeline_mode = #tpu.pipeline_mode<synchronous>, transform_indices = @transform_1, window_bounds = array<i64: 36, 128>}, {pipeline_mode = #tpu.pipeline_mode<synchronous>, transform_indices = @transform_2, window_bounds = array<i64: 72, 128>}, {pipeline_mode = #tpu.pipeline_mode<synchronous>, transform_indices = @transform_3, window_bounds = array<i64: 144, 128>}, {pipeline_mode = #tpu.pipeline_mode<synchronous>, transform_indices = @transform_4, window_bounds = array<i64: 1, 128>}, {pipeline_mode = #tpu.pipeline_mode<synchronous>, transform_indices = @transform_5, window_bounds = array<i64: 1, 128>}, {pipeline_mode = #tpu.pipeline_mode<synchronous>, transform_indices = @transform_6, window_bounds = array<i64: 1, 128>}, {pipeline_mode = #tpu.pipeline_mode<synchronous>, transform_indices = @transform_7, window_bounds = array<i64: 1, 128>}, {pipeline_mode = #tpu.pipeline_mode<synchronous>, transform_indices = @transform_8, window_bounds = array<i64: 1, 128>}, {pipeline_mode = #tpu.pipeline_mode<synchronous>, transform_indices = @transform_9, window_bounds = array<i64: 1, 128>}, {pipeline_mode = #tpu.pipeline_mode<synchronous>, transform_indices = @transform_10, window_bounds = array<i64: 64, 256>}, {pipeline_mode = #tpu.pipeline_mode<synchronous>, transform_indices = @transform_11, window_bounds = array<i64: 16, 64>}, {transform_indices = @transform_12, window_bounds = array<i64: 256, 128>}, {transform_indices = @transform_13, window_bounds = array<i64: 64, 128>}, {transform_indices = @transform_14, window_bounds = array<i64: 16, 128>}]} {
    %c0 = arith.constant 0 : index
    %c0_0 = arith.constant 0 : index
    %0 = vector.load %arg1[%c0, %c0_0] : memref<256x4xf32, #tpu.memory_space<vmem>>, vector<256x4xf32>
    %cst = arith.constant 0.000000e+00 : f32
    %1 = vector.broadcast %cst : f32 to vector<24x4xf32>
    %c0_1 = arith.constant 0 : index
    %c0_2 = arith.constant 0 : index
    %2 = vector.load %arg16[%c0_1, %c0_2] : memref<304x4xf32, #tpu.memory_space<vmem>>, vector<24x4xf32>
    tpu.vector_store %arg16[%c0_1, %c0_2], %1 {strides = array<i32>} : memref<304x4xf32, #tpu.memory_space<vmem>>, vector<24x4xf32>,
    %cst_3 = arith.constant 0.000000e+00 : f32
    %3 = vector.broadcast %cst_3 : f32 to vector<24x4xf32>
    %c280 = arith.constant 280 : index
    %c0_4 = arith.constant 0 : index
    %4 = vector.load %arg16[%c280, %c0_4] : memref<304x4xf32, #tpu.memory_space<vmem>>, vector<24x4xf32>
    tpu.vector_store %arg16[%c280, %c0_4], %3 {strides = array<i32>} : memref<304x4xf32, #tpu.memory_space<vmem>>, vector<24x4xf32>,
    %c24 = arith.constant 24 : index
    %c0_5 = arith.constant 0 : index
    %5 = vector.load %arg16[%c24, %c0_5] : memref<304x4xf32, #tpu.memory_space<vmem>>, vector<256x4xf32>
    tpu.vector_store %arg16[%c24, %c0_5], %0 {strides = array<i32>} : memref<304x4xf32, #tpu.memory_space<vmem>>, vector<256x4xf32>,
    %6 = tpu.iota {dimensions = array<i32: 0>} : vector<256x1xi32>
    %c256_i32 = arith.constant 256 : i32
    %c0_i32 = arith.constant 0 : i32
    %7 = arith.cmpi eq, %c256_i32, %c0_i32 : i32
    %c1_i32 = arith.constant 1 : i32
    %8 = arith.select %7, %c1_i32, %c256_i32 : i32
    %9 = vector.broadcast %8 : i32 to vector<256x1xi32>
    %10 = arith.remsi %6, %9 : vector<256x1xi32>
    %c0_i32_6 = arith.constant 0 : i32
    %11 = vector.broadcast %c0_i32_6 : i32 to vector<256x1xi32>
    %12 = arith.cmpi ne, %10, %11 : vector<256x1xi32>
    %c0_i32_7 = arith.constant 0 : i32
    %13 = vector.broadcast %c0_i32_7 : i32 to vector<256x1xi32>
    %14 = arith.cmpi slt, %10, %13 : vector<256x1xi32>
    %c0_i32_8 = arith.constant 0 : i32
    %15 = arith.cmpi slt, %8, %c0_i32_8 : i32
    %16 = vector.broadcast %15 : i1 to vector<256x1xi1>
    %17 = vector.broadcast %16 : vector<256x1xi1> to vector<256x1xi1>
    %18 = arith.xori %14, %17 : vector<256x1xi1>
    %19 = arith.andi %18, %12 : vector<256x1xi1>
    %20 = vector.broadcast %8 : i32 to vector<256x1xi32>
    %21 = arith.addi %10, %20 : vector<256x1xi32>
    %22 = arith.select %19, %21, %10 : vector<256x1xi1>, vector<256x1xi32>
    %c16_i32 = arith.constant 16 : i32
    %c0_i32_9 = arith.constant 0 : i32
    %23 = arith.cmpi eq, %c16_i32, %c0_i32_9 : i32
    %c1_i32_10 = arith.constant 1 : i32
    %24 = arith.select %23, %c1_i32_10, %c16_i32 : i32
    %25 = vector.broadcast %24 : i32 to vector<256x1xi32>
    %26 = arith.remsi %22, %25 : vector<256x1xi32>
    %c0_i32_11 = arith.constant 0 : i32
    %27 = vector.broadcast %c0_i32_11 : i32 to vector<256x1xi32>
    %28 = arith.cmpi ne, %26, %27 : vector<256x1xi32>
    %c0_i32_12 = arith.constant 0 : i32
    %29 = vector.broadcast %c0_i32_12 : i32 to vector<256x1xi32>
    %30 = arith.cmpi slt, %26, %29 : vector<256x1xi32>
    %c0_i32_13 = arith.constant 0 : i32
    %31 = arith.cmpi slt, %24, %c0_i32_13 : i32
    %32 = vector.broadcast %31 : i1 to vector<256x1xi1>
    %33 = vector.broadcast %32 : vector<256x1xi1> to vector<256x1xi1>
    %34 = arith.xori %30, %33 : vector<256x1xi1>
    %35 = arith.andi %34, %28 : vector<256x1xi1>
    %36 = vector.broadcast %24 : i32 to vector<256x1xi32>
    %37 = arith.addi %26, %36 : vector<256x1xi32>
    %38 = arith.select %35, %37, %26 : vector<256x1xi1>, vector<256x1xi32>
    %c1_i32_14 = arith.constant 1 : i32
    %39 = vector.broadcast %c1_i32_14 : i32 to vector<256x1xi32>
    %40 = arith.cmpi sge, %38, %39 : vector<256x1xi32>
    %c14_i32 = arith.constant 14 : i32
    %41 = vector.broadcast %c14_i32 : i32 to vector<256x1xi32>
    %42 = arith.cmpi sle, %38, %41 : vector<256x1xi32>
    %c16_i32_15 = arith.constant 16 : i32
    %43 = vector.broadcast %c16_i32_15 : i32 to vector<256x1xi32>
    %44 = arith.cmpi sge, %22, %43 : vector<256x1xi32>
    %c240_i32 = arith.constant 240 : i32
    %45 = vector.broadcast %c240_i32 : i32 to vector<256x1xi32>
    %46 = arith.cmpi slt, %22, %45 : vector<256x1xi32>
    %c7 = arith.constant 7 : index
    %c0_16 = arith.constant 0 : index
    %47 = vector.load %arg16[%c7, %c0_16] : memref<304x4xf32, #tpu.memory_space<vmem>>, vector<256x4xf32>
    %48 = arith.andi %44, %40 : vector<256x1xi1>
    %cst_17 = arith.constant 0.000000e+00 : f32
    %49 = vector.shape_cast %48 : vector<256x1xi1> to vector<256x1xi1>
    %50 = vector.broadcast %49 : vector<256x1xi1> to vector<256x4xi1>
    %51 = vector.broadcast %cst_17 : f32 to vector<256x4xf32>
    %52 = arith.select %50, %47, %51 : vector<256x4xi1>, vector<256x4xf32>
    %c0_18 = arith.constant 0 : index
    %c0_19 = arith.constant 0 : index
    %53 = vector.load %arg19[%c0_18, %c0_19] : memref<256x36xf32, #tpu.memory_space<vmem>>, vector<256x4xf32>
    tpu.vector_store %arg19[%c0_18, %c0_19], %52 {strides = array<i32>} : memref<256x36xf32, #tpu.memory_space<vmem>>, vector<256x4xf32>,
    %c8 = arith.constant 8 : index
    %c0_20 = arith.constant 0 : index
    %54 = vector.load %arg16[%c8, %c0_20] : memref<304x4xf32, #tpu.memory_space<vmem>>, vector<256x4xf32>
    %cst_21 = arith.constant 0.000000e+00 : f32
    %55 = vector.shape_cast %44 : vector<256x1xi1> to vector<256x1xi1>
    %56 = vector.broadcast %55 : vector<256x1xi1> to vector<256x4xi1>
    %57 = vector.broadcast %cst_21 : f32 to vector<256x4xf32>
    %58 = arith.select %56, %54, %57 : vector<256x4xi1>, vector<256x4xf32>
    %c0_22 = arith.constant 0 : index
    %c4 = arith.constant 4 : index
    %59 = vector.load %arg19[%c0_22, %c4] : memref<256x36xf32, #tpu.memory_space<vmem>>, vector<256x4xf32>
    tpu.vector_store %arg19[%c0_22, %c4], %58 {strides = array<i32>} : memref<256x36xf32, #tpu.memory_space<vmem>>, vector<256x4xf32>,
    %c9 = arith.constant 9 : index
    %c0_23 = arith.constant 0 : index
    %60 = vector.load %arg16[%c9, %c0_23] : memref<304x4xf32, #tpu.memory_space<vmem>>, vector<256x4xf32>
    %61 = arith.andi %44, %42 : vector<256x1xi1>
    %cst_24 = arith.constant 0.000000e+00 : f32
    %62 = vector.shape_cast %61 : vector<256x1xi1> to vector<256x1xi1>
    %63 = vector.broadcast %62 : vector<256x1xi1> to vector<256x4xi1>
    %64 = vector.broadcast %cst_24 : f32 to vector<256x4xf32>
    %65 = arith.select %63, %60, %64 : vector<256x4xi1>, vector<256x4xf32>
    %c0_25 = arith.constant 0 : index
    %c8_26 = arith.constant 8 : index
    %66 = vector.load %arg19[%c0_25, %c8_26] : memref<256x36xf32, #tpu.memory_space<vmem>>, vector<256x4xf32>
    tpu.vector_store %arg19[%c0_25, %c8_26], %65 {strides = array<i32>} : memref<256x36xf32, #tpu.memory_space<vmem>>, vector<256x4xf32>,
    %c23 = arith.constant 23 : index
    %c0_27 = arith.constant 0 : index
    %67 = vector.load %arg16[%c23, %c0_27] : memref<304x4xf32, #tpu.memory_space<vmem>>, vector<256x4xf32>
    %cst_28 = arith.constant 0.000000e+00 : f32
    %68 = vector.shape_cast %40 : vector<256x1xi1> to vector<256x1xi1>
    %69 = vector.broadcast %68 : vector<256x1xi1> to vector<256x4xi1>
    %70 = vector.broadcast %cst_28 : f32 to vector<256x4xf32>
    %71 = arith.select %69, %67, %70 : vector<256x4xi1>, vector<256x4xf32>
    %c0_29 = arith.constant 0 : index
    %c12 = arith.constant 12 : index
    %72 = vector.load %arg19[%c0_29, %c12] : memref<256x36xf32, #tpu.memory_space<vmem>>, vector<256x4xf32>
    tpu.vector_store %arg19[%c0_29, %c12], %71 {strides = array<i32>} : memref<256x36xf32, #tpu.memory_space<vmem>>, vector<256x4xf32>,
    %c24_30 = arith.constant 24 : index
    %c0_31 = arith.constant 0 : index
    %73 = vector.load %arg16[%c24_30, %c0_31] : memref<304x4xf32, #tpu.memory_space<vmem>>, vector<256x4xf32>
    %c0_32 = arith.constant 0 : index
    %c16 = arith.constant 16 : index
    %74 = vector.load %arg19[%c0_32, %c16] : memref<256x36xf32, #tpu.memory_space<vmem>>, vector<256x4xf32>
    tpu.vector_store %arg19[%c0_32, %c16], %73 {strides = array<i32>} : memref<256x36xf32, #tpu.memory_space<vmem>>, vector<256x4xf32>,
    %c25 = arith.constant 25 : index
    %c0_33 = arith.constant 0 : index
    %75 = vector.load %arg16[%c25, %c0_33] : memref<304x4xf32, #tpu.memory_space<vmem>>, vector<256x4xf32>
    %cst_34 = arith.constant 0.000000e+00 : f32
    %76 = vector.shape_cast %42 : vector<256x1xi1> to vector<256x1xi1>
    %77 = vector.broadcast %76 : vector<256x1xi1> to vector<256x4xi1>
    %78 = vector.broadcast %cst_34 : f32 to vector<256x4xf32>
    %79 = arith.select %77, %75, %78 : vector<256x4xi1>, vector<256x4xf32>
    %c0_35 = arith.constant 0 : index
    %c20 = arith.constant 20 : index
    %80 = vector.load %arg19[%c0_35, %c20] : memref<256x36xf32, #tpu.memory_space<vmem>>, vector<256x4xf32>
    tpu.vector_store %arg19[%c0_35, %c20], %79 {strides = array<i32>} : memref<256x36xf32, #tpu.memory_space<vmem>>, vector<256x4xf32>,
    %c39 = arith.constant 39 : index
    %c0_36 = arith.constant 0 : index
    %81 = vector.load %arg16[%c39, %c0_36] : memref<304x4xf32, #tpu.memory_space<vmem>>, vector<256x4xf32>
    %82 = arith.andi %46, %40 : vector<256x1xi1>
    %cst_37 = arith.constant 0.000000e+00 : f32
    %83 = vector.shape_cast %82 : vector<256x1xi1> to vector<256x1xi1>
    %84 = vector.broadcast %83 : vector<256x1xi1> to vector<256x4xi1>
    %85 = vector.broadcast %cst_37 : f32 to vector<256x4xf32>
    %86 = arith.select %84, %81, %85 : vector<256x4xi1>, vector<256x4xf32>
    %c0_38 = arith.constant 0 : index
    %c24_39 = arith.constant 24 : index
    %87 = vector.load %arg19[%c0_38, %c24_39] : memref<256x36xf32, #tpu.memory_space<vmem>>, vector<256x4xf32>
    tpu.vector_store %arg19[%c0_38, %c24_39], %86 {strides = array<i32>} : memref<256x36xf32, #tpu.memory_space<vmem>>, vector<256x4xf32>,
    %c40 = arith.constant 40 : index
    %c0_40 = arith.constant 0 : index
    %88 = vector.load %arg16[%c40, %c0_40] : memref<304x4xf32, #tpu.memory_space<vmem>>, vector<256x4xf32>
    %cst_41 = arith.constant 0.000000e+00 : f32
    %89 = vector.shape_cast %46 : vector<256x1xi1> to vector<256x1xi1>
    %90 = vector.broadcast %89 : vector<256x1xi1> to vector<256x4xi1>
    %91 = vector.broadcast %cst_41 : f32 to vector<256x4xf32>
    %92 = arith.select %90, %88, %91 : vector<256x4xi1>, vector<256x4xf32>
    %c0_42 = arith.constant 0 : index
    %c28 = arith.constant 28 : index
    %93 = vector.load %arg19[%c0_42, %c28] : memref<256x36xf32, #tpu.memory_space<vmem>>, vector<256x4xf32>
    tpu.vector_store %arg19[%c0_42, %c28], %92 {strides = array<i32>} : memref<256x36xf32, #tpu.memory_space<vmem>>, vector<256x4xf32>,
    %c41 = arith.constant 41 : index
    %c0_43 = arith.constant 0 : index
    %94 = vector.load %arg16[%c41, %c0_43] : memref<304x4xf32, #tpu.memory_space<vmem>>, vector<256x4xf32>
    %95 = arith.andi %46, %42 : vector<256x1xi1>
    %cst_44 = arith.constant 0.000000e+00 : f32
    %96 = vector.shape_cast %95 : vector<256x1xi1> to vector<256x1xi1>
    %97 = vector.broadcast %96 : vector<256x1xi1> to vector<256x4xi1>
    %98 = vector.broadcast %cst_44 : f32 to vector<256x4xf32>
    %99 = arith.select %97, %94, %98 : vector<256x4xi1>, vector<256x4xf32>
    %c0_45 = arith.constant 0 : index
    %c32 = arith.constant 32 : index
    %100 = vector.load %arg19[%c0_45, %c32] : memref<256x36xf32, #tpu.memory_space<vmem>>, vector<256x4xf32>
    tpu.vector_store %arg19[%c0_45, %c32], %99 {strides = array<i32>} : memref<256x36xf32, #tpu.memory_space<vmem>>, vector<256x4xf32>,
    %c0_46 = arith.constant 0 : index
    %c0_47 = arith.constant 0 : index
    %101 = vector.load %arg19[%c0_46, %c0_47] : memref<256x36xf32, #tpu.memory_space<vmem>>, vector<256x36xf32>
    %c0_48 = arith.constant 0 : index
    %c0_49 = arith.constant 0 : index
    %102 = vector.load %arg2[%c0_48, %c0_49] : memref<36x128xf32, #tpu.memory_space<vmem>>, vector<36x128xf32>
    %cst_50 = arith.constant dense<0.000000e+00> : vector<256x128xf32>
    %103 = tpu.matmul %101, %102, %cst_50 {dimension_numbers = #tpu.dot_dimension_numbers<[1], [0], [0], [1], [0, 0, 1, 1], [], []>} : vector<256x36xf32>, vector<36x128xf32>, vector<256x128xf32> -> vector<256x128xf32>
    %c0_51 = arith.constant 0 : index
    %c0_52 = arith.constant 0 : index
    %104 = vector.load %arg5[%c0_51, %c0_52] : memref<1x128xf32, #tpu.memory_space<vmem>>, vector<1x128xf32>
    %105 = vector.broadcast %104 : vector<1x128xf32> to vector<256x128xf32>
    %106 = arith.mulf %103, %105 : vector<256x128xf32>
    %c0_53 = arith.constant 0 : index
    %c0_54 = arith.constant 0 : index
    %107 = vector.load %arg8[%c0_53, %c0_54] : memref<1x128xf32, #tpu.memory_space<vmem>>, vector<1x128xf32>
    %108 = vector.broadcast %107 : vector<1x128xf32> to vector<256x128xf32>
    %109 = arith.addf %106, %108 : vector<256x128xf32>
    %cst_55 = arith.constant 0.000000e+00 : f32
    %110 = vector.broadcast %cst_55 : f32 to vector<256x128xf32>
    %111 = arith.maximumf %109, %110 : vector<256x128xf32>
    %c0_56 = arith.constant 0 : index
    %c0_57 = arith.constant 0 : index
    %112 = vector.load %arg13[%c0_56, %c0_57] : memref<256x128xf32, #tpu.memory_space<vmem>>, vector<256x128xf32>
    tpu.vector_store %arg13[%c0_56, %c0_57], %111 {strides = array<i32>} : memref<256x128xf32, #tpu.memory_space<vmem>>, vector<256x128xf32>,
    %113 = vector.extract_strided_slice %111 {offsets = [0, 0], sizes = [256, 8], strides = [1, 1]} : vector<256x128xf32> to vector<256x8xf32>
    %cst_58 = arith.constant 0.000000e+00 : f32
    %114 = vector.broadcast %cst_58 : f32 to vector<24x8xf32>
    %c0_59 = arith.constant 0 : index
    %c0_60 = arith.constant 0 : index
    %115 = vector.load %arg17[%c0_59, %c0_60] : memref<304x8xf32, #tpu.memory_space<vmem>>, vector<24x8xf32>
    tpu.vector_store %arg17[%c0_59, %c0_60], %114 {strides = array<i32>} : memref<304x8xf32, #tpu.memory_space<vmem>>, vector<24x8xf32>,
    %cst_61 = arith.constant 0.000000e+00 : f32
    %116 = vector.broadcast %cst_61 : f32 to vector<24x8xf32>
    %c280_62 = arith.constant 280 : index
    %c0_63 = arith.constant 0 : index
    %117 = vector.load %arg17[%c280_62, %c0_63] : memref<304x8xf32, #tpu.memory_space<vmem>>, vector<24x8xf32>
    tpu.vector_store %arg17[%c280_62, %c0_63], %116 {strides = array<i32>} : memref<304x8xf32, #tpu.memory_space<vmem>>, vector<24x8xf32>,
    %c24_64 = arith.constant 24 : index
    %c0_65 = arith.constant 0 : index
    %118 = vector.load %arg17[%c24_64, %c0_65] : memref<304x8xf32, #tpu.memory_space<vmem>>, vector<256x8xf32>
    tpu.vector_store %arg17[%c24_64, %c0_65], %113 {strides = array<i32>} : memref<304x8xf32, #tpu.memory_space<vmem>>, vector<256x8xf32>,
    %119 = tpu.iota {dimensions = array<i32: 0>} : vector<256x1xi32>
    %c256_i32_66 = arith.constant 256 : i32
    %c0_i32_67 = arith.constant 0 : i32
    %120 = arith.cmpi eq, %c256_i32_66, %c0_i32_67 : i32
    %c1_i32_68 = arith.constant 1 : i32
    %121 = arith.select %120, %c1_i32_68, %c256_i32_66 : i32
    %122 = vector.broadcast %121 : i32 to vector<256x1xi32>
    %123 = arith.remsi %119, %122 : vector<256x1xi32>
    %c0_i32_69 = arith.constant 0 : i32
    %124 = vector.broadcast %c0_i32_69 : i32 to vector<256x1xi32>
    %125 = arith.cmpi ne, %123, %124 : vector<256x1xi32>
    %c0_i32_70 = arith.constant 0 : i32
    %126 = vector.broadcast %c0_i32_70 : i32 to vector<256x1xi32>
    %127 = arith.cmpi slt, %123, %126 : vector<256x1xi32>
    %c0_i32_71 = arith.constant 0 : i32
    %128 = arith.cmpi slt, %121, %c0_i32_71 : i32
    %129 = vector.broadcast %128 : i1 to vector<256x1xi1>
    %130 = vector.broadcast %129 : vector<256x1xi1> to vector<256x1xi1>
    %131 = arith.xori %127, %130 : vector<256x1xi1>
    %132 = arith.andi %131, %125 : vector<256x1xi1>
    %133 = vector.broadcast %121 : i32 to vector<256x1xi32>
    %134 = arith.addi %123, %133 : vector<256x1xi32>
    %135 = arith.select %132, %134, %123 : vector<256x1xi1>, vector<256x1xi32>
    %c16_i32_72 = arith.constant 16 : i32
    %c0_i32_73 = arith.constant 0 : i32
    %136 = arith.cmpi eq, %c16_i32_72, %c0_i32_73 : i32
    %c1_i32_74 = arith.constant 1 : i32
    %137 = arith.select %136, %c1_i32_74, %c16_i32_72 : i32
    %138 = vector.broadcast %137 : i32 to vector<256x1xi32>
    %139 = arith.remsi %135, %138 : vector<256x1xi32>
    %c0_i32_75 = arith.constant 0 : i32
    %140 = vector.broadcast %c0_i32_75 : i32 to vector<256x1xi32>
    %141 = arith.cmpi ne, %139, %140 : vector<256x1xi32>
    %c0_i32_76 = arith.constant 0 : i32
    %142 = vector.broadcast %c0_i32_76 : i32 to vector<256x1xi32>
    %143 = arith.cmpi slt, %139, %142 : vector<256x1xi32>
    %c0_i32_77 = arith.constant 0 : i32
    %144 = arith.cmpi slt, %137, %c0_i32_77 : i32
    %145 = vector.broadcast %144 : i1 to vector<256x1xi1>
    %146 = vector.broadcast %145 : vector<256x1xi1> to vector<256x1xi1>
    %147 = arith.xori %143, %146 : vector<256x1xi1>
    %148 = arith.andi %147, %141 : vector<256x1xi1>
    %149 = vector.broadcast %137 : i32 to vector<256x1xi32>
    %150 = arith.addi %139, %149 : vector<256x1xi32>
    %151 = arith.select %148, %150, %139 : vector<256x1xi1>, vector<256x1xi32>
    %c1_i32_78 = arith.constant 1 : i32
    %152 = vector.broadcast %c1_i32_78 : i32 to vector<256x1xi32>
    %153 = arith.cmpi sge, %151, %152 : vector<256x1xi32>
    %c14_i32_79 = arith.constant 14 : i32
    %154 = vector.broadcast %c14_i32_79 : i32 to vector<256x1xi32>
    %155 = arith.cmpi sle, %151, %154 : vector<256x1xi32>
    %c16_i32_80 = arith.constant 16 : i32
    %156 = vector.broadcast %c16_i32_80 : i32 to vector<256x1xi32>
    %157 = arith.cmpi sge, %135, %156 : vector<256x1xi32>
    %c240_i32_81 = arith.constant 240 : i32
    %158 = vector.broadcast %c240_i32_81 : i32 to vector<256x1xi32>
    %159 = arith.cmpi slt, %135, %158 : vector<256x1xi32>
    %c7_82 = arith.constant 7 : index
    %c0_83 = arith.constant 0 : index
    %160 = vector.load %arg17[%c7_82, %c0_83] : memref<304x8xf32, #tpu.memory_space<vmem>>, vector<256x8xf32>
    %161 = arith.andi %157, %153 : vector<256x1xi1>
    %cst_84 = arith.constant 0.000000e+00 : f32
    %162 = vector.shape_cast %161 : vector<256x1xi1> to vector<256x1xi1>
    %163 = vector.broadcast %162 : vector<256x1xi1> to vector<256x8xi1>
    %164 = vector.broadcast %cst_84 : f32 to vector<256x8xf32>
    %165 = arith.select %163, %160, %164 : vector<256x8xi1>, vector<256x8xf32>
    %c0_85 = arith.constant 0 : index
    %c0_86 = arith.constant 0 : index
    %166 = vector.load %arg20[%c0_85, %c0_86] : memref<256x72xf32, #tpu.memory_space<vmem>>, vector<256x8xf32>
    tpu.vector_store %arg20[%c0_85, %c0_86], %165 {strides = array<i32>} : memref<256x72xf32, #tpu.memory_space<vmem>>, vector<256x8xf32>,
    %c8_87 = arith.constant 8 : index
    %c0_88 = arith.constant 0 : index
    %167 = vector.load %arg17[%c8_87, %c0_88] : memref<304x8xf32, #tpu.memory_space<vmem>>, vector<256x8xf32>
    %cst_89 = arith.constant 0.000000e+00 : f32
    %168 = vector.shape_cast %157 : vector<256x1xi1> to vector<256x1xi1>
    %169 = vector.broadcast %168 : vector<256x1xi1> to vector<256x8xi1>
    %170 = vector.broadcast %cst_89 : f32 to vector<256x8xf32>
    %171 = arith.select %169, %167, %170 : vector<256x8xi1>, vector<256x8xf32>
    %c0_90 = arith.constant 0 : index
    %c8_91 = arith.constant 8 : index
    %172 = vector.load %arg20[%c0_90, %c8_91] : memref<256x72xf32, #tpu.memory_space<vmem>>, vector<256x8xf32>
    tpu.vector_store %arg20[%c0_90, %c8_91], %171 {strides = array<i32>} : memref<256x72xf32, #tpu.memory_space<vmem>>, vector<256x8xf32>,
    %c9_92 = arith.constant 9 : index
    %c0_93 = arith.constant 0 : index
    %173 = vector.load %arg17[%c9_92, %c0_93] : memref<304x8xf32, #tpu.memory_space<vmem>>, vector<256x8xf32>
    %174 = arith.andi %157, %155 : vector<256x1xi1>
    %cst_94 = arith.constant 0.000000e+00 : f32
    %175 = vector.shape_cast %174 : vector<256x1xi1> to vector<256x1xi1>
    %176 = vector.broadcast %175 : vector<256x1xi1> to vector<256x8xi1>
    %177 = vector.broadcast %cst_94 : f32 to vector<256x8xf32>
    %178 = arith.select %176, %173, %177 : vector<256x8xi1>, vector<256x8xf32>
    %c0_95 = arith.constant 0 : index
    %c16_96 = arith.constant 16 : index
    %179 = vector.load %arg20[%c0_95, %c16_96] : memref<256x72xf32, #tpu.memory_space<vmem>>, vector<256x8xf32>
    tpu.vector_store %arg20[%c0_95, %c16_96], %178 {strides = array<i32>} : memref<256x72xf32, #tpu.memory_space<vmem>>, vector<256x8xf32>,
    %c23_97 = arith.constant 23 : index
    %c0_98 = arith.constant 0 : index
    %180 = vector.load %arg17[%c23_97, %c0_98] : memref<304x8xf32, #tpu.memory_space<vmem>>, vector<256x8xf32>
    %cst_99 = arith.constant 0.000000e+00 : f32
    %181 = vector.shape_cast %153 : vector<256x1xi1> to vector<256x1xi1>
    %182 = vector.broadcast %181 : vector<256x1xi1> to vector<256x8xi1>
    %183 = vector.broadcast %cst_99 : f32 to vector<256x8xf32>
    %184 = arith.select %182, %180, %183 : vector<256x8xi1>, vector<256x8xf32>
    %c0_100 = arith.constant 0 : index
    %c24_101 = arith.constant 24 : index
    %185 = vector.load %arg20[%c0_100, %c24_101] : memref<256x72xf32, #tpu.memory_space<vmem>>, vector<256x8xf32>
    tpu.vector_store %arg20[%c0_100, %c24_101], %184 {strides = array<i32>} : memref<256x72xf32, #tpu.memory_space<vmem>>, vector<256x8xf32>,
    %c24_102 = arith.constant 24 : index
    %c0_103 = arith.constant 0 : index
    %186 = vector.load %arg17[%c24_102, %c0_103] : memref<304x8xf32, #tpu.memory_space<vmem>>, vector<256x8xf32>
    %c0_104 = arith.constant 0 : index
    %c32_105 = arith.constant 32 : index
    %187 = vector.load %arg20[%c0_104, %c32_105] : memref<256x72xf32, #tpu.memory_space<vmem>>, vector<256x8xf32>
    tpu.vector_store %arg20[%c0_104, %c32_105], %186 {strides = array<i32>} : memref<256x72xf32, #tpu.memory_space<vmem>>, vector<256x8xf32>,
    %c25_106 = arith.constant 25 : index
    %c0_107 = arith.constant 0 : index
    %188 = vector.load %arg17[%c25_106, %c0_107] : memref<304x8xf32, #tpu.memory_space<vmem>>, vector<256x8xf32>
    %cst_108 = arith.constant 0.000000e+00 : f32
    %189 = vector.shape_cast %155 : vector<256x1xi1> to vector<256x1xi1>
    %190 = vector.broadcast %189 : vector<256x1xi1> to vector<256x8xi1>
    %191 = vector.broadcast %cst_108 : f32 to vector<256x8xf32>
    %192 = arith.select %190, %188, %191 : vector<256x8xi1>, vector<256x8xf32>
    %c0_109 = arith.constant 0 : index
    %c40_110 = arith.constant 40 : index
    %193 = vector.load %arg20[%c0_109, %c40_110] : memref<256x72xf32, #tpu.memory_space<vmem>>, vector<256x8xf32>
    tpu.vector_store %arg20[%c0_109, %c40_110], %192 {strides = array<i32>} : memref<256x72xf32, #tpu.memory_space<vmem>>, vector<256x8xf32>,
    %c39_111 = arith.constant 39 : index
    %c0_112 = arith.constant 0 : index
    %194 = vector.load %arg17[%c39_111, %c0_112] : memref<304x8xf32, #tpu.memory_space<vmem>>, vector<256x8xf32>
    %195 = arith.andi %159, %153 : vector<256x1xi1>
    %cst_113 = arith.constant 0.000000e+00 : f32
    %196 = vector.shape_cast %195 : vector<256x1xi1> to vector<256x1xi1>
    %197 = vector.broadcast %196 : vector<256x1xi1> to vector<256x8xi1>
    %198 = vector.broadcast %cst_113 : f32 to vector<256x8xf32>
    %199 = arith.select %197, %194, %198 : vector<256x8xi1>, vector<256x8xf32>
    %c0_114 = arith.constant 0 : index
    %c48 = arith.constant 48 : index
    %200 = vector.load %arg20[%c0_114, %c48] : memref<256x72xf32, #tpu.memory_space<vmem>>, vector<256x8xf32>
    tpu.vector_store %arg20[%c0_114, %c48], %199 {strides = array<i32>} : memref<256x72xf32, #tpu.memory_space<vmem>>, vector<256x8xf32>,
    %c40_115 = arith.constant 40 : index
    %c0_116 = arith.constant 0 : index
    %201 = vector.load %arg17[%c40_115, %c0_116] : memref<304x8xf32, #tpu.memory_space<vmem>>, vector<256x8xf32>
    %cst_117 = arith.constant 0.000000e+00 : f32
    %202 = vector.shape_cast %159 : vector<256x1xi1> to vector<256x1xi1>
    %203 = vector.broadcast %202 : vector<256x1xi1> to vector<256x8xi1>
    %204 = vector.broadcast %cst_117 : f32 to vector<256x8xf32>
    %205 = arith.select %203, %201, %204 : vector<256x8xi1>, vector<256x8xf32>
    %c0_118 = arith.constant 0 : index
    %c56 = arith.constant 56 : index
    %206 = vector.load %arg20[%c0_118, %c56] : memref<256x72xf32, #tpu.memory_space<vmem>>, vector<256x8xf32>
    tpu.vector_store %arg20[%c0_118, %c56], %205 {strides = array<i32>} : memref<256x72xf32, #tpu.memory_space<vmem>>, vector<256x8xf32>,
    %c41_119 = arith.constant 41 : index
    %c0_120 = arith.constant 0 : index
    %207 = vector.load %arg17[%c41_119, %c0_120] : memref<304x8xf32, #tpu.memory_space<vmem>>, vector<256x8xf32>
    %208 = arith.andi %159, %155 : vector<256x1xi1>
    %cst_121 = arith.constant 0.000000e+00 : f32
    %209 = vector.shape_cast %208 : vector<256x1xi1> to vector<256x1xi1>
    %210 = vector.broadcast %209 : vector<256x1xi1> to vector<256x8xi1>
    %211 = vector.broadcast %cst_121 : f32 to vector<256x8xf32>
    %212 = arith.select %210, %207, %211 : vector<256x8xi1>, vector<256x8xf32>
    %c0_122 = arith.constant 0 : index
    %c64 = arith.constant 64 : index
    %213 = vector.load %arg20[%c0_122, %c64] : memref<256x72xf32, #tpu.memory_space<vmem>>, vector<256x8xf32>
    tpu.vector_store %arg20[%c0_122, %c64], %212 {strides = array<i32>} : memref<256x72xf32, #tpu.memory_space<vmem>>, vector<256x8xf32>,
    %c0_123 = arith.constant 0 : index
    %c0_124 = arith.constant 0 : index
    %214 = vector.load %arg11[%c0_123, %c0_124] : memref<64x256xf32, #tpu.memory_space<vmem>>, vector<64x256xf32>
    %c0_125 = arith.constant 0 : index
    %c0_126 = arith.constant 0 : index
    %215 = vector.load %arg20[%c0_125, %c0_126] : memref<256x72xf32, #tpu.memory_space<vmem>>, vector<256x72xf32>
    %cst_127 = arith.constant dense<0.000000e+00> : vector<64x72xf32>
    %216 = tpu.matmul %214, %215, %cst_127 {dimension_numbers = #tpu.dot_dimension_numbers<[1], [0], [0], [1], [0, 0, 1, 1], [], []>} : vector<64x256xf32>, vector<256x72xf32>, vector<64x72xf32> -> vector<64x72xf32>
    %c0_128 = arith.constant 0 : index
    %c0_129 = arith.constant 0 : index
    %217 = vector.load %arg22[%c0_128, %c0_129] : memref<64x72xf32, #tpu.memory_space<vmem>>, vector<64x72xf32>
    tpu.vector_store %arg22[%c0_128, %c0_129], %216 {strides = array<i32>} : memref<64x72xf32, #tpu.memory_space<vmem>>, vector<64x72xf32>,
    %c0_130 = arith.constant 0 : index
    %c0_131 = arith.constant 0 : index
    %218 = vector.load %arg22[%c0_130, %c0_131] : memref<64x72xf32, #tpu.memory_space<vmem>>, vector<64x72xf32>
    %c0_132 = arith.constant 0 : index
    %c0_133 = arith.constant 0 : index
    %219 = vector.load %arg3[%c0_132, %c0_133] : memref<72x128xf32, #tpu.memory_space<vmem>>, vector<72x128xf32>
    %cst_134 = arith.constant dense<0.000000e+00> : vector<64x128xf32>
    %220 = tpu.matmul %218, %219, %cst_134 {dimension_numbers = #tpu.dot_dimension_numbers<[1], [0], [0], [1], [0, 0, 1, 1], [], []>} : vector<64x72xf32>, vector<72x128xf32>, vector<64x128xf32> -> vector<64x128xf32>
    %c0_135 = arith.constant 0 : index
    %c0_136 = arith.constant 0 : index
    %221 = vector.load %arg6[%c0_135, %c0_136] : memref<1x128xf32, #tpu.memory_space<vmem>>, vector<1x128xf32>
    %222 = vector.broadcast %221 : vector<1x128xf32> to vector<64x128xf32>
    %223 = arith.mulf %220, %222 : vector<64x128xf32>
    %c0_137 = arith.constant 0 : index
    %c0_138 = arith.constant 0 : index
    %224 = vector.load %arg9[%c0_137, %c0_138] : memref<1x128xf32, #tpu.memory_space<vmem>>, vector<1x128xf32>
    %225 = vector.broadcast %224 : vector<1x128xf32> to vector<64x128xf32>
    %226 = arith.addf %223, %225 : vector<64x128xf32>
    %cst_139 = arith.constant 0.000000e+00 : f32
    %227 = vector.broadcast %cst_139 : f32 to vector<64x128xf32>
    %228 = arith.maximumf %226, %227 : vector<64x128xf32>
    %c0_140 = arith.constant 0 : index
    %c0_141 = arith.constant 0 : index
    %229 = vector.load %arg14[%c0_140, %c0_141] : memref<64x128xf32, #tpu.memory_space<vmem>>, vector<64x128xf32>
    tpu.vector_store %arg14[%c0_140, %c0_141], %228 {strides = array<i32>} : memref<64x128xf32, #tpu.memory_space<vmem>>, vector<64x128xf32>,
    %230 = vector.extract_strided_slice %228 {offsets = [0, 0], sizes = [64, 16], strides = [1, 1]} : vector<64x128xf32> to vector<64x16xf32>
    %cst_142 = arith.constant 0.000000e+00 : f32
    %231 = vector.broadcast %cst_142 : f32 to vector<16x16xf32>
    %c0_143 = arith.constant 0 : index
    %c0_144 = arith.constant 0 : index
    %232 = vector.load %arg18[%c0_143, %c0_144] : memref<96x16xf32, #tpu.memory_space<vmem>>, vector<16x16xf32>
    tpu.vector_store %arg18[%c0_143, %c0_144], %231 {strides = array<i32>} : memref<96x16xf32, #tpu.memory_space<vmem>>, vector<16x16xf32>,
    %cst_145 = arith.constant 0.000000e+00 : f32
    %233 = vector.broadcast %cst_145 : f32 to vector<16x16xf32>
    %c80 = arith.constant 80 : index
    %c0_146 = arith.constant 0 : index
    %234 = vector.load %arg18[%c80, %c0_146] : memref<96x16xf32, #tpu.memory_space<vmem>>, vector<16x16xf32>
    tpu.vector_store %arg18[%c80, %c0_146], %233 {strides = array<i32>} : memref<96x16xf32, #tpu.memory_space<vmem>>, vector<16x16xf32>,
    %c16_147 = arith.constant 16 : index
    %c0_148 = arith.constant 0 : index
    %235 = vector.load %arg18[%c16_147, %c0_148] : memref<96x16xf32, #tpu.memory_space<vmem>>, vector<64x16xf32>
    tpu.vector_store %arg18[%c16_147, %c0_148], %230 {strides = array<i32>} : memref<96x16xf32, #tpu.memory_space<vmem>>, vector<64x16xf32>,
    %236 = tpu.iota {dimensions = array<i32: 0>} : vector<64x1xi32>
    %c64_i32 = arith.constant 64 : i32
    %c0_i32_149 = arith.constant 0 : i32
    %237 = arith.cmpi eq, %c64_i32, %c0_i32_149 : i32
    %c1_i32_150 = arith.constant 1 : i32
    %238 = arith.select %237, %c1_i32_150, %c64_i32 : i32
    %239 = vector.broadcast %238 : i32 to vector<64x1xi32>
    %240 = arith.remsi %236, %239 : vector<64x1xi32>
    %c0_i32_151 = arith.constant 0 : i32
    %241 = vector.broadcast %c0_i32_151 : i32 to vector<64x1xi32>
    %242 = arith.cmpi ne, %240, %241 : vector<64x1xi32>
    %c0_i32_152 = arith.constant 0 : i32
    %243 = vector.broadcast %c0_i32_152 : i32 to vector<64x1xi32>
    %244 = arith.cmpi slt, %240, %243 : vector<64x1xi32>
    %c0_i32_153 = arith.constant 0 : i32
    %245 = arith.cmpi slt, %238, %c0_i32_153 : i32
    %246 = vector.broadcast %245 : i1 to vector<64x1xi1>
    %247 = vector.broadcast %246 : vector<64x1xi1> to vector<64x1xi1>
    %248 = arith.xori %244, %247 : vector<64x1xi1>
    %249 = arith.andi %248, %242 : vector<64x1xi1>
    %250 = vector.broadcast %238 : i32 to vector<64x1xi32>
    %251 = arith.addi %240, %250 : vector<64x1xi32>
    %252 = arith.select %249, %251, %240 : vector<64x1xi1>, vector<64x1xi32>
    %c8_i32 = arith.constant 8 : i32
    %c0_i32_154 = arith.constant 0 : i32
    %253 = arith.cmpi eq, %c8_i32, %c0_i32_154 : i32
    %c1_i32_155 = arith.constant 1 : i32
    %254 = arith.select %253, %c1_i32_155, %c8_i32 : i32
    %255 = vector.broadcast %254 : i32 to vector<64x1xi32>
    %256 = arith.remsi %252, %255 : vector<64x1xi32>
    %c0_i32_156 = arith.constant 0 : i32
    %257 = vector.broadcast %c0_i32_156 : i32 to vector<64x1xi32>
    %258 = arith.cmpi ne, %256, %257 : vector<64x1xi32>
    %c0_i32_157 = arith.constant 0 : i32
    %259 = vector.broadcast %c0_i32_157 : i32 to vector<64x1xi32>
    %260 = arith.cmpi slt, %256, %259 : vector<64x1xi32>
    %c0_i32_158 = arith.constant 0 : i32
    %261 = arith.cmpi slt, %254, %c0_i32_158 : i32
    %262 = vector.broadcast %261 : i1 to vector<64x1xi1>
    %263 = vector.broadcast %262 : vector<64x1xi1> to vector<64x1xi1>
    %264 = arith.xori %260, %263 : vector<64x1xi1>
    %265 = arith.andi %264, %258 : vector<64x1xi1>
    %266 = vector.broadcast %254 : i32 to vector<64x1xi32>
    %267 = arith.addi %256, %266 : vector<64x1xi32>
    %268 = arith.select %265, %267, %256 : vector<64x1xi1>, vector<64x1xi32>
    %c1_i32_159 = arith.constant 1 : i32
    %269 = vector.broadcast %c1_i32_159 : i32 to vector<64x1xi32>
    %270 = arith.cmpi sge, %268, %269 : vector<64x1xi32>
    %c6_i32 = arith.constant 6 : i32
    %271 = vector.broadcast %c6_i32 : i32 to vector<64x1xi32>
    %272 = arith.cmpi sle, %268, %271 : vector<64x1xi32>
    %c8_i32_160 = arith.constant 8 : i32
    %273 = vector.broadcast %c8_i32_160 : i32 to vector<64x1xi32>
    %274 = arith.cmpi sge, %252, %273 : vector<64x1xi32>
    %c56_i32 = arith.constant 56 : i32
    %275 = vector.broadcast %c56_i32 : i32 to vector<64x1xi32>
    %276 = arith.cmpi slt, %252, %275 : vector<64x1xi32>
    %c7_161 = arith.constant 7 : index
    %c0_162 = arith.constant 0 : index
    %277 = vector.load %arg18[%c7_161, %c0_162] : memref<96x16xf32, #tpu.memory_space<vmem>>, vector<64x16xf32>
    %278 = arith.andi %274, %270 : vector<64x1xi1>
    %cst_163 = arith.constant 0.000000e+00 : f32
    %279 = vector.shape_cast %278 : vector<64x1xi1> to vector<64x1xi1>
    %280 = vector.broadcast %279 : vector<64x1xi1> to vector<64x16xi1>
    %281 = vector.broadcast %cst_163 : f32 to vector<64x16xf32>
    %282 = arith.select %280, %277, %281 : vector<64x16xi1>, vector<64x16xf32>
    %c0_164 = arith.constant 0 : index
    %c0_165 = arith.constant 0 : index
    %283 = vector.load %arg21[%c0_164, %c0_165] : memref<64x144xf32, #tpu.memory_space<vmem>>, vector<64x16xf32>
    tpu.vector_store %arg21[%c0_164, %c0_165], %282 {strides = array<i32>} : memref<64x144xf32, #tpu.memory_space<vmem>>, vector<64x16xf32>,
    %c8_166 = arith.constant 8 : index
    %c0_167 = arith.constant 0 : index
    %284 = vector.load %arg18[%c8_166, %c0_167] : memref<96x16xf32, #tpu.memory_space<vmem>>, vector<64x16xf32>
    %cst_168 = arith.constant 0.000000e+00 : f32
    %285 = vector.shape_cast %274 : vector<64x1xi1> to vector<64x1xi1>
    %286 = vector.broadcast %285 : vector<64x1xi1> to vector<64x16xi1>
    %287 = vector.broadcast %cst_168 : f32 to vector<64x16xf32>
    %288 = arith.select %286, %284, %287 : vector<64x16xi1>, vector<64x16xf32>
    %c0_169 = arith.constant 0 : index
    %c16_170 = arith.constant 16 : index
    %289 = vector.load %arg21[%c0_169, %c16_170] : memref<64x144xf32, #tpu.memory_space<vmem>>, vector<64x16xf32>
    tpu.vector_store %arg21[%c0_169, %c16_170], %288 {strides = array<i32>} : memref<64x144xf32, #tpu.memory_space<vmem>>, vector<64x16xf32>,
    %c9_171 = arith.constant 9 : index
    %c0_172 = arith.constant 0 : index
    %290 = vector.load %arg18[%c9_171, %c0_172] : memref<96x16xf32, #tpu.memory_space<vmem>>, vector<64x16xf32>
    %291 = arith.andi %274, %272 : vector<64x1xi1>
    %cst_173 = arith.constant 0.000000e+00 : f32
    %292 = vector.shape_cast %291 : vector<64x1xi1> to vector<64x1xi1>
    %293 = vector.broadcast %292 : vector<64x1xi1> to vector<64x16xi1>
    %294 = vector.broadcast %cst_173 : f32 to vector<64x16xf32>
    %295 = arith.select %293, %290, %294 : vector<64x16xi1>, vector<64x16xf32>
    %c0_174 = arith.constant 0 : index
    %c32_175 = arith.constant 32 : index
    %296 = vector.load %arg21[%c0_174, %c32_175] : memref<64x144xf32, #tpu.memory_space<vmem>>, vector<64x16xf32>
    tpu.vector_store %arg21[%c0_174, %c32_175], %295 {strides = array<i32>} : memref<64x144xf32, #tpu.memory_space<vmem>>, vector<64x16xf32>,
    %c15 = arith.constant 15 : index
    %c0_176 = arith.constant 0 : index
    %297 = vector.load %arg18[%c15, %c0_176] : memref<96x16xf32, #tpu.memory_space<vmem>>, vector<64x16xf32>
    %cst_177 = arith.constant 0.000000e+00 : f32
    %298 = vector.shape_cast %270 : vector<64x1xi1> to vector<64x1xi1>
    %299 = vector.broadcast %298 : vector<64x1xi1> to vector<64x16xi1>
    %300 = vector.broadcast %cst_177 : f32 to vector<64x16xf32>
    %301 = arith.select %299, %297, %300 : vector<64x16xi1>, vector<64x16xf32>
    %c0_178 = arith.constant 0 : index
    %c48_179 = arith.constant 48 : index
    %302 = vector.load %arg21[%c0_178, %c48_179] : memref<64x144xf32, #tpu.memory_space<vmem>>, vector<64x16xf32>
    tpu.vector_store %arg21[%c0_178, %c48_179], %301 {strides = array<i32>} : memref<64x144xf32, #tpu.memory_space<vmem>>, vector<64x16xf32>,
    %c16_180 = arith.constant 16 : index
    %c0_181 = arith.constant 0 : index
    %303 = vector.load %arg18[%c16_180, %c0_181] : memref<96x16xf32, #tpu.memory_space<vmem>>, vector<64x16xf32>
    %c0_182 = arith.constant 0 : index
    %c64_183 = arith.constant 64 : index
    %304 = vector.load %arg21[%c0_182, %c64_183] : memref<64x144xf32, #tpu.memory_space<vmem>>, vector<64x16xf32>
    tpu.vector_store %arg21[%c0_182, %c64_183], %303 {strides = array<i32>} : memref<64x144xf32, #tpu.memory_space<vmem>>, vector<64x16xf32>,
    %c17 = arith.constant 17 : index
    %c0_184 = arith.constant 0 : index
    %305 = vector.load %arg18[%c17, %c0_184] : memref<96x16xf32, #tpu.memory_space<vmem>>, vector<64x16xf32>
    %cst_185 = arith.constant 0.000000e+00 : f32
    %306 = vector.shape_cast %272 : vector<64x1xi1> to vector<64x1xi1>
    %307 = vector.broadcast %306 : vector<64x1xi1> to vector<64x16xi1>
    %308 = vector.broadcast %cst_185 : f32 to vector<64x16xf32>
    %309 = arith.select %307, %305, %308 : vector<64x16xi1>, vector<64x16xf32>
    %c0_186 = arith.constant 0 : index
    %c80_187 = arith.constant 80 : index
    %310 = vector.load %arg21[%c0_186, %c80_187] : memref<64x144xf32, #tpu.memory_space<vmem>>, vector<64x16xf32>
    tpu.vector_store %arg21[%c0_186, %c80_187], %309 {strides = array<i32>} : memref<64x144xf32, #tpu.memory_space<vmem>>, vector<64x16xf32>,
    %c23_188 = arith.constant 23 : index
    %c0_189 = arith.constant 0 : index
    %311 = vector.load %arg18[%c23_188, %c0_189] : memref<96x16xf32, #tpu.memory_space<vmem>>, vector<64x16xf32>
    %312 = arith.andi %276, %270 : vector<64x1xi1>
    %cst_190 = arith.constant 0.000000e+00 : f32
    %313 = vector.shape_cast %312 : vector<64x1xi1> to vector<64x1xi1>
    %314 = vector.broadcast %313 : vector<64x1xi1> to vector<64x16xi1>
    %315 = vector.broadcast %cst_190 : f32 to vector<64x16xf32>
    %316 = arith.select %314, %311, %315 : vector<64x16xi1>, vector<64x16xf32>
    %c0_191 = arith.constant 0 : index
    %c96 = arith.constant 96 : index
    %317 = vector.load %arg21[%c0_191, %c96] : memref<64x144xf32, #tpu.memory_space<vmem>>, vector<64x16xf32>
    tpu.vector_store %arg21[%c0_191, %c96], %316 {strides = array<i32>} : memref<64x144xf32, #tpu.memory_space<vmem>>, vector<64x16xf32>,
    %c24_192 = arith.constant 24 : index
    %c0_193 = arith.constant 0 : index
    %318 = vector.load %arg18[%c24_192, %c0_193] : memref<96x16xf32, #tpu.memory_space<vmem>>, vector<64x16xf32>
    %cst_194 = arith.constant 0.000000e+00 : f32
    %319 = vector.shape_cast %276 : vector<64x1xi1> to vector<64x1xi1>
    %320 = vector.broadcast %319 : vector<64x1xi1> to vector<64x16xi1>
    %321 = vector.broadcast %cst_194 : f32 to vector<64x16xf32>
    %322 = arith.select %320, %318, %321 : vector<64x16xi1>, vector<64x16xf32>
    %c0_195 = arith.constant 0 : index
    %c112 = arith.constant 112 : index
    %323 = vector.load %arg21[%c0_195, %c112] : memref<64x144xf32, #tpu.memory_space<vmem>>, vector<64x16xf32>
    tpu.vector_store %arg21[%c0_195, %c112], %322 {strides = array<i32>} : memref<64x144xf32, #tpu.memory_space<vmem>>, vector<64x16xf32>,
    %c25_196 = arith.constant 25 : index
    %c0_197 = arith.constant 0 : index
    %324 = vector.load %arg18[%c25_196, %c0_197] : memref<96x16xf32, #tpu.memory_space<vmem>>, vector<64x16xf32>
    %325 = arith.andi %276, %272 : vector<64x1xi1>
    %cst_198 = arith.constant 0.000000e+00 : f32
    %326 = vector.shape_cast %325 : vector<64x1xi1> to vector<64x1xi1>
    %327 = vector.broadcast %326 : vector<64x1xi1> to vector<64x16xi1>
    %328 = vector.broadcast %cst_198 : f32 to vector<64x16xf32>
    %329 = arith.select %327, %324, %328 : vector<64x16xi1>, vector<64x16xf32>
    %c0_199 = arith.constant 0 : index
    %c128 = arith.constant 128 : index
    %330 = vector.load %arg21[%c0_199, %c128] : memref<64x144xf32, #tpu.memory_space<vmem>>, vector<64x16xf32>
    tpu.vector_store %arg21[%c0_199, %c128], %329 {strides = array<i32>} : memref<64x144xf32, #tpu.memory_space<vmem>>, vector<64x16xf32>,
    %c0_200 = arith.constant 0 : index
    %c0_201 = arith.constant 0 : index
    %331 = vector.load %arg12[%c0_200, %c0_201] : memref<16x64xf32, #tpu.memory_space<vmem>>, vector<16x64xf32>
    %c0_202 = arith.constant 0 : index
    %c0_203 = arith.constant 0 : index
    %332 = vector.load %arg21[%c0_202, %c0_203] : memref<64x144xf32, #tpu.memory_space<vmem>>, vector<64x144xf32>
    %cst_204 = arith.constant dense<0.000000e+00> : vector<16x144xf32>
    %333 = tpu.matmul %331, %332, %cst_204 {dimension_numbers = #tpu.dot_dimension_numbers<[1], [0], [0], [1], [0, 0, 1, 1], [], []>} : vector<16x64xf32>, vector<64x144xf32>, vector<16x144xf32> -> vector<16x144xf32>
    %c0_205 = arith.constant 0 : index
    %c0_206 = arith.constant 0 : index
    %334 = vector.load %arg23[%c0_205, %c0_206] : memref<16x144xf32, #tpu.memory_space<vmem>>, vector<16x144xf32>
    tpu.vector_store %arg23[%c0_205, %c0_206], %333 {strides = array<i32>} : memref<16x144xf32, #tpu.memory_space<vmem>>, vector<16x144xf32>,
    %c0_207 = arith.constant 0 : index
    %c0_208 = arith.constant 0 : index
    %335 = vector.load %arg23[%c0_207, %c0_208] : memref<16x144xf32, #tpu.memory_space<vmem>>, vector<16x144xf32>
    %c0_209 = arith.constant 0 : index
    %c0_210 = arith.constant 0 : index
    %336 = vector.load %arg4[%c0_209, %c0_210] : memref<144x128xf32, #tpu.memory_space<vmem>>, vector<144x128xf32>
    %cst_211 = arith.constant dense<0.000000e+00> : vector<16x128xf32>
    %337 = tpu.matmul %335, %336, %cst_211 {dimension_numbers = #tpu.dot_dimension_numbers<[1], [0], [0], [1], [0, 0, 1, 1], [], []>} : vector<16x144xf32>, vector<144x128xf32>, vector<16x128xf32> -> vector<16x128xf32>
    %c0_212 = arith.constant 0 : index
    %c0_213 = arith.constant 0 : index
    %338 = vector.load %arg7[%c0_212, %c0_213] : memref<1x128xf32, #tpu.memory_space<vmem>>, vector<1x128xf32>
    %339 = vector.broadcast %338 : vector<1x128xf32> to vector<16x128xf32>
    %340 = arith.mulf %337, %339 : vector<16x128xf32>
    %c0_214 = arith.constant 0 : index
    %c0_215 = arith.constant 0 : index
    %341 = vector.load %arg10[%c0_214, %c0_215] : memref<1x128xf32, #tpu.memory_space<vmem>>, vector<1x128xf32>
    %342 = vector.broadcast %341 : vector<1x128xf32> to vector<16x128xf32>
    %343 = arith.addf %340, %342 : vector<16x128xf32>
    %cst_216 = arith.constant 0.000000e+00 : f32
    %344 = vector.broadcast %cst_216 : f32 to vector<16x128xf32>
    %345 = arith.maximumf %343, %344 : vector<16x128xf32>
    %c0_217 = arith.constant 0 : index
    %c0_218 = arith.constant 0 : index
    %346 = vector.load %arg15[%c0_217, %c0_218] : memref<16x128xf32, #tpu.memory_space<vmem>>, vector<16x128xf32>
    tpu.vector_store %arg15[%c0_217, %c0_218], %345 {strides = array<i32>} : memref<16x128xf32, #tpu.memory_space<vmem>>, vector<16x128xf32>,
    return
  }
  func.func @transform_0(%arg0: i32) -> (i32, i32) {
    %c0_i32 = arith.constant 0 : i32
    %c0_i32_0 = arith.constant 0 : i32
    return %arg0, %c0_i32 : i32, i32
  }
  func.func @transform_1(%arg0: i32) -> (i32, i32) {
    %c0_i32 = arith.constant 0 : i32
    %c0_i32_0 = arith.constant 0 : i32
    %c0_i32_1 = arith.constant 0 : i32
    return %c0_i32, %c0_i32_0 : i32, i32
  }
  func.func @transform_2(%arg0: i32) -> (i32, i32) {
    %c0_i32 = arith.constant 0 : i32
    %c0_i32_0 = arith.constant 0 : i32
    %c0_i32_1 = arith.constant 0 : i32
    return %c0_i32, %c0_i32_0 : i32, i32
  }
  func.func @transform_3(%arg0: i32) -> (i32, i32) {
    %c0_i32 = arith.constant 0 : i32
    %c0_i32_0 = arith.constant 0 : i32
    %c0_i32_1 = arith.constant 0 : i32
    return %c0_i32, %c0_i32_0 : i32, i32
  }
  func.func @transform_4(%arg0: i32) -> (i32, i32) {
    %c0_i32 = arith.constant 0 : i32
    %c0_i32_0 = arith.constant 0 : i32
    %c0_i32_1 = arith.constant 0 : i32
    return %c0_i32, %c0_i32_0 : i32, i32
  }
  func.func @transform_5(%arg0: i32) -> (i32, i32) {
    %c0_i32 = arith.constant 0 : i32
    %c0_i32_0 = arith.constant 0 : i32
    %c0_i32_1 = arith.constant 0 : i32
    return %c0_i32, %c0_i32_0 : i32, i32
  }
  func.func @transform_6(%arg0: i32) -> (i32, i32) {
    %c0_i32 = arith.constant 0 : i32
    %c0_i32_0 = arith.constant 0 : i32
    %c0_i32_1 = arith.constant 0 : i32
    return %c0_i32, %c0_i32_0 : i32, i32
  }
  func.func @transform_7(%arg0: i32) -> (i32, i32) {
    %c0_i32 = arith.constant 0 : i32
    %c0_i32_0 = arith.constant 0 : i32
    %c0_i32_1 = arith.constant 0 : i32
    return %c0_i32, %c0_i32_0 : i32, i32
  }
  func.func @transform_8(%arg0: i32) -> (i32, i32) {
    %c0_i32 = arith.constant 0 : i32
    %c0_i32_0 = arith.constant 0 : i32
    %c0_i32_1 = arith.constant 0 : i32
    return %c0_i32, %c0_i32_0 : i32, i32
  }
  func.func @transform_9(%arg0: i32) -> (i32, i32) {
    %c0_i32 = arith.constant 0 : i32
    %c0_i32_0 = arith.constant 0 : i32
    %c0_i32_1 = arith.constant 0 : i32
    return %c0_i32, %c0_i32_0 : i32, i32
  }
  func.func @transform_10(%arg0: i32) -> (i32, i32) {
    %c0_i32 = arith.constant 0 : i32
    %c0_i32_0 = arith.constant 0 : i32
    %c0_i32_1 = arith.constant 0 : i32
    return %c0_i32, %c0_i32_0 : i32, i32
  }
  func.func @transform_11(%arg0: i32) -> (i32, i32) {
    %c0_i32 = arith.constant 0 : i32
    %c0_i32_0 = arith.constant 0 : i32
    %c0_i32_1 = arith.constant 0 : i32
    return %c0_i32, %c0_i32_0 : i32, i32
  }
  func.func @transform_12(%arg0: i32) -> (i32, i32) {
    %c0_i32 = arith.constant 0 : i32
    %c0_i32_0 = arith.constant 0 : i32
    return %arg0, %c0_i32 : i32, i32
  }
  func.func @transform_13(%arg0: i32) -> (i32, i32) {
    %c0_i32 = arith.constant 0 : i32
    %c0_i32_0 = arith.constant 0 : i32
    return %arg0, %c0_i32 : i32, i32
  }
  func.func @transform_14(%arg0: i32) -> (i32, i32) {
    %c0_i32 = arith.constant 0 : i32
    %c0_i32_0 = arith.constant 0 : i32
    return %arg0, %c0_i32 : i32, i32
  }
}

</mosaic_0001>

<llo_original>
// kernel: tpu_custom_call.1
$region0: #{tpu_custom_call.1}
  #allocation0 [shape = 'u32[]', space=smem, size = 0x4, offset = 0x4, fixed_abs, tag = 'smem constant byte address 0x4 - core index']
  #allocation1 [shape = 'u32[144,128]{1,0:T(1,128)}', space=vmem, size = 0x12000, scoped, tag = 'internal scratch']
  #allocation2 [shape = 'f32[304,4]{1,0:T(8,128)}', space=vmem, size = 0x26000, scoped, tag = 'scratch operand']
  #allocation3 [shape = 'f32[304,8]{1,0:T(8,128)}', space=vmem, size = 0x26000, scoped, tag = 'scratch operand']
  #allocation4 [shape = 'f32[96,16]{1,0:T(8,128)}', space=vmem, size = 0xc000, scoped, tag = 'scratch operand']
  #allocation5 [shape = 'f32[256,36]{1,0:T(8,128)}', space=vmem, size = 0x20000, scoped, tag = 'scratch operand']
  #allocation6 [shape = 'f32[256,72]{1,0:T(8,128)}', space=vmem, size = 0x20000, scoped, tag = 'scratch operand']
  #allocation7 [shape = 'f32[64,144]{1,0:T(8,128)}', space=vmem, size = 0x10000, scoped, tag = 'scratch operand']
  #allocation8 [shape = 'f32[64,72]{1,0:T(8,128)}', space=vmem, size = 0x8000, scoped, tag = 'scratch operand']
  #allocation9 [shape = 'f32[16,144]{1,0:T(8,128)}', space=vmem, size = 0x4000, scoped, tag = 'scratch operand']
  %s0 = inlined_call_operand.vmem [shape: f32[512,4], index: 0, kind: input, shape index: {}]
  %s1 = inlined_call_operand.vmem [shape: f32[36,128], index: 1, kind: input, shape index: {}]
  %s2 = inlined_call_operand.vmem [shape: f32[72,128], index: 2, kind: input, shape index: {}]
  %s3 = inlined_call_operand.vmem [shape: f32[144,128], index: 3, kind: input, shape index: {}]
  %s4 = inlined_call_operand.vmem [shape: f32[1,128], index: 4, kind: input, shape index: {}]
  %s5 = inlined_call_operand.vmem [shape: f32[1,128], index: 5, kind: input, shape index: {}]
  %s6 = inlined_call_operand.vmem [shape: f32[1,128], index: 6, kind: input, shape index: {}]
  %s7 = inlined_call_operand.vmem [shape: f32[1,128], index: 7, kind: input, shape index: {}]
  %s8 = inlined_call_operand.vmem [shape: f32[1,128], index: 8, kind: input, shape index: {}]
  %s9 = inlined_call_operand.vmem [shape: f32[1,128], index: 9, kind: input, shape index: {}]
  %s10 = inlined_call_operand.vmem [shape: f32[64,256], index: 10, kind: input, shape index: {}]
  %s11 = inlined_call_operand.vmem [shape: f32[16,64], index: 11, kind: input, shape index: {}]
  %s12 = inlined_call_operand.hbm [shape: f32[512,128], index: 12, kind: output, shape index: {0}]
  %s13 = inlined_call_operand.hbm [shape: f32[128,128], index: 13, kind: output, shape index: {1}]
  %s14 = inlined_call_operand.hbm [shape: f32[32,128], index: 14, kind: output, shape index: {2}]
  %15 = xla_tuple %s12, %s13, %s14
  %s16 = sld [smem:[#allocation0]]
  $region97: #{tpu_custom_call.1} parent=0
    _
  %s18 = ssub.s32 1, %s16
  %s19 = scalar_select 0, %s18, %s16
  $region1: #{tpu_custom_call.1} parent=0
    #allocation10 [shape = 'u8[262144]{0}', space=vmem, size = 0x40000, scoped, tag = 'output window, operand 0']
    #allocation11 [shape = 's32[2]{0}', space=sflag, size = 0x8, scoped, tag = 'scoped memory for tpu_custom_call.1']
    #allocation12 [shape = 'u8[65536]{0}', space=vmem, size = 0x10000, scoped, tag = 'output window, operand 1']
    #allocation13 [shape = 's32[2]{0}', space=sflag, size = 0x8, scoped, tag = 'scoped memory for tpu_custom_call.1']
    #allocation14 [shape = 'u8[16384]{0}', space=vmem, size = 0x4000, scoped, tag = 'output window, operand 2']
    %20 = vsyncpa [#allocation11], 0
    %s21 = scalar_lea.sflag [#allocation11], 1
    %22 = vsyncpa %s21, 0
    %23 = vsyncpa [#allocation13], 0
    %s24 = scalar_lea.sflag [#allocation13], 1
    %25 = vsyncpa %s24, 0
    loop: start=0, step=1, limit=4
    $region2: #{tpu_custom_call.1} parent=1 // loop_pre_header
      _
    $region3: #{tpu_custom_call.1} parent=1 // loop_header
      %s27 = sphi 0, %s31
      %p28 = scmp.ge.s32.totalorder %s27, 4
      %s37 = sphi 0, %s39
      %s40 = sphi 0, %s37
      %s41 = sphi 0, %s40
      %s57 = sphi 0, %s41
      %s61 = sphi 0, %s61
      %s63 = sphi 0, %s61
      %s64 = sphi 0, %s63
      %s78 = sphi 0, %s64
      %s82 = sphi 0, %s82
      %s84 = sphi 0, %s82
      %s85 = sphi 0, %s84
      %s99 = sphi 0, %s85
      %s103 = sphi 0, %s103
      %s105 = sphi 0, %s103
      %s106 = sphi 0, %s105
      %s120 = sphi 0, %s106
      %s124 = sphi 0, %s124
      %s126 = sphi 0, %s124
      %s127 = sphi 0, %s126
      %s141 = sphi 0, %s127
      %s145 = sphi 0, %s145
      %s147 = sphi 0, %s145
      %s148 = sphi 0, %s147
      %s162 = sphi 0, %s148
      %s166 = sphi 0, %s166
      %s168 = sphi 0, %s166
      %s169 = sphi 0, %s168
      %s183 = sphi 0, %s169
      %s187 = sphi 0, %s187
      %s189 = sphi 0, %s187
      %s190 = sphi 0, %s189
      %s204 = sphi 0, %s190
      %s208 = sphi 0, %s208
      %s210 = sphi 0, %s208
      %s211 = sphi 0, %s210
      %s225 = sphi 0, %s211
      %s229 = sphi 0, %s229
      %s231 = sphi 0, %s229
      %s232 = sphi 0, %s231
      %s246 = sphi 0, %s232
      %s250 = sphi 0, %s250
      %s252 = sphi 0, %s250
      %s253 = sphi 0, %s252
      %s267 = sphi 0, %s253
      %s271 = sphi 0, %s271
      %s273 = sphi 0, %s271
      %s274 = sphi 0, %s273
      %s288 = sphi 0, %s274
      %s294 = sphi 0, %s296
      %s297 = sphi 0, %s294
      %s298 = sphi 0, %s297
      %s314 = sphi 0, %s298
      %s320 = sphi 0, %s322
      %s323 = sphi 0, %s320
      %s324 = sphi 0, %s323
      %s340 = sphi 0, %s324
      %s346 = sphi 0, %s348
      %s349 = sphi 0, %s346
      %s350 = sphi 0, %s349
      %s366 = sphi 0, %s350
    $region4: #{tpu_custom_call.1} parent=1 // loop_header_branch
      %30 = sbr.rel (%p28) target = $region8
    $region5: #{tpu_custom_call.1} parent=1 // loop_body
      %s32 = ssub.s32 %s27, 1
      %s33 = ssub.s32 %s27, 2
      %s34 = sadd.s32 %s27, 1
      %s35 = ssub.s32 %s27, %s34
      %p36 = scmp.eq.s32.totalorder %s35, 0
      %s38 = sadd.s32 %s37, 1
      %s39 = scalar_select %p36, %s37, %s38
      %p42 = pneg %p36
      %p43 = scmp.eq.s32.totalorder %s27, 1
      %p44 = por %p42, %p43
      %p45 = scmp.ne.s32.totalorder %s37, %s40
      %p46 = scmp.eq.s32.totalorder %s27, 0
      %p47 = por %p45, %p46
      %p48 = scmp.ne.s32.totalorder %s37, %s40
      %p49 = scmp.eq.s32.totalorder %s32, 1
      %p50 = por %p48, %p49
      %p51 = scmp.ne.s32.totalorder %s40, %s41
      %p52 = scmp.eq.s32.totalorder %s32, 0
      %p53 = por %p51, %p52
      %p54 = scmp.ne.s32.totalorder %s40, %s41
      %p55 = scmp.eq.s32.totalorder %s33, 1
      %p56 = por %p54, %p55
      %p58 = scmp.ne.s32.totalorder %s41, %s57
      %p59 = scmp.eq.s32.totalorder %s33, 0
      %p60 = por %p58, %p59
      %s62 = sadd.s32 %s61, 1
      %p65 = scmp.eq.s32.totalorder %s27, 1
      %p66 = scmp.ne.s32.totalorder %s61, %s63
      %p67 = scmp.eq.s32.totalorder %s27, 0
      %p68 = por %p66, %p67
      %p69 = scmp.ne.s32.totalorder %s61, %s63
      %p70 = scmp.eq.s32.totalorder %s32, 1
      %p71 = por %p69, %p70
      %p72 = scmp.ne.s32.totalorder %s63, %s64
      %p73 = scmp.eq.s32.totalorder %s32, 0
      %p74 = por %p72, %p73
      %p75 = scmp.ne.s32.totalorder %s63, %s64
      %p76 = scmp.eq.s32.totalorder %s33, 1
      %p77 = por %p75, %p76
      %p79 = scmp.ne.s32.totalorder %s64, %s78
      %p80 = scmp.eq.s32.totalorder %s33, 0
      %p81 = por %p79, %p80
      %s83 = sadd.s32 %s82, 1
      %p86 = scmp.eq.s32.totalorder %s27, 1
      %p87 = scmp.ne.s32.totalorder %s82, %s84
      %p88 = scmp.eq.s32.totalorder %s27, 0
      %p89 = por %p87, %p88
      %p90 = scmp.ne.s32.totalorder %s82, %s84
      %p91 = scmp.eq.s32.totalorder %s32, 1
      %p92 = por %p90, %p91
      %p93 = scmp.ne.s32.totalorder %s84, %s85
      %p94 = scmp.eq.s32.totalorder %s32, 0
      %p95 = por %p93, %p94
      %p96 = scmp.ne.s32.totalorder %s84, %s85
      %p97 = scmp.eq.s32.totalorder %s33, 1
      %p98 = por %p96, %p97
      %p100 = scmp.ne.s32.totalorder %s85, %s99
      %p101 = scmp.eq.s32.totalorder %s33, 0
      %p102 = por %p100, %p101
      %s104 = sadd.s32 %s103, 1
      %p107 = scmp.eq.s32.totalorder %s27, 1
      %p108 = scmp.ne.s32.totalorder %s103, %s105
      %p109 = scmp.eq.s32.totalorder %s27, 0
      %p110 = por %p108, %p109
      %p111 = scmp.ne.s32.totalorder %s103, %s105
      %p112 = scmp.eq.s32.totalorder %s32, 1
      %p113 = por %p111, %p112
      %p114 = scmp.ne.s32.totalorder %s105, %s106
      %p115 = scmp.eq.s32.totalorder %s32, 0
      %p116 = por %p114, %p115
      %p117 = scmp.ne.s32.totalorder %s105, %s106
      %p118 = scmp.eq.s32.totalorder %s33, 1
      %p119 = por %p117, %p118
      %p121 = scmp.ne.s32.totalorder %s106, %s120
      %p122 = scmp.eq.s32.totalorder %s33, 0
      %p123 = por %p121, %p122
      %s125 = sadd.s32 %s124, 1
      %p128 = scmp.eq.s32.totalorder %s27, 1
      %p129 = scmp.ne.s32.totalorder %s124, %s126
      %p130 = scmp.eq.s32.totalorder %s27, 0
      %p131 = por %p129, %p130
      %p132 = scmp.ne.s32.totalorder %s124, %s126
      %p133 = scmp.eq.s32.totalorder %s32, 1
      %p134 = por %p132, %p133
      %p135 = scmp.ne.s32.totalorder %s126, %s127
      %p136 = scmp.eq.s32.totalorder %s32, 0
      %p137 = por %p135, %p136
      %p138 = scmp.ne.s32.totalorder %s126, %s127
      %p139 = scmp.eq.s32.totalorder %s33, 1
      %p140 = por %p138, %p139
      %p142 = scmp.ne.s32.totalorder %s127, %s141
      %p143 = scmp.eq.s32.totalorder %s33, 0
      %p144 = por %p142, %p143
      %s146 = sadd.s32 %s145, 1
      %p149 = scmp.eq.s32.totalorder %s27, 1
      %p150 = scmp.ne.s32.totalorder %s145, %s147
      %p151 = scmp.eq.s32.totalorder %s27, 0
      %p152 = por %p150, %p151
      %p153 = scmp.ne.s32.totalorder %s145, %s147
      %p154 = scmp.eq.s32.totalorder %s32, 1
      %p155 = por %p153, %p154
      %p156 = scmp.ne.s32.totalorder %s147, %s148
      %p157 = scmp.eq.s32.totalorder %s32, 0
      %p158 = por %p156, %p157
      %p159 = scmp.ne.s32.totalorder %s147, %s148
      %p160 = scmp.eq.s32.totalorder %s33, 1
      %p161 = por %p159, %p160
      %p163 = scmp.ne.s32.totalorder %s148, %s162
      %p164 = scmp.eq.s32.totalorder %s33, 0
      %p165 = por %p163, %p164
      %s167 = sadd.s32 %s166, 1
      %p170 = scmp.eq.s32.totalorder %s27, 1
      %p171 = scmp.ne.s32.totalorder %s166, %s168
      %p172 = scmp.eq.s32.totalorder %s27, 0
      %p173 = por %p171, %p172
      %p174 = scmp.ne.s32.totalorder %s166, %s168
      %p175 = scmp.eq.s32.totalorder %s32, 1
      %p176 = por %p174, %p175
      %p177 = scmp.ne.s32.totalorder %s168, %s169
      %p178 = scmp.eq.s32.totalorder %s32, 0
      %p179 = por %p177, %p178
      %p180 = scmp.ne.s32.totalorder %s168, %s169
      %p181 = scmp.eq.s32.totalorder %s33, 1
      %p182 = por %p180, %p181
      %p184 = scmp.ne.s32.totalorder %s169, %s183
      %p185 = scmp.eq.s32.totalorder %s33, 0
      %p186 = por %p184, %p185
      %s188 = sadd.s32 %s187, 1
      %p191 = scmp.eq.s32.totalorder %s27, 1
      %p192 = scmp.ne.s32.totalorder %s187, %s189
      %p193 = scmp.eq.s32.totalorder %s27, 0
      %p194 = por %p192, %p193
      %p195 = scmp.ne.s32.totalorder %s187, %s189
      %p196 = scmp.eq.s32.totalorder %s32, 1
      %p197 = por %p195, %p196
      %p198 = scmp.ne.s32.totalorder %s189, %s190
      %p199 = scmp.eq.s32.totalorder %s32, 0
      %p200 = por %p198, %p199
      %p201 = scmp.ne.s32.totalorder %s189, %s190
      %p202 = scmp.eq.s32.totalorder %s33, 1
      %p203 = por %p201, %p202
      %p205 = scmp.ne.s32.totalorder %s190, %s204
      %p206 = scmp.eq.s32.totalorder %s33, 0
      %p207 = por %p205, %p206
      %s209 = sadd.s32 %s208, 1
      %p212 = scmp.eq.s32.totalorder %s27, 1
      %p213 = scmp.ne.s32.totalorder %s208, %s210
      %p214 = scmp.eq.s32.totalorder %s27, 0
      %p215 = por %p213, %p214
      %p216 = scmp.ne.s32.totalorder %s208, %s210
      %p217 = scmp.eq.s32.totalorder %s32, 1
      %p218 = por %p216, %p217
      %p219 = scmp.ne.s32.totalorder %s210, %s211
      %p220 = scmp.eq.s32.totalorder %s32, 0
      %p221 = por %p219, %p220
      %p222 = scmp.ne.s32.totalorder %s210, %s211
      %p223 = scmp.eq.s32.totalorder %s33, 1
      %p224 = por %p222, %p223
      %p226 = scmp.ne.s32.totalorder %s211, %s225
      %p227 = scmp.eq.s32.totalorder %s33, 0
      %p228 = por %p226, %p227
      %s230 = sadd.s32 %s229, 1
      %p233 = scmp.eq.s32.totalorder %s27, 1
      %p234 = scmp.ne.s32.totalorder %s229, %s231
      %p235 = scmp.eq.s32.totalorder %s27, 0
      %p236 = por %p234, %p235
      %p237 = scmp.ne.s32.totalorder %s229, %s231
      %p238 = scmp.eq.s32.totalorder %s32, 1
      %p239 = por %p237, %p238
      %p240 = scmp.ne.s32.totalorder %s231, %s232
      %p241 = scmp.eq.s32.totalorder %s32, 0
      %p242 = por %p240, %p241
      %p243 = scmp.ne.s32.totalorder %s231, %s232
      %p244 = scmp.eq.s32.totalorder %s33, 1
      %p245 = por %p243, %p244
      %p247 = scmp.ne.s32.totalorder %s232, %s246
      %p248 = scmp.eq.s32.totalorder %s33, 0
      %p249 = por %p247, %p248
      %s251 = sadd.s32 %s250, 1
      %p254 = scmp.eq.s32.totalorder %s27, 1
      %p255 = scmp.ne.s32.totalorder %s250, %s252
      %p256 = scmp.eq.s32.totalorder %s27, 0
      %p257 = por %p255, %p256
      %p258 = scmp.ne.s32.totalorder %s250, %s252
      %p259 = scmp.eq.s32.totalorder %s32, 1
      %p260 = por %p258, %p259
      %p261 = scmp.ne.s32.totalorder %s252, %s253
      %p262 = scmp.eq.s32.totalorder %s32, 0
      %p263 = por %p261, %p262
      %p264 = scmp.ne.s32.totalorder %s252, %s253
      %p265 = scmp.eq.s32.totalorder %s33, 1
      %p266 = por %p264, %p265
      %p268 = scmp.ne.s32.totalorder %s253, %s267
      %p269 = scmp.eq.s32.totalorder %s33, 0
      %p270 = por %p268, %p269
      %s272 = sadd.s32 %s271, 1
      %p275 = scmp.eq.s32.totalorder %s27, 1
      %p276 = scmp.ne.s32.totalorder %s271, %s273
      %p277 = scmp.eq.s32.totalorder %s27, 0
      %p278 = por %p276, %p277
      %p279 = scmp.ne.s32.totalorder %s271, %s273
      %p280 = scmp.eq.s32.totalorder %s32, 1
      %p281 = por %p279, %p280
      %p282 = scmp.ne.s32.totalorder %s273, %s274
      %p283 = scmp.eq.s32.totalorder %s32, 0
      %p284 = por %p282, %p283
      %p285 = scmp.ne.s32.totalorder %s273, %s274
      %p286 = scmp.eq.s32.totalorder %s33, 1
      %p287 = por %p285, %p286
      %p289 = scmp.ne.s32.totalorder %s274, %s288
      %p290 = scmp.eq.s32.totalorder %s33, 0
      %p291 = por %p289, %p290
      %s292 = ssub.s32 %s27, %s34
      %p293 = scmp.eq.s32.totalorder %s292, 0
      %s295 = sadd.s32 %s294, 1
      %s296 = scalar_select %p293, %s294, %s295
      %p299 = pneg %p293
      %p300 = scmp.eq.s32.totalorder %s27, 1
      %p301 = por %p299, %p300
      %p302 = scmp.ne.s32.totalorder %s294, %s297
      %p303 = scmp.eq.s32.totalorder %s27, 0
      %p304 = por %p302, %p303
      %p305 = scmp.ne.s32.totalorder %s294, %s297
      %p306 = scmp.eq.s32.totalorder %s32, 1
      %p307 = por %p305, %p306
      %p308 = scmp.ne.s32.totalorder %s297, %s298
      %p309 = scmp.eq.s32.totalorder %s32, 0
      %p310 = por %p308, %p309
      %p311 = scmp.ne.s32.totalorder %s297, %s298
      %p312 = scmp.eq.s32.totalorder %s33, 1
      %p313 = por %p311, %p312
      %p315 = scmp.ne.s32.totalorder %s298, %s314
      %p316 = scmp.eq.s32.totalorder %s33, 0
      %p317 = por %p315, %p316
      %s318 = ssub.s32 %s27, %s34
      %p319 = scmp.eq.s32.totalorder %s318, 0
      %s321 = sadd.s32 %s320, 1
      %s322 = scalar_select %p319, %s320, %s321
      %p325 = pneg %p319
      %p326 = scmp.eq.s32.totalorder %s27, 1
      %p327 = por %p325, %p326
      %p328 = scmp.ne.s32.totalorder %s320, %s323
      %p329 = scmp.eq.s32.totalorder %s27, 0
      %p330 = por %p328, %p329
      %p331 = scmp.ne.s32.totalorder %s320, %s323
      %p332 = scmp.eq.s32.totalorder %s32, 1
      %p333 = por %p331, %p332
      %p334 = scmp.ne.s32.totalorder %s323, %s324
      %p335 = scmp.eq.s32.totalorder %s32, 0
      %p336 = por %p334, %p335
      %p337 = scmp.ne.s32.totalorder %s323, %s324
      %p338 = scmp.eq.s32.totalorder %s33, 1
      %p339 = por %p337, %p338
      %p341 = scmp.ne.s32.totalorder %s324, %s340
      %p342 = scmp.eq.s32.totalorder %s33, 0
      %p343 = por %p341, %p342
      %s344 = ssub.s32 %s27, %s34
      %p345 = scmp.eq.s32.totalorder %s344, 0
      %s347 = sadd.s32 %s346, 1
      %s348 = scalar_select %p345, %s346, %s347
      %p351 = pneg %p345
      %p352 = scmp.eq.s32.totalorder %s27, 1
      %p353 = por %p351, %p352
      %p354 = scmp.ne.s32.totalorder %s346, %s349
      %p355 = scmp.eq.s32.totalorder %s27, 0
      %p356 = por %p354, %p355
      %p357 = scmp.ne.s32.totalorder %s346, %s349
      %p358 = scmp.eq.s32.totalorder %s32, 1
      %p359 = por %p357, %p358
      %p360 = scmp.ne.s32.totalorder %s349, %s350
      %p361 = scmp.eq.s32.totalorder %s32, 0
      %p362 = por %p360, %p361
      %p363 = scmp.ne.s32.totalorder %s349, %s350
      %p364 = scmp.eq.s32.totalorder %s33, 1
      %p365 = por %p363, %p364
      %p367 = scmp.ne.s32.totalorder %s350, %s366
      %p368 = scmp.eq.s32.totalorder %s33, 0
      %p369 = por %p367, %p368
      %p370 = scmp.le.s32.totalorder 1, %s27
      %p371 = scmp.lt.s32.totalorder %s27, 3
      %p372 = pnand %p370, %p371
      %p373 = pneg %p372
      // Predicated region
      $region9: #{tpu_custom_call.1} parent=5 // pred_check
        _
      $region10: #{tpu_custom_call.1} parent=5 // pred_check_branch
        %375 = sbr.rel (%p372) target = $region12
      $region11: #{tpu_custom_call.1} parent=5 // pred_region
        %s376 = ssub.s32 %s27, 1
        // Predicated region
        $region13: #{tpu_custom_call.1} parent=11 // pred_check
          %p377 = pneg %p74
        $region14: #{tpu_custom_call.1} parent=11 // pred_check_branch
          %379 = sbr.rel (%p377) target = $region16
        $region15: #{tpu_custom_call.1} parent=11 // pred_region
          _
        $region16: #{tpu_custom_call.1} parent=11 // pred_fallthru
          _
        // Predicated region
        $region17: #{tpu_custom_call.1} parent=11 // pred_check
          %p380 = pneg %p95
        $region18: #{tpu_custom_call.1} parent=11 // pred_check_branch
          %382 = sbr.rel (%p380) target = $region20
        $region19: #{tpu_custom_call.1} parent=11 // pred_region
          _
        $region20: #{tpu_custom_call.1} parent=11 // pred_fallthru
          _
        // Predicated region
        $region21: #{tpu_custom_call.1} parent=11 // pred_check
          %p383 = pneg %p116
        $region22: #{tpu_custom_call.1} parent=11 // pred_check_branch
          %385 = sbr.rel (%p383) target = $region24
        $region23: #{tpu_custom_call.1} parent=11 // pred_region
          _
        $region24: #{tpu_custom_call.1} parent=11 // pred_fallthru
          _
        // Predicated region
        $region25: #{tpu_custom_call.1} parent=11 // pred_check
          %p386 = pneg %p137
        $region26: #{tpu_custom_call.1} parent=11 // pred_check_branch
          %388 = sbr.rel (%p386) target = $region28
        $region27: #{tpu_custom_call.1} parent=11 // pred_region
          _
        $region28: #{tpu_custom_call.1} parent=11 // pred_fallthru
          _
        // Predicated region
        $region29: #{tpu_custom_call.1} parent=11 // pred_check
          %p389 = pneg %p158
        $region30: #{tpu_custom_call.1} parent=11 // pred_check_branch
          %391 = sbr.rel (%p389) target = $region32
        $region31: #{tpu_custom_call.1} parent=11 // pred_region
          _
        $region32: #{tpu_custom_call.1} parent=11 // pred_fallthru
          _
        // Predicated region
        $region33: #{tpu_custom_call.1} parent=11 // pred_check
          %p392 = pneg %p179
        $region34: #{tpu_custom_call.1} parent=11 // pred_check_branch
          %394 = sbr.rel (%p392) target = $region36
        $region35: #{tpu_custom_call.1} parent=11 // pred_region
          _
        $region36: #{tpu_custom_call.1} parent=11 // pred_fallthru
          _
        // Predicated region
        $region37: #{tpu_custom_call.1} parent=11 // pred_check
          %p395 = pneg %p200
        $region38: #{tpu_custom_call.1} parent=11 // pred_check_branch
          %397 = sbr.rel (%p395) target = $region40
        $region39: #{tpu_custom_call.1} parent=11 // pred_region
          _
        $region40: #{tpu_custom_call.1} parent=11 // pred_fallthru
          _
        // Predicated region
        $region41: #{tpu_custom_call.1} parent=11 // pred_check
          %p398 = pneg %p221
        $region42: #{tpu_custom_call.1} parent=11 // pred_check_branch
          %400 = sbr.rel (%p398) target = $region44
        $region43: #{tpu_custom_call.1} parent=11 // pred_region
          _
        $region44: #{tpu_custom_call.1} parent=11 // pred_fallthru
          _
        // Predicated region
        $region45: #{tpu_custom_call.1} parent=11 // pred_check
          %p401 = pneg %p242
        $region46: #{tpu_custom_call.1} parent=11 // pred_check_branch
          %403 = sbr.rel (%p401) target = $region48
        $region47: #{tpu_custom_call.1} parent=11 // pred_region
          _
        $region48: #{tpu_custom_call.1} parent=11 // pred_fallthru
          _
        // Predicated region
        $region49: #{tpu_custom_call.1} parent=11 // pred_check
          %p404 = pneg %p263
        $region50: #{tpu_custom_call.1} parent=11 // pred_check_branch
          %406 = sbr.rel (%p404) target = $region52
        $region51: #{tpu_custom_call.1} parent=11 // pred_region
          _
        $region52: #{tpu_custom_call.1} parent=11 // pred_fallthru
          _
        // Predicated region
        $region53: #{tpu_custom_call.1} parent=11 // pred_check
          %p407 = pneg %p284
        $region54: #{tpu_custom_call.1} parent=11 // pred_check_branch
          %409 = sbr.rel (%p407) target = $region56
        $region55: #{tpu_custom_call.1} parent=11 // pred_region
          _
        $region56: #{tpu_custom_call.1} parent=11 // pred_fallthru
          _
      $region12: #{tpu_custom_call.1} parent=5 // pred_fallthru
        _
      %p410 = scmp.lt.s32.totalorder %s27, 2
      // Predicated region
      $region57: #{tpu_custom_call.1} parent=5 // pred_check
        %p411 = pneg %p410
      $region58: #{tpu_custom_call.1} parent=5 // pred_check_branch
        %413 = sbr.rel (%p411) target = $region60
      $region59: #{tpu_custom_call.1} parent=5 // pred_region
        // Predicated region
        $region61: #{tpu_custom_call.1} parent=59 // pred_check
          %p414 = pneg %p47
        $region62: #{tpu_custom_call.1} parent=59 // pred_check_branch
          %416 = sbr.rel (%p414) target = $region64
        $region63: #{tpu_custom_call.1} parent=59 // pred_region
          %s417 = smul.u32 32, %s27
          %p418 = scmp.lt.s32.totalorder %s417, 63
          %s419 = scalar_select %p418, %s417, 63
          %s420 = smul.addr %s419, 8
          %s421 = scalar_lea.vmem %s0, %s420
          %s422 = smul.u32 32, %s27
        $region64: #{tpu_custom_call.1} parent=59 // pred_fallthru
          _
      $region60: #{tpu_custom_call.1} parent=5 // pred_fallthru
        _
      %p423 = scmp.le.s32.totalorder 1, %s27
      %p424 = scmp.lt.s32.totalorder %s27, 3
      %p425 = pnand %p423, %p424
      %p426 = pneg %p425
      // Predicated region
      $region65: #{tpu_custom_call.1} parent=5 // pred_check
        _
      $region66: #{tpu_custom_call.1} parent=5 // pred_check_branch
        %428 = sbr.rel (%p425) target = $region68
      $region67: #{tpu_custom_call.1} parent=5 // pred_region
        %s429 = ssub.s32 %s27, 1
        %s430 = smul.u32 32, %s32
        %p431 = scmp.lt.s32.totalorder %s430, 63
        %s432 = scalar_select %p431, %s430, 63
        %s433 = smul.addr %s432, 8
        %s434 = scalar_lea.vmem %s0, %s433
        %p435 = pneg %p53
        %p436 = pneg %p50
        %p437 = pneg %p74
        %p438 = pneg %p71
        %p439 = pneg %p95
        %p440 = pneg %p92
        %p441 = pneg %p116
        %p442 = pneg %p113
        %p443 = pneg %p137
        %p444 = pneg %p134
        %p445 = pneg %p158
        %p446 = pneg %p155
        %p447 = pneg %p179
        %p448 = pneg %p176
        %p449 = pneg %p200
        %p450 = pneg %p197
        %p451 = pneg %p221
        %p452 = pneg %p218
        %p453 = pneg %p242
        %p454 = pneg %p239
        %p455 = pneg %p263
        %p456 = pneg %p260
        %p457 = pneg %p284
        %p458 = pneg %p281
        %p459 = pneg %p310
        %p460 = pneg %p307
        %s461 = sand.u32 %s297, 1
        %s462 = scalar_lea.sflag [#allocation11], %s461
        %s463 = sand.u32 %s297, 1
        %s464 = smul.addr %s463, 256
        %s465 = scalar_lea.vmem [#allocation10], %s464
        %p466 = pneg %p336
        %p467 = pneg %p333
        %s468 = sand.u32 %s32, 1
        %s469 = scalar_lea.sflag [#allocation13], %s468
        %s470 = sand.u32 %s323, 1
        %s471 = smul.addr %s470, 64
        %s472 = scalar_lea.vmem [#allocation12], %s471
        %p473 = pneg %p362
        %p474 = pneg %p359
        %s475 = sand.u32 %s32, 1
        %s476 = scalar_lea.sflag [#allocation13], %s475
        %s477 = sand.u32 %s349, 1
        %s478 = smul.addr %s477, 16
        %s479 = scalar_lea.vmem [#allocation14], %s478
        %s480 = smul.u32 32, %s32
        %p481 = scmp.lt.s32.totalorder %s480, 63
        %s482 = scalar_select %p481, %s480, 63
        %s483 = smul.addr %s482, 8
        %s484 = scalar_lea.vmem %s0, %s483
        %s485 = smul.u32 32, %s32
        %s486 = smul.u32 32, %s32
        %s487 = smul.u32 8, %s32
        %s488 = smul.u32 2, %s32
        %v489 = vld [vmem:[%s484] sm:$0xff]
        %v490 = vld [vmem:[%s484 + $0x8] sm:$0xff]
        %v491 = vld [vmem:[%s484 + $0x10] sm:$0xff]
        %v492 = vld [vmem:[%s484 + $0x18] sm:$0xff]
        %v493 = vld [vmem:[%s484 + $0x20] sm:$0xff]
        %v494 = vld [vmem:[%s484 + $0x28] sm:$0xff]
        %v495 = vld [vmem:[%s484 + $0x30] sm:$0xff]
        %v496 = vld [vmem:[%s484 + $0x38] sm:$0xff]
        %v497 = vld [vmem:[%s484 + $0x40] sm:$0xff]
        %v498 = vld [vmem:[%s484 + $0x48] sm:$0xff]
        %v499 = vld [vmem:[%s484 + $0x50] sm:$0xff]
        %v500 = vld [vmem:[%s484 + $0x58] sm:$0xff]
        %v501 = vld [vmem:[%s484 + $0x60] sm:$0xff]
        %v502 = vld [vmem:[%s484 + $0x68] sm:$0xff]
        %v503 = vld [vmem:[%s484 + $0x70] sm:$0xff]
        %v504 = vld [vmem:[%s484 + $0x78] sm:$0xff]
        %v505 = vld [vmem:[%s484 + $0x80] sm:$0xff]
        %v506 = vld [vmem:[%s484 + $0x88] sm:$0xff]
        %v507 = vld [vmem:[%s484 + $0x90] sm:$0xff]
        %v508 = vld [vmem:[%s484 + $0x98] sm:$0xff]
        %v509 = vld [vmem:[%s484 + $0xa0] sm:$0xff]
        %v510 = vld [vmem:[%s484 + $0xa8] sm:$0xff]
        %v511 = vld [vmem:[%s484 + $0xb0] sm:$0xff]
        %v512 = vld [vmem:[%s484 + $0xb8] sm:$0xff]
        %v513 = vld [vmem:[%s484 + $0xc0] sm:$0xff]
        %v514 = vld [vmem:[%s484 + $0xc8] sm:$0xff]
        %v515 = vld [vmem:[%s484 + $0xd0] sm:$0xff]
        %v516 = vld [vmem:[%s484 + $0xd8] sm:$0xff]
        %v517 = vld [vmem:[%s484 + $0xe0] sm:$0xff]
        %v518 = vld [vmem:[%s484 + $0xe8] sm:$0xff]
        %v519 = vld [vmem:[%s484 + $0xf0] sm:$0xff]
        %v520 = vld [vmem:[%s484 + $0xf8] sm:$0xff]
        %vm521 = vcmask 31744
        %522 = vst.msk [vmem:[#allocation2] sm:$0xff] %vm521, 0.0
        %523 = vst.msk [vmem:[#allocation2 + $0x8] sm:$0xff] %vm521, 0.0
        %524 = vst.msk [vmem:[#allocation2 + $0x10] sm:$0xff] %vm521, 0.0
        %525 = vst.msk [vmem:[#allocation2 + $0x118] sm:$0xff] %vm521, 0.0
        %526 = vst.msk [vmem:[#allocation2 + $0x120] sm:$0xff] %vm521, 0.0
        %527 = vst.msk [vmem:[#allocation2 + $0x128] sm:$0xff] %vm521, 0.0
        %528 = vst.msk [vmem:[#allocation2 + $0x18] sm:$0xff] %vm521, %v489
        %529 = vst.msk [vmem:[#allocation2 + $0x20] sm:$0xff] %vm521, %v490
        %530 = vst.msk [vmem:[#allocation2 + $0x28] sm:$0xff] %vm521, %v491
        %531 = vst.msk [vmem:[#allocation2 + $0x30] sm:$0xff] %vm521, %v492
        %532 = vst.msk [vmem:[#allocation2 + $0x38] sm:$0xff] %vm521, %v493
        %533 = vst.msk [vmem:[#allocation2 + $0x40] sm:$0xff] %vm521, %v494
        %534 = vst.msk [vmem:[#allocation2 + $0x48] sm:$0xff] %vm521, %v495
        %535 = vst.msk [vmem:[#allocation2 + $0x50] sm:$0xff] %vm521, %v496
        %536 = vst.msk [vmem:[#allocation2 + $0x58] sm:$0xff] %vm521, %v497
        %537 = vst.msk [vmem:[#allocation2 + $0x60] sm:$0xff] %vm521, %v498
        %538 = vst.msk [vmem:[#allocation2 + $0x68] sm:$0xff] %vm521, %v499
        %539 = vst.msk [vmem:[#allocation2 + $0x70] sm:$0xff] %vm521, %v500
        %540 = vst.msk [vmem:[#allocation2 + $0x78] sm:$0xff] %vm521, %v501
        %541 = vst.msk [vmem:[#allocation2 + $0x80] sm:$0xff] %vm521, %v502
        %542 = vst.msk [vmem:[#allocation2 + $0x88] sm:$0xff] %vm521, %v503
        %543 = vst.msk [vmem:[#allocation2 + $0x90] sm:$0xff] %vm521, %v504
        %544 = vst.msk [vmem:[#allocation2 + $0x98] sm:$0xff] %vm521, %v505
        %545 = vst.msk [vmem:[#allocation2 + $0xa0] sm:$0xff] %vm521, %v506
        %546 = vst.msk [vmem:[#allocation2 + $0xa8] sm:$0xff] %vm521, %v507
        %547 = vst.msk [vmem:[#allocation2 + $0xb0] sm:$0xff] %vm521, %v508
        %548 = vst.msk [vmem:[#allocation2 + $0xb8] sm:$0xff] %vm521, %v509
        %549 = vst.msk [vmem:[#allocation2 + $0xc0] sm:$0xff] %vm521, %v510
        %550 = vst.msk [vmem:[#allocation2 + $0xc8] sm:$0xff] %vm521, %v511
        %551 = vst.msk [vmem:[#allocation2 + $0xd0] sm:$0xff] %vm521, %v512
        %552 = vst.msk [vmem:[#allocation2 + $0xd8] sm:$0xff] %vm521, %v513
        %553 = vst.msk [vmem:[#allocation2 + $0xe0] sm:$0xff] %vm521, %v514
        %554 = vst.msk [vmem:[#allocation2 + $0xe8] sm:$0xff] %vm521, %v515
        %555 = vst.msk [vmem:[#allocation2 + $0xf0] sm:$0xff] %vm521, %v516
        %556 = vst.msk [vmem:[#allocation2 + $0xf8] sm:$0xff] %vm521, %v517
        %557 = vst.msk [vmem:[#allocation2 + $0x100] sm:$0xff] %vm521, %v518
        %558 = vst.msk [vmem:[#allocation2 + $0x108] sm:$0xff] %vm521, %v519
        %559 = vst.msk [vmem:[#allocation2 + $0x110] sm:$0xff] %vm521, %v520
        %v560 = vlaneseq
        %v561 = vshrl.u32 %v560, 7
        %v562 = vadd.s32 %v561, 8
        %v563 = vadd.s32 %v561, 16
        %v564 = vadd.s32 %v561, 24
        %v565 = vadd.s32 %v561, 32
        %v566 = vadd.s32 %v561, 40
        %v567 = vadd.s32 %v561, 48
        %v568 = vadd.s32 %v561, 56
        %v569 = vadd.s32 %v561, 64
        %v570 = vadd.s32 %v561, 72
        %v571 = vadd.s32 %v561, 80
        %v572 = vadd.s32 %v561, 88
        %v573 = vadd.s32 %v561, 96
        %v574 = vadd.s32 %v561, 104
        %v575 = vadd.s32 %v561, 112
        %v576 = vadd.s32 %v561, 120
        %v577 = vadd.s32 %v561, 128
        %v578 = vadd.s32 %v561, 136
        %v579 = vadd.s32 %v561, 144
        %v580 = vadd.s32 %v561, 152
        %v581 = vadd.s32 %v561, 160
        %v582 = vadd.s32 %v561, 168
        %v583 = vadd.s32 %v561, 176
        %v584 = vadd.s32 %v561, 184
        %v585 = vadd.s32 %v561, 192
        %v586 = vadd.s32 %v561, 200
        %v587 = vadd.s32 %v561, 208
        %v588 = vadd.s32 %v561, 216
        %v589 = vadd.s32 %v561, 224
        %v590 = vadd.s32 %v561, 232
        %v591 = vadd.s32 %v561, 240
        %v592 = vadd.s32 %v561, 248
        %vm593 = vcmp.lt.s32.totalorder %v561, 0
        %v594 = vsub.s32 0, %v561
        %v595 = vsel %vm593, %v594, %v561
        %v596 = vshrl.u32 %v595, 8
        %v597 = vand.u32 %v595, 255
        %v598 = vsub.s32 0, %v597
        %v599 = vsel %vm593, %v598, %v597
        %vm600 = vcmp.lt.s32.totalorder %v562, 0
        %v601 = vsub.s32 0, %v562
        %v602 = vsel %vm600, %v601, %v562
        %v603 = vshrl.u32 %v602, 8
        %v604 = vand.u32 %v602, 255
        %v605 = vsub.s32 0, %v604
        %v606 = vsel %vm600, %v605, %v604
        %vm607 = vcmp.lt.s32.totalorder %v563, 0
        %v608 = vsub.s32 0, %v563
        %v609 = vsel %vm607, %v608, %v563
        %v610 = vshrl.u32 %v609, 8
        %v611 = vand.u32 %v609, 255
        %v612 = vsub.s32 0, %v611
        %v613 = vsel %vm607, %v612, %v611
        %vm614 = vcmp.lt.s32.totalorder %v564, 0
        %v615 = vsub.s32 0, %v564
        %v616 = vsel %vm614, %v615, %v564
        %v617 = vshrl.u32 %v616, 8
        %v618 = vand.u32 %v616, 255
        %v619 = vsub.s32 0, %v618
        %v620 = vsel %vm614, %v619, %v618
        %vm621 = vcmp.lt.s32.totalorder %v565, 0
        %v622 = vsub.s32 0, %v565
        %v623 = vsel %vm621, %v622, %v565
        %v624 = vshrl.u32 %v623, 8
        %v625 = vand.u32 %v623, 255
        %v626 = vsub.s32 0, %v625
        %v627 = vsel %vm621, %v626, %v625
        %vm628 = vcmp.lt.s32.totalorder %v566, 0
        %v629 = vsub.s32 0, %v566
        %v630 = vsel %vm628, %v629, %v566
        %v631 = vshrl.u32 %v630, 8
        %v632 = vand.u32 %v630, 255
        %v633 = vsub.s32 0, %v632
        %v634 = vsel %vm628, %v633, %v632
        %vm635 = vcmp.lt.s32.totalorder %v567, 0
        %v636 = vsub.s32 0, %v567
        %v637 = vsel %vm635, %v636, %v567
        %v638 = vshrl.u32 %v637, 8
        %v639 = vand.u32 %v637, 255
        %v640 = vsub.s32 0, %v639
        %v641 = vsel %vm635, %v640, %v639
        %vm642 = vcmp.lt.s32.totalorder %v568, 0
        %v643 = vsub.s32 0, %v568
        %v644 = vsel %vm642, %v643, %v568
        %v645 = vshrl.u32 %v644, 8
        %v646 = vand.u32 %v644, 255
        %v647 = vsub.s32 0, %v646
        %v648 = vsel %vm642, %v647, %v646
        %vm649 = vcmp.lt.s32.totalorder %v569, 0
        %v650 = vsub.s32 0, %v569
        %v651 = vsel %vm649, %v650, %v569
        %v652 = vshrl.u32 %v651, 8
        %v653 = vand.u32 %v651, 255
        %v654 = vsub.s32 0, %v653
        %v655 = vsel %vm649, %v654, %v653
        %vm656 = vcmp.lt.s32.totalorder %v570, 0
        %v657 = vsub.s32 0, %v570
        %v658 = vsel %vm656, %v657, %v570
        %v659 = vshrl.u32 %v658, 8
        %v660 = vand.u32 %v658, 255
        %v661 = vsub.s32 0, %v660
        %v662 = vsel %vm656, %v661, %v660
        %vm663 = vcmp.lt.s32.totalorder %v571, 0
        %v664 = vsub.s32 0, %v571
        %v665 = vsel %vm663, %v664, %v571
        %v666 = vshrl.u32 %v665, 8
        %v667 = vand.u32 %v665, 255
        %v668 = vsub.s32 0, %v667
        %v669 = vsel %vm663, %v668, %v667
        %vm670 = vcmp.lt.s32.totalorder %v572, 0
        %v671 = vsub.s32 0, %v572
        %v672 = vsel %vm670, %v671, %v572
        %v673 = vshrl.u32 %v672, 8
        %v674 = vand.u32 %v672, 255
        %v675 = vsub.s32 0, %v674
        %v676 = vsel %vm670, %v675, %v674
        %vm677 = vcmp.lt.s32.totalorder %v573, 0
        %v678 = vsub.s32 0, %v573
        %v679 = vsel %vm677, %v678, %v573
        %v680 = vshrl.u32 %v679, 8
        %v681 = vand.u32 %v679, 255
        %v682 = vsub.s32 0, %v681
        %v683 = vsel %vm677, %v682, %v681
        %vm684 = vcmp.lt.s32.totalorder %v574, 0
        %v685 = vsub.s32 0, %v574
        %v686 = vsel %vm684, %v685, %v574
        %v687 = vshrl.u32 %v686, 8
        %v688 = vand.u32 %v686, 255
        %v689 = vsub.s32 0, %v688
        %v690 = vsel %vm684, %v689, %v688
        %vm691 = vcmp.lt.s32.totalorder %v575, 0
        %v692 = vsub.s32 0, %v575
        %v693 = vsel %vm691, %v692, %v575
        %v694 = vshrl.u32 %v693, 8
        %v695 = vand.u32 %v693, 255
        %v696 = vsub.s32 0, %v695
        %v697 = vsel %vm691, %v696, %v695
        %vm698 = vcmp.lt.s32.totalorder %v576, 0
        %v699 = vsub.s32 0, %v576
        %v700 = vsel %vm698, %v699, %v576
        %v701 = vshrl.u32 %v700, 8
        %v702 = vand.u32 %v700, 255
        %v703 = vsub.s32 0, %v702
        %v704 = vsel %vm698, %v703, %v702
        %vm705 = vcmp.lt.s32.totalorder %v577, 0
        %v706 = vsub.s32 0, %v577
        %v707 = vsel %vm705, %v706, %v577
        %v708 = vshrl.u32 %v707, 8
        %v709 = vand.u32 %v707, 255
        %v710 = vsub.s32 0, %v709
        %v711 = vsel %vm705, %v710, %v709
        %vm712 = vcmp.lt.s32.totalorder %v578, 0
        %v713 = vsub.s32 0, %v578
        %v714 = vsel %vm712, %v713, %v578
        %v715 = vshrl.u32 %v714, 8
        %v716 = vand.u32 %v714, 255
        %v717 = vsub.s32 0, %v716
        %v718 = vsel %vm712, %v717, %v716
        %vm719 = vcmp.lt.s32.totalorder %v579, 0
        %v720 = vsub.s32 0, %v579
        %v721 = vsel %vm719, %v720, %v579
        %v722 = vshrl.u32 %v721, 8
        %v723 = vand.u32 %v721, 255
        %v724 = vsub.s32 0, %v723
        %v725 = vsel %vm719, %v724, %v723
        %vm726 = vcmp.lt.s32.totalorder %v580, 0
        %v727 = vsub.s32 0, %v580
        %v728 = vsel %vm726, %v727, %v580
        %v729 = vshrl.u32 %v728, 8
        %v730 = vand.u32 %v728, 255
        %v731 = vsub.s32 0, %v730
        %v732 = vsel %vm726, %v731, %v730
        %vm733 = vcmp.lt.s32.totalorder %v581, 0
        %v734 = vsub.s32 0, %v581
        %v735 = vsel %vm733, %v734, %v581
        %v736 = vshrl.u32 %v735, 8
        %v737 = vand.u32 %v735, 255
        %v738 = vsub.s32 0, %v737
        %v739 = vsel %vm733, %v738, %v737
        %vm740 = vcmp.lt.s32.totalorder %v582, 0
        %v741 = vsub.s32 0, %v582
        %v742 = vsel %vm740, %v741, %v582
        %v743 = vshrl.u32 %v742, 8
        %v744 = vand.u32 %v742, 255
        %v745 = vsub.s32 0, %v744
        %v746 = vsel %vm740, %v745, %v744
        %vm747 = vcmp.lt.s32.totalorder %v583, 0
        %v748 = vsub.s32 0, %v583
        %v749 = vsel %vm747, %v748, %v583
        %v750 = vshrl.u32 %v749, 8
        %v751 = vand.u32 %v749, 255
        %v752 = vsub.s32 0, %v751
        %v753 = vsel %vm747, %v752, %v751
        %vm754 = vcmp.lt.s32.totalorder %v584, 0
        %v755 = vsub.s32 0, %v584
        %v756 = vsel %vm754, %v755, %v584
        %v757 = vshrl.u32 %v756, 8
        %v758 = vand.u32 %v756, 255
        %v759 = vsub.s32 0, %v758
        %v760 = vsel %vm754, %v759, %v758
        %vm761 = vcmp.lt.s32.totalorder %v585, 0
        %v762 = vsub.s32 0, %v585
        %v763 = vsel %vm761, %v762, %v585
        %v764 = vshrl.u32 %v763, 8
        %v765 = vand.u32 %v763, 255
        %v766 = vsub.s32 0, %v765
        %v767 = vsel %vm761, %v766, %v765
        %vm768 = vcmp.lt.s32.totalorder %v586, 0
        %v769 = vsub.s32 0, %v586
        %v770 = vsel %vm768, %v769, %v586
        %v771 = vshrl.u32 %v770, 8
        %v772 = vand.u32 %v770, 255
        %v773 = vsub.s32 0, %v772
        %v774 = vsel %vm768, %v773, %v772
        %vm775 = vcmp.lt.s32.totalorder %v587, 0
        %v776 = vsub.s32 0, %v587
        %v777 = vsel %vm775, %v776, %v587
        %v778 = vshrl.u32 %v777, 8
        %v779 = vand.u32 %v777, 255
        %v780 = vsub.s32 0, %v779
        %v781 = vsel %vm775, %v780, %v779
        %vm782 = vcmp.lt.s32.totalorder %v588, 0
        %v783 = vsub.s32 0, %v588
        %v784 = vsel %vm782, %v783, %v588
        %v785 = vshrl.u32 %v784, 8
        %v786 = vand.u32 %v784, 255
        %v787 = vsub.s32 0, %v786
        %v788 = vsel %vm782, %v787, %v786
        %vm789 = vcmp.lt.s32.totalorder %v589, 0
        %v790 = vsub.s32 0, %v589
        %v791 = vsel %vm789, %v790, %v589
        %v792 = vshrl.u32 %v791, 8
        %v793 = vand.u32 %v791, 255
        %v794 = vsub.s32 0, %v793
        %v795 = vsel %vm789, %v794, %v793
        %vm796 = vcmp.lt.s32.totalorder %v590, 0
        %v797 = vsub.s32 0, %v590
        %v798 = vsel %vm796, %v797, %v590
        %v799 = vshrl.u32 %v798, 8
        %v800 = vand.u32 %v798, 255
        %v801 = vsub.s32 0, %v800
        %v802 = vsel %vm796, %v801, %v800
        %vm803 = vcmp.lt.s32.totalorder %v591, 0
        %v804 = vsub.s32 0, %v591
        %v805 = vsel %vm803, %v804, %v591
        %v806 = vshrl.u32 %v805, 8
        %v807 = vand.u32 %v805, 255
        %v808 = vsub.s32 0, %v807
        %v809 = vsel %vm803, %v808, %v807
        %vm810 = vcmp.lt.s32.totalorder %v592, 0
        %v811 = vsub.s32 0, %v592
        %v812 = vsel %vm810, %v811, %v592
        %v813 = vshrl.u32 %v812, 8
        %v814 = vand.u32 %v812, 255
        %v815 = vsub.s32 0, %v814
        %v816 = vsel %vm810, %v815, %v814
        %vm817 = vcmp.ne.s32.totalorder %v599, 0
        %vm818 = vcmp.ne.s32.totalorder %v606, 0
        %vm819 = vcmp.ne.s32.totalorder %v613, 0
        %vm820 = vcmp.ne.s32.totalorder %v620, 0
        %vm821 = vcmp.ne.s32.totalorder %v627, 0
        %vm822 = vcmp.ne.s32.totalorder %v634, 0
        %vm823 = vcmp.ne.s32.totalorder %v641, 0
        %vm824 = vcmp.ne.s32.totalorder %v648, 0
        %vm825 = vcmp.ne.s32.totalorder %v655, 0
        %vm826 = vcmp.ne.s32.totalorder %v662, 0
        %vm827 = vcmp.ne.s32.totalorder %v669, 0
        %vm828 = vcmp.ne.s32.totalorder %v676, 0
        %vm829 = vcmp.ne.s32.totalorder %v683, 0
        %vm830 = vcmp.ne.s32.totalorder %v690, 0
        %vm831 = vcmp.ne.s32.totalorder %v697, 0
        %vm832 = vcmp.ne.s32.totalorder %v704, 0
        %vm833 = vcmp.ne.s32.totalorder %v711, 0
        %vm834 = vcmp.ne.s32.totalorder %v718, 0
        %vm835 = vcmp.ne.s32.totalorder %v725, 0
        %vm836 = vcmp.ne.s32.totalorder %v732, 0
        %vm837 = vcmp.ne.s32.totalorder %v739, 0
        %vm838 = vcmp.ne.s32.totalorder %v746, 0
        %vm839 = vcmp.ne.s32.totalorder %v753, 0
        %vm840 = vcmp.ne.s32.totalorder %v760, 0
        %vm841 = vcmp.ne.s32.totalorder %v767, 0
        %vm842 = vcmp.ne.s32.totalorder %v774, 0
        %vm843 = vcmp.ne.s32.totalorder %v781, 0
        %vm844 = vcmp.ne.s32.totalorder %v788, 0
        %vm845 = vcmp.ne.s32.totalorder %v795, 0
        %vm846 = vcmp.ne.s32.totalorder %v802, 0
        %vm847 = vcmp.ne.s32.totalorder %v809, 0
        %vm848 = vcmp.ne.s32.totalorder %v816, 0
        %vm849 = vcmp.lt.s32.totalorder %v599, 0
        %vm850 = vcmp.lt.s32.totalorder %v606, 0
        %vm851 = vcmp.lt.s32.totalorder %v613, 0
        %vm852 = vcmp.lt.s32.totalorder %v620, 0
        %vm853 = vcmp.lt.s32.totalorder %v627, 0
        %vm854 = vcmp.lt.s32.totalorder %v634, 0
        %vm855 = vcmp.lt.s32.totalorder %v641, 0
        %vm856 = vcmp.lt.s32.totalorder %v648, 0
        %vm857 = vcmp.lt.s32.totalorder %v655, 0
        %vm858 = vcmp.lt.s32.totalorder %v662, 0
        %vm859 = vcmp.lt.s32.totalorder %v669, 0
        %vm860 = vcmp.lt.s32.totalorder %v676, 0
        %vm861 = vcmp.lt.s32.totalorder %v683, 0
        %vm862 = vcmp.lt.s32.totalorder %v690, 0
        %vm863 = vcmp.lt.s32.totalorder %v697, 0
        %vm864 = vcmp.lt.s32.totalorder %v704, 0
        %vm865 = vcmp.lt.s32.totalorder %v711, 0
        %vm866 = vcmp.lt.s32.totalorder %v718, 0
        %vm867 = vcmp.lt.s32.totalorder %v725, 0
        %vm868 = vcmp.lt.s32.totalorder %v732, 0
        %vm869 = vcmp.lt.s32.totalorder %v739, 0
        %vm870 = vcmp.lt.s32.totalorder %v746, 0
        %vm871 = vcmp.lt.s32.totalorder %v753, 0
        %vm872 = vcmp.lt.s32.totalorder %v760, 0
        %vm873 = vcmp.lt.s32.totalorder %v767, 0
        %vm874 = vcmp.lt.s32.totalorder %v774, 0
        %vm875 = vcmp.lt.s32.totalorder %v781, 0
        %vm876 = vcmp.lt.s32.totalorder %v788, 0
        %vm877 = vcmp.lt.s32.totalorder %v795, 0
        %vm878 = vcmp.lt.s32.totalorder %v802, 0
        %vm879 = vcmp.lt.s32.totalorder %v809, 0
        %vm880 = vcmp.lt.s32.totalorder %v816, 0
        %vm881 = vmand %vm849, %vm817
        %vm882 = vmand %vm850, %vm818
        %vm883 = vmand %vm851, %vm819
        %vm884 = vmand %vm852, %vm820
        %vm885 = vmand %vm853, %vm821
        %vm886 = vmand %vm854, %vm822
        %vm887 = vmand %vm855, %vm823
        %vm888 = vmand %vm856, %vm824
        %vm889 = vmand %vm857, %vm825
        %vm890 = vmand %vm858, %vm826
        %vm891 = vmand %vm859, %vm827
        %vm892 = vmand %vm860, %vm828
        %vm893 = vmand %vm861, %vm829
        %vm894 = vmand %vm862, %vm830
        %vm895 = vmand %vm863, %vm831
        %vm896 = vmand %vm864, %vm832
        %vm897 = vmand %vm865, %vm833
        %vm898 = vmand %vm866, %vm834
        %vm899 = vmand %vm867, %vm835
        %vm900 = vmand %vm868, %vm836
        %vm901 = vmand %vm869, %vm837
        %vm902 = vmand %vm870, %vm838
        %vm903 = vmand %vm871, %vm839
        %vm904 = vmand %vm872, %vm840
        %vm905 = vmand %vm873, %vm841
        %vm906 = vmand %vm874, %vm842
        %vm907 = vmand %vm875, %vm843
        %vm908 = vmand %vm876, %vm844
        %vm909 = vmand %vm877, %vm845
        %vm910 = vmand %vm878, %vm846
        %vm911 = vmand %vm879, %vm847
        %vm912 = vmand %vm880, %vm848
        %v913 = vadd.s32 %v599, 256
        %v914 = vadd.s32 %v606, 256
        %v915 = vadd.s32 %v613, 256
        %v916 = vadd.s32 %v620, 256
        %v917 = vadd.s32 %v627, 256
        %v918 = vadd.s32 %v634, 256
        %v919 = vadd.s32 %v641, 256
        %v920 = vadd.s32 %v648, 256
        %v921 = vadd.s32 %v655, 256
        %v922 = vadd.s32 %v662, 256
        %v923 = vadd.s32 %v669, 256
        %v924 = vadd.s32 %v676, 256
        %v925 = vadd.s32 %v683, 256
        %v926 = vadd.s32 %v690, 256
        %v927 = vadd.s32 %v697, 256
        %v928 = vadd.s32 %v704, 256
        %v929 = vadd.s32 %v711, 256
        %v930 = vadd.s32 %v718, 256
        %v931 = vadd.s32 %v725, 256
        %v932 = vadd.s32 %v732, 256
        %v933 = vadd.s32 %v739, 256
        %v934 = vadd.s32 %v746, 256
        %v935 = vadd.s32 %v753, 256
        %v936 = vadd.s32 %v760, 256
        %v937 = vadd.s32 %v767, 256
        %v938 = vadd.s32 %v774, 256
        %v939 = vadd.s32 %v781, 256
        %v940 = vadd.s32 %v788, 256
        %v941 = vadd.s32 %v795, 256
        %v942 = vadd.s32 %v802, 256
        %v943 = vadd.s32 %v809, 256
        %v944 = vadd.s32 %v816, 256
        %v945 = vsel %vm881, %v913, %v599
        %v946 = vsel %vm882, %v914, %v606
        %v947 = vsel %vm883, %v915, %v613
        %v948 = vsel %vm884, %v916, %v620
        %v949 = vsel %vm885, %v917, %v627
        %v950 = vsel %vm886, %v918, %v634
        %v951 = vsel %vm887, %v919, %v641
        %v952 = vsel %vm888, %v920, %v648
        %v953 = vsel %vm889, %v921, %v655
        %v954 = vsel %vm890, %v922, %v662
        %v955 = vsel %vm891, %v923, %v669
        %v956 = vsel %vm892, %v924, %v676
        %v957 = vsel %vm893, %v925, %v683
        %v958 = vsel %vm894, %v926, %v690
        %v959 = vsel %vm895, %v927, %v697
        %v960 = vsel %vm896, %v928, %v704
        %v961 = vsel %vm897, %v929, %v711
        %v962 = vsel %vm898, %v930, %v718
        %v963 = vsel %vm899, %v931, %v725
        %v964 = vsel %vm900, %v932, %v732
        %v965 = vsel %vm901, %v933, %v739
        %v966 = vsel %vm902, %v934, %v746
        %v967 = vsel %vm903, %v935, %v753
        %v968 = vsel %vm904, %v936, %v760
        %v969 = vsel %vm905, %v937, %v767
        %v970 = vsel %vm906, %v938, %v774
        %v971 = vsel %vm907, %v939, %v781
        %v972 = vsel %vm908, %v940, %v788
        %v973 = vsel %vm909, %v941, %v795
        %v974 = vsel %vm910, %v942, %v802
        %v975 = vsel %vm911, %v943, %v809
        %v976 = vsel %vm912, %v944, %v816
        %vm977 = vcmp.lt.s32.totalorder %v945, 0
        %v978 = vsub.s32 0, %v945
        %v979 = vsel %vm977, %v978, %v945
        %v980 = vshrl.u32 %v979, 4
        %v981 = vand.u32 %v979, 15
        %v982 = vsub.s32 0, %v981
        %v983 = vsel %vm977, %v982, %v981
        %vm984 = vcmp.lt.s32.totalorder %v946, 0
        %v985 = vsub.s32 0, %v946
        %v986 = vsel %vm984, %v985, %v946
        %v987 = vshrl.u32 %v986, 4
        %v988 = vand.u32 %v986, 15
        %v989 = vsub.s32 0, %v988
        %v990 = vsel %vm984, %v989, %v988
        %vm991 = vcmp.lt.s32.totalorder %v947, 0
        %v992 = vsub.s32 0, %v947
        %v993 = vsel %vm991, %v992, %v947
        %v994 = vshrl.u32 %v993, 4
        %v995 = vand.u32 %v993, 15
        %v996 = vsub.s32 0, %v995
        %v997 = vsel %vm991, %v996, %v995
        %vm998 = vcmp.lt.s32.totalorder %v948, 0
        %v999 = vsub.s32 0, %v948
        %v1000 = vsel %vm998, %v999, %v948
        %v1001 = vshrl.u32 %v1000, 4
        %v1002 = vand.u32 %v1000, 15
        %v1003 = vsub.s32 0, %v1002
        %v1004 = vsel %vm998, %v1003, %v1002
        %vm1005 = vcmp.lt.s32.totalorder %v949, 0
        %v1006 = vsub.s32 0, %v949
        %v1007 = vsel %vm1005, %v1006, %v949
        %v1008 = vshrl.u32 %v1007, 4
        %v1009 = vand.u32 %v1007, 15
        %v1010 = vsub.s32 0, %v1009
        %v1011 = vsel %vm1005, %v1010, %v1009
        %vm1012 = vcmp.lt.s32.totalorder %v950, 0
        %v1013 = vsub.s32 0, %v950
        %v1014 = vsel %vm1012, %v1013, %v950
        %v1015 = vshrl.u32 %v1014, 4
        %v1016 = vand.u32 %v1014, 15
        %v1017 = vsub.s32 0, %v1016
        %v1018 = vsel %vm1012, %v1017, %v1016
        %vm1019 = vcmp.lt.s32.totalorder %v951, 0
        %v1020 = vsub.s32 0, %v951
        %v1021 = vsel %vm1019, %v1020, %v951
        %v1022 = vshrl.u32 %v1021, 4
        %v1023 = vand.u32 %v1021, 15
        %v1024 = vsub.s32 0, %v1023
        %v1025 = vsel %vm1019, %v1024, %v1023
        %vm1026 = vcmp.lt.s32.totalorder %v952, 0
        %v1027 = vsub.s32 0, %v952
        %v1028 = vsel %vm1026, %v1027, %v952
        %v1029 = vshrl.u32 %v1028, 4
        %v1030 = vand.u32 %v1028, 15
        %v1031 = vsub.s32 0, %v1030
        %v1032 = vsel %vm1026, %v1031, %v1030
        %vm1033 = vcmp.lt.s32.totalorder %v953, 0
        %v1034 = vsub.s32 0, %v953
        %v1035 = vsel %vm1033, %v1034, %v953
        %v1036 = vshrl.u32 %v1035, 4
        %v1037 = vand.u32 %v1035, 15
        %v1038 = vsub.s32 0, %v1037
        %v1039 = vsel %vm1033, %v1038, %v1037
        %vm1040 = vcmp.lt.s32.totalorder %v954, 0
        %v1041 = vsub.s32 0, %v954
        %v1042 = vsel %vm1040, %v1041, %v954
        %v1043 = vshrl.u32 %v1042, 4
        %v1044 = vand.u32 %v1042, 15
        %v1045 = vsub.s32 0, %v1044
        %v1046 = vsel %vm1040, %v1045, %v1044
        %vm1047 = vcmp.lt.s32.totalorder %v955, 0
        %v1048 = vsub.s32 0, %v955
        %v1049 = vsel %vm1047, %v1048, %v955
        %v1050 = vshrl.u32 %v1049, 4
        %v1051 = vand.u32 %v1049, 15
        %v1052 = vsub.s32 0, %v1051
        %v1053 = vsel %vm1047, %v1052, %v1051
        %vm1054 = vcmp.lt.s32.totalorder %v956, 0
        %v1055 = vsub.s32 0, %v956
        %v1056 = vsel %vm1054, %v1055, %v956
        %v1057 = vshrl.u32 %v1056, 4
        %v1058 = vand.u32 %v1056, 15
        %v1059 = vsub.s32 0, %v1058
        %v1060 = vsel %vm1054, %v1059, %v1058
        %vm1061 = vcmp.lt.s32.totalorder %v957, 0
        %v1062 = vsub.s32 0, %v957
        %v1063 = vsel %vm1061, %v1062, %v957
        %v1064 = vshrl.u32 %v1063, 4
        %v1065 = vand.u32 %v1063, 15
        %v1066 = vsub.s32 0, %v1065
        %v1067 = vsel %vm1061, %v1066, %v1065
        %vm1068 = vcmp.lt.s32.totalorder %v958, 0
        %v1069 = vsub.s32 0, %v958
        %v1070 = vsel %vm1068, %v1069, %v958
        %v1071 = vshrl.u32 %v1070, 4
        %v1072 = vand.u32 %v1070, 15
        %v1073 = vsub.s32 0, %v1072
        %v1074 = vsel %vm1068, %v1073, %v1072
        %vm1075 = vcmp.lt.s32.totalorder %v959, 0
        %v1076 = vsub.s32 0, %v959
        %v1077 = vsel %vm1075, %v1076, %v959
        %v1078 = vshrl.u32 %v1077, 4
        %v1079 = vand.u32 %v1077, 15
        %v1080 = vsub.s32 0, %v1079
        %v1081 = vsel %vm1075, %v1080, %v1079
        %vm1082 = vcmp.lt.s32.totalorder %v960, 0
        %v1083 = vsub.s32 0, %v960
        %v1084 = vsel %vm1082, %v1083, %v960
        %v1085 = vshrl.u32 %v1084, 4
        %v1086 = vand.u32 %v1084, 15
        %v1087 = vsub.s32 0, %v1086
        %v1088 = vsel %vm1082, %v1087, %v1086
        %vm1089 = vcmp.lt.s32.totalorder %v961, 0
        %v1090 = vsub.s32 0, %v961
        %v1091 = vsel %vm1089, %v1090, %v961
        %v1092 = vshrl.u32 %v1091, 4
        %v1093 = vand.u32 %v1091, 15
        %v1094 = vsub.s32 0, %v1093
        %v1095 = vsel %vm1089, %v1094, %v1093
        %vm1096 = vcmp.lt.s32.totalorder %v962, 0
        %v1097 = vsub.s32 0, %v962
        %v1098 = vsel %vm1096, %v1097, %v962
        %v1099 = vshrl.u32 %v1098, 4
        %v1100 = vand.u32 %v1098, 15
        %v1101 = vsub.s32 0, %v1100
        %v1102 = vsel %vm1096, %v1101, %v1100
        %vm1103 = vcmp.lt.s32.totalorder %v963, 0
        %v1104 = vsub.s32 0, %v963
        %v1105 = vsel %vm1103, %v1104, %v963
        %v1106 = vshrl.u32 %v1105, 4
        %v1107 = vand.u32 %v1105, 15
        %v1108 = vsub.s32 0, %v1107
        %v1109 = vsel %vm1103, %v1108, %v1107
        %vm1110 = vcmp.lt.s32.totalorder %v964, 0
        %v1111 = vsub.s32 0, %v964
        %v1112 = vsel %vm1110, %v1111, %v964
        %v1113 = vshrl.u32 %v1112, 4
        %v1114 = vand.u32 %v1112, 15
        %v1115 = vsub.s32 0, %v1114
        %v1116 = vsel %vm1110, %v1115, %v1114
        %vm1117 = vcmp.lt.s32.totalorder %v965, 0
        %v1118 = vsub.s32 0, %v965
        %v1119 = vsel %vm1117, %v1118, %v965
        %v1120 = vshrl.u32 %v1119, 4
        %v1121 = vand.u32 %v1119, 15
        %v1122 = vsub.s32 0, %v1121
        %v1123 = vsel %vm1117, %v1122, %v1121
        %vm1124 = vcmp.lt.s32.totalorder %v966, 0
        %v1125 = vsub.s32 0, %v966
        %v1126 = vsel %vm1124, %v1125, %v966
        %v1127 = vshrl.u32 %v1126, 4
        %v1128 = vand.u32 %v1126, 15
        %v1129 = vsub.s32 0, %v1128
        %v1130 = vsel %vm1124, %v1129, %v1128
        %vm1131 = vcmp.lt.s32.totalorder %v967, 0
        %v1132 = vsub.s32 0, %v967
        %v1133 = vsel %vm1131, %v1132, %v967
        %v1134 = vshrl.u32 %v1133, 4
        %v1135 = vand.u32 %v1133, 15
        %v1136 = vsub.s32 0, %v1135
        %v1137 = vsel %vm1131, %v1136, %v1135
        %vm1138 = vcmp.lt.s32.totalorder %v968, 0
        %v1139 = vsub.s32 0, %v968
        %v1140 = vsel %vm1138, %v1139, %v968
        %v1141 = vshrl.u32 %v1140, 4
        %v1142 = vand.u32 %v1140, 15
        %v1143 = vsub.s32 0, %v1142
        %v1144 = vsel %vm1138, %v1143, %v1142
        %vm1145 = vcmp.lt.s32.totalorder %v969, 0
        %v1146 = vsub.s32 0, %v969
        %v1147 = vsel %vm1145, %v1146, %v969
        %v1148 = vshrl.u32 %v1147, 4
        %v1149 = vand.u32 %v1147, 15
        %v1150 = vsub.s32 0, %v1149
        %v1151 = vsel %vm1145, %v1150, %v1149
        %vm1152 = vcmp.lt.s32.totalorder %v970, 0
        %v1153 = vsub.s32 0, %v970
        %v1154 = vsel %vm1152, %v1153, %v970
        %v1155 = vshrl.u32 %v1154, 4
        %v1156 = vand.u32 %v1154, 15
        %v1157 = vsub.s32 0, %v1156
        %v1158 = vsel %vm1152, %v1157, %v1156
        %vm1159 = vcmp.lt.s32.totalorder %v971, 0
        %v1160 = vsub.s32 0, %v971
        %v1161 = vsel %vm1159, %v1160, %v971
        %v1162 = vshrl.u32 %v1161, 4
        %v1163 = vand.u32 %v1161, 15
        %v1164 = vsub.s32 0, %v1163
        %v1165 = vsel %vm1159, %v1164, %v1163
        %vm1166 = vcmp.lt.s32.totalorder %v972, 0
        %v1167 = vsub.s32 0, %v972
        %v1168 = vsel %vm1166, %v1167, %v972
        %v1169 = vshrl.u32 %v1168, 4
        %v1170 = vand.u32 %v1168, 15
        %v1171 = vsub.s32 0, %v1170
        %v1172 = vsel %vm1166, %v1171, %v1170
        %vm1173 = vcmp.lt.s32.totalorder %v973, 0
        %v1174 = vsub.s32 0, %v973
        %v1175 = vsel %vm1173, %v1174, %v973
        %v1176 = vshrl.u32 %v1175, 4
        %v1177 = vand.u32 %v1175, 15
        %v1178 = vsub.s32 0, %v1177
        %v1179 = vsel %vm1173, %v1178, %v1177
        %vm1180 = vcmp.lt.s32.totalorder %v974, 0
        %v1181 = vsub.s32 0, %v974
        %v1182 = vsel %vm1180, %v1181, %v974
        %v1183 = vshrl.u32 %v1182, 4
        %v1184 = vand.u32 %v1182, 15
        %v1185 = vsub.s32 0, %v1184
        %v1186 = vsel %vm1180, %v1185, %v1184
        %vm1187 = vcmp.lt.s32.totalorder %v975, 0
        %v1188 = vsub.s32 0, %v975
        %v1189 = vsel %vm1187, %v1188, %v975
        %v1190 = vshrl.u32 %v1189, 4
        %v1191 = vand.u32 %v1189, 15
        %v1192 = vsub.s32 0, %v1191
        %v1193 = vsel %vm1187, %v1192, %v1191
        %vm1194 = vcmp.lt.s32.totalorder %v976, 0
        %v1195 = vsub.s32 0, %v976
        %v1196 = vsel %vm1194, %v1195, %v976
        %v1197 = vshrl.u32 %v1196, 4
        %v1198 = vand.u32 %v1196, 15
        %v1199 = vsub.s32 0, %v1198
        %v1200 = vsel %vm1194, %v1199, %v1198
        %vm1201 = vcmp.ne.s32.totalorder %v983, 0
        %vm1202 = vcmp.ne.s32.totalorder %v990, 0
        %vm1203 = vcmp.ne.s32.totalorder %v997, 0
        %vm1204 = vcmp.ne.s32.totalorder %v1004, 0
        %vm1205 = vcmp.ne.s32.totalorder %v1011, 0
        %vm1206 = vcmp.ne.s32.totalorder %v1018, 0
        %vm1207 = vcmp.ne.s32.totalorder %v1025, 0
        %vm1208 = vcmp.ne.s32.totalorder %v1032, 0
        %vm1209 = vcmp.ne.s32.totalorder %v1039, 0
        %vm1210 = vcmp.ne.s32.totalorder %v1046, 0
        %vm1211 = vcmp.ne.s32.totalorder %v1053, 0
        %vm1212 = vcmp.ne.s32.totalorder %v1060, 0
        %vm1213 = vcmp.ne.s32.totalorder %v1067, 0
        %vm1214 = vcmp.ne.s32.totalorder %v1074, 0
        %vm1215 = vcmp.ne.s32.totalorder %v1081, 0
        %vm1216 = vcmp.ne.s32.totalorder %v1088, 0
        %vm1217 = vcmp.ne.s32.totalorder %v1095, 0
        %vm1218 = vcmp.ne.s32.totalorder %v1102, 0
        %vm1219 = vcmp.ne.s32.totalorder %v1109, 0
        %vm1220 = vcmp.ne.s32.totalorder %v1116, 0
        %vm1221 = vcmp.ne.s32.totalorder %v1123, 0
        %vm1222 = vcmp.ne.s32.totalorder %v1130, 0
        %vm1223 = vcmp.ne.s32.totalorder %v1137, 0
        %vm1224 = vcmp.ne.s32.totalorder %v1144, 0
        %vm1225 = vcmp.ne.s32.totalorder %v1151, 0
        %vm1226 = vcmp.ne.s32.totalorder %v1158, 0
        %vm1227 = vcmp.ne.s32.totalorder %v1165, 0
        %vm1228 = vcmp.ne.s32.totalorder %v1172, 0
        %vm1229 = vcmp.ne.s32.totalorder %v1179, 0
        %vm1230 = vcmp.ne.s32.totalorder %v1186, 0
        %vm1231 = vcmp.ne.s32.totalorder %v1193, 0
        %vm1232 = vcmp.ne.s32.totalorder %v1200, 0
        %vm1233 = vcmp.lt.s32.totalorder %v983, 0
        %vm1234 = vcmp.lt.s32.totalorder %v990, 0
        %vm1235 = vcmp.lt.s32.totalorder %v997, 0
        %vm1236 = vcmp.lt.s32.totalorder %v1004, 0
        %vm1237 = vcmp.lt.s32.totalorder %v1011, 0
        %vm1238 = vcmp.lt.s32.totalorder %v1018, 0
        %vm1239 = vcmp.lt.s32.totalorder %v1025, 0
        %vm1240 = vcmp.lt.s32.totalorder %v1032, 0
        %vm1241 = vcmp.lt.s32.totalorder %v1039, 0
        %vm1242 = vcmp.lt.s32.totalorder %v1046, 0
        %vm1243 = vcmp.lt.s32.totalorder %v1053, 0
        %vm1244 = vcmp.lt.s32.totalorder %v1060, 0
        %vm1245 = vcmp.lt.s32.totalorder %v1067, 0
        %vm1246 = vcmp.lt.s32.totalorder %v1074, 0
        %vm1247 = vcmp.lt.s32.totalorder %v1081, 0
        %vm1248 = vcmp.lt.s32.totalorder %v1088, 0
        %vm1249 = vcmp.lt.s32.totalorder %v1095, 0
        %vm1250 = vcmp.lt.s32.totalorder %v1102, 0
        %vm1251 = vcmp.lt.s32.totalorder %v1109, 0
        %vm1252 = vcmp.lt.s32.totalorder %v1116, 0
        %vm1253 = vcmp.lt.s32.totalorder %v1123, 0
        %vm1254 = vcmp.lt.s32.totalorder %v1130, 0
        %vm1255 = vcmp.lt.s32.totalorder %v1137, 0
        %vm1256 = vcmp.lt.s32.totalorder %v1144, 0
        %vm1257 = vcmp.lt.s32.totalorder %v1151, 0
        %vm1258 = vcmp.lt.s32.totalorder %v1158, 0
        %vm1259 = vcmp.lt.s32.totalorder %v1165, 0
        %vm1260 = vcmp.lt.s32.totalorder %v1172, 0
        %vm1261 = vcmp.lt.s32.totalorder %v1179, 0
        %vm1262 = vcmp.lt.s32.totalorder %v1186, 0
        %vm1263 = vcmp.lt.s32.totalorder %v1193, 0
        %vm1264 = vcmp.lt.s32.totalorder %v1200, 0
        %vm1265 = vmand %vm1233, %vm1201
        %vm1266 = vmand %vm1234, %vm1202
        %vm1267 = vmand %vm1235, %vm1203
        %vm1268 = vmand %vm1236, %vm1204
        %vm1269 = vmand %vm1237, %vm1205
        %vm1270 = vmand %vm1238, %vm1206
        %vm1271 = vmand %vm1239, %vm1207
        %vm1272 = vmand %vm1240, %vm1208
        %vm1273 = vmand %vm1241, %vm1209
        %vm1274 = vmand %vm1242, %vm1210
        %vm1275 = vmand %vm1243, %vm1211
        %vm1276 = vmand %vm1244, %vm1212
        %vm1277 = vmand %vm1245, %vm1213
        %vm1278 = vmand %vm1246, %vm1214
        %vm1279 = vmand %vm1247, %vm1215
        %vm1280 = vmand %vm1248, %vm1216
        %vm1281 = vmand %vm1249, %vm1217
        %vm1282 = vmand %vm1250, %vm1218
        %vm1283 = vmand %vm1251, %vm1219
        %vm1284 = vmand %vm1252, %vm1220
        %vm1285 = vmand %vm1253, %vm1221
        %vm1286 = vmand %vm1254, %vm1222
        %vm1287 = vmand %vm1255, %vm1223
        %vm1288 = vmand %vm1256, %vm1224
        %vm1289 = vmand %vm1257, %vm1225
        %vm1290 = vmand %vm1258, %vm1226
        %vm1291 = vmand %vm1259, %vm1227
        %vm1292 = vmand %vm1260, %vm1228
        %vm1293 = vmand %vm1261, %vm1229
        %vm1294 = vmand %vm1262, %vm1230
        %vm1295 = vmand %vm1263, %vm1231
        %vm1296 = vmand %vm1264, %vm1232
        %v1297 = vadd.s32 %v983, 16
        %v1298 = vadd.s32 %v990, 16
        %v1299 = vadd.s32 %v997, 16
        %v1300 = vadd.s32 %v1004, 16
        %v1301 = vadd.s32 %v1011, 16
        %v1302 = vadd.s32 %v1018, 16
        %v1303 = vadd.s32 %v1025, 16
        %v1304 = vadd.s32 %v1032, 16
        %v1305 = vadd.s32 %v1039, 16
        %v1306 = vadd.s32 %v1046, 16
        %v1307 = vadd.s32 %v1053, 16
        %v1308 = vadd.s32 %v1060, 16
        %v1309 = vadd.s32 %v1067, 16
        %v1310 = vadd.s32 %v1074, 16
        %v1311 = vadd.s32 %v1081, 16
        %v1312 = vadd.s32 %v1088, 16
        %v1313 = vadd.s32 %v1095, 16
        %v1314 = vadd.s32 %v1102, 16
        %v1315 = vadd.s32 %v1109, 16
        %v1316 = vadd.s32 %v1116, 16
        %v1317 = vadd.s32 %v1123, 16
        %v1318 = vadd.s32 %v1130, 16
        %v1319 = vadd.s32 %v1137, 16
        %v1320 = vadd.s32 %v1144, 16
        %v1321 = vadd.s32 %v1151, 16
        %v1322 = vadd.s32 %v1158, 16
        %v1323 = vadd.s32 %v1165, 16
        %v1324 = vadd.s32 %v1172, 16
        %v1325 = vadd.s32 %v1179, 16
        %v1326 = vadd.s32 %v1186, 16
        %v1327 = vadd.s32 %v1193, 16
        %v1328 = vadd.s32 %v1200, 16
        %v1329 = vsel %vm1265, %v1297, %v983
        %v1330 = vsel %vm1266, %v1298, %v990
        %v1331 = vsel %vm1267, %v1299, %v997
        %v1332 = vsel %vm1268, %v1300, %v1004
        %v1333 = vsel %vm1269, %v1301, %v1011
        %v1334 = vsel %vm1270, %v1302, %v1018
        %v1335 = vsel %vm1271, %v1303, %v1025
        %v1336 = vsel %vm1272, %v1304, %v1032
        %v1337 = vsel %vm1273, %v1305, %v1039
        %v1338 = vsel %vm1274, %v1306, %v1046
        %v1339 = vsel %vm1275, %v1307, %v1053
        %v1340 = vsel %vm1276, %v1308, %v1060
        %v1341 = vsel %vm1277, %v1309, %v1067
        %v1342 = vsel %vm1278, %v1310, %v1074
        %v1343 = vsel %vm1279, %v1311, %v1081
        %v1344 = vsel %vm1280, %v1312, %v1088
        %v1345 = vsel %vm1281, %v1313, %v1095
        %v1346 = vsel %vm1282, %v1314, %v1102
        %v1347 = vsel %vm1283, %v1315, %v1109
        %v1348 = vsel %vm1284, %v1316, %v1116
        %v1349 = vsel %vm1285, %v1317, %v1123
        %v1350 = vsel %vm1286, %v1318, %v1130
        %v1351 = vsel %vm1287, %v1319, %v1137
        %v1352 = vsel %vm1288, %v1320, %v1144
        %v1353 = vsel %vm1289, %v1321, %v1151
        %v1354 = vsel %vm1290, %v1322, %v1158
        %v1355 = vsel %vm1291, %v1323, %v1165
        %v1356 = vsel %vm1292, %v1324, %v1172
        %v1357 = vsel %vm1293, %v1325, %v1179
        %v1358 = vsel %vm1294, %v1326, %v1186
        %v1359 = vsel %vm1295, %v1327, %v1193
        %v1360 = vsel %vm1296, %v1328, %v1200
        %vm1361 = vcmp.ge.s32.totalorder %v1329, 1
        %vm1362 = vcmp.ge.s32.totalorder %v1330, 1
        %vm1363 = vcmp.ge.s32.totalorder %v1331, 1
        %vm1364 = vcmp.ge.s32.totalorder %v1332, 1
        %vm1365 = vcmp.ge.s32.totalorder %v1333, 1
        %vm1366 = vcmp.ge.s32.totalorder %v1334, 1
        %vm1367 = vcmp.ge.s32.totalorder %v1335, 1
        %vm1368 = vcmp.ge.s32.totalorder %v1336, 1
        %vm1369 = vcmp.ge.s32.totalorder %v1337, 1
        %vm1370 = vcmp.ge.s32.totalorder %v1338, 1
        %vm1371 = vcmp.ge.s32.totalorder %v1339, 1
        %vm1372 = vcmp.ge.s32.totalorder %v1340, 1
        %vm1373 = vcmp.ge.s32.totalorder %v1341, 1
        %vm1374 = vcmp.ge.s32.totalorder %v1342, 1
        %vm1375 = vcmp.ge.s32.totalorder %v1343, 1
        %vm1376 = vcmp.ge.s32.totalorder %v1344, 1
        %vm1377 = vcmp.ge.s32.totalorder %v1345, 1
        %vm1378 = vcmp.ge.s32.totalorder %v1346, 1
        %vm1379 = vcmp.ge.s32.totalorder %v1347, 1
        %vm1380 = vcmp.ge.s32.totalorder %v1348, 1
        %vm1381 = vcmp.ge.s32.totalorder %v1349, 1
        %vm1382 = vcmp.ge.s32.totalorder %v1350, 1
        %vm1383 = vcmp.ge.s32.totalorder %v1351, 1
        %vm1384 = vcmp.ge.s32.totalorder %v1352, 1
        %vm1385 = vcmp.ge.s32.totalorder %v1353, 1
        %vm1386 = vcmp.ge.s32.totalorder %v1354, 1
        %vm1387 = vcmp.ge.s32.totalorder %v1355, 1
        %vm1388 = vcmp.ge.s32.totalorder %v1356, 1
        %vm1389 = vcmp.ge.s32.totalorder %v1357, 1
        %vm1390 = vcmp.ge.s32.totalorder %v1358, 1
        %vm1391 = vcmp.ge.s32.totalorder %v1359, 1
        %vm1392 = vcmp.ge.s32.totalorder %v1360, 1
        %vm1393 = vcmp.le.s32.totalorder %v1329, 14
        %vm1394 = vcmp.le.s32.totalorder %v1330, 14
        %vm1395 = vcmp.le.s32.totalorder %v1331, 14
        %vm1396 = vcmp.le.s32.totalorder %v1332, 14
        %vm1397 = vcmp.le.s32.totalorder %v1333, 14
        %vm1398 = vcmp.le.s32.totalorder %v1334, 14
        %vm1399 = vcmp.le.s32.totalorder %v1335, 14
        %vm1400 = vcmp.le.s32.totalorder %v1336, 14
        %vm1401 = vcmp.le.s32.totalorder %v1337, 14
        %vm1402 = vcmp.le.s32.totalorder %v1338, 14
        %vm1403 = vcmp.le.s32.totalorder %v1339, 14
        %vm1404 = vcmp.le.s32.totalorder %v1340, 14
        %vm1405 = vcmp.le.s32.totalorder %v1341, 14
        %vm1406 = vcmp.le.s32.totalorder %v1342, 14
        %vm1407 = vcmp.le.s32.totalorder %v1343, 14
        %vm1408 = vcmp.le.s32.totalorder %v1344, 14
        %vm1409 = vcmp.le.s32.totalorder %v1345, 14
        %vm1410 = vcmp.le.s32.totalorder %v1346, 14
        %vm1411 = vcmp.le.s32.totalorder %v1347, 14
        %vm1412 = vcmp.le.s32.totalorder %v1348, 14
        %vm1413 = vcmp.le.s32.totalorder %v1349, 14
        %vm1414 = vcmp.le.s32.totalorder %v1350, 14
        %vm1415 = vcmp.le.s32.totalorder %v1351, 14
        %vm1416 = vcmp.le.s32.totalorder %v1352, 14
        %vm1417 = vcmp.le.s32.totalorder %v1353, 14
        %vm1418 = vcmp.le.s32.totalorder %v1354, 14
        %vm1419 = vcmp.le.s32.totalorder %v1355, 14
        %vm1420 = vcmp.le.s32.totalorder %v1356, 14
        %vm1421 = vcmp.le.s32.totalorder %v1357, 14
        %vm1422 = vcmp.le.s32.totalorder %v1358, 14
        %vm1423 = vcmp.le.s32.totalorder %v1359, 14
        %vm1424 = vcmp.le.s32.totalorder %v1360, 14
        %vm1425 = vcmp.ge.s32.totalorder %v945, 16
        %vm1426 = vcmp.ge.s32.totalorder %v946, 16
        %vm1427 = vcmp.ge.s32.totalorder %v947, 16
        %vm1428 = vcmp.ge.s32.totalorder %v948, 16
        %vm1429 = vcmp.ge.s32.totalorder %v949, 16
        %vm1430 = vcmp.ge.s32.totalorder %v950, 16
        %vm1431 = vcmp.ge.s32.totalorder %v951, 16
        %vm1432 = vcmp.ge.s32.totalorder %v952, 16
        %vm1433 = vcmp.ge.s32.totalorder %v953, 16
        %vm1434 = vcmp.ge.s32.totalorder %v954, 16
        %vm1435 = vcmp.ge.s32.totalorder %v955, 16
        %vm1436 = vcmp.ge.s32.totalorder %v956, 16
        %vm1437 = vcmp.ge.s32.totalorder %v957, 16
        %vm1438 = vcmp.ge.s32.totalorder %v958, 16
        %vm1439 = vcmp.ge.s32.totalorder %v959, 16
        %vm1440 = vcmp.ge.s32.totalorder %v960, 16
        %vm1441 = vcmp.ge.s32.totalorder %v961, 16
        %vm1442 = vcmp.ge.s32.totalorder %v962, 16
        %vm1443 = vcmp.ge.s32.totalorder %v963, 16
        %vm1444 = vcmp.ge.s32.totalorder %v964, 16
        %vm1445 = vcmp.ge.s32.totalorder %v965, 16
        %vm1446 = vcmp.ge.s32.totalorder %v966, 16
        %vm1447 = vcmp.ge.s32.totalorder %v967, 16
        %vm1448 = vcmp.ge.s32.totalorder %v968, 16
        %vm1449 = vcmp.ge.s32.totalorder %v969, 16
        %vm1450 = vcmp.ge.s32.totalorder %v970, 16
        %vm1451 = vcmp.ge.s32.totalorder %v971, 16
        %vm1452 = vcmp.ge.s32.totalorder %v972, 16
        %vm1453 = vcmp.ge.s32.totalorder %v973, 16
        %vm1454 = vcmp.ge.s32.totalorder %v974, 16
        %vm1455 = vcmp.ge.s32.totalorder %v975, 16
        %vm1456 = vcmp.ge.s32.totalorder %v976, 16
        %vm1457 = vcmp.lt.s32.totalorder %v945, 240
        %vm1458 = vcmp.lt.s32.totalorder %v946, 240
        %vm1459 = vcmp.lt.s32.totalorder %v947, 240
        %vm1460 = vcmp.lt.s32.totalorder %v948, 240
        %vm1461 = vcmp.lt.s32.totalorder %v949, 240
        %vm1462 = vcmp.lt.s32.totalorder %v950, 240
        %vm1463 = vcmp.lt.s32.totalorder %v951, 240
        %vm1464 = vcmp.lt.s32.totalorder %v952, 240
        %vm1465 = vcmp.lt.s32.totalorder %v953, 240
        %vm1466 = vcmp.lt.s32.totalorder %v954, 240
        %vm1467 = vcmp.lt.s32.totalorder %v955, 240
        %vm1468 = vcmp.lt.s32.totalorder %v956, 240
        %vm1469 = vcmp.lt.s32.totalorder %v957, 240
        %vm1470 = vcmp.lt.s32.totalorder %v958, 240
        %vm1471 = vcmp.lt.s32.totalorder %v959, 240
        %vm1472 = vcmp.lt.s32.totalorder %v960, 240
        %vm1473 = vcmp.lt.s32.totalorder %v961, 240
        %vm1474 = vcmp.lt.s32.totalorder %v962, 240
        %vm1475 = vcmp.lt.s32.totalorder %v963, 240
        %vm1476 = vcmp.lt.s32.totalorder %v964, 240
        %vm1477 = vcmp.lt.s32.totalorder %v965, 240
        %vm1478 = vcmp.lt.s32.totalorder %v966, 240
        %vm1479 = vcmp.lt.s32.totalorder %v967, 240
        %vm1480 = vcmp.lt.s32.totalorder %v968, 240
        %vm1481 = vcmp.lt.s32.totalorder %v969, 240
        %vm1482 = vcmp.lt.s32.totalorder %v970, 240
        %vm1483 = vcmp.lt.s32.totalorder %v971, 240
        %vm1484 = vcmp.lt.s32.totalorder %v972, 240
        %vm1485 = vcmp.lt.s32.totalorder %v973, 240
        %vm1486 = vcmp.lt.s32.totalorder %v974, 240
        %vm1487 = vcmp.lt.s32.totalorder %v975, 240
        %vm1488 = vcmp.lt.s32.totalorder %v976, 240
        %v1489 = vld [vmem:[#allocation2 + $0x7] sm:$0xff]
        %v1490 = vld [vmem:[#allocation2 + $0xf] sm:$0xff]
        %v1491 = vld [vmem:[#allocation2 + $0x17] sm:$0xff]
        %v1492 = vld [vmem:[#allocation2 + $0x1f] sm:$0xff]
        %v1493 = vld [vmem:[#allocation2 + $0x27] sm:$0xff]
        %v1494 = vld [vmem:[#allocation2 + $0x2f] sm:$0xff]
        %v1495 = vld [vmem:[#allocation2 + $0x37] sm:$0xff]
        %v1496 = vld [vmem:[#allocation2 + $0x3f] sm:$0xff]
        %v1497 = vld [vmem:[#allocation2 + $0x47] sm:$0xff]
        %v1498 = vld [vmem:[#allocation2 + $0x4f] sm:$0xff]
        %v1499 = vld [vmem:[#allocation2 + $0x57] sm:$0xff]
        %v1500 = vld [vmem:[#allocation2 + $0x5f] sm:$0xff]
        %v1501 = vld [vmem:[#allocation2 + $0x67] sm:$0xff]
        %v1502 = vld [vmem:[#allocation2 + $0x6f] sm:$0xff]
        %v1503 = vld [vmem:[#allocation2 + $0x77] sm:$0xff]
        %v1504 = vld [vmem:[#allocation2 + $0x7f] sm:$0xff]
        %v1505 = vld [vmem:[#allocation2 + $0x87] sm:$0xff]
        %v1506 = vld [vmem:[#allocation2 + $0x8f] sm:$0xff]
        %v1507 = vld [vmem:[#allocation2 + $0x97] sm:$0xff]
        %v1508 = vld [vmem:[#allocation2 + $0x9f] sm:$0xff]
        %v1509 = vld [vmem:[#allocation2 + $0xa7] sm:$0xff]
        %v1510 = vld [vmem:[#allocation2 + $0xaf] sm:$0xff]
        %v1511 = vld [vmem:[#allocation2 + $0xb7] sm:$0xff]
        %v1512 = vld [vmem:[#allocation2 + $0xbf] sm:$0xff]
        %v1513 = vld [vmem:[#allocation2 + $0xc7] sm:$0xff]
        %v1514 = vld [vmem:[#allocation2 + $0xcf] sm:$0xff]
        %v1515 = vld [vmem:[#allocation2 + $0xd7] sm:$0xff]
        %v1516 = vld [vmem:[#allocation2 + $0xdf] sm:$0xff]
        %v1517 = vld [vmem:[#allocation2 + $0xe7] sm:$0xff]
        %v1518 = vld [vmem:[#allocation2 + $0xef] sm:$0xff]
        %v1519 = vld [vmem:[#allocation2 + $0xf7] sm:$0xff]
        %v1520 = vld [vmem:[#allocation2 + $0xff] sm:$0xff]
        %vm1521 = vmand %vm1425, %vm1361
        %vm1522 = vmand %vm1426, %vm1362
        %vm1523 = vmand %vm1427, %vm1363
        %vm1524 = vmand %vm1428, %vm1364
        %vm1525 = vmand %vm1429, %vm1365
        %vm1526 = vmand %vm1430, %vm1366
        %vm1527 = vmand %vm1431, %vm1367
        %vm1528 = vmand %vm1432, %vm1368
        %vm1529 = vmand %vm1433, %vm1369
        %vm1530 = vmand %vm1434, %vm1370
        %vm1531 = vmand %vm1435, %vm1371
        %vm1532 = vmand %vm1436, %vm1372
        %vm1533 = vmand %vm1437, %vm1373
        %vm1534 = vmand %vm1438, %vm1374
        %vm1535 = vmand %vm1439, %vm1375
        %vm1536 = vmand %vm1440, %vm1376
        %vm1537 = vmand %vm1441, %vm1377
        %vm1538 = vmand %vm1442, %vm1378
        %vm1539 = vmand %vm1443, %vm1379
        %vm1540 = vmand %vm1444, %vm1380
        %vm1541 = vmand %vm1445, %vm1381
        %vm1542 = vmand %vm1446, %vm1382
        %vm1543 = vmand %vm1447, %vm1383
        %vm1544 = vmand %vm1448, %vm1384
        %vm1545 = vmand %vm1449, %vm1385
        %vm1546 = vmand %vm1450, %vm1386
        %vm1547 = vmand %vm1451, %vm1387
        %vm1548 = vmand %vm1452, %vm1388
        %vm1549 = vmand %vm1453, %vm1389
        %vm1550 = vmand %vm1454, %vm1390
        %vm1551 = vmand %vm1455, %vm1391
        %vm1552 = vmand %vm1456, %vm1392
        %v1553 = vsel %vm1521, 1, 0
        %v1554 = vsel %vm1522, 1, 0
        %v1555 = vsel %vm1523, 1, 0
        %v1556 = vsel %vm1524, 1, 0
        %v1557 = vsel %vm1525, 1, 0
        %v1558 = vsel %vm1526, 1, 0
        %v1559 = vsel %vm1527, 1, 0
        %v1560 = vsel %vm1528, 1, 0
        %v1561 = vsel %vm1529, 1, 0
        %v1562 = vsel %vm1530, 1, 0
        %v1563 = vsel %vm1531, 1, 0
        %v1564 = vsel %vm1532, 1, 0
        %v1565 = vsel %vm1533, 1, 0
        %v1566 = vsel %vm1534, 1, 0
        %v1567 = vsel %vm1535, 1, 0
        %v1568 = vsel %vm1536, 1, 0
        %v1569 = vsel %vm1537, 1, 0
        %v1570 = vsel %vm1538, 1, 0
        %v1571 = vsel %vm1539, 1, 0
        %v1572 = vsel %vm1540, 1, 0
        %v1573 = vsel %vm1541, 1, 0
        %v1574 = vsel %vm1542, 1, 0
        %v1575 = vsel %vm1543, 1, 0
        %v1576 = vsel %vm1544, 1, 0
        %v1577 = vsel %vm1545, 1, 0
        %v1578 = vsel %vm1546, 1, 0
        %v1579 = vsel %vm1547, 1, 0
        %v1580 = vsel %vm1548, 1, 0
        %v1581 = vsel %vm1549, 1, 0
        %v1582 = vsel %vm1550, 1, 0
        %v1583 = vsel %vm1551, 1, 0
        %v1584 = vsel %vm1552, 1, 0
        %vm1585 = vcmp.eq.s32.totalorder %v1553, 1
        %vm1586 = vcmp.eq.s32.totalorder %v1554, 1
        %vm1587 = vcmp.eq.s32.totalorder %v1555, 1
        %vm1588 = vcmp.eq.s32.totalorder %v1556, 1
        %vm1589 = vcmp.eq.s32.totalorder %v1557, 1
        %vm1590 = vcmp.eq.s32.totalorder %v1558, 1
        %vm1591 = vcmp.eq.s32.totalorder %v1559, 1
        %vm1592 = vcmp.eq.s32.totalorder %v1560, 1
        %vm1593 = vcmp.eq.s32.totalorder %v1561, 1
        %vm1594 = vcmp.eq.s32.totalorder %v1562, 1
        %vm1595 = vcmp.eq.s32.totalorder %v1563, 1
        %vm1596 = vcmp.eq.s32.totalorder %v1564, 1
        %vm1597 = vcmp.eq.s32.totalorder %v1565, 1
        %vm1598 = vcmp.eq.s32.totalorder %v1566, 1
        %vm1599 = vcmp.eq.s32.totalorder %v1567, 1
        %vm1600 = vcmp.eq.s32.totalorder %v1568, 1
        %vm1601 = vcmp.eq.s32.totalorder %v1569, 1
        %vm1602 = vcmp.eq.s32.totalorder %v1570, 1
        %vm1603 = vcmp.eq.s32.totalorder %v1571, 1
        %vm1604 = vcmp.eq.s32.totalorder %v1572, 1
        %vm1605 = vcmp.eq.s32.totalorder %v1573, 1
        %vm1606 = vcmp.eq.s32.totalorder %v1574, 1
        %vm1607 = vcmp.eq.s32.totalorder %v1575, 1
        %vm1608 = vcmp.eq.s32.totalorder %v1576, 1
        %vm1609 = vcmp.eq.s32.totalorder %v1577, 1
        %vm1610 = vcmp.eq.s32.totalorder %v1578, 1
        %vm1611 = vcmp.eq.s32.totalorder %v1579, 1
        %vm1612 = vcmp.eq.s32.totalorder %v1580, 1
        %vm1613 = vcmp.eq.s32.totalorder %v1581, 1
        %vm1614 = vcmp.eq.s32.totalorder %v1582, 1
        %vm1615 = vcmp.eq.s32.totalorder %v1583, 1
        %vm1616 = vcmp.eq.s32.totalorder %v1584, 1
        %v1617 = vsel %vm1585, %v1489, 0.0
        %v1618 = vsel %vm1586, %v1490, 0.0
        %v1619 = vsel %vm1587, %v1491, 0.0
        %v1620 = vsel %vm1588, %v1492, 0.0
        %v1621 = vsel %vm1589, %v1493, 0.0
        %v1622 = vsel %vm1590, %v1494, 0.0
        %v1623 = vsel %vm1591, %v1495, 0.0
        %v1624 = vsel %vm1592, %v1496, 0.0
        %v1625 = vsel %vm1593, %v1497, 0.0
        %v1626 = vsel %vm1594, %v1498, 0.0
        %v1627 = vsel %vm1595, %v1499, 0.0
        %v1628 = vsel %vm1596, %v1500, 0.0
        %v1629 = vsel %vm1597, %v1501, 0.0
        %v1630 = vsel %vm1598, %v1502, 0.0
        %v1631 = vsel %vm1599, %v1503, 0.0
        %v1632 = vsel %vm1600, %v1504, 0.0
        %v1633 = vsel %vm1601, %v1505, 0.0
        %v1634 = vsel %vm1602, %v1506, 0.0
        %v1635 = vsel %vm1603, %v1507, 0.0
        %v1636 = vsel %vm1604, %v1508, 0.0
        %v1637 = vsel %vm1605, %v1509, 0.0
        %v1638 = vsel %vm1606, %v1510, 0.0
        %v1639 = vsel %vm1607, %v1511, 0.0
        %v1640 = vsel %vm1608, %v1512, 0.0
        %v1641 = vsel %vm1609, %v1513, 0.0
        %v1642 = vsel %vm1610, %v1514, 0.0
        %v1643 = vsel %vm1611, %v1515, 0.0
        %v1644 = vsel %vm1612, %v1516, 0.0
        %v1645 = vsel %vm1613, %v1517, 0.0
        %v1646 = vsel %vm1614, %v1518, 0.0
        %v1647 = vsel %vm1615, %v1519, 0.0
        %v1648 = vsel %vm1616, %v1520, 0.0
        %1649 = vst.msk [vmem:[#allocation5] sm:$0xff] %vm521, %v1617
        %1650 = vst.msk [vmem:[#allocation5 + $0x8] sm:$0xff] %vm521, %v1618
        %1651 = vst.msk [vmem:[#allocation5 + $0x10] sm:$0xff] %vm521, %v1619
        %1652 = vst.msk [vmem:[#allocation5 + $0x18] sm:$0xff] %vm521, %v1620
        %1653 = vst.msk [vmem:[#allocation5 + $0x20] sm:$0xff] %vm521, %v1621
        %1654 = vst.msk [vmem:[#allocation5 + $0x28] sm:$0xff] %vm521, %v1622
        %1655 = vst.msk [vmem:[#allocation5 + $0x30] sm:$0xff] %vm521, %v1623
        %1656 = vst.msk [vmem:[#allocation5 + $0x38] sm:$0xff] %vm521, %v1624
        %1657 = vst.msk [vmem:[#allocation5 + $0x40] sm:$0xff] %vm521, %v1625
        %1658 = vst.msk [vmem:[#allocation5 + $0x48] sm:$0xff] %vm521, %v1626
        %1659 = vst.msk [vmem:[#allocation5 + $0x50] sm:$0xff] %vm521, %v1627
        %1660 = vst.msk [vmem:[#allocation5 + $0x58] sm:$0xff] %vm521, %v1628
        %1661 = vst.msk [vmem:[#allocation5 + $0x60] sm:$0xff] %vm521, %v1629
        %1662 = vst.msk [vmem:[#allocation5 + $0x68] sm:$0xff] %vm521, %v1630
        %1663 = vst.msk [vmem:[#allocation5 + $0x70] sm:$0xff] %vm521, %v1631
        %1664 = vst.msk [vmem:[#allocation5 + $0x78] sm:$0xff] %vm521, %v1632
        %1665 = vst.msk [vmem:[#allocation5 + $0x80] sm:$0xff] %vm521, %v1633
        %1666 = vst.msk [vmem:[#allocation5 + $0x88] sm:$0xff] %vm521, %v1634
        %1667 = vst.msk [vmem:[#allocation5 + $0x90] sm:$0xff] %vm521, %v1635
        %1668 = vst.msk [vmem:[#allocation5 + $0x98] sm:$0xff] %vm521, %v1636
        %1669 = vst.msk [vmem:[#allocation5 + $0xa0] sm:$0xff] %vm521, %v1637
        %1670 = vst.msk [vmem:[#allocation5 + $0xa8] sm:$0xff] %vm521, %v1638
        %1671 = vst.msk [vmem:[#allocation5 + $0xb0] sm:$0xff] %vm521, %v1639
        %1672 = vst.msk [vmem:[#allocation5 + $0xb8] sm:$0xff] %vm521, %v1640
        %1673 = vst.msk [vmem:[#allocation5 + $0xc0] sm:$0xff] %vm521, %v1641
        %1674 = vst.msk [vmem:[#allocation5 + $0xc8] sm:$0xff] %vm521, %v1642
        %1675 = vst.msk [vmem:[#allocation5 + $0xd0] sm:$0xff] %vm521, %v1643
        %1676 = vst.msk [vmem:[#allocation5 + $0xd8] sm:$0xff] %vm521, %v1644
        %1677 = vst.msk [vmem:[#allocation5 + $0xe0] sm:$0xff] %vm521, %v1645
        %1678 = vst.msk [vmem:[#allocation5 + $0xe8] sm:$0xff] %vm521, %v1646
        %1679 = vst.msk [vmem:[#allocation5 + $0xf0] sm:$0xff] %vm521, %v1647
        %1680 = vst.msk [vmem:[#allocation5 + $0xf8] sm:$0xff] %vm521, %v1648
        %v1681 = vld [vmem:[#allocation2 + $0x8] sm:$0xff]
        %v1682 = vld [vmem:[#allocation2 + $0x10] sm:$0xff]
        %v1683 = vld [vmem:[#allocation2 + $0x18] sm:$0xff]
        %v1684 = vld [vmem:[#allocation2 + $0x20] sm:$0xff]
        %v1685 = vld [vmem:[#allocation2 + $0x28] sm:$0xff]
        %v1686 = vld [vmem:[#allocation2 + $0x30] sm:$0xff]
        %v1687 = vld [vmem:[#allocation2 + $0x38] sm:$0xff]
        %v1688 = vld [vmem:[#allocation2 + $0x40] sm:$0xff]
        %v1689 = vld [vmem:[#allocation2 + $0x48] sm:$0xff]
        %v1690 = vld [vmem:[#allocation2 + $0x50] sm:$0xff]
        %v1691 = vld [vmem:[#allocation2 + $0x58] sm:$0xff]
        %v1692 = vld [vmem:[#allocation2 + $0x60] sm:$0xff]
        %v1693 = vld [vmem:[#allocation2 + $0x68] sm:$0xff]
        %v1694 = vld [vmem:[#allocation2 + $0x70] sm:$0xff]
        %v1695 = vld [vmem:[#allocation2 + $0x78] sm:$0xff]
        %v1696 = vld [vmem:[#allocation2 + $0x80] sm:$0xff]
        %v1697 = vld [vmem:[#allocation2 + $0x88] sm:$0xff]
        %v1698 = vld [vmem:[#allocation2 + $0x90] sm:$0xff]
        %v1699 = vld [vmem:[#allocation2 + $0x98] sm:$0xff]
        %v1700 = vld [vmem:[#allocation2 + $0xa0] sm:$0xff]
        %v1701 = vld [vmem:[#allocation2 + $0xa8] sm:$0xff]
        %v1702 = vld [vmem:[#allocation2 + $0xb0] sm:$0xff]
        %v1703 = vld [vmem:[#allocation2 + $0xb8] sm:$0xff]
        %v1704 = vld [vmem:[#allocation2 + $0xc0] sm:$0xff]
        %v1705 = vld [vmem:[#allocation2 + $0xc8] sm:$0xff]
        %v1706 = vld [vmem:[#allocation2 + $0xd0] sm:$0xff]
        %v1707 = vld [vmem:[#allocation2 + $0xd8] sm:$0xff]
        %v1708 = vld [vmem:[#allocation2 + $0xe0] sm:$0xff]
        %v1709 = vld [vmem:[#allocation2 + $0xe8] sm:$0xff]
        %v1710 = vld [vmem:[#allocation2 + $0xf0] sm:$0xff]
        %v1711 = vld [vmem:[#allocation2 + $0xf8] sm:$0xff]
        %v1712 = vld [vmem:[#allocation2 + $0x100] sm:$0xff]
        %v1713 = vsel %vm1425, 1, 0
        %v1714 = vsel %vm1426, 1, 0
        %v1715 = vsel %vm1427, 1, 0
        %v1716 = vsel %vm1428, 1, 0
        %v1717 = vsel %vm1429, 1, 0
        %v1718 = vsel %vm1430, 1, 0
        %v1719 = vsel %vm1431, 1, 0
        %v1720 = vsel %vm1432, 1, 0
        %v1721 = vsel %vm1433, 1, 0
        %v1722 = vsel %vm1434, 1, 0
        %v1723 = vsel %vm1435, 1, 0
        %v1724 = vsel %vm1436, 1, 0
        %v1725 = vsel %vm1437, 1, 0
        %v1726 = vsel %vm1438, 1, 0
        %v1727 = vsel %vm1439, 1, 0
        %v1728 = vsel %vm1440, 1, 0
        %v1729 = vsel %vm1441, 1, 0
        %v1730 = vsel %vm1442, 1, 0
        %v1731 = vsel %vm1443, 1, 0
        %v1732 = vsel %vm1444, 1, 0
        %v1733 = vsel %vm1445, 1, 0
        %v1734 = vsel %vm1446, 1, 0
        %v1735 = vsel %vm1447, 1, 0
        %v1736 = vsel %vm1448, 1, 0
        %v1737 = vsel %vm1449, 1, 0
        %v1738 = vsel %vm1450, 1, 0
        %v1739 = vsel %vm1451, 1, 0
        %v1740 = vsel %vm1452, 1, 0
        %v1741 = vsel %vm1453, 1, 0
        %v1742 = vsel %vm1454, 1, 0
        %v1743 = vsel %vm1455, 1, 0
        %v1744 = vsel %vm1456, 1, 0
        %vm1745 = vcmp.eq.s32.totalorder %v1713, 1
        %vm1746 = vcmp.eq.s32.totalorder %v1714, 1
        %vm1747 = vcmp.eq.s32.totalorder %v1715, 1
        %vm1748 = vcmp.eq.s32.totalorder %v1716, 1
        %vm1749 = vcmp.eq.s32.totalorder %v1717, 1
        %vm1750 = vcmp.eq.s32.totalorder %v1718, 1
        %vm1751 = vcmp.eq.s32.totalorder %v1719, 1
        %vm1752 = vcmp.eq.s32.totalorder %v1720, 1
        %vm1753 = vcmp.eq.s32.totalorder %v1721, 1
        %vm1754 = vcmp.eq.s32.totalorder %v1722, 1
        %vm1755 = vcmp.eq.s32.totalorder %v1723, 1
        %vm1756 = vcmp.eq.s32.totalorder %v1724, 1
        %vm1757 = vcmp.eq.s32.totalorder %v1725, 1
        %vm1758 = vcmp.eq.s32.totalorder %v1726, 1
        %vm1759 = vcmp.eq.s32.totalorder %v1727, 1
        %vm1760 = vcmp.eq.s32.totalorder %v1728, 1
        %vm1761 = vcmp.eq.s32.totalorder %v1729, 1
        %vm1762 = vcmp.eq.s32.totalorder %v1730, 1
        %vm1763 = vcmp.eq.s32.totalorder %v1731, 1
        %vm1764 = vcmp.eq.s32.totalorder %v1732, 1
        %vm1765 = vcmp.eq.s32.totalorder %v1733, 1
        %vm1766 = vcmp.eq.s32.totalorder %v1734, 1
        %vm1767 = vcmp.eq.s32.totalorder %v1735, 1
        %vm1768 = vcmp.eq.s32.totalorder %v1736, 1
        %vm1769 = vcmp.eq.s32.totalorder %v1737, 1
        %vm1770 = vcmp.eq.s32.totalorder %v1738, 1
        %vm1771 = vcmp.eq.s32.totalorder %v1739, 1
        %vm1772 = vcmp.eq.s32.totalorder %v1740, 1
        %vm1773 = vcmp.eq.s32.totalorder %v1741, 1
        %vm1774 = vcmp.eq.s32.totalorder %v1742, 1
        %vm1775 = vcmp.eq.s32.totalorder %v1743, 1
        %vm1776 = vcmp.eq.s32.totalorder %v1744, 1
        %v1777 = vsel %vm1745, %v1681, 0.0
        %v1778 = vsel %vm1746, %v1682, 0.0
        %v1779 = vsel %vm1747, %v1683, 0.0
        %v1780 = vsel %vm1748, %v1684, 0.0
        %v1781 = vsel %vm1749, %v1685, 0.0
        %v1782 = vsel %vm1750, %v1686, 0.0
        %v1783 = vsel %vm1751, %v1687, 0.0
        %v1784 = vsel %vm1752, %v1688, 0.0
        %v1785 = vsel %vm1753, %v1689, 0.0
        %v1786 = vsel %vm1754, %v1690, 0.0
        %v1787 = vsel %vm1755, %v1691, 0.0
        %v1788 = vsel %vm1756, %v1692, 0.0
        %v1789 = vsel %vm1757, %v1693, 0.0
        %v1790 = vsel %vm1758, %v1694, 0.0
        %v1791 = vsel %vm1759, %v1695, 0.0
        %v1792 = vsel %vm1760, %v1696, 0.0
        %v1793 = vsel %vm1761, %v1697, 0.0
        %v1794 = vsel %vm1762, %v1698, 0.0
        %v1795 = vsel %vm1763, %v1699, 0.0
        %v1796 = vsel %vm1764, %v1700, 0.0
        %v1797 = vsel %vm1765, %v1701, 0.0
        %v1798 = vsel %vm1766, %v1702, 0.0
        %v1799 = vsel %vm1767, %v1703, 0.0
        %v1800 = vsel %vm1768, %v1704, 0.0
        %v1801 = vsel %vm1769, %v1705, 0.0
        %v1802 = vsel %vm1770, %v1706, 0.0
        %v1803 = vsel %vm1771, %v1707, 0.0
        %v1804 = vsel %vm1772, %v1708, 0.0
        %v1805 = vsel %vm1773, %v1709, 0.0
        %v1806 = vsel %vm1774, %v1710, 0.0
        %v1807 = vsel %vm1775, %v1711, 0.0
        %v1808 = vsel %vm1776, %v1712, 0.0
        %1841 = vrot.lane.b32.xlu0 %v1777, 4
        %v1842 = vpop.permute.xlu0 %1841
        %1843 = vrot.lane.b32.xlu0 %v1778, 4
        %v1844 = vpop.permute.xlu0 %1843
        %1845 = vrot.lane.b32.xlu0 %v1779, 4
        %v1846 = vpop.permute.xlu0 %1845
        %1847 = vrot.lane.b32.xlu0 %v1780, 4
        %v1848 = vpop.permute.xlu0 %1847
        %1849 = vrot.lane.b32.xlu0 %v1781, 4
        %v1850 = vpop.permute.xlu0 %1849
        %1851 = vrot.lane.b32.xlu0 %v1782, 4
        %v1852 = vpop.permute.xlu0 %1851
        %1853 = vrot.lane.b32.xlu0 %v1783, 4
        %v1854 = vpop.permute.xlu0 %1853
        %1855 = vrot.lane.b32.xlu0 %v1784, 4
        %v1856 = vpop.permute.xlu0 %1855
        %1857 = vrot.lane.b32.xlu0 %v1785, 4
        %v1858 = vpop.permute.xlu0 %1857
        %1859 = vrot.lane.b32.xlu0 %v1786, 4
        %v1860 = vpop.permute.xlu0 %1859
        %1861 = vrot.lane.b32.xlu0 %v1787, 4
        %v1862 = vpop.permute.xlu0 %1861
        %1863 = vrot.lane.b32.xlu0 %v1788, 4
        %v1864 = vpop.permute.xlu0 %1863
        %1865 = vrot.lane.b32.xlu0 %v1789, 4
        %v1866 = vpop.permute.xlu0 %1865
        %1867 = vrot.lane.b32.xlu0 %v1790, 4
        %v1868 = vpop.permute.xlu0 %1867
        %1869 = vrot.lane.b32.xlu0 %v1791, 4
        %v1870 = vpop.permute.xlu0 %1869
        %1871 = vrot.lane.b32.xlu0 %v1792, 4
        %v1872 = vpop.permute.xlu0 %1871
        %1873 = vrot.lane.b32.xlu0 %v1793, 4
        %v1874 = vpop.permute.xlu0 %1873
        %1875 = vrot.lane.b32.xlu0 %v1794, 4
        %v1876 = vpop.permute.xlu0 %1875
        %1877 = vrot.lane.b32.xlu0 %v1795, 4
        %v1878 = vpop.permute.xlu0 %1877
        %1879 = vrot.lane.b32.xlu0 %v1796, 4
        %v1880 = vpop.permute.xlu0 %1879
        %1881 = vrot.lane.b32.xlu0 %v1797, 4
        %v1882 = vpop.permute.xlu0 %1881
        %1883 = vrot.lane.b32.xlu0 %v1798, 4
        %v1884 = vpop.permute.xlu0 %1883
        %1885 = vrot.lane.b32.xlu0 %v1799, 4
        %v1886 = vpop.permute.xlu0 %1885
        %1887 = vrot.lane.b32.xlu0 %v1800, 4
        %v1888 = vpop.permute.xlu0 %1887
        %1889 = vrot.lane.b32.xlu0 %v1801, 4
        %v1890 = vpop.permute.xlu0 %1889
        %1891 = vrot.lane.b32.xlu0 %v1802, 4
        %v1892 = vpop.permute.xlu0 %1891
        %1893 = vrot.lane.b32.xlu0 %v1803, 4
        %v1894 = vpop.permute.xlu0 %1893
        %1895 = vrot.lane.b32.xlu0 %v1804, 4
        %v1896 = vpop.permute.xlu0 %1895
        %1897 = vrot.lane.b32.xlu0 %v1805, 4
        %v1898 = vpop.permute.xlu0 %1897
        %1899 = vrot.lane.b32.xlu0 %v1806, 4
        %v1900 = vpop.permute.xlu0 %1899
        %1901 = vrot.lane.b32.xlu0 %v1807, 4
        %v1902 = vpop.permute.xlu0 %1901
        %1903 = vrot.lane.b32.xlu0 %v1808, 4
        %v1904 = vpop.permute.xlu0 %1903
        %vm1937 = vcmask 64544
        %1938 = vst.msk [vmem:[#allocation5] sm:$0xff] %vm1937, %v1842
        %1939 = vst.msk [vmem:[#allocation5 + $0x8] sm:$0xff] %vm1937, %v1844
        %1940 = vst.msk [vmem:[#allocation5 + $0x10] sm:$0xff] %vm1937, %v1846
        %1941 = vst.msk [vmem:[#allocation5 + $0x18] sm:$0xff] %vm1937, %v1848
        %1942 = vst.msk [vmem:[#allocation5 + $0x20] sm:$0xff] %vm1937, %v1850
        %1943 = vst.msk [vmem:[#allocation5 + $0x28] sm:$0xff] %vm1937, %v1852
        %1944 = vst.msk [vmem:[#allocation5 + $0x30] sm:$0xff] %vm1937, %v1854
        %1945 = vst.msk [vmem:[#allocation5 + $0x38] sm:$0xff] %vm1937, %v1856
        %1946 = vst.msk [vmem:[#allocation5 + $0x40] sm:$0xff] %vm1937, %v1858
        %1947 = vst.msk [vmem:[#allocation5 + $0x48] sm:$0xff] %vm1937, %v1860
        %1948 = vst.msk [vmem:[#allocation5 + $0x50] sm:$0xff] %vm1937, %v1862
        %1949 = vst.msk [vmem:[#allocation5 + $0x58] sm:$0xff] %vm1937, %v1864
        %1950 = vst.msk [vmem:[#allocation5 + $0x60] sm:$0xff] %vm1937, %v1866
        %1951 = vst.msk [vmem:[#allocation5 + $0x68] sm:$0xff] %vm1937, %v1868
        %1952 = vst.msk [vmem:[#allocation5 + $0x70] sm:$0xff] %vm1937, %v1870
        %1953 = vst.msk [vmem:[#allocation5 + $0x78] sm:$0xff] %vm1937, %v1872
        %1954 = vst.msk [vmem:[#allocation5 + $0x80] sm:$0xff] %vm1937, %v1874
        %1955 = vst.msk [vmem:[#allocation5 + $0x88] sm:$0xff] %vm1937, %v1876
        %1956 = vst.msk [vmem:[#allocation5 + $0x90] sm:$0xff] %vm1937, %v1878
        %1957 = vst.msk [vmem:[#allocation5 + $0x98] sm:$0xff] %vm1937, %v1880
        %1958 = vst.msk [vmem:[#allocation5 + $0xa0] sm:$0xff] %vm1937, %v1882
        %1959 = vst.msk [vmem:[#allocation5 + $0xa8] sm:$0xff] %vm1937, %v1884
        %1960 = vst.msk [vmem:[#allocation5 + $0xb0] sm:$0xff] %vm1937, %v1886
        %1961 = vst.msk [vmem:[#allocation5 + $0xb8] sm:$0xff] %vm1937, %v1888
        %1962 = vst.msk [vmem:[#allocation5 + $0xc0] sm:$0xff] %vm1937, %v1890
        %1963 = vst.msk [vmem:[#allocation5 + $0xc8] sm:$0xff] %vm1937, %v1892
        %1964 = vst.msk [vmem:[#allocation5 + $0xd0] sm:$0xff] %vm1937, %v1894
        %1965 = vst.msk [vmem:[#allocation5 + $0xd8] sm:$0xff] %vm1937, %v1896
        %1966 = vst.msk [vmem:[#allocation5 + $0xe0] sm:$0xff] %vm1937, %v1898
        %1967 = vst.msk [vmem:[#allocation5 + $0xe8] sm:$0xff] %vm1937, %v1900
        %1968 = vst.msk [vmem:[#allocation5 + $0xf0] sm:$0xff] %vm1937, %v1902
        %1969 = vst.msk [vmem:[#allocation5 + $0xf8] sm:$0xff] %vm1937, %v1904
        %v1970 = vld [vmem:[#allocation2 + $0x9] sm:$0xff]
        %v1971 = vld [vmem:[#allocation2 + $0x11] sm:$0xff]
        %v1972 = vld [vmem:[#allocation2 + $0x19] sm:$0xff]
        %v1973 = vld [vmem:[#allocation2 + $0x21] sm:$0xff]
        %v1974 = vld [vmem:[#allocation2 + $0x29] sm:$0xff]
        %v1975 = vld [vmem:[#allocation2 + $0x31] sm:$0xff]
        %v1976 = vld [vmem:[#allocation2 + $0x39] sm:$0xff]
        %v1977 = vld [vmem:[#allocation2 + $0x41] sm:$0xff]
        %v1978 = vld [vmem:[#allocation2 + $0x49] sm:$0xff]
        %v1979 = vld [vmem:[#allocation2 + $0x51] sm:$0xff]
        %v1980 = vld [vmem:[#allocation2 + $0x59] sm:$0xff]
        %v1981 = vld [vmem:[#allocation2 + $0x61] sm:$0xff]
        %v1982 = vld [vmem:[#allocation2 + $0x69] sm:$0xff]
        %v1983 = vld [vmem:[#allocation2 + $0x71] sm:$0xff]
        %v1984 = vld [vmem:[#allocation2 + $0x79] sm:$0xff]
        %v1985 = vld [vmem:[#allocation2 + $0x81] sm:$0xff]
        %v1986 = vld [vmem:[#allocation2 + $0x89] sm:$0xff]
        %v1987 = vld [vmem:[#allocation2 + $0x91] sm:$0xff]
        %v1988 = vld [vmem:[#allocation2 + $0x99] sm:$0xff]
        %v1989 = vld [vmem:[#allocation2 + $0xa1] sm:$0xff]
        %v1990 = vld [vmem:[#allocation2 + $0xa9] sm:$0xff]
        %v1991 = vld [vmem:[#allocation2 + $0xb1] sm:$0xff]
        %v1992 = vld [vmem:[#allocation2 + $0xb9] sm:$0xff]
        %v1993 = vld [vmem:[#allocation2 + $0xc1] sm:$0xff]
        %v1994 = vld [vmem:[#allocation2 + $0xc9] sm:$0xff]
        %v1995 = vld [vmem:[#allocation2 + $0xd1] sm:$0xff]
        %v1996 = vld [vmem:[#allocation2 + $0xd9] sm:$0xff]
        %v1997 = vld [vmem:[#allocation2 + $0xe1] sm:$0xff]
        %v1998 = vld [vmem:[#allocation2 + $0xe9] sm:$0xff]
        %v1999 = vld [vmem:[#allocation2 + $0xf1] sm:$0xff]
        %v2000 = vld [vmem:[#allocation2 + $0xf9] sm:$0xff]
        %v2001 = vld [vmem:[#allocation2 + $0x101] sm:$0xff]
        %vm2002 = vmand %vm1425, %vm1393
        %vm2003 = vmand %vm1426, %vm1394
        %vm2004 = vmand %vm1427, %vm1395
        %vm2005 = vmand %vm1428, %vm1396
        %vm2006 = vmand %vm1429, %vm1397
        %vm2007 = vmand %vm1430, %vm1398
        %vm2008 = vmand %vm1431, %vm1399
        %vm2009 = vmand %vm1432, %vm1400
        %vm2010 = vmand %vm1433, %vm1401
        %vm2011 = vmand %vm1434, %vm1402
        %vm2012 = vmand %vm1435, %vm1403
        %vm2013 = vmand %vm1436, %vm1404
        %vm2014 = vmand %vm1437, %vm1405
        %vm2015 = vmand %vm1438, %vm1406
        %vm2016 = vmand %vm1439, %vm1407
        %vm2017 = vmand %vm1440, %vm1408
        %vm2018 = vmand %vm1441, %vm1409
        %vm2019 = vmand %vm1442, %vm1410
        %vm2020 = vmand %vm1443, %vm1411
        %vm2021 = vmand %vm1444, %vm1412
        %vm2022 = vmand %vm1445, %vm1413
        %vm2023 = vmand %vm1446, %vm1414
        %vm2024 = vmand %vm1447, %vm1415
        %vm2025 = vmand %vm1448, %vm1416
        %vm2026 = vmand %vm1449, %vm1417
        %vm2027 = vmand %vm1450, %vm1418
        %vm2028 = vmand %vm1451, %vm1419
        %vm2029 = vmand %vm1452, %vm1420
        %vm2030 = vmand %vm1453, %vm1421
        %vm2031 = vmand %vm1454, %vm1422
        %vm2032 = vmand %vm1455, %vm1423
        %vm2033 = vmand %vm1456, %vm1424
        %v2034 = vsel %vm2002, 1, 0
        %v2035 = vsel %vm2003, 1, 0
        %v2036 = vsel %vm2004, 1, 0
        %v2037 = vsel %vm2005, 1, 0
        %v2038 = vsel %vm2006, 1, 0
        %v2039 = vsel %vm2007, 1, 0
        %v2040 = vsel %vm2008, 1, 0
        %v2041 = vsel %vm2009, 1, 0
        %v2042 = vsel %vm2010, 1, 0
        %v2043 = vsel %vm2011, 1, 0
        %v2044 = vsel %vm2012, 1, 0
        %v2045 = vsel %vm2013, 1, 0
        %v2046 = vsel %vm2014, 1, 0
        %v2047 = vsel %vm2015, 1, 0
        %v2048 = vsel %vm2016, 1, 0
        %v2049 = vsel %vm2017, 1, 0
        %v2050 = vsel %vm2018, 1, 0
        %v2051 = vsel %vm2019, 1, 0
        %v2052 = vsel %vm2020, 1, 0
        %v2053 = vsel %vm2021, 1, 0
        %v2054 = vsel %vm2022, 1, 0
        %v2055 = vsel %vm2023, 1, 0
        %v2056 = vsel %vm2024, 1, 0
        %v2057 = vsel %vm2025, 1, 0
        %v2058 = vsel %vm2026, 1, 0
        %v2059 = vsel %vm2027, 1, 0
        %v2060 = vsel %vm2028, 1, 0
        %v2061 = vsel %vm2029, 1, 0
        %v2062 = vsel %vm2030, 1, 0
        %v2063 = vsel %vm2031, 1, 0
        %v2064 = vsel %vm2032, 1, 0
        %v2065 = vsel %vm2033, 1, 0
        %vm2066 = vcmp.eq.s32.totalorder %v2034, 1
        %vm2067 = vcmp.eq.s32.totalorder %v2035, 1
        %vm2068 = vcmp.eq.s32.totalorder %v2036, 1
        %vm2069 = vcmp.eq.s32.totalorder %v2037, 1
        %vm2070 = vcmp.eq.s32.totalorder %v2038, 1
        %vm2071 = vcmp.eq.s32.totalorder %v2039, 1
        %vm2072 = vcmp.eq.s32.totalorder %v2040, 1
        %vm2073 = vcmp.eq.s32.totalorder %v2041, 1
        %vm2074 = vcmp.eq.s32.totalorder %v2042, 1
        %vm2075 = vcmp.eq.s32.totalorder %v2043, 1
        %vm2076 = vcmp.eq.s32.totalorder %v2044, 1
        %vm2077 = vcmp.eq.s32.totalorder %v2045, 1
        %vm2078 = vcmp.eq.s32.totalorder %v2046, 1
        %vm2079 = vcmp.eq.s32.totalorder %v2047, 1
        %vm2080 = vcmp.eq.s32.totalorder %v2048, 1
        %vm2081 = vcmp.eq.s32.totalorder %v2049, 1
        %vm2082 = vcmp.eq.s32.totalorder %v2050, 1
        %vm2083 = vcmp.eq.s32.totalorder %v2051, 1
        %vm2084 = vcmp.eq.s32.totalorder %v2052, 1
        %vm2085 = vcmp.eq.s32.totalorder %v2053, 1
        %vm2086 = vcmp.eq.s32.totalorder %v2054, 1
        %vm2087 = vcmp.eq.s32.totalorder %v2055, 1
        %vm2088 = vcmp.eq.s32.totalorder %v2056, 1
        %vm2089 = vcmp.eq.s32.totalorder %v2057, 1
        %vm2090 = vcmp.eq.s32.totalorder %v2058, 1
        %vm2091 = vcmp.eq.s32.totalorder %v2059, 1
        %vm2092 = vcmp.eq.s32.totalorder %v2060, 1
        %vm2093 = vcmp.eq.s32.totalorder %v2061, 1
        %vm2094 = vcmp.eq.s32.totalorder %v2062, 1
        %vm2095 = vcmp.eq.s32.totalorder %v2063, 1
        %vm2096 = vcmp.eq.s32.totalorder %v2064, 1
        %vm2097 = vcmp.eq.s32.totalorder %v2065, 1
        %v2098 = vsel %vm2066, %v1970, 0.0
        %v2099 = vsel %vm2067, %v1971, 0.0
        %v2100 = vsel %vm2068, %v1972, 0.0
        %v2101 = vsel %vm2069, %v1973, 0.0
        %v2102 = vsel %vm2070, %v1974, 0.0
        %v2103 = vsel %vm2071, %v1975, 0.0
        %v2104 = vsel %vm2072, %v1976, 0.0
        %v2105 = vsel %vm2073, %v1977, 0.0
        %v2106 = vsel %vm2074, %v1978, 0.0
        %v2107 = vsel %vm2075, %v1979, 0.0
        %v2108 = vsel %vm2076, %v1980, 0.0
        %v2109 = vsel %vm2077, %v1981, 0.0
        %v2110 = vsel %vm2078, %v1982, 0.0
        %v2111 = vsel %vm2079, %v1983, 0.0
        %v2112 = vsel %vm2080, %v1984, 0.0
        %v2113 = vsel %vm2081, %v1985, 0.0
        %v2114 = vsel %vm2082, %v1986, 0.0
        %v2115 = vsel %vm2083, %v1987, 0.0
        %v2116 = vsel %vm2084, %v1988, 0.0
        %v2117 = vsel %vm2085, %v1989, 0.0
        %v2118 = vsel %vm2086, %v1990, 0.0
        %v2119 = vsel %vm2087, %v1991, 0.0
        %v2120 = vsel %vm2088, %v1992, 0.0
        %v2121 = vsel %vm2089, %v1993, 0.0
        %v2122 = vsel %vm2090, %v1994, 0.0
        %v2123 = vsel %vm2091, %v1995, 0.0
        %v2124 = vsel %vm2092, %v1996, 0.0
        %v2125 = vsel %vm2093, %v1997, 0.0
        %v2126 = vsel %vm2094, %v1998, 0.0
        %v2127 = vsel %vm2095, %v1999, 0.0
        %v2128 = vsel %vm2096, %v2000, 0.0
        %v2129 = vsel %vm2097, %v2001, 0.0
        %2162 = vrot.lane.b32.xlu0 %v2098, 8
        %v2163 = vpop.permute.xlu0 %2162
        %2164 = vrot.lane.b32.xlu0 %v2099, 8
        %v2165 = vpop.permute.xlu0 %2164
        %2166 = vrot.lane.b32.xlu0 %v2100, 8
        %v2167 = vpop.permute.xlu0 %2166
        %2168 = vrot.lane.b32.xlu0 %v2101, 8
        %v2169 = vpop.permute.xlu0 %2168
        %2170 = vrot.lane.b32.xlu0 %v2102, 8
        %v2171 = vpop.permute.xlu0 %2170
        %2172 = vrot.lane.b32.xlu0 %v2103, 8
        %v2173 = vpop.permute.xlu0 %2172
        %2174 = vrot.lane.b32.xlu0 %v2104, 8
        %v2175 = vpop.permute.xlu0 %2174
        %2176 = vrot.lane.b32.xlu0 %v2105, 8
        %v2177 = vpop.permute.xlu0 %2176
        %2178 = vrot.lane.b32.xlu0 %v2106, 8
        %v2179 = vpop.permute.xlu0 %2178
        %2180 = vrot.lane.b32.xlu0 %v2107, 8
        %v2181 = vpop.permute.xlu0 %2180
        %2182 = vrot.lane.b32.xlu0 %v2108, 8
        %v2183 = vpop.permute.xlu0 %2182
        %2184 = vrot.lane.b32.xlu0 %v2109, 8
        %v2185 = vpop.permute.xlu0 %2184
        %2186 = vrot.lane.b32.xlu0 %v2110, 8
        %v2187 = vpop.permute.xlu0 %2186
        %2188 = vrot.lane.b32.xlu0 %v2111, 8
        %v2189 = vpop.permute.xlu0 %2188
        %2190 = vrot.lane.b32.xlu0 %v2112, 8
        %v2191 = vpop.permute.xlu0 %2190
        %2192 = vrot.lane.b32.xlu0 %v2113, 8
        %v2193 = vpop.permute.xlu0 %2192
        %2194 = vrot.lane.b32.xlu0 %v2114, 8
        %v2195 = vpop.permute.xlu0 %2194
        %2196 = vrot.lane.b32.xlu0 %v2115, 8
        %v2197 = vpop.permute.xlu0 %2196
        %2198 = vrot.lane.b32.xlu0 %v2116, 8
        %v2199 = vpop.permute.xlu0 %2198
        %2200 = vrot.lane.b32.xlu0 %v2117, 8
        %v2201 = vpop.permute.xlu0 %2200
        %2202 = vrot.lane.b32.xlu0 %v2118, 8
        %v2203 = vpop.permute.xlu0 %2202
        %2204 = vrot.lane.b32.xlu0 %v2119, 8
        %v2205 = vpop.permute.xlu0 %2204
        %2206 = vrot.lane.b32.xlu0 %v2120, 8
        %v2207 = vpop.permute.xlu0 %2206
        %2208 = vrot.lane.b32.xlu0 %v2121, 8
        %v2209 = vpop.permute.xlu0 %2208
        %2210 = vrot.lane.b32.xlu0 %v2122, 8
        %v2211 = vpop.permute.xlu0 %2210
        %2212 = vrot.lane.b32.xlu0 %v2123, 8
        %v2213 = vpop.permute.xlu0 %2212
        %2214 = vrot.lane.b32.xlu0 %v2124, 8
        %v2215 = vpop.permute.xlu0 %2214
        %2216 = vrot.lane.b32.xlu0 %v2125, 8
        %v2217 = vpop.permute.xlu0 %2216
        %2218 = vrot.lane.b32.xlu0 %v2126, 8
        %v2219 = vpop.permute.xlu0 %2218
        %2220 = vrot.lane.b32.xlu0 %v2127, 8
        %v2221 = vpop.permute.xlu0 %2220
        %2222 = vrot.lane.b32.xlu0 %v2128, 8
        %v2223 = vpop.permute.xlu0 %2222
        %2224 = vrot.lane.b32.xlu0 %v2129, 8
        %v2225 = vpop.permute.xlu0 %2224
        %vm2258 = vcmask 97344
        %2259 = vst.msk [vmem:[#allocation5] sm:$0xff] %vm2258, %v2163
        %2260 = vst.msk [vmem:[#allocation5 + $0x8] sm:$0xff] %vm2258, %v2165
        %2261 = vst.msk [vmem:[#allocation5 + $0x10] sm:$0xff] %vm2258, %v2167
        %2262 = vst.msk [vmem:[#allocation5 + $0x18] sm:$0xff] %vm2258, %v2169
        %2263 = vst.msk [vmem:[#allocation5 + $0x20] sm:$0xff] %vm2258, %v2171
        %2264 = vst.msk [vmem:[#allocation5 + $0x28] sm:$0xff] %vm2258, %v2173
        %2265 = vst.msk [vmem:[#allocation5 + $0x30] sm:$0xff] %vm2258, %v2175
        %2266 = vst.msk [vmem:[#allocation5 + $0x38] sm:$0xff] %vm2258, %v2177
        %2267 = vst.msk [vmem:[#allocation5 + $0x40] sm:$0xff] %vm2258, %v2179
        %2268 = vst.msk [vmem:[#allocation5 + $0x48] sm:$0xff] %vm2258, %v2181
        %2269 = vst.msk [vmem:[#allocation5 + $0x50] sm:$0xff] %vm2258, %v2183
        %2270 = vst.msk [vmem:[#allocation5 + $0x58] sm:$0xff] %vm2258, %v2185
        %2271 = vst.msk [vmem:[#allocation5 + $0x60] sm:$0xff] %vm2258, %v2187
        %2272 = vst.msk [vmem:[#allocation5 + $0x68] sm:$0xff] %vm2258, %v2189
        %2273 = vst.msk [vmem:[#allocation5 + $0x70] sm:$0xff] %vm2258, %v2191
        %2274 = vst.msk [vmem:[#allocation5 + $0x78] sm:$0xff] %vm2258, %v2193
        %2275 = vst.msk [vmem:[#allocation5 + $0x80] sm:$0xff] %vm2258, %v2195
        %2276 = vst.msk [vmem:[#allocation5 + $0x88] sm:$0xff] %vm2258, %v2197
        %2277 = vst.msk [vmem:[#allocation5 + $0x90] sm:$0xff] %vm2258, %v2199
        %2278 = vst.msk [vmem:[#allocation5 + $0x98] sm:$0xff] %vm2258, %v2201
        %2279 = vst.msk [vmem:[#allocation5 + $0xa0] sm:$0xff] %vm2258, %v2203
        %2280 = vst.msk [vmem:[#allocation5 + $0xa8] sm:$0xff] %vm2258, %v2205
        %2281 = vst.msk [vmem:[#allocation5 + $0xb0] sm:$0xff] %vm2258, %v2207
        %2282 = vst.msk [vmem:[#allocation5 + $0xb8] sm:$0xff] %vm2258, %v2209
        %2283 = vst.msk [vmem:[#allocation5 + $0xc0] sm:$0xff] %vm2258, %v2211
        %2284 = vst.msk [vmem:[#allocation5 + $0xc8] sm:$0xff] %vm2258, %v2213
        %2285 = vst.msk [vmem:[#allocation5 + $0xd0] sm:$0xff] %vm2258, %v2215
        %2286 = vst.msk [vmem:[#allocation5 + $0xd8] sm:$0xff] %vm2258, %v2217
        %2287 = vst.msk [vmem:[#allocation5 + $0xe0] sm:$0xff] %vm2258, %v2219
        %2288 = vst.msk [vmem:[#allocation5 + $0xe8] sm:$0xff] %vm2258, %v2221
        %2289 = vst.msk [vmem:[#allocation5 + $0xf0] sm:$0xff] %vm2258, %v2223
        %2290 = vst.msk [vmem:[#allocation5 + $0xf8] sm:$0xff] %vm2258, %v2225
        %v2291 = vld [vmem:[#allocation2 + $0x17] sm:$0xff]
        %v2292 = vld [vmem:[#allocation2 + $0x1f] sm:$0xff]
        %v2293 = vld [vmem:[#allocation2 + $0x27] sm:$0xff]
        %v2294 = vld [vmem:[#allocation2 + $0x2f] sm:$0xff]
        %v2295 = vld [vmem:[#allocation2 + $0x37] sm:$0xff]
        %v2296 = vld [vmem:[#allocation2 + $0x3f] sm:$0xff]
        %v2297 = vld [vmem:[#allocation2 + $0x47] sm:$0xff]
        %v2298 = vld [vmem:[#allocation2 + $0x4f] sm:$0xff]
        %v2299 = vld [vmem:[#allocation2 + $0x57] sm:$0xff]
        %v2300 = vld [vmem:[#allocation2 + $0x5f] sm:$0xff]
        %v2301 = vld [vmem:[#allocation2 + $0x67] sm:$0xff]
        %v2302 = vld [vmem:[#allocation2 + $0x6f] sm:$0xff]
        %v2303 = vld [vmem:[#allocation2 + $0x77] sm:$0xff]
        %v2304 = vld [vmem:[#allocation2 + $0x7f] sm:$0xff]
        %v2305 = vld [vmem:[#allocation2 + $0x87] sm:$0xff]
        %v2306 = vld [vmem:[#allocation2 + $0x8f] sm:$0xff]
        %v2307 = vld [vmem:[#allocation2 + $0x97] sm:$0xff]
        %v2308 = vld [vmem:[#allocation2 + $0x9f] sm:$0xff]
        %v2309 = vld [vmem:[#allocation2 + $0xa7] sm:$0xff]
        %v2310 = vld [vmem:[#allocation2 + $0xaf] sm:$0xff]
        %v2311 = vld [vmem:[#allocation2 + $0xb7] sm:$0xff]
        %v2312 = vld [vmem:[#allocation2 + $0xbf] sm:$0xff]
        %v2313 = vld [vmem:[#allocation2 + $0xc7] sm:$0xff]
        %v2314 = vld [vmem:[#allocation2 + $0xcf] sm:$0xff]
        %v2315 = vld [vmem:[#allocation2 + $0xd7] sm:$0xff]
        %v2316 = vld [vmem:[#allocation2 + $0xdf] sm:$0xff]
        %v2317 = vld [vmem:[#allocation2 + $0xe7] sm:$0xff]
        %v2318 = vld [vmem:[#allocation2 + $0xef] sm:$0xff]
        %v2319 = vld [vmem:[#allocation2 + $0xf7] sm:$0xff]
        %v2320 = vld [vmem:[#allocation2 + $0xff] sm:$0xff]
        %v2321 = vld [vmem:[#allocation2 + $0x107] sm:$0xff]
        %v2322 = vld [vmem:[#allocation2 + $0x10f] sm:$0xff]
        %v2323 = vsel %vm1361, 1, 0
        %v2324 = vsel %vm1362, 1, 0
        %v2325 = vsel %vm1363, 1, 0
        %v2326 = vsel %vm1364, 1, 0
        %v2327 = vsel %vm1365, 1, 0
        %v2328 = vsel %vm1366, 1, 0
        %v2329 = vsel %vm1367, 1, 0
        %v2330 = vsel %vm1368, 1, 0
        %v2331 = vsel %vm1369, 1, 0
        %v2332 = vsel %vm1370, 1, 0
        %v2333 = vsel %vm1371, 1, 0
        %v2334 = vsel %vm1372, 1, 0
        %v2335 = vsel %vm1373, 1, 0
        %v2336 = vsel %vm1374, 1, 0
        %v2337 = vsel %vm1375, 1, 0
        %v2338 = vsel %vm1376, 1, 0
        %v2339 = vsel %vm1377, 1, 0
        %v2340 = vsel %vm1378, 1, 0
        %v2341 = vsel %vm1379, 1, 0
        %v2342 = vsel %vm1380, 1, 0
        %v2343 = vsel %vm1381, 1, 0
        %v2344 = vsel %vm1382, 1, 0
        %v2345 = vsel %vm1383, 1, 0
        %v2346 = vsel %vm1384, 1, 0
        %v2347 = vsel %vm1385, 1, 0
        %v2348 = vsel %vm1386, 1, 0
        %v2349 = vsel %vm1387, 1, 0
        %v2350 = vsel %vm1388, 1, 0
        %v2351 = vsel %vm1389, 1, 0
        %v2352 = vsel %vm1390, 1, 0
        %v2353 = vsel %vm1391, 1, 0
        %v2354 = vsel %vm1392, 1, 0
        %vm2355 = vcmp.eq.s32.totalorder %v2323, 1
        %vm2356 = vcmp.eq.s32.totalorder %v2324, 1
        %vm2357 = vcmp.eq.s32.totalorder %v2325, 1
        %vm2358 = vcmp.eq.s32.totalorder %v2326, 1
        %vm2359 = vcmp.eq.s32.totalorder %v2327, 1
        %vm2360 = vcmp.eq.s32.totalorder %v2328, 1
        %vm2361 = vcmp.eq.s32.totalorder %v2329, 1
        %vm2362 = vcmp.eq.s32.totalorder %v2330, 1
        %vm2363 = vcmp.eq.s32.totalorder %v2331, 1
        %vm2364 = vcmp.eq.s32.totalorder %v2332, 1
        %vm2365 = vcmp.eq.s32.totalorder %v2333, 1
        %vm2366 = vcmp.eq.s32.totalorder %v2334, 1
        %vm2367 = vcmp.eq.s32.totalorder %v2335, 1
        %vm2368 = vcmp.eq.s32.totalorder %v2336, 1
        %vm2369 = vcmp.eq.s32.totalorder %v2337, 1
        %vm2370 = vcmp.eq.s32.totalorder %v2338, 1
        %vm2371 = vcmp.eq.s32.totalorder %v2339, 1
        %vm2372 = vcmp.eq.s32.totalorder %v2340, 1
        %vm2373 = vcmp.eq.s32.totalorder %v2341, 1
        %vm2374 = vcmp.eq.s32.totalorder %v2342, 1
        %vm2375 = vcmp.eq.s32.totalorder %v2343, 1
        %vm2376 = vcmp.eq.s32.totalorder %v2344, 1
        %vm2377 = vcmp.eq.s32.totalorder %v2345, 1
        %vm2378 = vcmp.eq.s32.totalorder %v2346, 1
        %vm2379 = vcmp.eq.s32.totalorder %v2347, 1
        %vm2380 = vcmp.eq.s32.totalorder %v2348, 1
        %vm2381 = vcmp.eq.s32.totalorder %v2349, 1
        %vm2382 = vcmp.eq.s32.totalorder %v2350, 1
        %vm2383 = vcmp.eq.s32.totalorder %v2351, 1
        %vm2384 = vcmp.eq.s32.totalorder %v2352, 1
        %vm2385 = vcmp.eq.s32.totalorder %v2353, 1
        %vm2386 = vcmp.eq.s32.totalorder %v2354, 1
        %v2387 = vsel %vm2355, %v2291, 0.0
        %v2388 = vsel %vm2356, %v2292, 0.0
        %v2389 = vsel %vm2357, %v2293, 0.0
        %v2390 = vsel %vm2358, %v2294, 0.0
        %v2391 = vsel %vm2359, %v2295, 0.0
        %v2392 = vsel %vm2360, %v2296, 0.0
        %v2393 = vsel %vm2361, %v2297, 0.0
        %v2394 = vsel %vm2362, %v2298, 0.0
        %v2395 = vsel %vm2363, %v2299, 0.0
        %v2396 = vsel %vm2364, %v2300, 0.0
        %v2397 = vsel %vm2365, %v2301, 0.0
        %v2398 = vsel %vm2366, %v2302, 0.0
        %v2399 = vsel %vm2367, %v2303, 0.0
        %v2400 = vsel %vm2368, %v2304, 0.0
        %v2401 = vsel %vm2369, %v2305, 0.0
        %v2402 = vsel %vm2370, %v2306, 0.0
        %v2403 = vsel %vm2371, %v2307, 0.0
        %v2404 = vsel %vm2372, %v2308, 0.0
        %v2405 = vsel %vm2373, %v2309, 0.0
        %v2406 = vsel %vm2374, %v2310, 0.0
        %v2407 = vsel %vm2375, %v2311, 0.0
        %v2408 = vsel %vm2376, %v2312, 0.0
        %v2409 = vsel %vm2377, %v2313, 0.0
        %v2410 = vsel %vm2378, %v2314, 0.0
        %v2411 = vsel %vm2379, %v2315, 0.0
        %v2412 = vsel %vm2380, %v2316, 0.0
        %v2413 = vsel %vm2381, %v2317, 0.0
        %v2414 = vsel %vm2382, %v2318, 0.0
        %v2415 = vsel %vm2383, %v2319, 0.0
        %v2416 = vsel %vm2384, %v2320, 0.0
        %v2417 = vsel %vm2385, %v2321, 0.0
        %v2418 = vsel %vm2386, %v2322, 0.0
        %2451 = vrot.lane.b32.xlu0 %v2387, 12
        %v2452 = vpop.permute.xlu0 %2451
        %2453 = vrot.lane.b32.xlu0 %v2388, 12
        %v2454 = vpop.permute.xlu0 %2453
        %2455 = vrot.lane.b32.xlu0 %v2389, 12
        %v2456 = vpop.permute.xlu0 %2455
        %2457 = vrot.lane.b32.xlu0 %v2390, 12
        %v2458 = vpop.permute.xlu0 %2457
        %2459 = vrot.lane.b32.xlu0 %v2391, 12
        %v2460 = vpop.permute.xlu0 %2459
        %2461 = vrot.lane.b32.xlu0 %v2392, 12
        %v2462 = vpop.permute.xlu0 %2461
        %2463 = vrot.lane.b32.xlu0 %v2393, 12
        %v2464 = vpop.permute.xlu0 %2463
        %2465 = vrot.lane.b32.xlu0 %v2394, 12
        %v2466 = vpop.permute.xlu0 %2465
        %2467 = vrot.lane.b32.xlu0 %v2395, 12
        %v2468 = vpop.permute.xlu0 %2467
        %2469 = vrot.lane.b32.xlu0 %v2396, 12
        %v2470 = vpop.permute.xlu0 %2469
        %2471 = vrot.lane.b32.xlu0 %v2397, 12
        %v2472 = vpop.permute.xlu0 %2471
        %2473 = vrot.lane.b32.xlu0 %v2398, 12
        %v2474 = vpop.permute.xlu0 %2473
        %2475 = vrot.lane.b32.xlu0 %v2399, 12
        %v2476 = vpop.permute.xlu0 %2475
        %2477 = vrot.lane.b32.xlu0 %v2400, 12
        %v2478 = vpop.permute.xlu0 %2477
        %2479 = vrot.lane.b32.xlu0 %v2401, 12
        %v2480 = vpop.permute.xlu0 %2479
        %2481 = vrot.lane.b32.xlu0 %v2402, 12
        %v2482 = vpop.permute.xlu0 %2481
        %2483 = vrot.lane.b32.xlu0 %v2403, 12
        %v2484 = vpop.permute.xlu0 %2483
        %2485 = vrot.lane.b32.xlu0 %v2404, 12
        %v2486 = vpop.permute.xlu0 %2485
        %2487 = vrot.lane.b32.xlu0 %v2405, 12
        %v2488 = vpop.permute.xlu0 %2487
        %2489 = vrot.lane.b32.xlu0 %v2406, 12
        %v2490 = vpop.permute.xlu0 %2489
        %2491 = vrot.lane.b32.xlu0 %v2407, 12
        %v2492 = vpop.permute.xlu0 %2491
        %2493 = vrot.lane.b32.xlu0 %v2408, 12
        %v2494 = vpop.permute.xlu0 %2493
        %2495 = vrot.lane.b32.xlu0 %v2409, 12
        %v2496 = vpop.permute.xlu0 %2495
        %2497 = vrot.lane.b32.xlu0 %v2410, 12
        %v2498 = vpop.permute.xlu0 %2497
        %2499 = vrot.lane.b32.xlu0 %v2411, 12
        %v2500 = vpop.permute.xlu0 %2499
        %2501 = vrot.lane.b32.xlu0 %v2412, 12
        %v2502 = vpop.permute.xlu0 %2501
        %2503 = vrot.lane.b32.xlu0 %v2413, 12
        %v2504 = vpop.permute.xlu0 %2503
        %2505 = vrot.lane.b32.xlu0 %v2414, 12
        %v2506 = vpop.permute.xlu0 %2505
        %2507 = vrot.lane.b32.xlu0 %v2415, 12
        %v2508 = vpop.permute.xlu0 %2507
        %2509 = vrot.lane.b32.xlu0 %v2416, 12
        %v2510 = vpop.permute.xlu0 %2509
        %2511 = vrot.lane.b32.xlu0 %v2417, 12
        %v2512 = vpop.permute.xlu0 %2511
        %2513 = vrot.lane.b32.xlu0 %v2418, 12
        %v2514 = vpop.permute.xlu0 %2513
        %vm2547 = vcmask 130144
        %2548 = vst.msk [vmem:[#allocation5] sm:$0xff] %vm2547, %v2452
        %2549 = vst.msk [vmem:[#allocation5 + $0x8] sm:$0xff] %vm2547, %v2454
        %2550 = vst.msk [vmem:[#allocation5 + $0x10] sm:$0xff] %vm2547, %v2456
        %2551 = vst.msk [vmem:[#allocation5 + $0x18] sm:$0xff] %vm2547, %v2458
        %2552 = vst.msk [vmem:[#allocation5 + $0x20] sm:$0xff] %vm2547, %v2460
        %2553 = vst.msk [vmem:[#allocation5 + $0x28] sm:$0xff] %vm2547, %v2462
        %2554 = vst.msk [vmem:[#allocation5 + $0x30] sm:$0xff] %vm2547, %v2464
        %2555 = vst.msk [vmem:[#allocation5 + $0x38] sm:$0xff] %vm2547, %v2466
        %2556 = vst.msk [vmem:[#allocation5 + $0x40] sm:$0xff] %vm2547, %v2468
        %2557 = vst.msk [vmem:[#allocation5 + $0x48] sm:$0xff] %vm2547, %v2470
        %2558 = vst.msk [vmem:[#allocation5 + $0x50] sm:$0xff] %vm2547, %v2472
        %2559 = vst.msk [vmem:[#allocation5 + $0x58] sm:$0xff] %vm2547, %v2474
        %2560 = vst.msk [vmem:[#allocation5 + $0x60] sm:$0xff] %vm2547, %v2476
        %2561 = vst.msk [vmem:[#allocation5 + $0x68] sm:$0xff] %vm2547, %v2478
        %2562 = vst.msk [vmem:[#allocation5 + $0x70] sm:$0xff] %vm2547, %v2480
        %2563 = vst.msk [vmem:[#allocation5 + $0x78] sm:$0xff] %vm2547, %v2482
        %2564 = vst.msk [vmem:[#allocation5 + $0x80] sm:$0xff] %vm2547, %v2484
        %2565 = vst.msk [vmem:[#allocation5 + $0x88] sm:$0xff] %vm2547, %v2486
        %2566 = vst.msk [vmem:[#allocation5 + $0x90] sm:$0xff] %vm2547, %v2488
        %2567 = vst.msk [vmem:[#allocation5 + $0x98] sm:$0xff] %vm2547, %v2490
        %2568 = vst.msk [vmem:[#allocation5 + $0xa0] sm:$0xff] %vm2547, %v2492
        %2569 = vst.msk [vmem:[#allocation5 + $0xa8] sm:$0xff] %vm2547, %v2494
        %2570 = vst.msk [vmem:[#allocation5 + $0xb0] sm:$0xff] %vm2547, %v2496
        %2571 = vst.msk [vmem:[#allocation5 + $0xb8] sm:$0xff] %vm2547, %v2498
        %2572 = vst.msk [vmem:[#allocation5 + $0xc0] sm:$0xff] %vm2547, %v2500
        %2573 = vst.msk [vmem:[#allocation5 + $0xc8] sm:$0xff] %vm2547, %v2502
        %2574 = vst.msk [vmem:[#allocation5 + $0xd0] sm:$0xff] %vm2547, %v2504
        %2575 = vst.msk [vmem:[#allocation5 + $0xd8] sm:$0xff] %vm2547, %v2506
        %2576 = vst.msk [vmem:[#allocation5 + $0xe0] sm:$0xff] %vm2547, %v2508
        %2577 = vst.msk [vmem:[#allocation5 + $0xe8] sm:$0xff] %vm2547, %v2510
        %2578 = vst.msk [vmem:[#allocation5 + $0xf0] sm:$0xff] %vm2547, %v2512
        %2579 = vst.msk [vmem:[#allocation5 + $0xf8] sm:$0xff] %vm2547, %v2514
        %v2580 = vld [vmem:[#allocation2 + $0x18] sm:$0xff]
        %v2581 = vld [vmem:[#allocation2 + $0x20] sm:$0xff]
        %v2582 = vld [vmem:[#allocation2 + $0x28] sm:$0xff]
        %v2583 = vld [vmem:[#allocation2 + $0x30] sm:$0xff]
        %v2584 = vld [vmem:[#allocation2 + $0x38] sm:$0xff]
        %v2585 = vld [vmem:[#allocation2 + $0x40] sm:$0xff]
        %v2586 = vld [vmem:[#allocation2 + $0x48] sm:$0xff]
        %v2587 = vld [vmem:[#allocation2 + $0x50] sm:$0xff]
        %v2588 = vld [vmem:[#allocation2 + $0x58] sm:$0xff]
        %v2589 = vld [vmem:[#allocation2 + $0x60] sm:$0xff]
        %v2590 = vld [vmem:[#allocation2 + $0x68] sm:$0xff]
        %v2591 = vld [vmem:[#allocation2 + $0x70] sm:$0xff]
        %v2592 = vld [vmem:[#allocation2 + $0x78] sm:$0xff]
        %v2593 = vld [vmem:[#allocation2 + $0x80] sm:$0xff]
        %v2594 = vld [vmem:[#allocation2 + $0x88] sm:$0xff]
        %v2595 = vld [vmem:[#allocation2 + $0x90] sm:$0xff]
        %v2596 = vld [vmem:[#allocation2 + $0x98] sm:$0xff]
        %v2597 = vld [vmem:[#allocation2 + $0xa0] sm:$0xff]
        %v2598 = vld [vmem:[#allocation2 + $0xa8] sm:$0xff]
        %v2599 = vld [vmem:[#allocation2 + $0xb0] sm:$0xff]
        %v2600 = vld [vmem:[#allocation2 + $0xb8] sm:$0xff]
        %v2601 = vld [vmem:[#allocation2 + $0xc0] sm:$0xff]
        %v2602 = vld [vmem:[#allocation2 + $0xc8] sm:$0xff]
        %v2603 = vld [vmem:[#allocation2 + $0xd0] sm:$0xff]
        %v2604 = vld [vmem:[#allocation2 + $0xd8] sm:$0xff]
        %v2605 = vld [vmem:[#allocation2 + $0xe0] sm:$0xff]
        %v2606 = vld [vmem:[#allocation2 + $0xe8] sm:$0xff]
        %v2607 = vld [vmem:[#allocation2 + $0xf0] sm:$0xff]
        %v2608 = vld [vmem:[#allocation2 + $0xf8] sm:$0xff]
        %v2609 = vld [vmem:[#allocation2 + $0x100] sm:$0xff]
        %v2610 = vld [vmem:[#allocation2 + $0x108] sm:$0xff]
        %v2611 = vld [vmem:[#allocation2 + $0x110] sm:$0xff]
        %2644 = vrot.lane.b32.xlu0 %v2580, 16
        %v2645 = vpop.permute.xlu0 %2644
        %2646 = vrot.lane.b32.xlu0 %v2581, 16
        %v2647 = vpop.permute.xlu0 %2646
        %2648 = vrot.lane.b32.xlu0 %v2582, 16
        %v2649 = vpop.permute.xlu0 %2648
        %2650 = vrot.lane.b32.xlu0 %v2583, 16
        %v2651 = vpop.permute.xlu0 %2650
        %2652 = vrot.lane.b32.xlu0 %v2584, 16
        %v2653 = vpop.permute.xlu0 %2652
        %2654 = vrot.lane.b32.xlu0 %v2585, 16
        %v2655 = vpop.permute.xlu0 %2654
        %2656 = vrot.lane.b32.xlu0 %v2586, 16
        %v2657 = vpop.permute.xlu0 %2656
        %2658 = vrot.lane.b32.xlu0 %v2587, 16
        %v2659 = vpop.permute.xlu0 %2658
        %2660 = vrot.lane.b32.xlu0 %v2588, 16
        %v2661 = vpop.permute.xlu0 %2660
        %2662 = vrot.lane.b32.xlu0 %v2589, 16
        %v2663 = vpop.permute.xlu0 %2662
        %2664 = vrot.lane.b32.xlu0 %v2590, 16
        %v2665 = vpop.permute.xlu0 %2664
        %2666 = vrot.lane.b32.xlu0 %v2591, 16
        %v2667 = vpop.permute.xlu0 %2666
        %2668 = vrot.lane.b32.xlu0 %v2592, 16
        %v2669 = vpop.permute.xlu0 %2668
        %2670 = vrot.lane.b32.xlu0 %v2593, 16
        %v2671 = vpop.permute.xlu0 %2670
        %2672 = vrot.lane.b32.xlu0 %v2594, 16
        %v2673 = vpop.permute.xlu0 %2672
        %2674 = vrot.lane.b32.xlu0 %v2595, 16
        %v2675 = vpop.permute.xlu0 %2674
        %2676 = vrot.lane.b32.xlu0 %v2596, 16
        %v2677 = vpop.permute.xlu0 %2676
        %2678 = vrot.lane.b32.xlu0 %v2597, 16
        %v2679 = vpop.permute.xlu0 %2678
        %2680 = vrot.lane.b32.xlu0 %v2598, 16
        %v2681 = vpop.permute.xlu0 %2680
        %2682 = vrot.lane.b32.xlu0 %v2599, 16
        %v2683 = vpop.permute.xlu0 %2682
        %2684 = vrot.lane.b32.xlu0 %v2600, 16
        %v2685 = vpop.permute.xlu0 %2684
        %2686 = vrot.lane.b32.xlu0 %v2601, 16
        %v2687 = vpop.permute.xlu0 %2686
        %2688 = vrot.lane.b32.xlu0 %v2602, 16
        %v2689 = vpop.permute.xlu0 %2688
        %2690 = vrot.lane.b32.xlu0 %v2603, 16
        %v2691 = vpop.permute.xlu0 %2690
        %2692 = vrot.lane.b32.xlu0 %v2604, 16
        %v2693 = vpop.permute.xlu0 %2692
        %2694 = vrot.lane.b32.xlu0 %v2605, 16
        %v2695 = vpop.permute.xlu0 %2694
        %2696 = vrot.lane.b32.xlu0 %v2606, 16
        %v2697 = vpop.permute.xlu0 %2696
        %2698 = vrot.lane.b32.xlu0 %v2607, 16
        %v2699 = vpop.permute.xlu0 %2698
        %2700 = vrot.lane.b32.xlu0 %v2608, 16
        %v2701 = vpop.permute.xlu0 %2700
        %2702 = vrot.lane.b32.xlu0 %v2609, 16
        %v2703 = vpop.permute.xlu0 %2702
        %2704 = vrot.lane.b32.xlu0 %v2610, 16
        %v2705 = vpop.permute.xlu0 %2704
        %2706 = vrot.lane.b32.xlu0 %v2611, 16
        %v2707 = vpop.permute.xlu0 %2706
        %vm2740 = vcmask 162944
        %2741 = vst.msk [vmem:[#allocation5] sm:$0xff] %vm2740, %v2645
        %2742 = vst.msk [vmem:[#allocation5 + $0x8] sm:$0xff] %vm2740, %v2647
        %2743 = vst.msk [vmem:[#allocation5 + $0x10] sm:$0xff] %vm2740, %v2649
        %2744 = vst.msk [vmem:[#allocation5 + $0x18] sm:$0xff] %vm2740, %v2651
        %2745 = vst.msk [vmem:[#allocation5 + $0x20] sm:$0xff] %vm2740, %v2653
        %2746 = vst.msk [vmem:[#allocation5 + $0x28] sm:$0xff] %vm2740, %v2655
        %2747 = vst.msk [vmem:[#allocation5 + $0x30] sm:$0xff] %vm2740, %v2657
        %2748 = vst.msk [vmem:[#allocation5 + $0x38] sm:$0xff] %vm2740, %v2659
        %2749 = vst.msk [vmem:[#allocation5 + $0x40] sm:$0xff] %vm2740, %v2661
        %2750 = vst.msk [vmem:[#allocation5 + $0x48] sm:$0xff] %vm2740, %v2663
        %2751 = vst.msk [vmem:[#allocation5 + $0x50] sm:$0xff] %vm2740, %v2665
        %2752 = vst.msk [vmem:[#allocation5 + $0x58] sm:$0xff] %vm2740, %v2667
        %2753 = vst.msk [vmem:[#allocation5 + $0x60] sm:$0xff] %vm2740, %v2669
        %2754 = vst.msk [vmem:[#allocation5 + $0x68] sm:$0xff] %vm2740, %v2671
        %2755 = vst.msk [vmem:[#allocation5 + $0x70] sm:$0xff] %vm2740, %v2673
        %2756 = vst.msk [vmem:[#allocation5 + $0x78] sm:$0xff] %vm2740, %v2675
        %2757 = vst.msk [vmem:[#allocation5 + $0x80] sm:$0xff] %vm2740, %v2677
        %2758 = vst.msk [vmem:[#allocation5 + $0x88] sm:$0xff] %vm2740, %v2679
        %2759 = vst.msk [vmem:[#allocation5 + $0x90] sm:$0xff] %vm2740, %v2681
        %2760 = vst.msk [vmem:[#allocation5 + $0x98] sm:$0xff] %vm2740, %v2683
        %2761 = vst.msk [vmem:[#allocation5 + $0xa0] sm:$0xff] %vm2740, %v2685
        %2762 = vst.msk [vmem:[#allocation5 + $0xa8] sm:$0xff] %vm2740, %v2687
        %2763 = vst.msk [vmem:[#allocation5 + $0xb0] sm:$0xff] %vm2740, %v2689
        %2764 = vst.msk [vmem:[#allocation5 + $0xb8] sm:$0xff] %vm2740, %v2691
        %2765 = vst.msk [vmem:[#allocation5 + $0xc0] sm:$0xff] %vm2740, %v2693
        %2766 = vst.msk [vmem:[#allocation5 + $0xc8] sm:$0xff] %vm2740, %v2695
        %2767 = vst.msk [vmem:[#allocation5 + $0xd0] sm:$0xff] %vm2740, %v2697
        %2768 = vst.msk [vmem:[#allocation5 + $0xd8] sm:$0xff] %vm2740, %v2699
        %2769 = vst.msk [vmem:[#allocation5 + $0xe0] sm:$0xff] %vm2740, %v2701
        %2770 = vst.msk [vmem:[#allocation5 + $0xe8] sm:$0xff] %vm2740, %v2703
        %2771 = vst.msk [vmem:[#allocation5 + $0xf0] sm:$0xff] %vm2740, %v2705
        %2772 = vst.msk [vmem:[#allocation5 + $0xf8] sm:$0xff] %vm2740, %v2707
        %v2773 = vld [vmem:[#allocation2 + $0x19] sm:$0xff]
        %v2774 = vld [vmem:[#allocation2 + $0x21] sm:$0xff]
        %v2775 = vld [vmem:[#allocation2 + $0x29] sm:$0xff]
        %v2776 = vld [vmem:[#allocation2 + $0x31] sm:$0xff]
        %v2777 = vld [vmem:[#allocation2 + $0x39] sm:$0xff]
        %v2778 = vld [vmem:[#allocation2 + $0x41] sm:$0xff]
        %v2779 = vld [vmem:[#allocation2 + $0x49] sm:$0xff]
        %v2780 = vld [vmem:[#allocation2 + $0x51] sm:$0xff]
        %v2781 = vld [vmem:[#allocation2 + $0x59] sm:$0xff]
        %v2782 = vld [vmem:[#allocation2 + $0x61] sm:$0xff]
        %v2783 = vld [vmem:[#allocation2 + $0x69] sm:$0xff]
        %v2784 = vld [vmem:[#allocation2 + $0x71] sm:$0xff]
        %v2785 = vld [vmem:[#allocation2 + $0x79] sm:$0xff]
        %v2786 = vld [vmem:[#allocation2 + $0x81] sm:$0xff]
        %v2787 = vld [vmem:[#allocation2 + $0x89] sm:$0xff]
        %v2788 = vld [vmem:[#allocation2 + $0x91] sm:$0xff]
        %v2789 = vld [vmem:[#allocation2 + $0x99] sm:$0xff]
        %v2790 = vld [vmem:[#allocation2 + $0xa1] sm:$0xff]
        %v2791 = vld [vmem:[#allocation2 + $0xa9] sm:$0xff]
        %v2792 = vld [vmem:[#allocation2 + $0xb1] sm:$0xff]
        %v2793 = vld [vmem:[#allocation2 + $0xb9] sm:$0xff]
        %v2794 = vld [vmem:[#allocation2 + $0xc1] sm:$0xff]
        %v2795 = vld [vmem:[#allocation2 + $0xc9] sm:$0xff]
        %v2796 = vld [vmem:[#allocation2 + $0xd1] sm:$0xff]
        %v2797 = vld [vmem:[#allocation2 + $0xd9] sm:$0xff]
        %v2798 = vld [vmem:[#allocation2 + $0xe1] sm:$0xff]
        %v2799 = vld [vmem:[#allocation2 + $0xe9] sm:$0xff]
        %v2800 = vld [vmem:[#allocation2 + $0xf1] sm:$0xff]
        %v2801 = vld [vmem:[#allocation2 + $0xf9] sm:$0xff]
        %v2802 = vld [vmem:[#allocation2 + $0x101] sm:$0xff]
        %v2803 = vld [vmem:[#allocation2 + $0x109] sm:$0xff]
        %v2804 = vld [vmem:[#allocation2 + $0x111] sm:$0xff]
        %v2805 = vsel %vm1393, 1, 0
        %v2806 = vsel %vm1394, 1, 0
        %v2807 = vsel %vm1395, 1, 0
        %v2808 = vsel %vm1396, 1, 0
        %v2809 = vsel %vm1397, 1, 0
        %v2810 = vsel %vm1398, 1, 0
        %v2811 = vsel %vm1399, 1, 0
        %v2812 = vsel %vm1400, 1, 0
        %v2813 = vsel %vm1401, 1, 0
        %v2814 = vsel %vm1402, 1, 0
        %v2815 = vsel %vm1403, 1, 0
        %v2816 = vsel %vm1404, 1, 0
        %v2817 = vsel %vm1405, 1, 0
        %v2818 = vsel %vm1406, 1, 0
        %v2819 = vsel %vm1407, 1, 0
        %v2820 = vsel %vm1408, 1, 0
        %v2821 = vsel %vm1409, 1, 0
        %v2822 = vsel %vm1410, 1, 0
        %v2823 = vsel %vm1411, 1, 0
        %v2824 = vsel %vm1412, 1, 0
        %v2825 = vsel %vm1413, 1, 0
        %v2826 = vsel %vm1414, 1, 0
        %v2827 = vsel %vm1415, 1, 0
        %v2828 = vsel %vm1416, 1, 0
        %v2829 = vsel %vm1417, 1, 0
        %v2830 = vsel %vm1418, 1, 0
        %v2831 = vsel %vm1419, 1, 0
        %v2832 = vsel %vm1420, 1, 0
        %v2833 = vsel %vm1421, 1, 0
        %v2834 = vsel %vm1422, 1, 0
        %v2835 = vsel %vm1423, 1, 0
        %v2836 = vsel %vm1424, 1, 0
        %vm2837 = vcmp.eq.s32.totalorder %v2805, 1
        %vm2838 = vcmp.eq.s32.totalorder %v2806, 1
        %vm2839 = vcmp.eq.s32.totalorder %v2807, 1
        %vm2840 = vcmp.eq.s32.totalorder %v2808, 1
        %vm2841 = vcmp.eq.s32.totalorder %v2809, 1
        %vm2842 = vcmp.eq.s32.totalorder %v2810, 1
        %vm2843 = vcmp.eq.s32.totalorder %v2811, 1
        %vm2844 = vcmp.eq.s32.totalorder %v2812, 1
        %vm2845 = vcmp.eq.s32.totalorder %v2813, 1
        %vm2846 = vcmp.eq.s32.totalorder %v2814, 1
        %vm2847 = vcmp.eq.s32.totalorder %v2815, 1
        %vm2848 = vcmp.eq.s32.totalorder %v2816, 1
        %vm2849 = vcmp.eq.s32.totalorder %v2817, 1
        %vm2850 = vcmp.eq.s32.totalorder %v2818, 1
        %vm2851 = vcmp.eq.s32.totalorder %v2819, 1
        %vm2852 = vcmp.eq.s32.totalorder %v2820, 1
        %vm2853 = vcmp.eq.s32.totalorder %v2821, 1
        %vm2854 = vcmp.eq.s32.totalorder %v2822, 1
        %vm2855 = vcmp.eq.s32.totalorder %v2823, 1
        %vm2856 = vcmp.eq.s32.totalorder %v2824, 1
        %vm2857 = vcmp.eq.s32.totalorder %v2825, 1
        %vm2858 = vcmp.eq.s32.totalorder %v2826, 1
        %vm2859 = vcmp.eq.s32.totalorder %v2827, 1
        %vm2860 = vcmp.eq.s32.totalorder %v2828, 1
        %vm2861 = vcmp.eq.s32.totalorder %v2829, 1
        %vm2862 = vcmp.eq.s32.totalorder %v2830, 1
        %vm2863 = vcmp.eq.s32.totalorder %v2831, 1
        %vm2864 = vcmp.eq.s32.totalorder %v2832, 1
        %vm2865 = vcmp.eq.s32.totalorder %v2833, 1
        %vm2866 = vcmp.eq.s32.totalorder %v2834, 1
        %vm2867 = vcmp.eq.s32.totalorder %v2835, 1
        %vm2868 = vcmp.eq.s32.totalorder %v2836, 1
        %v2869 = vsel %vm2837, %v2773, 0.0
        %v2870 = vsel %vm2838, %v2774, 0.0
        %v2871 = vsel %vm2839, %v2775, 0.0
        %v2872 = vsel %vm2840, %v2776, 0.0
        %v2873 = vsel %vm2841, %v2777, 0.0
        %v2874 = vsel %vm2842, %v2778, 0.0
        %v2875 = vsel %vm2843, %v2779, 0.0
        %v2876 = vsel %vm2844, %v2780, 0.0
        %v2877 = vsel %vm2845, %v2781, 0.0
        %v2878 = vsel %vm2846, %v2782, 0.0
        %v2879 = vsel %vm2847, %v2783, 0.0
        %v2880 = vsel %vm2848, %v2784, 0.0
        %v2881 = vsel %vm2849, %v2785, 0.0
        %v2882 = vsel %vm2850, %v2786, 0.0
        %v2883 = vsel %vm2851, %v2787, 0.0
        %v2884 = vsel %vm2852, %v2788, 0.0
        %v2885 = vsel %vm2853, %v2789, 0.0
        %v2886 = vsel %vm2854, %v2790, 0.0
        %v2887 = vsel %vm2855, %v2791, 0.0
        %v2888 = vsel %vm2856, %v2792, 0.0
        %v2889 = vsel %vm2857, %v2793, 0.0
        %v2890 = vsel %vm2858, %v2794, 0.0
        %v2891 = vsel %vm2859, %v2795, 0.0
        %v2892 = vsel %vm2860, %v2796, 0.0
        %v2893 = vsel %vm2861, %v2797, 0.0
        %v2894 = vsel %vm2862, %v2798, 0.0
        %v2895 = vsel %vm2863, %v2799, 0.0
        %v2896 = vsel %vm2864, %v2800, 0.0
        %v2897 = vsel %vm2865, %v2801, 0.0
        %v2898 = vsel %vm2866, %v2802, 0.0
        %v2899 = vsel %vm2867, %v2803, 0.0
        %v2900 = vsel %vm2868, %v2804, 0.0
        %2933 = vrot.lane.b32.xlu0 %v2869, 20
        %v2934 = vpop.permute.xlu0 %2933
        %2935 = vrot.lane.b32.xlu0 %v2870, 20
        %v2936 = vpop.permute.xlu0 %2935
        %2937 = vrot.lane.b32.xlu0 %v2871, 20
        %v2938 = vpop.permute.xlu0 %2937
        %2939 = vrot.lane.b32.xlu0 %v2872, 20
        %v2940 = vpop.permute.xlu0 %2939
        %2941 = vrot.lane.b32.xlu0 %v2873, 20
        %v2942 = vpop.permute.xlu0 %2941
        %2943 = vrot.lane.b32.xlu0 %v2874, 20
        %v2944 = vpop.permute.xlu0 %2943
        %2945 = vrot.lane.b32.xlu0 %v2875, 20
        %v2946 = vpop.permute.xlu0 %2945
        %2947 = vrot.lane.b32.xlu0 %v2876, 20
        %v2948 = vpop.permute.xlu0 %2947
        %2949 = vrot.lane.b32.xlu0 %v2877, 20
        %v2950 = vpop.permute.xlu0 %2949
        %2951 = vrot.lane.b32.xlu0 %v2878, 20
        %v2952 = vpop.permute.xlu0 %2951
        %2953 = vrot.lane.b32.xlu0 %v2879, 20
        %v2954 = vpop.permute.xlu0 %2953
        %2955 = vrot.lane.b32.xlu0 %v2880, 20
        %v2956 = vpop.permute.xlu0 %2955
        %2957 = vrot.lane.b32.xlu0 %v2881, 20
        %v2958 = vpop.permute.xlu0 %2957
        %2959 = vrot.lane.b32.xlu0 %v2882, 20
        %v2960 = vpop.permute.xlu0 %2959
        %2961 = vrot.lane.b32.xlu0 %v2883, 20
        %v2962 = vpop.permute.xlu0 %2961
        %2963 = vrot.lane.b32.xlu0 %v2884, 20
        %v2964 = vpop.permute.xlu0 %2963
        %2965 = vrot.lane.b32.xlu0 %v2885, 20
        %v2966 = vpop.permute.xlu0 %2965
        %2967 = vrot.lane.b32.xlu0 %v2886, 20
        %v2968 = vpop.permute.xlu0 %2967
        %2969 = vrot.lane.b32.xlu0 %v2887, 20
        %v2970 = vpop.permute.xlu0 %2969
        %2971 = vrot.lane.b32.xlu0 %v2888, 20
        %v2972 = vpop.permute.xlu0 %2971
        %2973 = vrot.lane.b32.xlu0 %v2889, 20
        %v2974 = vpop.permute.xlu0 %2973
        %2975 = vrot.lane.b32.xlu0 %v2890, 20
        %v2976 = vpop.permute.xlu0 %2975
        %2977 = vrot.lane.b32.xlu0 %v2891, 20
        %v2978 = vpop.permute.xlu0 %2977
        %2979 = vrot.lane.b32.xlu0 %v2892, 20
        %v2980 = vpop.permute.xlu0 %2979
        %2981 = vrot.lane.b32.xlu0 %v2893, 20
        %v2982 = vpop.permute.xlu0 %2981
        %2983 = vrot.lane.b32.xlu0 %v2894, 20
        %v2984 = vpop.permute.xlu0 %2983
        %2985 = vrot.lane.b32.xlu0 %v2895, 20
        %v2986 = vpop.permute.xlu0 %2985
        %2987 = vrot.lane.b32.xlu0 %v2896, 20
        %v2988 = vpop.permute.xlu0 %2987
        %2989 = vrot.lane.b32.xlu0 %v2897, 20
        %v2990 = vpop.permute.xlu0 %2989
        %2991 = vrot.lane.b32.xlu0 %v2898, 20
        %v2992 = vpop.permute.xlu0 %2991
        %2993 = vrot.lane.b32.xlu0 %v2899, 20
        %v2994 = vpop.permute.xlu0 %2993
        %2995 = vrot.lane.b32.xlu0 %v2900, 20
        %v2996 = vpop.permute.xlu0 %2995
        %vm3029 = vcmask 195744
        %3030 = vst.msk [vmem:[#allocation5] sm:$0xff] %vm3029, %v2934
        %3031 = vst.msk [vmem:[#allocation5 + $0x8] sm:$0xff] %vm3029, %v2936
        %3032 = vst.msk [vmem:[#allocation5 + $0x10] sm:$0xff] %vm3029, %v2938
        %3033 = vst.msk [vmem:[#allocation5 + $0x18] sm:$0xff] %vm3029, %v2940
        %3034 = vst.msk [vmem:[#allocation5 + $0x20] sm:$0xff] %vm3029, %v2942
        %3035 = vst.msk [vmem:[#allocation5 + $0x28] sm:$0xff] %vm3029, %v2944
        %3036 = vst.msk [vmem:[#allocation5 + $0x30] sm:$0xff] %vm3029, %v2946
        %3037 = vst.msk [vmem:[#allocation5 + $0x38] sm:$0xff] %vm3029, %v2948
        %3038 = vst.msk [vmem:[#allocation5 + $0x40] sm:$0xff] %vm3029, %v2950
        %3039 = vst.msk [vmem:[#allocation5 + $0x48] sm:$0xff] %vm3029, %v2952
        %3040 = vst.msk [vmem:[#allocation5 + $0x50] sm:$0xff] %vm3029, %v2954
        %3041 = vst.msk [vmem:[#allocation5 + $0x58] sm:$0xff] %vm3029, %v2956
        %3042 = vst.msk [vmem:[#allocation5 + $0x60] sm:$0xff] %vm3029, %v2958
        %3043 = vst.msk [vmem:[#allocation5 + $0x68] sm:$0xff] %vm3029, %v2960
        %3044 = vst.msk [vmem:[#allocation5 + $0x70] sm:$0xff] %vm3029, %v2962
        %3045 = vst.msk [vmem:[#allocation5 + $0x78] sm:$0xff] %vm3029, %v2964
        %3046 = vst.msk [vmem:[#allocation5 + $0x80] sm:$0xff] %vm3029, %v2966
        %3047 = vst.msk [vmem:[#allocation5 + $0x88] sm:$0xff] %vm3029, %v2968
        %3048 = vst.msk [vmem:[#allocation5 + $0x90] sm:$0xff] %vm3029, %v2970
        %3049 = vst.msk [vmem:[#allocation5 + $0x98] sm:$0xff] %vm3029, %v2972
        %3050 = vst.msk [vmem:[#allocation5 + $0xa0] sm:$0xff] %vm3029, %v2974
        %3051 = vst.msk [vmem:[#allocation5 + $0xa8] sm:$0xff] %vm3029, %v2976
        %3052 = vst.msk [vmem:[#allocation5 + $0xb0] sm:$0xff] %vm3029, %v2978
        %3053 = vst.msk [vmem:[#allocation5 + $0xb8] sm:$0xff] %vm3029, %v2980
        %3054 = vst.msk [vmem:[#allocation5 + $0xc0] sm:$0xff] %vm3029, %v2982
        %3055 = vst.msk [vmem:[#allocation5 + $0xc8] sm:$0xff] %vm3029, %v2984
        %3056 = vst.msk [vmem:[#allocation5 + $0xd0] sm:$0xff] %vm3029, %v2986
        %3057 = vst.msk [vmem:[#allocation5 + $0xd8] sm:$0xff] %vm3029, %v2988
        %3058 = vst.msk [vmem:[#allocation5 + $0xe0] sm:$0xff] %vm3029, %v2990
        %3059 = vst.msk [vmem:[#allocation5 + $0xe8] sm:$0xff] %vm3029, %v2992
        %3060 = vst.msk [vmem:[#allocation5 + $0xf0] sm:$0xff] %vm3029, %v2994
        %3061 = vst.msk [vmem:[#allocation5 + $0xf8] sm:$0xff] %vm3029, %v2996
        %v3062 = vld [vmem:[#allocation2 + $0x27] sm:$0xff]
        %v3063 = vld [vmem:[#allocation2 + $0x2f] sm:$0xff]
        %v3064 = vld [vmem:[#allocation2 + $0x37] sm:$0xff]
        %v3065 = vld [vmem:[#allocation2 + $0x3f] sm:$0xff]
        %v3066 = vld [vmem:[#allocation2 + $0x47] sm:$0xff]
        %v3067 = vld [vmem:[#allocation2 + $0x4f] sm:$0xff]
        %v3068 = vld [vmem:[#allocation2 + $0x57] sm:$0xff]
        %v3069 = vld [vmem:[#allocation2 + $0x5f] sm:$0xff]
        %v3070 = vld [vmem:[#allocation2 + $0x67] sm:$0xff]
        %v3071 = vld [vmem:[#allocation2 + $0x6f] sm:$0xff]
        %v3072 = vld [vmem:[#allocation2 + $0x77] sm:$0xff]
        %v3073 = vld [vmem:[#allocation2 + $0x7f] sm:$0xff]
        %v3074 = vld [vmem:[#allocation2 + $0x87] sm:$0xff]
        %v3075 = vld [vmem:[#allocation2 + $0x8f] sm:$0xff]
        %v3076 = vld [vmem:[#allocation2 + $0x97] sm:$0xff]
        %v3077 = vld [vmem:[#allocation2 + $0x9f] sm:$0xff]
        %v3078 = vld [vmem:[#allocation2 + $0xa7] sm:$0xff]
        %v3079 = vld [vmem:[#allocation2 + $0xaf] sm:$0xff]
        %v3080 = vld [vmem:[#allocation2 + $0xb7] sm:$0xff]
        %v3081 = vld [vmem:[#allocation2 + $0xbf] sm:$0xff]
        %v3082 = vld [vmem:[#allocation2 + $0xc7] sm:$0xff]
        %v3083 = vld [vmem:[#allocation2 + $0xcf] sm:$0xff]
        %v3084 = vld [vmem:[#allocation2 + $0xd7] sm:$0xff]
        %v3085 = vld [vmem:[#allocation2 + $0xdf] sm:$0xff]
        %v3086 = vld [vmem:[#allocation2 + $0xe7] sm:$0xff]
        %v3087 = vld [vmem:[#allocation2 + $0xef] sm:$0xff]
        %v3088 = vld [vmem:[#allocation2 + $0xf7] sm:$0xff]
        %v3089 = vld [vmem:[#allocation2 + $0xff] sm:$0xff]
        %v3090 = vld [vmem:[#allocation2 + $0x107] sm:$0xff]
        %v3091 = vld [vmem:[#allocation2 + $0x10f] sm:$0xff]
        %v3092 = vld [vmem:[#allocation2 + $0x117] sm:$0xff]
        %v3093 = vld [vmem:[#allocation2 + $0x11f] sm:$0xff]
        %vm3094 = vmand %vm1457, %vm1361
        %vm3095 = vmand %vm1458, %vm1362
        %vm3096 = vmand %vm1459, %vm1363
        %vm3097 = vmand %vm1460, %vm1364
        %vm3098 = vmand %vm1461, %vm1365
        %vm3099 = vmand %vm1462, %vm1366
        %vm3100 = vmand %vm1463, %vm1367
        %vm3101 = vmand %vm1464, %vm1368
        %vm3102 = vmand %vm1465, %vm1369
        %vm3103 = vmand %vm1466, %vm1370
        %vm3104 = vmand %vm1467, %vm1371
        %vm3105 = vmand %vm1468, %vm1372
        %vm3106 = vmand %vm1469, %vm1373
        %vm3107 = vmand %vm1470, %vm1374
        %vm3108 = vmand %vm1471, %vm1375
        %vm3109 = vmand %vm1472, %vm1376
        %vm3110 = vmand %vm1473, %vm1377
        %vm3111 = vmand %vm1474, %vm1378
        %vm3112 = vmand %vm1475, %vm1379
        %vm3113 = vmand %vm1476, %vm1380
        %vm3114 = vmand %vm1477, %vm1381
        %vm3115 = vmand %vm1478, %vm1382
        %vm3116 = vmand %vm1479, %vm1383
        %vm3117 = vmand %vm1480, %vm1384
        %vm3118 = vmand %vm1481, %vm1385
        %vm3119 = vmand %vm1482, %vm1386
        %vm3120 = vmand %vm1483, %vm1387
        %vm3121 = vmand %vm1484, %vm1388
        %vm3122 = vmand %vm1485, %vm1389
        %vm3123 = vmand %vm1486, %vm1390
        %vm3124 = vmand %vm1487, %vm1391
        %vm3125 = vmand %vm1488, %vm1392
        %v3126 = vsel %vm3094, 1, 0
        %v3127 = vsel %vm3095, 1, 0
        %v3128 = vsel %vm3096, 1, 0
        %v3129 = vsel %vm3097, 1, 0
        %v3130 = vsel %vm3098, 1, 0
        %v3131 = vsel %vm3099, 1, 0
        %v3132 = vsel %vm3100, 1, 0
        %v3133 = vsel %vm3101, 1, 0
        %v3134 = vsel %vm3102, 1, 0
        %v3135 = vsel %vm3103, 1, 0
        %v3136 = vsel %vm3104, 1, 0
        %v3137 = vsel %vm3105, 1, 0
        %v3138 = vsel %vm3106, 1, 0
        %v3139 = vsel %vm3107, 1, 0
        %v3140 = vsel %vm3108, 1, 0
        %v3141 = vsel %vm3109, 1, 0
        %v3142 = vsel %vm3110, 1, 0
        %v3143 = vsel %vm3111, 1, 0
        %v3144 = vsel %vm3112, 1, 0
        %v3145 = vsel %vm3113, 1, 0
        %v3146 = vsel %vm3114, 1, 0
        %v3147 = vsel %vm3115, 1, 0
        %v3148 = vsel %vm3116, 1, 0
        %v3149 = vsel %vm3117, 1, 0
        %v3150 = vsel %vm3118, 1, 0
        %v3151 = vsel %vm3119, 1, 0
        %v3152 = vsel %vm3120, 1, 0
        %v3153 = vsel %vm3121, 1, 0
        %v3154 = vsel %vm3122, 1, 0
        %v3155 = vsel %vm3123, 1, 0
        %v3156 = vsel %vm3124, 1, 0
        %v3157 = vsel %vm3125, 1, 0
        %vm3158 = vcmp.eq.s32.totalorder %v3126, 1
        %vm3159 = vcmp.eq.s32.totalorder %v3127, 1
        %vm3160 = vcmp.eq.s32.totalorder %v3128, 1
        %vm3161 = vcmp.eq.s32.totalorder %v3129, 1
        %vm3162 = vcmp.eq.s32.totalorder %v3130, 1
        %vm3163 = vcmp.eq.s32.totalorder %v3131, 1
        %vm3164 = vcmp.eq.s32.totalorder %v3132, 1
        %vm3165 = vcmp.eq.s32.totalorder %v3133, 1
        %vm3166 = vcmp.eq.s32.totalorder %v3134, 1
        %vm3167 = vcmp.eq.s32.totalorder %v3135, 1
        %vm3168 = vcmp.eq.s32.totalorder %v3136, 1
        %vm3169 = vcmp.eq.s32.totalorder %v3137, 1
        %vm3170 = vcmp.eq.s32.totalorder %v3138, 1
        %vm3171 = vcmp.eq.s32.totalorder %v3139, 1
        %vm3172 = vcmp.eq.s32.totalorder %v3140, 1
        %vm3173 = vcmp.eq.s32.totalorder %v3141, 1
        %vm3174 = vcmp.eq.s32.totalorder %v3142, 1
        %vm3175 = vcmp.eq.s32.totalorder %v3143, 1
        %vm3176 = vcmp.eq.s32.totalorder %v3144, 1
        %vm3177 = vcmp.eq.s32.totalorder %v3145, 1
        %vm3178 = vcmp.eq.s32.totalorder %v3146, 1
        %vm3179 = vcmp.eq.s32.totalorder %v3147, 1
        %vm3180 = vcmp.eq.s32.totalorder %v3148, 1
        %vm3181 = vcmp.eq.s32.totalorder %v3149, 1
        %vm3182 = vcmp.eq.s32.totalorder %v3150, 1
        %vm3183 = vcmp.eq.s32.totalorder %v3151, 1
        %vm3184 = vcmp.eq.s32.totalorder %v3152, 1
        %vm3185 = vcmp.eq.s32.totalorder %v3153, 1
        %vm3186 = vcmp.eq.s32.totalorder %v3154, 1
        %vm3187 = vcmp.eq.s32.totalorder %v3155, 1
        %vm3188 = vcmp.eq.s32.totalorder %v3156, 1
        %vm3189 = vcmp.eq.s32.totalorder %v3157, 1
        %v3190 = vsel %vm3158, %v3062, 0.0
        %v3191 = vsel %vm3159, %v3063, 0.0
        %v3192 = vsel %vm3160, %v3064, 0.0
        %v3193 = vsel %vm3161, %v3065, 0.0
        %v3194 = vsel %vm3162, %v3066, 0.0
        %v3195 = vsel %vm3163, %v3067, 0.0
        %v3196 = vsel %vm3164, %v3068, 0.0
        %v3197 = vsel %vm3165, %v3069, 0.0
        %v3198 = vsel %vm3166, %v3070, 0.0
        %v3199 = vsel %vm3167, %v3071, 0.0
        %v3200 = vsel %vm3168, %v3072, 0.0
        %v3201 = vsel %vm3169, %v3073, 0.0
        %v3202 = vsel %vm3170, %v3074, 0.0
        %v3203 = vsel %vm3171, %v3075, 0.0
        %v3204 = vsel %vm3172, %v3076, 0.0
        %v3205 = vsel %vm3173, %v3077, 0.0
        %v3206 = vsel %vm3174, %v3078, 0.0
        %v3207 = vsel %vm3175, %v3079, 0.0
        %v3208 = vsel %vm3176, %v3080, 0.0
        %v3209 = vsel %vm3177, %v3081, 0.0
        %v3210 = vsel %vm3178, %v3082, 0.0
        %v3211 = vsel %vm3179, %v3083, 0.0
        %v3212 = vsel %vm3180, %v3084, 0.0
        %v3213 = vsel %vm3181, %v3085, 0.0
        %v3214 = vsel %vm3182, %v3086, 0.0
        %v3215 = vsel %vm3183, %v3087, 0.0
        %v3216 = vsel %vm3184, %v3088, 0.0
        %v3217 = vsel %vm3185, %v3089, 0.0
        %v3218 = vsel %vm3186, %v3090, 0.0
        %v3219 = vsel %vm3187, %v3091, 0.0
        %v3220 = vsel %vm3188, %v3092, 0.0
        %v3221 = vsel %vm3189, %v3093, 0.0
        %3254 = vrot.lane.b32.xlu0 %v3190, 24
        %v3255 = vpop.permute.xlu0 %3254
        %3256 = vrot.lane.b32.xlu0 %v3191, 24
        %v3257 = vpop.permute.xlu0 %3256
        %3258 = vrot.lane.b32.xlu0 %v3192, 24
        %v3259 = vpop.permute.xlu0 %3258
        %3260 = vrot.lane.b32.xlu0 %v3193, 24
        %v3261 = vpop.permute.xlu0 %3260
        %3262 = vrot.lane.b32.xlu0 %v3194, 24
        %v3263 = vpop.permute.xlu0 %3262
        %3264 = vrot.lane.b32.xlu0 %v3195, 24
        %v3265 = vpop.permute.xlu0 %3264
        %3266 = vrot.lane.b32.xlu0 %v3196, 24
        %v3267 = vpop.permute.xlu0 %3266
        %3268 = vrot.lane.b32.xlu0 %v3197, 24
        %v3269 = vpop.permute.xlu0 %3268
        %3270 = vrot.lane.b32.xlu0 %v3198, 24
        %v3271 = vpop.permute.xlu0 %3270
        %3272 = vrot.lane.b32.xlu0 %v3199, 24
        %v3273 = vpop.permute.xlu0 %3272
        %3274 = vrot.lane.b32.xlu0 %v3200, 24
        %v3275 = vpop.permute.xlu0 %3274
        %3276 = vrot.lane.b32.xlu0 %v3201, 24
        %v3277 = vpop.permute.xlu0 %3276
        %3278 = vrot.lane.b32.xlu0 %v3202, 24
        %v3279 = vpop.permute.xlu0 %3278
        %3280 = vrot.lane.b32.xlu0 %v3203, 24
        %v3281 = vpop.permute.xlu0 %3280
        %3282 = vrot.lane.b32.xlu0 %v3204, 24
        %v3283 = vpop.permute.xlu0 %3282
        %3284 = vrot.lane.b32.xlu0 %v3205, 24
        %v3285 = vpop.permute.xlu0 %3284
        %3286 = vrot.lane.b32.xlu0 %v3206, 24
        %v3287 = vpop.permute.xlu0 %3286
        %3288 = vrot.lane.b32.xlu0 %v3207, 24
        %v3289 = vpop.permute.xlu0 %3288
        %3290 = vrot.lane.b32.xlu0 %v3208, 24
        %v3291 = vpop.permute.xlu0 %3290
        %3292 = vrot.lane.b32.xlu0 %v3209, 24
        %v3293 = vpop.permute.xlu0 %3292
        %3294 = vrot.lane.b32.xlu0 %v3210, 24
        %v3295 = vpop.permute.xlu0 %3294
        %3296 = vrot.lane.b32.xlu0 %v3211, 24
        %v3297 = vpop.permute.xlu0 %3296
        %3298 = vrot.lane.b32.xlu0 %v3212, 24
        %v3299 = vpop.permute.xlu0 %3298
        %3300 = vrot.lane.b32.xlu0 %v3213, 24
        %v3301 = vpop.permute.xlu0 %3300
        %3302 = vrot.lane.b32.xlu0 %v3214, 24
        %v3303 = vpop.permute.xlu0 %3302
        %3304 = vrot.lane.b32.xlu0 %v3215, 24
        %v3305 = vpop.permute.xlu0 %3304
        %3306 = vrot.lane.b32.xlu0 %v3216, 24
        %v3307 = vpop.permute.xlu0 %3306
        %3308 = vrot.lane.b32.xlu0 %v3217, 24
        %v3309 = vpop.permute.xlu0 %3308
        %3310 = vrot.lane.b32.xlu0 %v3218, 24
        %v3311 = vpop.permute.xlu0 %3310
        %3312 = vrot.lane.b32.xlu0 %v3219, 24
        %v3313 = vpop.permute.xlu0 %3312
        %3314 = vrot.lane.b32.xlu0 %v3220, 24
        %v3315 = vpop.permute.xlu0 %3314
        %3316 = vrot.lane.b32.xlu0 %v3221, 24
        %v3317 = vpop.permute.xlu0 %3316
        %vm3350 = vcmask 228544
        %3351 = vst.msk [vmem:[#allocation5] sm:$0xff] %vm3350, %v3255
        %3352 = vst.msk [vmem:[#allocation5 + $0x8] sm:$0xff] %vm3350, %v3257
        %3353 = vst.msk [vmem:[#allocation5 + $0x10] sm:$0xff] %vm3350, %v3259
        %3354 = vst.msk [vmem:[#allocation5 + $0x18] sm:$0xff] %vm3350, %v3261
        %3355 = vst.msk [vmem:[#allocation5 + $0x20] sm:$0xff] %vm3350, %v3263
        %3356 = vst.msk [vmem:[#allocation5 + $0x28] sm:$0xff] %vm3350, %v3265
        %3357 = vst.msk [vmem:[#allocation5 + $0x30] sm:$0xff] %vm3350, %v3267
        %3358 = vst.msk [vmem:[#allocation5 + $0x38] sm:$0xff] %vm3350, %v3269
        %3359 = vst.msk [vmem:[#allocation5 + $0x40] sm:$0xff] %vm3350, %v3271
        %3360 = vst.msk [vmem:[#allocation5 + $0x48] sm:$0xff] %vm3350, %v3273
        %3361 = vst.msk [vmem:[#allocation5 + $0x50] sm:$0xff] %vm3350, %v3275
        %3362 = vst.msk [vmem:[#allocation5 + $0x58] sm:$0xff] %vm3350, %v3277
        %3363 = vst.msk [vmem:[#allocation5 + $0x60] sm:$0xff] %vm3350, %v3279
        %3364 = vst.msk [vmem:[#allocation5 + $0x68] sm:$0xff] %vm3350, %v3281
        %3365 = vst.msk [vmem:[#allocation5 + $0x70] sm:$0xff] %vm3350, %v3283
        %3366 = vst.msk [vmem:[#allocation5 + $0x78] sm:$0xff] %vm3350, %v3285
        %3367 = vst.msk [vmem:[#allocation5 + $0x80] sm:$0xff] %vm3350, %v3287
        %3368 = vst.msk [vmem:[#allocation5 + $0x88] sm:$0xff] %vm3350, %v3289
        %3369 = vst.msk [vmem:[#allocation5 + $0x90] sm:$0xff] %vm3350, %v3291
        %3370 = vst.msk [vmem:[#allocation5 + $0x98] sm:$0xff] %vm3350, %v3293
        %3371 = vst.msk [vmem:[#allocation5 + $0xa0] sm:$0xff] %vm3350, %v3295
        %3372 = vst.msk [vmem:[#allocation5 + $0xa8] sm:$0xff] %vm3350, %v3297
        %3373 = vst.msk [vmem:[#allocation5 + $0xb0] sm:$0xff] %vm3350, %v3299
        %3374 = vst.msk [vmem:[#allocation5 + $0xb8] sm:$0xff] %vm3350, %v3301
        %3375 = vst.msk [vmem:[#allocation5 + $0xc0] sm:$0xff] %vm3350, %v3303
        %3376 = vst.msk [vmem:[#allocation5 + $0xc8] sm:$0xff] %vm3350, %v3305
        %3377 = vst.msk [vmem:[#allocation5 + $0xd0] sm:$0xff] %vm3350, %v3307
        %3378 = vst.msk [vmem:[#allocation5 + $0xd8] sm:$0xff] %vm3350, %v3309
        %3379 = vst.msk [vmem:[#allocation5 + $0xe0] sm:$0xff] %vm3350, %v3311
        %3380 = vst.msk [vmem:[#allocation5 + $0xe8] sm:$0xff] %vm3350, %v3313
        %3381 = vst.msk [vmem:[#allocation5 + $0xf0] sm:$0xff] %vm3350, %v3315
        %3382 = vst.msk [vmem:[#allocation5 + $0xf8] sm:$0xff] %vm3350, %v3317
        %v3383 = vld [vmem:[#allocation2 + $0x28] sm:$0xff]
        %v3384 = vld [vmem:[#allocation2 + $0x30] sm:$0xff]
        %v3385 = vld [vmem:[#allocation2 + $0x38] sm:$0xff]
        %v3386 = vld [vmem:[#allocation2 + $0x40] sm:$0xff]
        %v3387 = vld [vmem:[#allocation2 + $0x48] sm:$0xff]
        %v3388 = vld [vmem:[#allocation2 + $0x50] sm:$0xff]
        %v3389 = vld [vmem:[#allocation2 + $0x58] sm:$0xff]
        %v3390 = vld [vmem:[#allocation2 + $0x60] sm:$0xff]
        %v3391 = vld [vmem:[#allocation2 + $0x68] sm:$0xff]
        %v3392 = vld [vmem:[#allocation2 + $0x70] sm:$0xff]
        %v3393 = vld [vmem:[#allocation2 + $0x78] sm:$0xff]
        %v3394 = vld [vmem:[#allocation2 + $0x80] sm:$0xff]
        %v3395 = vld [vmem:[#allocation2 + $0x88] sm:$0xff]
        %v3396 = vld [vmem:[#allocation2 + $0x90] sm:$0xff]
        %v3397 = vld [vmem:[#allocation2 + $0x98] sm:$0xff]
        %v3398 = vld [vmem:[#allocation2 + $0xa0] sm:$0xff]
        %v3399 = vld [vmem:[#allocation2 + $0xa8] sm:$0xff]
        %v3400 = vld [vmem:[#allocation2 + $0xb0] sm:$0xff]
        %v3401 = vld [vmem:[#allocation2 + $0xb8] sm:$0xff]
        %v3402 = vld [vmem:[#allocation2 + $0xc0] sm:$0xff]
        %v3403 = vld [vmem:[#allocation2 + $0xc8] sm:$0xff]
        %v3404 = vld [vmem:[#allocation2 + $0xd0] sm:$0xff]
        %v3405 = vld [vmem:[#allocation2 + $0xd8] sm:$0xff]
        %v3406 = vld [vmem:[#allocation2 + $0xe0] sm:$0xff]
        %v3407 = vld [vmem:[#allocation2 + $0xe8] sm:$0xff]
        %v3408 = vld [vmem:[#allocation2 + $0xf0] sm:$0xff]
        %v3409 = vld [vmem:[#allocation2 + $0xf8] sm:$0xff]
        %v3410 = vld [vmem:[#allocation2 + $0x100] sm:$0xff]
        %v3411 = vld [vmem:[#allocation2 + $0x108] sm:$0xff]
        %v3412 = vld [vmem:[#allocation2 + $0x110] sm:$0xff]
        %v3413 = vld [vmem:[#allocation2 + $0x118] sm:$0xff]
        %v3414 = vld [vmem:[#allocation2 + $0x120] sm:$0xff]
        %v3415 = vsel %vm1457, 1, 0
        %v3416 = vsel %vm1458, 1, 0
        %v3417 = vsel %vm1459, 1, 0
        %v3418 = vsel %vm1460, 1, 0
        %v3419 = vsel %vm1461, 1, 0
        %v3420 = vsel %vm1462, 1, 0
        %v3421 = vsel %vm1463, 1, 0
        %v3422 = vsel %vm1464, 1, 0
        %v3423 = vsel %vm1465, 1, 0
        %v3424 = vsel %vm1466, 1, 0
        %v3425 = vsel %vm1467, 1, 0
        %v3426 = vsel %vm1468, 1, 0
        %v3427 = vsel %vm1469, 1, 0
        %v3428 = vsel %vm1470, 1, 0
        %v3429 = vsel %vm1471, 1, 0
        %v3430 = vsel %vm1472, 1, 0
        %v3431 = vsel %vm1473, 1, 0
        %v3432 = vsel %vm1474, 1, 0
        %v3433 = vsel %vm1475, 1, 0
        %v3434 = vsel %vm1476, 1, 0
        %v3435 = vsel %vm1477, 1, 0
        %v3436 = vsel %vm1478, 1, 0
        %v3437 = vsel %vm1479, 1, 0
        %v3438 = vsel %vm1480, 1, 0
        %v3439 = vsel %vm1481, 1, 0
        %v3440 = vsel %vm1482, 1, 0
        %v3441 = vsel %vm1483, 1, 0
        %v3442 = vsel %vm1484, 1, 0
        %v3443 = vsel %vm1485, 1, 0
        %v3444 = vsel %vm1486, 1, 0
        %v3445 = vsel %vm1487, 1, 0
        %v3446 = vsel %vm1488, 1, 0
        %vm3447 = vcmp.eq.s32.totalorder %v3415, 1
        %vm3448 = vcmp.eq.s32.totalorder %v3416, 1
        %vm3449 = vcmp.eq.s32.totalorder %v3417, 1
        %vm3450 = vcmp.eq.s32.totalorder %v3418, 1
        %vm3451 = vcmp.eq.s32.totalorder %v3419, 1
        %vm3452 = vcmp.eq.s32.totalorder %v3420, 1
        %vm3453 = vcmp.eq.s32.totalorder %v3421, 1
        %vm3454 = vcmp.eq.s32.totalorder %v3422, 1
        %vm3455 = vcmp.eq.s32.totalorder %v3423, 1
        %vm3456 = vcmp.eq.s32.totalorder %v3424, 1
        %vm3457 = vcmp.eq.s32.totalorder %v3425, 1
        %vm3458 = vcmp.eq.s32.totalorder %v3426, 1
        %vm3459 = vcmp.eq.s32.totalorder %v3427, 1
        %vm3460 = vcmp.eq.s32.totalorder %v3428, 1
        %vm3461 = vcmp.eq.s32.totalorder %v3429, 1
        %vm3462 = vcmp.eq.s32.totalorder %v3430, 1
        %vm3463 = vcmp.eq.s32.totalorder %v3431, 1
        %vm3464 = vcmp.eq.s32.totalorder %v3432, 1
        %vm3465 = vcmp.eq.s32.totalorder %v3433, 1
        %vm3466 = vcmp.eq.s32.totalorder %v3434, 1
        %vm3467 = vcmp.eq.s32.totalorder %v3435, 1
        %vm3468 = vcmp.eq.s32.totalorder %v3436, 1
        %vm3469 = vcmp.eq.s32.totalorder %v3437, 1
        %vm3470 = vcmp.eq.s32.totalorder %v3438, 1
        %vm3471 = vcmp.eq.s32.totalorder %v3439, 1
        %vm3472 = vcmp.eq.s32.totalorder %v3440, 1
        %vm3473 = vcmp.eq.s32.totalorder %v3441, 1
        %vm3474 = vcmp.eq.s32.totalorder %v3442, 1
        %vm3475 = vcmp.eq.s32.totalorder %v3443, 1
        %vm3476 = vcmp.eq.s32.totalorder %v3444, 1
        %vm3477 = vcmp.eq.s32.totalorder %v3445, 1
        %vm3478 = vcmp.eq.s32.totalorder %v3446, 1
        %v3479 = vsel %vm3447, %v3383, 0.0
        %v3480 = vsel %vm3448, %v3384, 0.0
        %v3481 = vsel %vm3449, %v3385, 0.0
        %v3482 = vsel %vm3450, %v3386, 0.0
        %v3483 = vsel %vm3451, %v3387, 0.0
        %v3484 = vsel %vm3452, %v3388, 0.0
        %v3485 = vsel %vm3453, %v3389, 0.0
        %v3486 = vsel %vm3454, %v3390, 0.0
        %v3487 = vsel %vm3455, %v3391, 0.0
        %v3488 = vsel %vm3456, %v3392, 0.0
        %v3489 = vsel %vm3457, %v3393, 0.0
        %v3490 = vsel %vm3458, %v3394, 0.0
        %v3491 = vsel %vm3459, %v3395, 0.0
        %v3492 = vsel %vm3460, %v3396, 0.0
        %v3493 = vsel %vm3461, %v3397, 0.0
        %v3494 = vsel %vm3462, %v3398, 0.0
        %v3495 = vsel %vm3463, %v3399, 0.0
        %v3496 = vsel %vm3464, %v3400, 0.0
        %v3497 = vsel %vm3465, %v3401, 0.0
        %v3498 = vsel %vm3466, %v3402, 0.0
        %v3499 = vsel %vm3467, %v3403, 0.0
        %v3500 = vsel %vm3468, %v3404, 0.0
        %v3501 = vsel %vm3469, %v3405, 0.0
        %v3502 = vsel %vm3470, %v3406, 0.0
        %v3503 = vsel %vm3471, %v3407, 0.0
        %v3504 = vsel %vm3472, %v3408, 0.0
        %v3505 = vsel %vm3473, %v3409, 0.0
        %v3506 = vsel %vm3474, %v3410, 0.0
        %v3507 = vsel %vm3475, %v3411, 0.0
        %v3508 = vsel %vm3476, %v3412, 0.0
        %v3509 = vsel %vm3477, %v3413, 0.0
        %v3510 = vsel %vm3478, %v3414, 0.0
        %3543 = vrot.lane.b32.xlu0 %v3479, 28
        %v3544 = vpop.permute.xlu0 %3543
        %3545 = vrot.lane.b32.xlu0 %v3480, 28
        %v3546 = vpop.permute.xlu0 %3545
        %3547 = vrot.lane.b32.xlu0 %v3481, 28
        %v3548 = vpop.permute.xlu0 %3547
        %3549 = vrot.lane.b32.xlu0 %v3482, 28
        %v3550 = vpop.permute.xlu0 %3549
        %3551 = vrot.lane.b32.xlu0 %v3483, 28
        %v3552 = vpop.permute.xlu0 %3551
        %3553 = vrot.lane.b32.xlu0 %v3484, 28
        %v3554 = vpop.permute.xlu0 %3553
        %3555 = vrot.lane.b32.xlu0 %v3485, 28
        %v3556 = vpop.permute.xlu0 %3555
        %3557 = vrot.lane.b32.xlu0 %v3486, 28
        %v3558 = vpop.permute.xlu0 %3557
        %3559 = vrot.lane.b32.xlu0 %v3487, 28
        %v3560 = vpop.permute.xlu0 %3559
        %3561 = vrot.lane.b32.xlu0 %v3488, 28
        %v3562 = vpop.permute.xlu0 %3561
        %3563 = vrot.lane.b32.xlu0 %v3489, 28
        %v3564 = vpop.permute.xlu0 %3563
        %3565 = vrot.lane.b32.xlu0 %v3490, 28
        %v3566 = vpop.permute.xlu0 %3565
        %3567 = vrot.lane.b32.xlu0 %v3491, 28
        %v3568 = vpop.permute.xlu0 %3567
        %3569 = vrot.lane.b32.xlu0 %v3492, 28
        %v3570 = vpop.permute.xlu0 %3569
        %3571 = vrot.lane.b32.xlu0 %v3493, 28
        %v3572 = vpop.permute.xlu0 %3571
        %3573 = vrot.lane.b32.xlu0 %v3494, 28
        %v3574 = vpop.permute.xlu0 %3573
        %3575 = vrot.lane.b32.xlu0 %v3495, 28
        %v3576 = vpop.permute.xlu0 %3575
        %3577 = vrot.lane.b32.xlu0 %v3496, 28
        %v3578 = vpop.permute.xlu0 %3577
        %3579 = vrot.lane.b32.xlu0 %v3497, 28
        %v3580 = vpop.permute.xlu0 %3579
        %3581 = vrot.lane.b32.xlu0 %v3498, 28
        %v3582 = vpop.permute.xlu0 %3581
        %3583 = vrot.lane.b32.xlu0 %v3499, 28
        %v3584 = vpop.permute.xlu0 %3583
        %3585 = vrot.lane.b32.xlu0 %v3500, 28
        %v3586 = vpop.permute.xlu0 %3585
        %3587 = vrot.lane.b32.xlu0 %v3501, 28
        %v3588 = vpop.permute.xlu0 %3587
        %3589 = vrot.lane.b32.xlu0 %v3502, 28
        %v3590 = vpop.permute.xlu0 %3589
        %3591 = vrot.lane.b32.xlu0 %v3503, 28
        %v3592 = vpop.permute.xlu0 %3591
        %3593 = vrot.lane.b32.xlu0 %v3504, 28
        %v3594 = vpop.permute.xlu0 %3593
        %3595 = vrot.lane.b32.xlu0 %v3505, 28
        %v3596 = vpop.permute.xlu0 %3595
        %3597 = vrot.lane.b32.xlu0 %v3506, 28
        %v3598 = vpop.permute.xlu0 %3597
        %3599 = vrot.lane.b32.xlu0 %v3507, 28
        %v3600 = vpop.permute.xlu0 %3599
        %3601 = vrot.lane.b32.xlu0 %v3508, 28
        %v3602 = vpop.permute.xlu0 %3601
        %3603 = vrot.lane.b32.xlu0 %v3509, 28
        %v3604 = vpop.permute.xlu0 %3603
        %3605 = vrot.lane.b32.xlu0 %v3510, 28
        %v3606 = vpop.permute.xlu0 %3605
        %vm3639 = vcmask 261344
        %3640 = vst.msk [vmem:[#allocation5] sm:$0xff] %vm3639, %v3544
        %3641 = vst.msk [vmem:[#allocation5 + $0x8] sm:$0xff] %vm3639, %v3546
        %3642 = vst.msk [vmem:[#allocation5 + $0x10] sm:$0xff] %vm3639, %v3548
        %3643 = vst.msk [vmem:[#allocation5 + $0x18] sm:$0xff] %vm3639, %v3550
        %3644 = vst.msk [vmem:[#allocation5 + $0x20] sm:$0xff] %vm3639, %v3552
        %3645 = vst.msk [vmem:[#allocation5 + $0x28] sm:$0xff] %vm3639, %v3554
        %3646 = vst.msk [vmem:[#allocation5 + $0x30] sm:$0xff] %vm3639, %v3556
        %3647 = vst.msk [vmem:[#allocation5 + $0x38] sm:$0xff] %vm3639, %v3558
        %3648 = vst.msk [vmem:[#allocation5 + $0x40] sm:$0xff] %vm3639, %v3560
        %3649 = vst.msk [vmem:[#allocation5 + $0x48] sm:$0xff] %vm3639, %v3562
        %3650 = vst.msk [vmem:[#allocation5 + $0x50] sm:$0xff] %vm3639, %v3564
        %3651 = vst.msk [vmem:[#allocation5 + $0x58] sm:$0xff] %vm3639, %v3566
        %3652 = vst.msk [vmem:[#allocation5 + $0x60] sm:$0xff] %vm3639, %v3568
        %3653 = vst.msk [vmem:[#allocation5 + $0x68] sm:$0xff] %vm3639, %v3570
        %3654 = vst.msk [vmem:[#allocation5 + $0x70] sm:$0xff] %vm3639, %v3572
        %3655 = vst.msk [vmem:[#allocation5 + $0x78] sm:$0xff] %vm3639, %v3574
        %3656 = vst.msk [vmem:[#allocation5 + $0x80] sm:$0xff] %vm3639, %v3576
        %3657 = vst.msk [vmem:[#allocation5 + $0x88] sm:$0xff] %vm3639, %v3578
        %3658 = vst.msk [vmem:[#allocation5 + $0x90] sm:$0xff] %vm3639, %v3580
        %3659 = vst.msk [vmem:[#allocation5 + $0x98] sm:$0xff] %vm3639, %v3582
        %3660 = vst.msk [vmem:[#allocation5 + $0xa0] sm:$0xff] %vm3639, %v3584
        %3661 = vst.msk [vmem:[#allocation5 + $0xa8] sm:$0xff] %vm3639, %v3586
        %3662 = vst.msk [vmem:[#allocation5 + $0xb0] sm:$0xff] %vm3639, %v3588
        %3663 = vst.msk [vmem:[#allocation5 + $0xb8] sm:$0xff] %vm3639, %v3590
        %3664 = vst.msk [vmem:[#allocation5 + $0xc0] sm:$0xff] %vm3639, %v3592
        %3665 = vst.msk [vmem:[#allocation5 + $0xc8] sm:$0xff] %vm3639, %v3594
        %3666 = vst.msk [vmem:[#allocation5 + $0xd0] sm:$0xff] %vm3639, %v3596
        %3667 = vst.msk [vmem:[#allocation5 + $0xd8] sm:$0xff] %vm3639, %v3598
        %3668 = vst.msk [vmem:[#allocation5 + $0xe0] sm:$0xff] %vm3639, %v3600
        %3669 = vst.msk [vmem:[#allocation5 + $0xe8] sm:$0xff] %vm3639, %v3602
        %3670 = vst.msk [vmem:[#allocation5 + $0xf0] sm:$0xff] %vm3639, %v3604
        %3671 = vst.msk [vmem:[#allocation5 + $0xf8] sm:$0xff] %vm3639, %v3606
        %v3672 = vld [vmem:[#allocation2 + $0x29] sm:$0xff]
        %v3673 = vld [vmem:[#allocation2 + $0x31] sm:$0xff]
        %v3674 = vld [vmem:[#allocation2 + $0x39] sm:$0xff]
        %v3675 = vld [vmem:[#allocation2 + $0x41] sm:$0xff]
        %v3676 = vld [vmem:[#allocation2 + $0x49] sm:$0xff]
        %v3677 = vld [vmem:[#allocation2 + $0x51] sm:$0xff]
        %v3678 = vld [vmem:[#allocation2 + $0x59] sm:$0xff]
        %v3679 = vld [vmem:[#allocation2 + $0x61] sm:$0xff]
        %v3680 = vld [vmem:[#allocation2 + $0x69] sm:$0xff]
        %v3681 = vld [vmem:[#allocation2 + $0x71] sm:$0xff]
        %v3682 = vld [vmem:[#allocation2 + $0x79] sm:$0xff]
        %v3683 = vld [vmem:[#allocation2 + $0x81] sm:$0xff]
        %v3684 = vld [vmem:[#allocation2 + $0x89] sm:$0xff]
        %v3685 = vld [vmem:[#allocation2 + $0x91] sm:$0xff]
        %v3686 = vld [vmem:[#allocation2 + $0x99] sm:$0xff]
        %v3687 = vld [vmem:[#allocation2 + $0xa1] sm:$0xff]
        %v3688 = vld [vmem:[#allocation2 + $0xa9] sm:$0xff]
        %v3689 = vld [vmem:[#allocation2 + $0xb1] sm:$0xff]
        %v3690 = vld [vmem:[#allocation2 + $0xb9] sm:$0xff]
        %v3691 = vld [vmem:[#allocation2 + $0xc1] sm:$0xff]
        %v3692 = vld [vmem:[#allocation2 + $0xc9] sm:$0xff]
        %v3693 = vld [vmem:[#allocation2 + $0xd1] sm:$0xff]
        %v3694 = vld [vmem:[#allocation2 + $0xd9] sm:$0xff]
        %v3695 = vld [vmem:[#allocation2 + $0xe1] sm:$0xff]
        %v3696 = vld [vmem:[#allocation2 + $0xe9] sm:$0xff]
        %v3697 = vld [vmem:[#allocation2 + $0xf1] sm:$0xff]
        %v3698 = vld [vmem:[#allocation2 + $0xf9] sm:$0xff]
        %v3699 = vld [vmem:[#allocation2 + $0x101] sm:$0xff]
        %v3700 = vld [vmem:[#allocation2 + $0x109] sm:$0xff]
        %v3701 = vld [vmem:[#allocation2 + $0x111] sm:$0xff]
        %v3702 = vld [vmem:[#allocation2 + $0x119] sm:$0xff]
        %v3703 = vld [vmem:[#allocation2 + $0x121] sm:$0xff]
        %vm3704 = vmand %vm1457, %vm1393
        %vm3705 = vmand %vm1458, %vm1394
        %vm3706 = vmand %vm1459, %vm1395
        %vm3707 = vmand %vm1460, %vm1396
        %vm3708 = vmand %vm1461, %vm1397
        %vm3709 = vmand %vm1462, %vm1398
        %vm3710 = vmand %vm1463, %vm1399
        %vm3711 = vmand %vm1464, %vm1400
        %vm3712 = vmand %vm1465, %vm1401
        %vm3713 = vmand %vm1466, %vm1402
        %vm3714 = vmand %vm1467, %vm1403
        %vm3715 = vmand %vm1468, %vm1404
        %vm3716 = vmand %vm1469, %vm1405
        %vm3717 = vmand %vm1470, %vm1406
        %vm3718 = vmand %vm1471, %vm1407
        %vm3719 = vmand %vm1472, %vm1408
        %vm3720 = vmand %vm1473, %vm1409
        %vm3721 = vmand %vm1474, %vm1410
        %vm3722 = vmand %vm1475, %vm1411
        %vm3723 = vmand %vm1476, %vm1412
        %vm3724 = vmand %vm1477, %vm1413
        %vm3725 = vmand %vm1478, %vm1414
        %vm3726 = vmand %vm1479, %vm1415
        %vm3727 = vmand %vm1480, %vm1416
        %vm3728 = vmand %vm1481, %vm1417
        %vm3729 = vmand %vm1482, %vm1418
        %vm3730 = vmand %vm1483, %vm1419
        %vm3731 = vmand %vm1484, %vm1420
        %vm3732 = vmand %vm1485, %vm1421
        %vm3733 = vmand %vm1486, %vm1422
        %vm3734 = vmand %vm1487, %vm1423
        %vm3735 = vmand %vm1488, %vm1424
        %v3736 = vsel %vm3704, 1, 0
        %v3737 = vsel %vm3705, 1, 0
        %v3738 = vsel %vm3706, 1, 0
        %v3739 = vsel %vm3707, 1, 0
        %v3740 = vsel %vm3708, 1, 0
        %v3741 = vsel %vm3709, 1, 0
        %v3742 = vsel %vm3710, 1, 0
        %v3743 = vsel %vm3711, 1, 0
        %v3744 = vsel %vm3712, 1, 0
        %v3745 = vsel %vm3713, 1, 0
        %v3746 = vsel %vm3714, 1, 0
        %v3747 = vsel %vm3715, 1, 0
        %v3748 = vsel %vm3716, 1, 0
        %v3749 = vsel %vm3717, 1, 0
        %v3750 = vsel %vm3718, 1, 0
        %v3751 = vsel %vm3719, 1, 0
        %v3752 = vsel %vm3720, 1, 0
        %v3753 = vsel %vm3721, 1, 0
        %v3754 = vsel %vm3722, 1, 0
        %v3755 = vsel %vm3723, 1, 0
        %v3756 = vsel %vm3724, 1, 0
        %v3757 = vsel %vm3725, 1, 0
        %v3758 = vsel %vm3726, 1, 0
        %v3759 = vsel %vm3727, 1, 0
        %v3760 = vsel %vm3728, 1, 0
        %v3761 = vsel %vm3729, 1, 0
        %v3762 = vsel %vm3730, 1, 0
        %v3763 = vsel %vm3731, 1, 0
        %v3764 = vsel %vm3732, 1, 0
        %v3765 = vsel %vm3733, 1, 0
        %v3766 = vsel %vm3734, 1, 0
        %v3767 = vsel %vm3735, 1, 0
        %vm3768 = vcmp.eq.s32.totalorder %v3736, 1
        %vm3769 = vcmp.eq.s32.totalorder %v3737, 1
        %vm3770 = vcmp.eq.s32.totalorder %v3738, 1
        %vm3771 = vcmp.eq.s32.totalorder %v3739, 1
        %vm3772 = vcmp.eq.s32.totalorder %v3740, 1
        %vm3773 = vcmp.eq.s32.totalorder %v3741, 1
        %vm3774 = vcmp.eq.s32.totalorder %v3742, 1
        %vm3775 = vcmp.eq.s32.totalorder %v3743, 1
        %vm3776 = vcmp.eq.s32.totalorder %v3744, 1
        %vm3777 = vcmp.eq.s32.totalorder %v3745, 1
        %vm3778 = vcmp.eq.s32.totalorder %v3746, 1
        %vm3779 = vcmp.eq.s32.totalorder %v3747, 1
        %vm3780 = vcmp.eq.s32.totalorder %v3748, 1
        %vm3781 = vcmp.eq.s32.totalorder %v3749, 1
        %vm3782 = vcmp.eq.s32.totalorder %v3750, 1
        %vm3783 = vcmp.eq.s32.totalorder %v3751, 1
        %vm3784 = vcmp.eq.s32.totalorder %v3752, 1
        %vm3785 = vcmp.eq.s32.totalorder %v3753, 1
        %vm3786 = vcmp.eq.s32.totalorder %v3754, 1
        %vm3787 = vcmp.eq.s32.totalorder %v3755, 1
        %vm3788 = vcmp.eq.s32.totalorder %v3756, 1
        %vm3789 = vcmp.eq.s32.totalorder %v3757, 1
        %vm3790 = vcmp.eq.s32.totalorder %v3758, 1
        %vm3791 = vcmp.eq.s32.totalorder %v3759, 1
        %vm3792 = vcmp.eq.s32.totalorder %v3760, 1
        %vm3793 = vcmp.eq.s32.totalorder %v3761, 1
        %vm3794 = vcmp.eq.s32.totalorder %v3762, 1
        %vm3795 = vcmp.eq.s32.totalorder %v3763, 1
        %vm3796 = vcmp.eq.s32.totalorder %v3764, 1
        %vm3797 = vcmp.eq.s32.totalorder %v3765, 1
        %vm3798 = vcmp.eq.s32.totalorder %v3766, 1
        %vm3799 = vcmp.eq.s32.totalorder %v3767, 1
        %v3800 = vsel %vm3768, %v3672, 0.0
        %v3801 = vsel %vm3769, %v3673, 0.0
        %v3802 = vsel %vm3770, %v3674, 0.0
        %v3803 = vsel %vm3771, %v3675, 0.0
        %v3804 = vsel %vm3772, %v3676, 0.0
        %v3805 = vsel %vm3773, %v3677, 0.0
        %v3806 = vsel %vm3774, %v3678, 0.0
        %v3807 = vsel %vm3775, %v3679, 0.0
        %v3808 = vsel %vm3776, %v3680, 0.0
        %v3809 = vsel %vm3777, %v3681, 0.0
        %v3810 = vsel %vm3778, %v3682, 0.0
        %v3811 = vsel %vm3779, %v3683, 0.0
        %v3812 = vsel %vm3780, %v3684, 0.0
        %v3813 = vsel %vm3781, %v3685, 0.0
        %v3814 = vsel %vm3782, %v3686, 0.0
        %v3815 = vsel %vm3783, %v3687, 0.0
        %v3816 = vsel %vm3784, %v3688, 0.0
        %v3817 = vsel %vm3785, %v3689, 0.0
        %v3818 = vsel %vm3786, %v3690, 0.0
        %v3819 = vsel %vm3787, %v3691, 0.0
        %v3820 = vsel %vm3788, %v3692, 0.0
        %v3821 = vsel %vm3789, %v3693, 0.0
        %v3822 = vsel %vm3790, %v3694, 0.0
        %v3823 = vsel %vm3791, %v3695, 0.0
        %v3824 = vsel %vm3792, %v3696, 0.0
        %v3825 = vsel %vm3793, %v3697, 0.0
        %v3826 = vsel %vm3794, %v3698, 0.0
        %v3827 = vsel %vm3795, %v3699, 0.0
        %v3828 = vsel %vm3796, %v3700, 0.0
        %v3829 = vsel %vm3797, %v3701, 0.0
        %v3830 = vsel %vm3798, %v3702, 0.0
        %v3831 = vsel %vm3799, %v3703, 0.0
        %3864 = vrot.lane.b32.xlu0 %v3800, 32
        %v3865 = vpop.permute.xlu0 %3864
        %3866 = vrot.lane.b32.xlu0 %v3801, 32
        %v3867 = vpop.permute.xlu0 %3866
        %3868 = vrot.lane.b32.xlu0 %v3802, 32
        %v3869 = vpop.permute.xlu0 %3868
        %3870 = vrot.lane.b32.xlu0 %v3803, 32
        %v3871 = vpop.permute.xlu0 %3870
        %3872 = vrot.lane.b32.xlu0 %v3804, 32
        %v3873 = vpop.permute.xlu0 %3872
        %3874 = vrot.lane.b32.xlu0 %v3805, 32
        %v3875 = vpop.permute.xlu0 %3874
        %3876 = vrot.lane.b32.xlu0 %v3806, 32
        %v3877 = vpop.permute.xlu0 %3876
        %3878 = vrot.lane.b32.xlu0 %v3807, 32
        %v3879 = vpop.permute.xlu0 %3878
        %3880 = vrot.lane.b32.xlu0 %v3808, 32
        %v3881 = vpop.permute.xlu0 %3880
        %3882 = vrot.lane.b32.xlu0 %v3809, 32
        %v3883 = vpop.permute.xlu0 %3882
        %3884 = vrot.lane.b32.xlu0 %v3810, 32
        %v3885 = vpop.permute.xlu0 %3884
        %3886 = vrot.lane.b32.xlu0 %v3811, 32
        %v3887 = vpop.permute.xlu0 %3886
        %3888 = vrot.lane.b32.xlu0 %v3812, 32
        %v3889 = vpop.permute.xlu0 %3888
        %3890 = vrot.lane.b32.xlu0 %v3813, 32
        %v3891 = vpop.permute.xlu0 %3890
        %3892 = vrot.lane.b32.xlu0 %v3814, 32
        %v3893 = vpop.permute.xlu0 %3892
        %3894 = vrot.lane.b32.xlu0 %v3815, 32
        %v3895 = vpop.permute.xlu0 %3894
        %3896 = vrot.lane.b32.xlu0 %v3816, 32
        %v3897 = vpop.permute.xlu0 %3896
        %3898 = vrot.lane.b32.xlu0 %v3817, 32
        %v3899 = vpop.permute.xlu0 %3898
        %3900 = vrot.lane.b32.xlu0 %v3818, 32
        %v3901 = vpop.permute.xlu0 %3900
        %3902 = vrot.lane.b32.xlu0 %v3819, 32
        %v3903 = vpop.permute.xlu0 %3902
        %3904 = vrot.lane.b32.xlu0 %v3820, 32
        %v3905 = vpop.permute.xlu0 %3904
        %3906 = vrot.lane.b32.xlu0 %v3821, 32
        %v3907 = vpop.permute.xlu0 %3906
        %3908 = vrot.lane.b32.xlu0 %v3822, 32
        %v3909 = vpop.permute.xlu0 %3908
        %3910 = vrot.lane.b32.xlu0 %v3823, 32
        %v3911 = vpop.permute.xlu0 %3910
        %3912 = vrot.lane.b32.xlu0 %v3824, 32
        %v3913 = vpop.permute.xlu0 %3912
        %3914 = vrot.lane.b32.xlu0 %v3825, 32
        %v3915 = vpop.permute.xlu0 %3914
        %3916 = vrot.lane.b32.xlu0 %v3826, 32
        %v3917 = vpop.permute.xlu0 %3916
        %3918 = vrot.lane.b32.xlu0 %v3827, 32
        %v3919 = vpop.permute.xlu0 %3918
        %3920 = vrot.lane.b32.xlu0 %v3828, 32
        %v3921 = vpop.permute.xlu0 %3920
        %3922 = vrot.lane.b32.xlu0 %v3829, 32
        %v3923 = vpop.permute.xlu0 %3922
        %3924 = vrot.lane.b32.xlu0 %v3830, 32
        %v3925 = vpop.permute.xlu0 %3924
        %3926 = vrot.lane.b32.xlu0 %v3831, 32
        %v3927 = vpop.permute.xlu0 %3926
        %vm3960 = vcmask 294144
        %3961 = vst.msk [vmem:[#allocation5] sm:$0xff] %vm3960, %v3865
        %3962 = vst.msk [vmem:[#allocation5 + $0x8] sm:$0xff] %vm3960, %v3867
        %3963 = vst.msk [vmem:[#allocation5 + $0x10] sm:$0xff] %vm3960, %v3869
        %3964 = vst.msk [vmem:[#allocation5 + $0x18] sm:$0xff] %vm3960, %v3871
        %3965 = vst.msk [vmem:[#allocation5 + $0x20] sm:$0xff] %vm3960, %v3873
        %3966 = vst.msk [vmem:[#allocation5 + $0x28] sm:$0xff] %vm3960, %v3875
        %3967 = vst.msk [vmem:[#allocation5 + $0x30] sm:$0xff] %vm3960, %v3877
        %3968 = vst.msk [vmem:[#allocation5 + $0x38] sm:$0xff] %vm3960, %v3879
        %3969 = vst.msk [vmem:[#allocation5 + $0x40] sm:$0xff] %vm3960, %v3881
        %3970 = vst.msk [vmem:[#allocation5 + $0x48] sm:$0xff] %vm3960, %v3883
        %3971 = vst.msk [vmem:[#allocation5 + $0x50] sm:$0xff] %vm3960, %v3885
        %3972 = vst.msk [vmem:[#allocation5 + $0x58] sm:$0xff] %vm3960, %v3887
        %3973 = vst.msk [vmem:[#allocation5 + $0x60] sm:$0xff] %vm3960, %v3889
        %3974 = vst.msk [vmem:[#allocation5 + $0x68] sm:$0xff] %vm3960, %v3891
        %3975 = vst.msk [vmem:[#allocation5 + $0x70] sm:$0xff] %vm3960, %v3893
        %3976 = vst.msk [vmem:[#allocation5 + $0x78] sm:$0xff] %vm3960, %v3895
        %3977 = vst.msk [vmem:[#allocation5 + $0x80] sm:$0xff] %vm3960, %v3897
        %3978 = vst.msk [vmem:[#allocation5 + $0x88] sm:$0xff] %vm3960, %v3899
        %3979 = vst.msk [vmem:[#allocation5 + $0x90] sm:$0xff] %vm3960, %v3901
        %3980 = vst.msk [vmem:[#allocation5 + $0x98] sm:$0xff] %vm3960, %v3903
        %3981 = vst.msk [vmem:[#allocation5 + $0xa0] sm:$0xff] %vm3960, %v3905
        %3982 = vst.msk [vmem:[#allocation5 + $0xa8] sm:$0xff] %vm3960, %v3907
        %3983 = vst.msk [vmem:[#allocation5 + $0xb0] sm:$0xff] %vm3960, %v3909
        %3984 = vst.msk [vmem:[#allocation5 + $0xb8] sm:$0xff] %vm3960, %v3911
        %3985 = vst.msk [vmem:[#allocation5 + $0xc0] sm:$0xff] %vm3960, %v3913
        %3986 = vst.msk [vmem:[#allocation5 + $0xc8] sm:$0xff] %vm3960, %v3915
        %3987 = vst.msk [vmem:[#allocation5 + $0xd0] sm:$0xff] %vm3960, %v3917
        %3988 = vst.msk [vmem:[#allocation5 + $0xd8] sm:$0xff] %vm3960, %v3919
        %3989 = vst.msk [vmem:[#allocation5 + $0xe0] sm:$0xff] %vm3960, %v3921
        %3990 = vst.msk [vmem:[#allocation5 + $0xe8] sm:$0xff] %vm3960, %v3923
        %3991 = vst.msk [vmem:[#allocation5 + $0xf0] sm:$0xff] %vm3960, %v3925
        %3992 = vst.msk [vmem:[#allocation5 + $0xf8] sm:$0xff] %vm3960, %v3927
        %v3993 = vld [vmem:[#allocation5] sm:$0xff]
        %v3994 = vld [vmem:[#allocation5 + $0x8] sm:$0xff]
        %v3995 = vld [vmem:[#allocation5 + $0x10] sm:$0xff]
        %v3996 = vld [vmem:[#allocation5 + $0x18] sm:$0xff]
        %v3997 = vld [vmem:[#allocation5 + $0x20] sm:$0xff]
        %v3998 = vld [vmem:[#allocation5 + $0x28] sm:$0xff]
        %v3999 = vld [vmem:[#allocation5 + $0x30] sm:$0xff]
        %v4000 = vld [vmem:[#allocation5 + $0x38] sm:$0xff]
        %v4001 = vld [vmem:[#allocation5 + $0x40] sm:$0xff]
        %v4002 = vld [vmem:[#allocation5 + $0x48] sm:$0xff]
        %v4003 = vld [vmem:[#allocation5 + $0x50] sm:$0xff]
        %v4004 = vld [vmem:[#allocation5 + $0x58] sm:$0xff]
        %v4005 = vld [vmem:[#allocation5 + $0x60] sm:$0xff]
        %v4006 = vld [vmem:[#allocation5 + $0x68] sm:$0xff]
        %v4007 = vld [vmem:[#allocation5 + $0x70] sm:$0xff]
        %v4008 = vld [vmem:[#allocation5 + $0x78] sm:$0xff]
        %v4009 = vld [vmem:[#allocation5 + $0x80] sm:$0xff]
        %v4010 = vld [vmem:[#allocation5 + $0x88] sm:$0xff]
        %v4011 = vld [vmem:[#allocation5 + $0x90] sm:$0xff]
        %v4012 = vld [vmem:[#allocation5 + $0x98] sm:$0xff]
        %v4013 = vld [vmem:[#allocation5 + $0xa0] sm:$0xff]
        %v4014 = vld [vmem:[#allocation5 + $0xa8] sm:$0xff]
        %v4015 = vld [vmem:[#allocation5 + $0xb0] sm:$0xff]
        %v4016 = vld [vmem:[#allocation5 + $0xb8] sm:$0xff]
        %v4017 = vld [vmem:[#allocation5 + $0xc0] sm:$0xff]
        %v4018 = vld [vmem:[#allocation5 + $0xc8] sm:$0xff]
        %v4019 = vld [vmem:[#allocation5 + $0xd0] sm:$0xff]
        %v4020 = vld [vmem:[#allocation5 + $0xd8] sm:$0xff]
        %v4021 = vld [vmem:[#allocation5 + $0xe0] sm:$0xff]
        %v4022 = vld [vmem:[#allocation5 + $0xe8] sm:$0xff]
        %v4023 = vld [vmem:[#allocation5 + $0xf0] sm:$0xff]
        %v4024 = vld [vmem:[#allocation5 + $0xf8] sm:$0xff]
        %v4025 = vld [vmem:[%s1] sm:$0xff]
        %v4026 = vld [vmem:[%s1 + $0x8] sm:$0xff]
        %v4027 = vld [vmem:[%s1 + $0x10] sm:$0xff]
        %v4028 = vld [vmem:[%s1 + $0x18] sm:$0xff]
        %v4029 = vld [vmem:[%s1 + $0x20] sm:$0xf]
        %vm4030 = vcmask 293888
        %v4032 = vsel %vm4030, %v3993, 0
        %v4035 = vsel %vm4030, %v3994, 0
        %v4038 = vsel %vm4030, %v3995, 0
        %v4041 = vsel %vm4030, %v3996, 0
        %v4044 = vsel %vm4030, %v3997, 0
        %v4047 = vsel %vm4030, %v3998, 0
        %v4050 = vsel %vm4030, %v3999, 0
        %v4053 = vsel %vm4030, %v4000, 0
        %v4056 = vsel %vm4030, %v4001, 0
        %v4059 = vsel %vm4030, %v4002, 0
        %v4062 = vsel %vm4030, %v4003, 0
        %v4065 = vsel %vm4030, %v4004, 0
        %v4068 = vsel %vm4030, %v4005, 0
        %v4071 = vsel %vm4030, %v4006, 0
        %v4074 = vsel %vm4030, %v4007, 0
        %v4077 = vsel %vm4030, %v4008, 0
        %v4080 = vsel %vm4030, %v4009, 0
        %v4083 = vsel %vm4030, %v4010, 0
        %v4086 = vsel %vm4030, %v4011, 0
        %v4089 = vsel %vm4030, %v4012, 0
        %v4092 = vsel %vm4030, %v4013, 0
        %v4095 = vsel %vm4030, %v4014, 0
        %v4098 = vsel %vm4030, %v4015, 0
        %v4101 = vsel %vm4030, %v4016, 0
        %v4104 = vsel %vm4030, %v4017, 0
        %v4107 = vsel %vm4030, %v4018, 0
        %v4110 = vsel %vm4030, %v4019, 0
        %v4113 = vsel %vm4030, %v4020, 0
        %v4116 = vsel %vm4030, %v4021, 0
        %v4119 = vsel %vm4030, %v4022, 0
        %v4122 = vsel %vm4030, %v4023, 0
        %v4125 = vsel %vm4030, %v4024, 0
        %vm4127 = vcmask 1043456
        %v4129 = vsel %vm4127, %v4029, 0
        %4131 = vmatprep.subr.mxu0 0.0
        %4132 = vmatpush1.msra.mxu0 0.0
        %4133 = vmatprep.subr.mxu0 0.0
        %4134 = vmatpush1.msra.mxu0 0.0
        %4135 = vmatprep.subr.mxu0 0.0
        %4136 = vmatpush1.msra.mxu0 0.0
        %4137 = vmatprep.subr.mxu0 0.0
        %4138 = vmatpush1.msra.mxu0 0.0
        %4139 = vmatprep.subr.mxu0 0.0
        %4140 = vmatpush1.msra.mxu0 0.0
        %4141 = vmatprep.subr.mxu0 0.0
        %4142 = vmatpush1.msra.mxu0 0.0
        %4143 = vmatprep.subr.mxu0 0.0
        %4144 = vmatpush1.msra.mxu0 0.0
        %4145 = vmatprep.subr.mxu0 0.0
        %4146 = vmatpush1.msra.mxu0 0.0
        %4147 = vmatprep.subr.mxu0 0.0
        %4148 = vmatpush1.msra.mxu0 0.0
        %4149 = vmatprep.subr.mxu0 0.0
        %4150 = vmatpush1.msra.mxu0 0.0
        %4151 = vmatprep.subr.mxu0 0.0
        %4152 = vmatpush1.msra.mxu0 0.0
        %4153 = vmatprep.subr.mxu0 0.0
        %4154 = vmatpush1.msra.mxu0 %v4129
        %4155 = vmatprep.subr.mxu0 0.0
        %4156 = vmatpush1.msra.mxu0 %v4028
        %4157 = vmatprep.subr.mxu0 0.0
        %4158 = vmatpush1.msra.mxu0 %v4027
        %4159 = vmatprep.subr.mxu0 0.0
        %4160 = vmatpush1.msra.mxu0 %v4026
        %4161 = vmatprep.subr.mxu0 0.0
        %4162 = vmatpush1.msra.mxu0 %v4025
        %4163 = vmatprep.subr.mxu0 0.0
        %4164 = vmatpush2.msra.mxu0 0.0
        %4165 = vmatprep.subr.mxu0 0.0
        %4166 = vmatpush2.msra.mxu0 0.0
        %4167 = vmatprep.subr.mxu0 0.0
        %4168 = vmatpush2.msra.mxu0 0.0
        %4169 = vmatprep.subr.mxu0 0.0
        %4170 = vmatpush2.msra.mxu0 0.0
        %4171 = vmatprep.subr.mxu0 0.0
        %4172 = vmatpush2.msra.mxu0 0.0
        %4173 = vmatprep.subr.mxu0 0.0
        %4174 = vmatpush2.msra.mxu0 0.0
        %4175 = vmatprep.subr.mxu0 0.0
        %4176 = vmatpush2.msra.mxu0 0.0
        %4177 = vmatprep.subr.mxu0 0.0
        %4178 = vmatpush2.msra.mxu0 0.0
        %4179 = vmatprep.subr.mxu0 0.0
        %4180 = vmatpush2.msra.mxu0 0.0
        %4181 = vmatprep.subr.mxu0 0.0
        %4182 = vmatpush2.msra.mxu0 0.0
        %4183 = vmatprep.subr.mxu0 0.0
        %4184 = vmatpush2.msra.mxu0 0.0
        %4185 = vmatprep.subr.mxu0 0.0
        %4186 = vmatpush2.msra.mxu0 0.0
        %4187 = vmatprep.subr.mxu0 0.0
        %4188 = vmatpush2.msra.mxu0 0.0
        %4189 = vmatprep.subr.mxu0 0.0
        %4190 = vmatpush2.msra.mxu0 0.0
        %4191 = vmatprep.subr.mxu0 0.0
        %4192 = vmatpush2.msra.mxu0 0.0
        %4193 = vmatprep.subr.mxu0 0.0
        %4194 = vmatpush2.msra.mxu0 0.0
        %4195 = vmatprep.mubr.f32.mxu0 0.0
        %4196 = vmatmul.mubr.f32.gmra.mxu0 %v4032
        %v4197 = vpop.f32.mrf.mxu0
        %v4198 = vadd.f32 0.0, %v4197
        %v4199 = vpop.f32.mrf.mxu0
        %4200 = vmatprep.mubr.f32.mxu0 0.0
        %4201 = vmatmul.mubr.f32.gmra.mxu0 %v4035
        %v4202 = vpop.f32.mrf.mxu0
        %v4203 = vadd.f32 0.0, %v4202
        %v4204 = vpop.f32.mrf.mxu0
        %4205 = vmatprep.mubr.f32.mxu0 0.0
        %4206 = vmatmul.mubr.f32.gmra.mxu0 %v4038
        %v4207 = vpop.f32.mrf.mxu0
        %v4208 = vadd.f32 0.0, %v4207
        %v4209 = vpop.f32.mrf.mxu0
        %4210 = vmatprep.mubr.f32.mxu0 0.0
        %4211 = vmatmul.mubr.f32.gmra.mxu0 %v4041
        %v4212 = vpop.f32.mrf.mxu0
        %v4213 = vadd.f32 0.0, %v4212
        %v4214 = vpop.f32.mrf.mxu0
        %4215 = vmatprep.mubr.f32.mxu0 0.0
        %4216 = vmatmul.mubr.f32.gmra.mxu0 %v4044
        %v4217 = vpop.f32.mrf.mxu0
        %v4218 = vadd.f32 0.0, %v4217
        %v4219 = vpop.f32.mrf.mxu0
        %4220 = vmatprep.mubr.f32.mxu0 0.0
        %4221 = vmatmul.mubr.f32.gmra.mxu0 %v4047
        %v4222 = vpop.f32.mrf.mxu0
        %v4223 = vadd.f32 0.0, %v4222
        %v4224 = vpop.f32.mrf.mxu0
        %4225 = vmatprep.mubr.f32.mxu0 0.0
        %4226 = vmatmul.mubr.f32.gmra.mxu0 %v4050
        %v4227 = vpop.f32.mrf.mxu0
        %v4228 = vadd.f32 0.0, %v4227
        %v4229 = vpop.f32.mrf.mxu0
        %4230 = vmatprep.mubr.f32.mxu0 0.0
        %4231 = vmatmul.mubr.f32.gmra.mxu0 %v4053
        %v4232 = vpop.f32.mrf.mxu0
        %v4233 = vadd.f32 0.0, %v4232
        %v4234 = vpop.f32.mrf.mxu0
        %4235 = vmatprep.mubr.f32.mxu0 0.0
        %4236 = vmatmul.mubr.f32.gmra.mxu0 %v4056
        %v4237 = vpop.f32.mrf.mxu0
        %v4238 = vadd.f32 0.0, %v4237
        %v4239 = vpop.f32.mrf.mxu0
        %4240 = vmatprep.mubr.f32.mxu0 0.0
        %4241 = vmatmul.mubr.f32.gmra.mxu0 %v4059
        %v4242 = vpop.f32.mrf.mxu0
        %v4243 = vadd.f32 0.0, %v4242
        %v4244 = vpop.f32.mrf.mxu0
        %4245 = vmatprep.mubr.f32.mxu0 0.0
        %4246 = vmatmul.mubr.f32.gmra.mxu0 %v4062
        %v4247 = vpop.f32.mrf.mxu0
        %v4248 = vadd.f32 0.0, %v4247
        %v4249 = vpop.f32.mrf.mxu0
        %4250 = vmatprep.mubr.f32.mxu0 0.0
        %4251 = vmatmul.mubr.f32.gmra.mxu0 %v4065
        %v4252 = vpop.f32.mrf.mxu0
        %v4253 = vadd.f32 0.0, %v4252
        %v4254 = vpop.f32.mrf.mxu0
        %4255 = vmatprep.mubr.f32.mxu0 0.0
        %4256 = vmatmul.mubr.f32.gmra.mxu0 %v4068
        %v4257 = vpop.f32.mrf.mxu0
        %v4258 = vadd.f32 0.0, %v4257
        %v4259 = vpop.f32.mrf.mxu0
        %4260 = vmatprep.mubr.f32.mxu0 0.0
        %4261 = vmatmul.mubr.f32.gmra.mxu0 %v4071
        %v4262 = vpop.f32.mrf.mxu0
        %v4263 = vadd.f32 0.0, %v4262
        %v4264 = vpop.f32.mrf.mxu0
        %4265 = vmatprep.mubr.f32.mxu0 0.0
        %4266 = vmatmul.mubr.f32.gmra.mxu0 %v4074
        %v4267 = vpop.f32.mrf.mxu0
        %v4268 = vadd.f32 0.0, %v4267
        %v4269 = vpop.f32.mrf.mxu0
        %4270 = vmatprep.mubr.f32.mxu0 0.0
        %4271 = vmatmul.mubr.f32.gmra.mxu0 %v4077
        %v4272 = vpop.f32.mrf.mxu0
        %v4273 = vadd.f32 0.0, %v4272
        %v4274 = vpop.f32.mrf.mxu0
        %4275 = vmatprep.mubr.f32.mxu0 0.0
        %4276 = vmatmul.mubr.f32.gmra.mxu0 %v4080
        %v4277 = vpop.f32.mrf.mxu0
        %v4278 = vadd.f32 0.0, %v4277
        %v4279 = vpop.f32.mrf.mxu0
        %4280 = vmatprep.mubr.f32.mxu0 0.0
        %4281 = vmatmul.mubr.f32.gmra.mxu0 %v4083
        %v4282 = vpop.f32.mrf.mxu0
        %v4283 = vadd.f32 0.0, %v4282
        %v4284 = vpop.f32.mrf.mxu0
        %4285 = vmatprep.mubr.f32.mxu0 0.0
        %4286 = vmatmul.mubr.f32.gmra.mxu0 %v4086
        %v4287 = vpop.f32.mrf.mxu0
        %v4288 = vadd.f32 0.0, %v4287
        %v4289 = vpop.f32.mrf.mxu0
        %4290 = vmatprep.mubr.f32.mxu0 0.0
        %4291 = vmatmul.mubr.f32.gmra.mxu0 %v4089
        %v4292 = vpop.f32.mrf.mxu0
        %v4293 = vadd.f32 0.0, %v4292
        %v4294 = vpop.f32.mrf.mxu0
        %4295 = vmatprep.mubr.f32.mxu0 0.0
        %4296 = vmatmul.mubr.f32.gmra.mxu0 %v4092
        %v4297 = vpop.f32.mrf.mxu0
        %v4298 = vadd.f32 0.0, %v4297
        %v4299 = vpop.f32.mrf.mxu0
        %4300 = vmatprep.mubr.f32.mxu0 0.0
        %4301 = vmatmul.mubr.f32.gmra.mxu0 %v4095
        %v4302 = vpop.f32.mrf.mxu0
        %v4303 = vadd.f32 0.0, %v4302
        %v4304 = vpop.f32.mrf.mxu0
        %4305 = vmatprep.mubr.f32.mxu0 0.0
        %4306 = vmatmul.mubr.f32.gmra.mxu0 %v4098
        %v4307 = vpop.f32.mrf.mxu0
        %v4308 = vadd.f32 0.0, %v4307
        %v4309 = vpop.f32.mrf.mxu0
        %4310 = vmatprep.mubr.f32.mxu0 0.0
        %4311 = vmatmul.mubr.f32.gmra.mxu0 %v4101
        %v4312 = vpop.f32.mrf.mxu0
        %v4313 = vadd.f32 0.0, %v4312
        %v4314 = vpop.f32.mrf.mxu0
        %4315 = vmatprep.mubr.f32.mxu0 0.0
        %4316 = vmatmul.mubr.f32.gmra.mxu0 %v4104
        %v4317 = vpop.f32.mrf.mxu0
        %v4318 = vadd.f32 0.0, %v4317
        %v4319 = vpop.f32.mrf.mxu0
        %4320 = vmatprep.mubr.f32.mxu0 0.0
        %4321 = vmatmul.mubr.f32.gmra.mxu0 %v4107
        %v4322 = vpop.f32.mrf.mxu0
        %v4323 = vadd.f32 0.0, %v4322
        %v4324 = vpop.f32.mrf.mxu0
        %4325 = vmatprep.mubr.f32.mxu0 0.0
        %4326 = vmatmul.mubr.f32.gmra.mxu0 %v4110
        %v4327 = vpop.f32.mrf.mxu0
        %v4328 = vadd.f32 0.0, %v4327
        %v4329 = vpop.f32.mrf.mxu0
        %4330 = vmatprep.mubr.f32.mxu0 0.0
        %4331 = vmatmul.mubr.f32.gmra.mxu0 %v4113
        %v4332 = vpop.f32.mrf.mxu0
        %v4333 = vadd.f32 0.0, %v4332
        %v4334 = vpop.f32.mrf.mxu0
        %4335 = vmatprep.mubr.f32.mxu0 0.0
        %4336 = vmatmul.mubr.f32.gmra.mxu0 %v4116
        %v4337 = vpop.f32.mrf.mxu0
        %v4338 = vadd.f32 0.0, %v4337
        %v4339 = vpop.f32.mrf.mxu0
        %4340 = vmatprep.mubr.f32.mxu0 0.0
        %4341 = vmatmul.mubr.f32.gmra.mxu0 %v4119
        %v4342 = vpop.f32.mrf.mxu0
        %v4343 = vadd.f32 0.0, %v4342
        %v4344 = vpop.f32.mrf.mxu0
        %4345 = vmatprep.mubr.f32.mxu0 0.0
        %4346 = vmatmul.mubr.f32.gmra.mxu0 %v4122
        %v4347 = vpop.f32.mrf.mxu0
        %v4348 = vadd.f32 0.0, %v4347
        %v4349 = vpop.f32.mrf.mxu0
        %4350 = vmatprep.mubr.f32.mxu0 0.0
        %4351 = vmatmul.mubr.f32.gmra.mxu0 %v4125
        %v4352 = vpop.f32.mrf.mxu0
        %v4353 = vadd.f32 0.0, %v4352
        %v4354 = vpop.f32.mrf.mxu0
        %4355 = vdwg.mxu0
        %v4356 = vld [vmem:[%s4] sm:$0x1]
        %v4358 = vlaneseq
        %v4359 = vshrl.u32 %v4358, 7
        %v4360 = vsub.s32 0, %v4359
        %v4361 = vrot.slane %v4356, %v4360
        %v4363 = vmul.f32 %v4198, %v4361
        %v4364 = vmul.f32 %v4203, %v4361
        %v4365 = vmul.f32 %v4208, %v4361
        %v4366 = vmul.f32 %v4213, %v4361
        %v4367 = vmul.f32 %v4218, %v4361
        %v4368 = vmul.f32 %v4223, %v4361
        %v4369 = vmul.f32 %v4228, %v4361
        %v4370 = vmul.f32 %v4233, %v4361
        %v4371 = vmul.f32 %v4238, %v4361
        %v4372 = vmul.f32 %v4243, %v4361
        %v4373 = vmul.f32 %v4248, %v4361
        %v4374 = vmul.f32 %v4253, %v4361
        %v4375 = vmul.f32 %v4258, %v4361
        %v4376 = vmul.f32 %v4263, %v4361
        %v4377 = vmul.f32 %v4268, %v4361
        %v4378 = vmul.f32 %v4273, %v4361
        %v4379 = vmul.f32 %v4278, %v4361
        %v4380 = vmul.f32 %v4283, %v4361
        %v4381 = vmul.f32 %v4288, %v4361
        %v4382 = vmul.f32 %v4293, %v4361
        %v4383 = vmul.f32 %v4298, %v4361
        %v4384 = vmul.f32 %v4303, %v4361
        %v4385 = vmul.f32 %v4308, %v4361
        %v4386 = vmul.f32 %v4313, %v4361
        %v4387 = vmul.f32 %v4318, %v4361
        %v4388 = vmul.f32 %v4323, %v4361
        %v4389 = vmul.f32 %v4328, %v4361
        %v4390 = vmul.f32 %v4333, %v4361
        %v4391 = vmul.f32 %v4338, %v4361
        %v4392 = vmul.f32 %v4343, %v4361
        %v4393 = vmul.f32 %v4348, %v4361
        %v4394 = vmul.f32 %v4353, %v4361
        %v4395 = vld [vmem:[%s7] sm:$0x1]
        %v4397 = vlaneseq
        %v4398 = vshrl.u32 %v4397, 7
        %v4399 = vsub.s32 0, %v4398
        %v4400 = vrot.slane %v4395, %v4399
        %v4402 = vadd.f32 %v4363, %v4400
        %v4403 = vadd.f32 %v4364, %v4400
        %v4404 = vadd.f32 %v4365, %v4400
        %v4405 = vadd.f32 %v4366, %v4400
        %v4406 = vadd.f32 %v4367, %v4400
        %v4407 = vadd.f32 %v4368, %v4400
        %v4408 = vadd.f32 %v4369, %v4400
        %v4409 = vadd.f32 %v4370, %v4400
        %v4410 = vadd.f32 %v4371, %v4400
        %v4411 = vadd.f32 %v4372, %v4400
        %v4412 = vadd.f32 %v4373, %v4400
        %v4413 = vadd.f32 %v4374, %v4400
        %v4414 = vadd.f32 %v4375, %v4400
        %v4415 = vadd.f32 %v4376, %v4400
        %v4416 = vadd.f32 %v4377, %v4400
        %v4417 = vadd.f32 %v4378, %v4400
        %v4418 = vadd.f32 %v4379, %v4400
        %v4419 = vadd.f32 %v4380, %v4400
        %v4420 = vadd.f32 %v4381, %v4400
        %v4421 = vadd.f32 %v4382, %v4400
        %v4422 = vadd.f32 %v4383, %v4400
        %v4423 = vadd.f32 %v4384, %v4400
        %v4424 = vadd.f32 %v4385, %v4400
        %v4425 = vadd.f32 %v4386, %v4400
        %v4426 = vadd.f32 %v4387, %v4400
        %v4427 = vadd.f32 %v4388, %v4400
        %v4428 = vadd.f32 %v4389, %v4400
        %v4429 = vadd.f32 %v4390, %v4400
        %v4430 = vadd.f32 %v4391, %v4400
        %v4431 = vadd.f32 %v4392, %v4400
        %v4432 = vadd.f32 %v4393, %v4400
        %v4433 = vadd.f32 %v4394, %v4400
        %v4434 = vmax.f32 %v4402, 0.0
        %v4435 = vmax.f32 %v4403, 0.0
        %v4436 = vmax.f32 %v4404, 0.0
        %v4437 = vmax.f32 %v4405, 0.0
        %v4438 = vmax.f32 %v4406, 0.0
        %v4439 = vmax.f32 %v4407, 0.0
        %v4440 = vmax.f32 %v4408, 0.0
        %v4441 = vmax.f32 %v4409, 0.0
        %v4442 = vmax.f32 %v4410, 0.0
        %v4443 = vmax.f32 %v4411, 0.0
        %v4444 = vmax.f32 %v4412, 0.0
        %v4445 = vmax.f32 %v4413, 0.0
        %v4446 = vmax.f32 %v4414, 0.0
        %v4447 = vmax.f32 %v4415, 0.0
        %v4448 = vmax.f32 %v4416, 0.0
        %v4449 = vmax.f32 %v4417, 0.0
        %v4450 = vmax.f32 %v4418, 0.0
        %v4451 = vmax.f32 %v4419, 0.0
        %v4452 = vmax.f32 %v4420, 0.0
        %v4453 = vmax.f32 %v4421, 0.0
        %v4454 = vmax.f32 %v4422, 0.0
        %v4455 = vmax.f32 %v4423, 0.0
        %v4456 = vmax.f32 %v4424, 0.0
        %v4457 = vmax.f32 %v4425, 0.0
        %v4458 = vmax.f32 %v4426, 0.0
        %v4459 = vmax.f32 %v4427, 0.0
        %v4460 = vmax.f32 %v4428, 0.0
        %v4461 = vmax.f32 %v4429, 0.0
        %v4462 = vmax.f32 %v4430, 0.0
        %v4463 = vmax.f32 %v4431, 0.0
        %v4464 = vmax.f32 %v4432, 0.0
        %v4465 = vmax.f32 %v4433, 0.0
        %4466 = vst [vmem:[%s465] sm:$0xff] %v4434
        %4467 = vst [vmem:[%s465 + $0x8] sm:$0xff] %v4435
        %4468 = vst [vmem:[%s465 + $0x10] sm:$0xff] %v4436
        %4469 = vst [vmem:[%s465 + $0x18] sm:$0xff] %v4437
        %4470 = vst [vmem:[%s465 + $0x20] sm:$0xff] %v4438
        %4471 = vst [vmem:[%s465 + $0x28] sm:$0xff] %v4439
        %4472 = vst [vmem:[%s465 + $0x30] sm:$0xff] %v4440
        %4473 = vst [vmem:[%s465 + $0x38] sm:$0xff] %v4441
        %4474 = vst [vmem:[%s465 + $0x40] sm:$0xff] %v4442
        %4475 = vst [vmem:[%s465 + $0x48] sm:$0xff] %v4443
        %4476 = vst [vmem:[%s465 + $0x50] sm:$0xff] %v4444
        %4477 = vst [vmem:[%s465 + $0x58] sm:$0xff] %v4445
        %4478 = vst [vmem:[%s465 + $0x60] sm:$0xff] %v4446
        %4479 = vst [vmem:[%s465 + $0x68] sm:$0xff] %v4447
        %4480 = vst [vmem:[%s465 + $0x70] sm:$0xff] %v4448
        %4481 = vst [vmem:[%s465 + $0x78] sm:$0xff] %v4449
        %4482 = vst [vmem:[%s465 + $0x80] sm:$0xff] %v4450
        %4483 = vst [vmem:[%s465 + $0x88] sm:$0xff] %v4451
        %4484 = vst [vmem:[%s465 + $0x90] sm:$0xff] %v4452
        %4485 = vst [vmem:[%s465 + $0x98] sm:$0xff] %v4453
        %4486 = vst [vmem:[%s465 + $0xa0] sm:$0xff] %v4454
        %4487 = vst [vmem:[%s465 + $0xa8] sm:$0xff] %v4455
        %4488 = vst [vmem:[%s465 + $0xb0] sm:$0xff] %v4456
        %4489 = vst [vmem:[%s465 + $0xb8] sm:$0xff] %v4457
        %4490 = vst [vmem:[%s465 + $0xc0] sm:$0xff] %v4458
        %4491 = vst [vmem:[%s465 + $0xc8] sm:$0xff] %v4459
        %4492 = vst [vmem:[%s465 + $0xd0] sm:$0xff] %v4460
        %4493 = vst [vmem:[%s465 + $0xd8] sm:$0xff] %v4461
        %4494 = vst [vmem:[%s465 + $0xe0] sm:$0xff] %v4462
        %4495 = vst [vmem:[%s465 + $0xe8] sm:$0xff] %v4463
        %4496 = vst [vmem:[%s465 + $0xf0] sm:$0xff] %v4464
        %4497 = vst [vmem:[%s465 + $0xf8] sm:$0xff] %v4465
        %vm4498 = vcmask 64512
        %4499 = vst.msk [vmem:[#allocation3] sm:$0xff] %vm4498, 0.0
        %4500 = vst.msk [vmem:[#allocation3 + $0x8] sm:$0xff] %vm4498, 0.0
        %4501 = vst.msk [vmem:[#allocation3 + $0x10] sm:$0xff] %vm4498, 0.0
        %4502 = vst.msk [vmem:[#allocation3 + $0x118] sm:$0xff] %vm4498, 0.0
        %4503 = vst.msk [vmem:[#allocation3 + $0x120] sm:$0xff] %vm4498, 0.0
        %4504 = vst.msk [vmem:[#allocation3 + $0x128] sm:$0xff] %vm4498, 0.0
        %4505 = vst.msk [vmem:[#allocation3 + $0x18] sm:$0xff] %vm4498, %v4434
        %4506 = vst.msk [vmem:[#allocation3 + $0x20] sm:$0xff] %vm4498, %v4435
        %4507 = vst.msk [vmem:[#allocation3 + $0x28] sm:$0xff] %vm4498, %v4436
        %4508 = vst.msk [vmem:[#allocation3 + $0x30] sm:$0xff] %vm4498, %v4437
        %4509 = vst.msk [vmem:[#allocation3 + $0x38] sm:$0xff] %vm4498, %v4438
        %4510 = vst.msk [vmem:[#allocation3 + $0x40] sm:$0xff] %vm4498, %v4439
        %4511 = vst.msk [vmem:[#allocation3 + $0x48] sm:$0xff] %vm4498, %v4440
        %4512 = vst.msk [vmem:[#allocation3 + $0x50] sm:$0xff] %vm4498, %v4441
        %4513 = vst.msk [vmem:[#allocation3 + $0x58] sm:$0xff] %vm4498, %v4442
        %4514 = vst.msk [vmem:[#allocation3 + $0x60] sm:$0xff] %vm4498, %v4443
        %4515 = vst.msk [vmem:[#allocation3 + $0x68] sm:$0xff] %vm4498, %v4444
        %4516 = vst.msk [vmem:[#allocation3 + $0x70] sm:$0xff] %vm4498, %v4445
        %4517 = vst.msk [vmem:[#allocation3 + $0x78] sm:$0xff] %vm4498, %v4446
        %4518 = vst.msk [vmem:[#allocation3 + $0x80] sm:$0xff] %vm4498, %v4447
        %4519 = vst.msk [vmem:[#allocation3 + $0x88] sm:$0xff] %vm4498, %v4448
        %4520 = vst.msk [vmem:[#allocation3 + $0x90] sm:$0xff] %vm4498, %v4449
        %4521 = vst.msk [vmem:[#allocation3 + $0x98] sm:$0xff] %vm4498, %v4450
        %4522 = vst.msk [vmem:[#allocation3 + $0xa0] sm:$0xff] %vm4498, %v4451
        %4523 = vst.msk [vmem:[#allocation3 + $0xa8] sm:$0xff] %vm4498, %v4452
        %4524 = vst.msk [vmem:[#allocation3 + $0xb0] sm:$0xff] %vm4498, %v4453
        %4525 = vst.msk [vmem:[#allocation3 + $0xb8] sm:$0xff] %vm4498, %v4454
        %4526 = vst.msk [vmem:[#allocation3 + $0xc0] sm:$0xff] %vm4498, %v4455
        %4527 = vst.msk [vmem:[#allocation3 + $0xc8] sm:$0xff] %vm4498, %v4456
        %4528 = vst.msk [vmem:[#allocation3 + $0xd0] sm:$0xff] %vm4498, %v4457
        %4529 = vst.msk [vmem:[#allocation3 + $0xd8] sm:$0xff] %vm4498, %v4458
        %4530 = vst.msk [vmem:[#allocation3 + $0xe0] sm:$0xff] %vm4498, %v4459
        %4531 = vst.msk [vmem:[#allocation3 + $0xe8] sm:$0xff] %vm4498, %v4460
        %4532 = vst.msk [vmem:[#allocation3 + $0xf0] sm:$0xff] %vm4498, %v4461
        %4533 = vst.msk [vmem:[#allocation3 + $0xf8] sm:$0xff] %vm4498, %v4462
        %4534 = vst.msk [vmem:[#allocation3 + $0x100] sm:$0xff] %vm4498, %v4463
        %4535 = vst.msk [vmem:[#allocation3 + $0x108] sm:$0xff] %vm4498, %v4464
        %4536 = vst.msk [vmem:[#allocation3 + $0x110] sm:$0xff] %vm4498, %v4465
        %v4537 = vld [vmem:[#allocation3 + $0x7] sm:$0xff]
        %v4538 = vld [vmem:[#allocation3 + $0xf] sm:$0xff]
        %v4539 = vld [vmem:[#allocation3 + $0x17] sm:$0xff]
        %v4540 = vld [vmem:[#allocation3 + $0x1f] sm:$0xff]
        %v4541 = vld [vmem:[#allocation3 + $0x27] sm:$0xff]
        %v4542 = vld [vmem:[#allocation3 + $0x2f] sm:$0xff]
        %v4543 = vld [vmem:[#allocation3 + $0x37] sm:$0xff]
        %v4544 = vld [vmem:[#allocation3 + $0x3f] sm:$0xff]
        %v4545 = vld [vmem:[#allocation3 + $0x47] sm:$0xff]
        %v4546 = vld [vmem:[#allocation3 + $0x4f] sm:$0xff]
        %v4547 = vld [vmem:[#allocation3 + $0x57] sm:$0xff]
        %v4548 = vld [vmem:[#allocation3 + $0x5f] sm:$0xff]
        %v4549 = vld [vmem:[#allocation3 + $0x67] sm:$0xff]
        %v4550 = vld [vmem:[#allocation3 + $0x6f] sm:$0xff]
        %v4551 = vld [vmem:[#allocation3 + $0x77] sm:$0xff]
        %v4552 = vld [vmem:[#allocation3 + $0x7f] sm:$0xff]
        %v4553 = vld [vmem:[#allocation3 + $0x87] sm:$0xff]
        %v4554 = vld [vmem:[#allocation3 + $0x8f] sm:$0xff]
        %v4555 = vld [vmem:[#allocation3 + $0x97] sm:$0xff]
        %v4556 = vld [vmem:[#allocation3 + $0x9f] sm:$0xff]
        %v4557 = vld [vmem:[#allocation3 + $0xa7] sm:$0xff]
        %v4558 = vld [vmem:[#allocation3 + $0xaf] sm:$0xff]
        %v4559 = vld [vmem:[#allocation3 + $0xb7] sm:$0xff]
        %v4560 = vld [vmem:[#allocation3 + $0xbf] sm:$0xff]
        %v4561 = vld [vmem:[#allocation3 + $0xc7] sm:$0xff]
        %v4562 = vld [vmem:[#allocation3 + $0xcf] sm:$0xff]
        %v4563 = vld [vmem:[#allocation3 + $0xd7] sm:$0xff]
        %v4564 = vld [vmem:[#allocation3 + $0xdf] sm:$0xff]
        %v4565 = vld [vmem:[#allocation3 + $0xe7] sm:$0xff]
        %v4566 = vld [vmem:[#allocation3 + $0xef] sm:$0xff]
        %v4567 = vld [vmem:[#allocation3 + $0xf7] sm:$0xff]
        %v4568 = vld [vmem:[#allocation3 + $0xff] sm:$0xff]
        %v4569 = vsel %vm1585, %v4537, 0.0
        %v4570 = vsel %vm1586, %v4538, 0.0
        %v4571 = vsel %vm1587, %v4539, 0.0
        %v4572 = vsel %vm1588, %v4540, 0.0
        %v4573 = vsel %vm1589, %v4541, 0.0
        %v4574 = vsel %vm1590, %v4542, 0.0
        %v4575 = vsel %vm1591, %v4543, 0.0
        %v4576 = vsel %vm1592, %v4544, 0.0
        %v4577 = vsel %vm1593, %v4545, 0.0
        %v4578 = vsel %vm1594, %v4546, 0.0
        %v4579 = vsel %vm1595, %v4547, 0.0
        %v4580 = vsel %vm1596, %v4548, 0.0
        %v4581 = vsel %vm1597, %v4549, 0.0
        %v4582 = vsel %vm1598, %v4550, 0.0
        %v4583 = vsel %vm1599, %v4551, 0.0
        %v4584 = vsel %vm1600, %v4552, 0.0
        %v4585 = vsel %vm1601, %v4553, 0.0
        %v4586 = vsel %vm1602, %v4554, 0.0
        %v4587 = vsel %vm1603, %v4555, 0.0
        %v4588 = vsel %vm1604, %v4556, 0.0
        %v4589 = vsel %vm1605, %v4557, 0.0
        %v4590 = vsel %vm1606, %v4558, 0.0
        %v4591 = vsel %vm1607, %v4559, 0.0
        %v4592 = vsel %vm1608, %v4560, 0.0
        %v4593 = vsel %vm1609, %v4561, 0.0
        %v4594 = vsel %vm1610, %v4562, 0.0
        %v4595 = vsel %vm1611, %v4563, 0.0
        %v4596 = vsel %vm1612, %v4564, 0.0
        %v4597 = vsel %vm1613, %v4565, 0.0
        %v4598 = vsel %vm1614, %v4566, 0.0
        %v4599 = vsel %vm1615, %v4567, 0.0
        %v4600 = vsel %vm1616, %v4568, 0.0
        %4601 = vst.msk [vmem:[#allocation6] sm:$0xff] %vm4498, %v4569
        %4602 = vst.msk [vmem:[#allocation6 + $0x8] sm:$0xff] %vm4498, %v4570
        %4603 = vst.msk [vmem:[#allocation6 + $0x10] sm:$0xff] %vm4498, %v4571
        %4604 = vst.msk [vmem:[#allocation6 + $0x18] sm:$0xff] %vm4498, %v4572
        %4605 = vst.msk [vmem:[#allocation6 + $0x20] sm:$0xff] %vm4498, %v4573
        %4606 = vst.msk [vmem:[#allocation6 + $0x28] sm:$0xff] %vm4498, %v4574
        %4607 = vst.msk [vmem:[#allocation6 + $0x30] sm:$0xff] %vm4498, %v4575
        %4608 = vst.msk [vmem:[#allocation6 + $0x38] sm:$0xff] %vm4498, %v4576
        %4609 = vst.msk [vmem:[#allocation6 + $0x40] sm:$0xff] %vm4498, %v4577
        %4610 = vst.msk [vmem:[#allocation6 + $0x48] sm:$0xff] %vm4498, %v4578
        %4611 = vst.msk [vmem:[#allocation6 + $0x50] sm:$0xff] %vm4498, %v4579
        %4612 = vst.msk [vmem:[#allocation6 + $0x58] sm:$0xff] %vm4498, %v4580
        %4613 = vst.msk [vmem:[#allocation6 + $0x60] sm:$0xff] %vm4498, %v4581
        %4614 = vst.msk [vmem:[#allocation6 + $0x68] sm:$0xff] %vm4498, %v4582
        %4615 = vst.msk [vmem:[#allocation6 + $0x70] sm:$0xff] %vm4498, %v4583
        %4616 = vst.msk [vmem:[#allocation6 + $0x78] sm:$0xff] %vm4498, %v4584
        %4617 = vst.msk [vmem:[#allocation6 + $0x80] sm:$0xff] %vm4498, %v4585
        %4618 = vst.msk [vmem:[#allocation6 + $0x88] sm:$0xff] %vm4498, %v4586
        %4619 = vst.msk [vmem:[#allocation6 + $0x90] sm:$0xff] %vm4498, %v4587
        %4620 = vst.msk [vmem:[#allocation6 + $0x98] sm:$0xff] %vm4498, %v4588
        %4621 = vst.msk [vmem:[#allocation6 + $0xa0] sm:$0xff] %vm4498, %v4589
        %4622 = vst.msk [vmem:[#allocation6 + $0xa8] sm:$0xff] %vm4498, %v4590
        %4623 = vst.msk [vmem:[#allocation6 + $0xb0] sm:$0xff] %vm4498, %v4591
        %4624 = vst.msk [vmem:[#allocation6 + $0xb8] sm:$0xff] %vm4498, %v4592
        %4625 = vst.msk [vmem:[#allocation6 + $0xc0] sm:$0xff] %vm4498, %v4593
        %4626 = vst.msk [vmem:[#allocation6 + $0xc8] sm:$0xff] %vm4498, %v4594
        %4627 = vst.msk [vmem:[#allocation6 + $0xd0] sm:$0xff] %vm4498, %v4595
        %4628 = vst.msk [vmem:[#allocation6 + $0xd8] sm:$0xff] %vm4498, %v4596
        %4629 = vst.msk [vmem:[#allocation6 + $0xe0] sm:$0xff] %vm4498, %v4597
        %4630 = vst.msk [vmem:[#allocation6 + $0xe8] sm:$0xff] %vm4498, %v4598
        %4631 = vst.msk [vmem:[#allocation6 + $0xf0] sm:$0xff] %vm4498, %v4599
        %4632 = vst.msk [vmem:[#allocation6 + $0xf8] sm:$0xff] %vm4498, %v4600
        %v4633 = vld [vmem:[#allocation3 + $0x8] sm:$0xff]
        %v4634 = vld [vmem:[#allocation3 + $0x10] sm:$0xff]
        %v4635 = vld [vmem:[#allocation3 + $0x18] sm:$0xff]
        %v4636 = vld [vmem:[#allocation3 + $0x20] sm:$0xff]
        %v4637 = vld [vmem:[#allocation3 + $0x28] sm:$0xff]
        %v4638 = vld [vmem:[#allocation3 + $0x30] sm:$0xff]
        %v4639 = vld [vmem:[#allocation3 + $0x38] sm:$0xff]
        %v4640 = vld [vmem:[#allocation3 + $0x40] sm:$0xff]
        %v4641 = vld [vmem:[#allocation3 + $0x48] sm:$0xff]
        %v4642 = vld [vmem:[#allocation3 + $0x50] sm:$0xff]
        %v4643 = vld [vmem:[#allocation3 + $0x58] sm:$0xff]
        %v4644 = vld [vmem:[#allocation3 + $0x60] sm:$0xff]
        %v4645 = vld [vmem:[#allocation3 + $0x68] sm:$0xff]
        %v4646 = vld [vmem:[#allocation3 + $0x70] sm:$0xff]
        %v4647 = vld [vmem:[#allocation3 + $0x78] sm:$0xff]
        %v4648 = vld [vmem:[#allocation3 + $0x80] sm:$0xff]
        %v4649 = vld [vmem:[#allocation3 + $0x88] sm:$0xff]
        %v4650 = vld [vmem:[#allocation3 + $0x90] sm:$0xff]
        %v4651 = vld [vmem:[#allocation3 + $0x98] sm:$0xff]
        %v4652 = vld [vmem:[#allocation3 + $0xa0] sm:$0xff]
        %v4653 = vld [vmem:[#allocation3 + $0xa8] sm:$0xff]
        %v4654 = vld [vmem:[#allocation3 + $0xb0] sm:$0xff]
        %v4655 = vld [vmem:[#allocation3 + $0xb8] sm:$0xff]
        %v4656 = vld [vmem:[#allocation3 + $0xc0] sm:$0xff]
        %v4657 = vld [vmem:[#allocation3 + $0xc8] sm:$0xff]
        %v4658 = vld [vmem:[#allocation3 + $0xd0] sm:$0xff]
        %v4659 = vld [vmem:[#allocation3 + $0xd8] sm:$0xff]
        %v4660 = vld [vmem:[#allocation3 + $0xe0] sm:$0xff]
        %v4661 = vld [vmem:[#allocation3 + $0xe8] sm:$0xff]
        %v4662 = vld [vmem:[#allocation3 + $0xf0] sm:$0xff]
        %v4663 = vld [vmem:[#allocation3 + $0xf8] sm:$0xff]
        %v4664 = vld [vmem:[#allocation3 + $0x100] sm:$0xff]
        %v4665 = vsel %vm1745, %v4633, 0.0
        %v4666 = vsel %vm1746, %v4634, 0.0
        %v4667 = vsel %vm1747, %v4635, 0.0
        %v4668 = vsel %vm1748, %v4636, 0.0
        %v4669 = vsel %vm1749, %v4637, 0.0
        %v4670 = vsel %vm1750, %v4638, 0.0
        %v4671 = vsel %vm1751, %v4639, 0.0
        %v4672 = vsel %vm1752, %v4640, 0.0
        %v4673 = vsel %vm1753, %v4641, 0.0
        %v4674 = vsel %vm1754, %v4642, 0.0
        %v4675 = vsel %vm1755, %v4643, 0.0
        %v4676 = vsel %vm1756, %v4644, 0.0
        %v4677 = vsel %vm1757, %v4645, 0.0
        %v4678 = vsel %vm1758, %v4646, 0.0
        %v4679 = vsel %vm1759, %v4647, 0.0
        %v4680 = vsel %vm1760, %v4648, 0.0
        %v4681 = vsel %vm1761, %v4649, 0.0
        %v4682 = vsel %vm1762, %v4650, 0.0
        %v4683 = vsel %vm1763, %v4651, 0.0
        %v4684 = vsel %vm1764, %v4652, 0.0
        %v4685 = vsel %vm1765, %v4653, 0.0
        %v4686 = vsel %vm1766, %v4654, 0.0
        %v4687 = vsel %vm1767, %v4655, 0.0
        %v4688 = vsel %vm1768, %v4656, 0.0
        %v4689 = vsel %vm1769, %v4657, 0.0
        %v4690 = vsel %vm1770, %v4658, 0.0
        %v4691 = vsel %vm1771, %v4659, 0.0
        %v4692 = vsel %vm1772, %v4660, 0.0
        %v4693 = vsel %vm1773, %v4661, 0.0
        %v4694 = vsel %vm1774, %v4662, 0.0
        %v4695 = vsel %vm1775, %v4663, 0.0
        %v4696 = vsel %vm1776, %v4664, 0.0
        %4729 = vrot.lane.b32.xlu0 %v4665, 8
        %v4730 = vpop.permute.xlu0 %4729
        %4731 = vrot.lane.b32.xlu0 %v4666, 8
        %v4732 = vpop.permute.xlu0 %4731
        %4733 = vrot.lane.b32.xlu0 %v4667, 8
        %v4734 = vpop.permute.xlu0 %4733
        %4735 = vrot.lane.b32.xlu0 %v4668, 8
        %v4736 = vpop.permute.xlu0 %4735
        %4737 = vrot.lane.b32.xlu0 %v4669, 8
        %v4738 = vpop.permute.xlu0 %4737
        %4739 = vrot.lane.b32.xlu0 %v4670, 8
        %v4740 = vpop.permute.xlu0 %4739
        %4741 = vrot.lane.b32.xlu0 %v4671, 8
        %v4742 = vpop.permute.xlu0 %4741
        %4743 = vrot.lane.b32.xlu0 %v4672, 8
        %v4744 = vpop.permute.xlu0 %4743
        %4745 = vrot.lane.b32.xlu0 %v4673, 8
        %v4746 = vpop.permute.xlu0 %4745
        %4747 = vrot.lane.b32.xlu0 %v4674, 8
        %v4748 = vpop.permute.xlu0 %4747
        %4749 = vrot.lane.b32.xlu0 %v4675, 8
        %v4750 = vpop.permute.xlu0 %4749
        %4751 = vrot.lane.b32.xlu0 %v4676, 8
        %v4752 = vpop.permute.xlu0 %4751
        %4753 = vrot.lane.b32.xlu0 %v4677, 8
        %v4754 = vpop.permute.xlu0 %4753
        %4755 = vrot.lane.b32.xlu0 %v4678, 8
        %v4756 = vpop.permute.xlu0 %4755
        %4757 = vrot.lane.b32.xlu0 %v4679, 8
        %v4758 = vpop.permute.xlu0 %4757
        %4759 = vrot.lane.b32.xlu0 %v4680, 8
        %v4760 = vpop.permute.xlu0 %4759
        %4761 = vrot.lane.b32.xlu0 %v4681, 8
        %v4762 = vpop.permute.xlu0 %4761
        %4763 = vrot.lane.b32.xlu0 %v4682, 8
        %v4764 = vpop.permute.xlu0 %4763
        %4765 = vrot.lane.b32.xlu0 %v4683, 8
        %v4766 = vpop.permute.xlu0 %4765
        %4767 = vrot.lane.b32.xlu0 %v4684, 8
        %v4768 = vpop.permute.xlu0 %4767
        %4769 = vrot.lane.b32.xlu0 %v4685, 8
        %v4770 = vpop.permute.xlu0 %4769
        %4771 = vrot.lane.b32.xlu0 %v4686, 8
        %v4772 = vpop.permute.xlu0 %4771
        %4773 = vrot.lane.b32.xlu0 %v4687, 8
        %v4774 = vpop.permute.xlu0 %4773
        %4775 = vrot.lane.b32.xlu0 %v4688, 8
        %v4776 = vpop.permute.xlu0 %4775
        %4777 = vrot.lane.b32.xlu0 %v4689, 8
        %v4778 = vpop.permute.xlu0 %4777
        %4779 = vrot.lane.b32.xlu0 %v4690, 8
        %v4780 = vpop.permute.xlu0 %4779
        %4781 = vrot.lane.b32.xlu0 %v4691, 8
        %v4782 = vpop.permute.xlu0 %4781
        %4783 = vrot.lane.b32.xlu0 %v4692, 8
        %v4784 = vpop.permute.xlu0 %4783
        %4785 = vrot.lane.b32.xlu0 %v4693, 8
        %v4786 = vpop.permute.xlu0 %4785
        %4787 = vrot.lane.b32.xlu0 %v4694, 8
        %v4788 = vpop.permute.xlu0 %4787
        %4789 = vrot.lane.b32.xlu0 %v4695, 8
        %v4790 = vpop.permute.xlu0 %4789
        %4791 = vrot.lane.b32.xlu0 %v4696, 8
        %v4792 = vpop.permute.xlu0 %4791
        %vm4825 = vcmask 130112
        %4826 = vst.msk [vmem:[#allocation6] sm:$0xff] %vm4825, %v4730
        %4827 = vst.msk [vmem:[#allocation6 + $0x8] sm:$0xff] %vm4825, %v4732
        %4828 = vst.msk [vmem:[#allocation6 + $0x10] sm:$0xff] %vm4825, %v4734
        %4829 = vst.msk [vmem:[#allocation6 + $0x18] sm:$0xff] %vm4825, %v4736
        %4830 = vst.msk [vmem:[#allocation6 + $0x20] sm:$0xff] %vm4825, %v4738
        %4831 = vst.msk [vmem:[#allocation6 + $0x28] sm:$0xff] %vm4825, %v4740
        %4832 = vst.msk [vmem:[#allocation6 + $0x30] sm:$0xff] %vm4825, %v4742
        %4833 = vst.msk [vmem:[#allocation6 + $0x38] sm:$0xff] %vm4825, %v4744
        %4834 = vst.msk [vmem:[#allocation6 + $0x40] sm:$0xff] %vm4825, %v4746
        %4835 = vst.msk [vmem:[#allocation6 + $0x48] sm:$0xff] %vm4825, %v4748
        %4836 = vst.msk [vmem:[#allocation6 + $0x50] sm:$0xff] %vm4825, %v4750
        %4837 = vst.msk [vmem:[#allocation6 + $0x58] sm:$0xff] %vm4825, %v4752
        %4838 = vst.msk [vmem:[#allocation6 + $0x60] sm:$0xff] %vm4825, %v4754
        %4839 = vst.msk [vmem:[#allocation6 + $0x68] sm:$0xff] %vm4825, %v4756
        %4840 = vst.msk [vmem:[#allocation6 + $0x70] sm:$0xff] %vm4825, %v4758
        %4841 = vst.msk [vmem:[#allocation6 + $0x78] sm:$0xff] %vm4825, %v4760
        %4842 = vst.msk [vmem:[#allocation6 + $0x80] sm:$0xff] %vm4825, %v4762
        %4843 = vst.msk [vmem:[#allocation6 + $0x88] sm:$0xff] %vm4825, %v4764
        %4844 = vst.msk [vmem:[#allocation6 + $0x90] sm:$0xff] %vm4825, %v4766
        %4845 = vst.msk [vmem:[#allocation6 + $0x98] sm:$0xff] %vm4825, %v4768
        %4846 = vst.msk [vmem:[#allocation6 + $0xa0] sm:$0xff] %vm4825, %v4770
        %4847 = vst.msk [vmem:[#allocation6 + $0xa8] sm:$0xff] %vm4825, %v4772
        %4848 = vst.msk [vmem:[#allocation6 + $0xb0] sm:$0xff] %vm4825, %v4774
        %4849 = vst.msk [vmem:[#allocation6 + $0xb8] sm:$0xff] %vm4825, %v4776
        %4850 = vst.msk [vmem:[#allocation6 + $0xc0] sm:$0xff] %vm4825, %v4778
        %4851 = vst.msk [vmem:[#allocation6 + $0xc8] sm:$0xff] %vm4825, %v4780
        %4852 = vst.msk [vmem:[#allocation6 + $0xd0] sm:$0xff] %vm4825, %v4782
        %4853 = vst.msk [vmem:[#allocation6 + $0xd8] sm:$0xff] %vm4825, %v4784
        %4854 = vst.msk [vmem:[#allocation6 + $0xe0] sm:$0xff] %vm4825, %v4786
        %4855 = vst.msk [vmem:[#allocation6 + $0xe8] sm:$0xff] %vm4825, %v4788
        %4856 = vst.msk [vmem:[#allocation6 + $0xf0] sm:$0xff] %vm4825, %v4790
        %4857 = vst.msk [vmem:[#allocation6 + $0xf8] sm:$0xff] %vm4825, %v4792
        %v4858 = vld [vmem:[#allocation3 + $0x9] sm:$0xff]
        %v4859 = vld [vmem:[#allocation3 + $0x11] sm:$0xff]
        %v4860 = vld [vmem:[#allocation3 + $0x19] sm:$0xff]
        %v4861 = vld [vmem:[#allocation3 + $0x21] sm:$0xff]
        %v4862 = vld [vmem:[#allocation3 + $0x29] sm:$0xff]
        %v4863 = vld [vmem:[#allocation3 + $0x31] sm:$0xff]
        %v4864 = vld [vmem:[#allocation3 + $0x39] sm:$0xff]
        %v4865 = vld [vmem:[#allocation3 + $0x41] sm:$0xff]
        %v4866 = vld [vmem:[#allocation3 + $0x49] sm:$0xff]
        %v4867 = vld [vmem:[#allocation3 + $0x51] sm:$0xff]
        %v4868 = vld [vmem:[#allocation3 + $0x59] sm:$0xff]
        %v4869 = vld [vmem:[#allocation3 + $0x61] sm:$0xff]
        %v4870 = vld [vmem:[#allocation3 + $0x69] sm:$0xff]
        %v4871 = vld [vmem:[#allocation3 + $0x71] sm:$0xff]
        %v4872 = vld [vmem:[#allocation3 + $0x79] sm:$0xff]
        %v4873 = vld [vmem:[#allocation3 + $0x81] sm:$0xff]
        %v4874 = vld [vmem:[#allocation3 + $0x89] sm:$0xff]
        %v4875 = vld [vmem:[#allocation3 + $0x91] sm:$0xff]
        %v4876 = vld [vmem:[#allocation3 + $0x99] sm:$0xff]
        %v4877 = vld [vmem:[#allocation3 + $0xa1] sm:$0xff]
        %v4878 = vld [vmem:[#allocation3 + $0xa9] sm:$0xff]
        %v4879 = vld [vmem:[#allocation3 + $0xb1] sm:$0xff]
        %v4880 = vld [vmem:[#allocation3 + $0xb9] sm:$0xff]
        %v4881 = vld [vmem:[#allocation3 + $0xc1] sm:$0xff]
        %v4882 = vld [vmem:[#allocation3 + $0xc9] sm:$0xff]
        %v4883 = vld [vmem:[#allocation3 + $0xd1] sm:$0xff]
        %v4884 = vld [vmem:[#allocation3 + $0xd9] sm:$0xff]
        %v4885 = vld [vmem:[#allocation3 + $0xe1] sm:$0xff]
        %v4886 = vld [vmem:[#allocation3 + $0xe9] sm:$0xff]
        %v4887 = vld [vmem:[#allocation3 + $0xf1] sm:$0xff]
        %v4888 = vld [vmem:[#allocation3 + $0xf9] sm:$0xff]
        %v4889 = vld [vmem:[#allocation3 + $0x101] sm:$0xff]
        %v4890 = vsel %vm2066, %v4858, 0.0
        %v4891 = vsel %vm2067, %v4859, 0.0
        %v4892 = vsel %vm2068, %v4860, 0.0
        %v4893 = vsel %vm2069, %v4861, 0.0
        %v4894 = vsel %vm2070, %v4862, 0.0
        %v4895 = vsel %vm2071, %v4863, 0.0
        %v4896 = vsel %vm2072, %v4864, 0.0
        %v4897 = vsel %vm2073, %v4865, 0.0
        %v4898 = vsel %vm2074, %v4866, 0.0
        %v4899 = vsel %vm2075, %v4867, 0.0
        %v4900 = vsel %vm2076, %v4868, 0.0
        %v4901 = vsel %vm2077, %v4869, 0.0
        %v4902 = vsel %vm2078, %v4870, 0.0
        %v4903 = vsel %vm2079, %v4871, 0.0
        %v4904 = vsel %vm2080, %v4872, 0.0
        %v4905 = vsel %vm2081, %v4873, 0.0
        %v4906 = vsel %vm2082, %v4874, 0.0
        %v4907 = vsel %vm2083, %v4875, 0.0
        %v4908 = vsel %vm2084, %v4876, 0.0
        %v4909 = vsel %vm2085, %v4877, 0.0
        %v4910 = vsel %vm2086, %v4878, 0.0
        %v4911 = vsel %vm2087, %v4879, 0.0
        %v4912 = vsel %vm2088, %v4880, 0.0
        %v4913 = vsel %vm2089, %v4881, 0.0
        %v4914 = vsel %vm2090, %v4882, 0.0
        %v4915 = vsel %vm2091, %v4883, 0.0
        %v4916 = vsel %vm2092, %v4884, 0.0
        %v4917 = vsel %vm2093, %v4885, 0.0
        %v4918 = vsel %vm2094, %v4886, 0.0
        %v4919 = vsel %vm2095, %v4887, 0.0
        %v4920 = vsel %vm2096, %v4888, 0.0
        %v4921 = vsel %vm2097, %v4889, 0.0
        %4954 = vrot.lane.b32.xlu0 %v4890, 16
        %v4955 = vpop.permute.xlu0 %4954
        %4956 = vrot.lane.b32.xlu0 %v4891, 16
        %v4957 = vpop.permute.xlu0 %4956
        %4958 = vrot.lane.b32.xlu0 %v4892, 16
        %v4959 = vpop.permute.xlu0 %4958
        %4960 = vrot.lane.b32.xlu0 %v4893, 16
        %v4961 = vpop.permute.xlu0 %4960
        %4962 = vrot.lane.b32.xlu0 %v4894, 16
        %v4963 = vpop.permute.xlu0 %4962
        %4964 = vrot.lane.b32.xlu0 %v4895, 16
        %v4965 = vpop.permute.xlu0 %4964
        %4966 = vrot.lane.b32.xlu0 %v4896, 16
        %v4967 = vpop.permute.xlu0 %4966
        %4968 = vrot.lane.b32.xlu0 %v4897, 16
        %v4969 = vpop.permute.xlu0 %4968
        %4970 = vrot.lane.b32.xlu0 %v4898, 16
        %v4971 = vpop.permute.xlu0 %4970
        %4972 = vrot.lane.b32.xlu0 %v4899, 16
        %v4973 = vpop.permute.xlu0 %4972
        %4974 = vrot.lane.b32.xlu0 %v4900, 16
        %v4975 = vpop.permute.xlu0 %4974
        %4976 = vrot.lane.b32.xlu0 %v4901, 16
        %v4977 = vpop.permute.xlu0 %4976
        %4978 = vrot.lane.b32.xlu0 %v4902, 16
        %v4979 = vpop.permute.xlu0 %4978
        %4980 = vrot.lane.b32.xlu0 %v4903, 16
        %v4981 = vpop.permute.xlu0 %4980
        %4982 = vrot.lane.b32.xlu0 %v4904, 16
        %v4983 = vpop.permute.xlu0 %4982
        %4984 = vrot.lane.b32.xlu0 %v4905, 16
        %v4985 = vpop.permute.xlu0 %4984
        %4986 = vrot.lane.b32.xlu0 %v4906, 16
        %v4987 = vpop.permute.xlu0 %4986
        %4988 = vrot.lane.b32.xlu0 %v4907, 16
        %v4989 = vpop.permute.xlu0 %4988
        %4990 = vrot.lane.b32.xlu0 %v4908, 16
        %v4991 = vpop.permute.xlu0 %4990
        %4992 = vrot.lane.b32.xlu0 %v4909, 16
        %v4993 = vpop.permute.xlu0 %4992
        %4994 = vrot.lane.b32.xlu0 %v4910, 16
        %v4995 = vpop.permute.xlu0 %4994
        %4996 = vrot.lane.b32.xlu0 %v4911, 16
        %v4997 = vpop.permute.xlu0 %4996
        %4998 = vrot.lane.b32.xlu0 %v4912, 16
        %v4999 = vpop.permute.xlu0 %4998
        %5000 = vrot.lane.b32.xlu0 %v4913, 16
        %v5001 = vpop.permute.xlu0 %5000
        %5002 = vrot.lane.b32.xlu0 %v4914, 16
        %v5003 = vpop.permute.xlu0 %5002
        %5004 = vrot.lane.b32.xlu0 %v4915, 16
        %v5005 = vpop.permute.xlu0 %5004
        %5006 = vrot.lane.b32.xlu0 %v4916, 16
        %v5007 = vpop.permute.xlu0 %5006
        %5008 = vrot.lane.b32.xlu0 %v4917, 16
        %v5009 = vpop.permute.xlu0 %5008
        %5010 = vrot.lane.b32.xlu0 %v4918, 16
        %v5011 = vpop.permute.xlu0 %5010
        %5012 = vrot.lane.b32.xlu0 %v4919, 16
        %v5013 = vpop.permute.xlu0 %5012
        %5014 = vrot.lane.b32.xlu0 %v4920, 16
        %v5015 = vpop.permute.xlu0 %5014
        %5016 = vrot.lane.b32.xlu0 %v4921, 16
        %v5017 = vpop.permute.xlu0 %5016
        %vm5050 = vcmask 195712
        %5051 = vst.msk [vmem:[#allocation6] sm:$0xff] %vm5050, %v4955
        %5052 = vst.msk [vmem:[#allocation6 + $0x8] sm:$0xff] %vm5050, %v4957
        %5053 = vst.msk [vmem:[#allocation6 + $0x10] sm:$0xff] %vm5050, %v4959
        %5054 = vst.msk [vmem:[#allocation6 + $0x18] sm:$0xff] %vm5050, %v4961
        %5055 = vst.msk [vmem:[#allocation6 + $0x20] sm:$0xff] %vm5050, %v4963
        %5056 = vst.msk [vmem:[#allocation6 + $0x28] sm:$0xff] %vm5050, %v4965
        %5057 = vst.msk [vmem:[#allocation6 + $0x30] sm:$0xff] %vm5050, %v4967
        %5058 = vst.msk [vmem:[#allocation6 + $0x38] sm:$0xff] %vm5050, %v4969
        %5059 = vst.msk [vmem:[#allocation6 + $0x40] sm:$0xff] %vm5050, %v4971
        %5060 = vst.msk [vmem:[#allocation6 + $0x48] sm:$0xff] %vm5050, %v4973
        %5061 = vst.msk [vmem:[#allocation6 + $0x50] sm:$0xff] %vm5050, %v4975
        %5062 = vst.msk [vmem:[#allocation6 + $0x58] sm:$0xff] %vm5050, %v4977
        %5063 = vst.msk [vmem:[#allocation6 + $0x60] sm:$0xff] %vm5050, %v4979
        %5064 = vst.msk [vmem:[#allocation6 + $0x68] sm:$0xff] %vm5050, %v4981
        %5065 = vst.msk [vmem:[#allocation6 + $0x70] sm:$0xff] %vm5050, %v4983
        %5066 = vst.msk [vmem:[#allocation6 + $0x78] sm:$0xff] %vm5050, %v4985
        %5067 = vst.msk [vmem:[#allocation6 + $0x80] sm:$0xff] %vm5050, %v4987
        %5068 = vst.msk [vmem:[#allocation6 + $0x88] sm:$0xff] %vm5050, %v4989
        %5069 = vst.msk [vmem:[#allocation6 + $0x90] sm:$0xff] %vm5050, %v4991
        %5070 = vst.msk [vmem:[#allocation6 + $0x98] sm:$0xff] %vm5050, %v4993
        %5071 = vst.msk [vmem:[#allocation6 + $0xa0] sm:$0xff] %vm5050, %v4995
        %5072 = vst.msk [vmem:[#allocation6 + $0xa8] sm:$0xff] %vm5050, %v4997
        %5073 = vst.msk [vmem:[#allocation6 + $0xb0] sm:$0xff] %vm5050, %v4999
        %5074 = vst.msk [vmem:[#allocation6 + $0xb8] sm:$0xff] %vm5050, %v5001
        %5075 = vst.msk [vmem:[#allocation6 + $0xc0] sm:$0xff] %vm5050, %v5003
        %5076 = vst.msk [vmem:[#allocation6 + $0xc8] sm:$0xff] %vm5050, %v5005
        %5077 = vst.msk [vmem:[#allocation6 + $0xd0] sm:$0xff] %vm5050, %v5007
        %5078 = vst.msk [vmem:[#allocation6 + $0xd8] sm:$0xff] %vm5050, %v5009
        %5079 = vst.msk [vmem:[#allocation6 + $0xe0] sm:$0xff] %vm5050, %v5011
        %5080 = vst.msk [vmem:[#allocation6 + $0xe8] sm:$0xff] %vm5050, %v5013
        %5081 = vst.msk [vmem:[#allocation6 + $0xf0] sm:$0xff] %vm5050, %v5015
        %5082 = vst.msk [vmem:[#allocation6 + $0xf8] sm:$0xff] %vm5050, %v5017
        %v5083 = vld [vmem:[#allocation3 + $0x17] sm:$0xff]
        %v5084 = vld [vmem:[#allocation3 + $0x1f] sm:$0xff]
        %v5085 = vld [vmem:[#allocation3 + $0x27] sm:$0xff]
        %v5086 = vld [vmem:[#allocation3 + $0x2f] sm:$0xff]
        %v5087 = vld [vmem:[#allocation3 + $0x37] sm:$0xff]
        %v5088 = vld [vmem:[#allocation3 + $0x3f] sm:$0xff]
        %v5089 = vld [vmem:[#allocation3 + $0x47] sm:$0xff]
        %v5090 = vld [vmem:[#allocation3 + $0x4f] sm:$0xff]
        %v5091 = vld [vmem:[#allocation3 + $0x57] sm:$0xff]
        %v5092 = vld [vmem:[#allocation3 + $0x5f] sm:$0xff]
        %v5093 = vld [vmem:[#allocation3 + $0x67] sm:$0xff]
        %v5094 = vld [vmem:[#allocation3 + $0x6f] sm:$0xff]
        %v5095 = vld [vmem:[#allocation3 + $0x77] sm:$0xff]
        %v5096 = vld [vmem:[#allocation3 + $0x7f] sm:$0xff]
        %v5097 = vld [vmem:[#allocation3 + $0x87] sm:$0xff]
        %v5098 = vld [vmem:[#allocation3 + $0x8f] sm:$0xff]
        %v5099 = vld [vmem:[#allocation3 + $0x97] sm:$0xff]
        %v5100 = vld [vmem:[#allocation3 + $0x9f] sm:$0xff]
        %v5101 = vld [vmem:[#allocation3 + $0xa7] sm:$0xff]
        %v5102 = vld [vmem:[#allocation3 + $0xaf] sm:$0xff]
        %v5103 = vld [vmem:[#allocation3 + $0xb7] sm:$0xff]
        %v5104 = vld [vmem:[#allocation3 + $0xbf] sm:$0xff]
        %v5105 = vld [vmem:[#allocation3 + $0xc7] sm:$0xff]
        %v5106 = vld [vmem:[#allocation3 + $0xcf] sm:$0xff]
        %v5107 = vld [vmem:[#allocation3 + $0xd7] sm:$0xff]
        %v5108 = vld [vmem:[#allocation3 + $0xdf] sm:$0xff]
        %v5109 = vld [vmem:[#allocation3 + $0xe7] sm:$0xff]
        %v5110 = vld [vmem:[#allocation3 + $0xef] sm:$0xff]
        %v5111 = vld [vmem:[#allocation3 + $0xf7] sm:$0xff]
        %v5112 = vld [vmem:[#allocation3 + $0xff] sm:$0xff]
        %v5113 = vld [vmem:[#allocation3 + $0x107] sm:$0xff]
        %v5114 = vld [vmem:[#allocation3 + $0x10f] sm:$0xff]
        %v5115 = vsel %vm2355, %v5083, 0.0
        %v5116 = vsel %vm2356, %v5084, 0.0
        %v5117 = vsel %vm2357, %v5085, 0.0
        %v5118 = vsel %vm2358, %v5086, 0.0
        %v5119 = vsel %vm2359, %v5087, 0.0
        %v5120 = vsel %vm2360, %v5088, 0.0
        %v5121 = vsel %vm2361, %v5089, 0.0
        %v5122 = vsel %vm2362, %v5090, 0.0
        %v5123 = vsel %vm2363, %v5091, 0.0
        %v5124 = vsel %vm2364, %v5092, 0.0
        %v5125 = vsel %vm2365, %v5093, 0.0
        %v5126 = vsel %vm2366, %v5094, 0.0
        %v5127 = vsel %vm2367, %v5095, 0.0
        %v5128 = vsel %vm2368, %v5096, 0.0
        %v5129 = vsel %vm2369, %v5097, 0.0
        %v5130 = vsel %vm2370, %v5098, 0.0
        %v5131 = vsel %vm2371, %v5099, 0.0
        %v5132 = vsel %vm2372, %v5100, 0.0
        %v5133 = vsel %vm2373, %v5101, 0.0
        %v5134 = vsel %vm2374, %v5102, 0.0
        %v5135 = vsel %vm2375, %v5103, 0.0
        %v5136 = vsel %vm2376, %v5104, 0.0
        %v5137 = vsel %vm2377, %v5105, 0.0
        %v5138 = vsel %vm2378, %v5106, 0.0
        %v5139 = vsel %vm2379, %v5107, 0.0
        %v5140 = vsel %vm2380, %v5108, 0.0
        %v5141 = vsel %vm2381, %v5109, 0.0
        %v5142 = vsel %vm2382, %v5110, 0.0
        %v5143 = vsel %vm2383, %v5111, 0.0
        %v5144 = vsel %vm2384, %v5112, 0.0
        %v5145 = vsel %vm2385, %v5113, 0.0
        %v5146 = vsel %vm2386, %v5114, 0.0
        %5179 = vrot.lane.b32.xlu0 %v5115, 24
        %v5180 = vpop.permute.xlu0 %5179
        %5181 = vrot.lane.b32.xlu0 %v5116, 24
        %v5182 = vpop.permute.xlu0 %5181
        %5183 = vrot.lane.b32.xlu0 %v5117, 24
        %v5184 = vpop.permute.xlu0 %5183
        %5185 = vrot.lane.b32.xlu0 %v5118, 24
        %v5186 = vpop.permute.xlu0 %5185
        %5187 = vrot.lane.b32.xlu0 %v5119, 24
        %v5188 = vpop.permute.xlu0 %5187
        %5189 = vrot.lane.b32.xlu0 %v5120, 24
        %v5190 = vpop.permute.xlu0 %5189
        %5191 = vrot.lane.b32.xlu0 %v5121, 24
        %v5192 = vpop.permute.xlu0 %5191
        %5193 = vrot.lane.b32.xlu0 %v5122, 24
        %v5194 = vpop.permute.xlu0 %5193
        %5195 = vrot.lane.b32.xlu0 %v5123, 24
        %v5196 = vpop.permute.xlu0 %5195
        %5197 = vrot.lane.b32.xlu0 %v5124, 24
        %v5198 = vpop.permute.xlu0 %5197
        %5199 = vrot.lane.b32.xlu0 %v5125, 24
        %v5200 = vpop.permute.xlu0 %5199
        %5201 = vrot.lane.b32.xlu0 %v5126, 24
        %v5202 = vpop.permute.xlu0 %5201
        %5203 = vrot.lane.b32.xlu0 %v5127, 24
        %v5204 = vpop.permute.xlu0 %5203
        %5205 = vrot.lane.b32.xlu0 %v5128, 24
        %v5206 = vpop.permute.xlu0 %5205
        %5207 = vrot.lane.b32.xlu0 %v5129, 24
        %v5208 = vpop.permute.xlu0 %5207
        %5209 = vrot.lane.b32.xlu0 %v5130, 24
        %v5210 = vpop.permute.xlu0 %5209
        %5211 = vrot.lane.b32.xlu0 %v5131, 24
        %v5212 = vpop.permute.xlu0 %5211
        %5213 = vrot.lane.b32.xlu0 %v5132, 24
        %v5214 = vpop.permute.xlu0 %5213
        %5215 = vrot.lane.b32.xlu0 %v5133, 24
        %v5216 = vpop.permute.xlu0 %5215
        %5217 = vrot.lane.b32.xlu0 %v5134, 24
        %v5218 = vpop.permute.xlu0 %5217
        %5219 = vrot.lane.b32.xlu0 %v5135, 24
        %v5220 = vpop.permute.xlu0 %5219
        %5221 = vrot.lane.b32.xlu0 %v5136, 24
        %v5222 = vpop.permute.xlu0 %5221
        %5223 = vrot.lane.b32.xlu0 %v5137, 24
        %v5224 = vpop.permute.xlu0 %5223
        %5225 = vrot.lane.b32.xlu0 %v5138, 24
        %v5226 = vpop.permute.xlu0 %5225
        %5227 = vrot.lane.b32.xlu0 %v5139, 24
        %v5228 = vpop.permute.xlu0 %5227
        %5229 = vrot.lane.b32.xlu0 %v5140, 24
        %v5230 = vpop.permute.xlu0 %5229
        %5231 = vrot.lane.b32.xlu0 %v5141, 24
        %v5232 = vpop.permute.xlu0 %5231
        %5233 = vrot.lane.b32.xlu0 %v5142, 24
        %v5234 = vpop.permute.xlu0 %5233
        %5235 = vrot.lane.b32.xlu0 %v5143, 24
        %v5236 = vpop.permute.xlu0 %5235
        %5237 = vrot.lane.b32.xlu0 %v5144, 24
        %v5238 = vpop.permute.xlu0 %5237
        %5239 = vrot.lane.b32.xlu0 %v5145, 24
        %v5240 = vpop.permute.xlu0 %5239
        %5241 = vrot.lane.b32.xlu0 %v5146, 24
        %v5242 = vpop.permute.xlu0 %5241
        %vm5275 = vcmask 261312
        %5276 = vst.msk [vmem:[#allocation6] sm:$0xff] %vm5275, %v5180
        %5277 = vst.msk [vmem:[#allocation6 + $0x8] sm:$0xff] %vm5275, %v5182
        %5278 = vst.msk [vmem:[#allocation6 + $0x10] sm:$0xff] %vm5275, %v5184
        %5279 = vst.msk [vmem:[#allocation6 + $0x18] sm:$0xff] %vm5275, %v5186
        %5280 = vst.msk [vmem:[#allocation6 + $0x20] sm:$0xff] %vm5275, %v5188
        %5281 = vst.msk [vmem:[#allocation6 + $0x28] sm:$0xff] %vm5275, %v5190
        %5282 = vst.msk [vmem:[#allocation6 + $0x30] sm:$0xff] %vm5275, %v5192
        %5283 = vst.msk [vmem:[#allocation6 + $0x38] sm:$0xff] %vm5275, %v5194
        %5284 = vst.msk [vmem:[#allocation6 + $0x40] sm:$0xff] %vm5275, %v5196
        %5285 = vst.msk [vmem:[#allocation6 + $0x48] sm:$0xff] %vm5275, %v5198
        %5286 = vst.msk [vmem:[#allocation6 + $0x50] sm:$0xff] %vm5275, %v5200
        %5287 = vst.msk [vmem:[#allocation6 + $0x58] sm:$0xff] %vm5275, %v5202
        %5288 = vst.msk [vmem:[#allocation6 + $0x60] sm:$0xff] %vm5275, %v5204
        %5289 = vst.msk [vmem:[#allocation6 + $0x68] sm:$0xff] %vm5275, %v5206
        %5290 = vst.msk [vmem:[#allocation6 + $0x70] sm:$0xff] %vm5275, %v5208
        %5291 = vst.msk [vmem:[#allocation6 + $0x78] sm:$0xff] %vm5275, %v5210
        %5292 = vst.msk [vmem:[#allocation6 + $0x80] sm:$0xff] %vm5275, %v5212
        %5293 = vst.msk [vmem:[#allocation6 + $0x88] sm:$0xff] %vm5275, %v5214
        %5294 = vst.msk [vmem:[#allocation6 + $0x90] sm:$0xff] %vm5275, %v5216
        %5295 = vst.msk [vmem:[#allocation6 + $0x98] sm:$0xff] %vm5275, %v5218
        %5296 = vst.msk [vmem:[#allocation6 + $0xa0] sm:$0xff] %vm5275, %v5220
        %5297 = vst.msk [vmem:[#allocation6 + $0xa8] sm:$0xff] %vm5275, %v5222
        %5298 = vst.msk [vmem:[#allocation6 + $0xb0] sm:$0xff] %vm5275, %v5224
        %5299 = vst.msk [vmem:[#allocation6 + $0xb8] sm:$0xff] %vm5275, %v5226
        %5300 = vst.msk [vmem:[#allocation6 + $0xc0] sm:$0xff] %vm5275, %v5228
        %5301 = vst.msk [vmem:[#allocation6 + $0xc8] sm:$0xff] %vm5275, %v5230
        %5302 = vst.msk [vmem:[#allocation6 + $0xd0] sm:$0xff] %vm5275, %v5232
        %5303 = vst.msk [vmem:[#allocation6 + $0xd8] sm:$0xff] %vm5275, %v5234
        %5304 = vst.msk [vmem:[#allocation6 + $0xe0] sm:$0xff] %vm5275, %v5236
        %5305 = vst.msk [vmem:[#allocation6 + $0xe8] sm:$0xff] %vm5275, %v5238
        %5306 = vst.msk [vmem:[#allocation6 + $0xf0] sm:$0xff] %vm5275, %v5240
        %5307 = vst.msk [vmem:[#allocation6 + $0xf8] sm:$0xff] %vm5275, %v5242
        %v5308 = vld [vmem:[#allocation3 + $0x18] sm:$0xff]
        %v5309 = vld [vmem:[#allocation3 + $0x20] sm:$0xff]
        %v5310 = vld [vmem:[#allocation3 + $0x28] sm:$0xff]
        %v5311 = vld [vmem:[#allocation3 + $0x30] sm:$0xff]
        %v5312 = vld [vmem:[#allocation3 + $0x38] sm:$0xff]
        %v5313 = vld [vmem:[#allocation3 + $0x40] sm:$0xff]
        %v5314 = vld [vmem:[#allocation3 + $0x48] sm:$0xff]
        %v5315 = vld [vmem:[#allocation3 + $0x50] sm:$0xff]
        %v5316 = vld [vmem:[#allocation3 + $0x58] sm:$0xff]
        %v5317 = vld [vmem:[#allocation3 + $0x60] sm:$0xff]
        %v5318 = vld [vmem:[#allocation3 + $0x68] sm:$0xff]
        %v5319 = vld [vmem:[#allocation3 + $0x70] sm:$0xff]
        %v5320 = vld [vmem:[#allocation3 + $0x78] sm:$0xff]
        %v5321 = vld [vmem:[#allocation3 + $0x80] sm:$0xff]
        %v5322 = vld [vmem:[#allocation3 + $0x88] sm:$0xff]
        %v5323 = vld [vmem:[#allocation3 + $0x90] sm:$0xff]
        %v5324 = vld [vmem:[#allocation3 + $0x98] sm:$0xff]
        %v5325 = vld [vmem:[#allocation3 + $0xa0] sm:$0xff]
        %v5326 = vld [vmem:[#allocation3 + $0xa8] sm:$0xff]
        %v5327 = vld [vmem:[#allocation3 + $0xb0] sm:$0xff]
        %v5328 = vld [vmem:[#allocation3 + $0xb8] sm:$0xff]
        %v5329 = vld [vmem:[#allocation3 + $0xc0] sm:$0xff]
        %v5330 = vld [vmem:[#allocation3 + $0xc8] sm:$0xff]
        %v5331 = vld [vmem:[#allocation3 + $0xd0] sm:$0xff]
        %v5332 = vld [vmem:[#allocation3 + $0xd8] sm:$0xff]
        %v5333 = vld [vmem:[#allocation3 + $0xe0] sm:$0xff]
        %v5334 = vld [vmem:[#allocation3 + $0xe8] sm:$0xff]
        %v5335 = vld [vmem:[#allocation3 + $0xf0] sm:$0xff]
        %v5336 = vld [vmem:[#allocation3 + $0xf8] sm:$0xff]
        %v5337 = vld [vmem:[#allocation3 + $0x100] sm:$0xff]
        %v5338 = vld [vmem:[#allocation3 + $0x108] sm:$0xff]
        %v5339 = vld [vmem:[#allocation3 + $0x110] sm:$0xff]
        %5372 = vrot.lane.b32.xlu0 %v5308, 32
        %v5373 = vpop.permute.xlu0 %5372
        %5374 = vrot.lane.b32.xlu0 %v5309, 32
        %v5375 = vpop.permute.xlu0 %5374
        %5376 = vrot.lane.b32.xlu0 %v5310, 32
        %v5377 = vpop.permute.xlu0 %5376
        %5378 = vrot.lane.b32.xlu0 %v5311, 32
        %v5379 = vpop.permute.xlu0 %5378
        %5380 = vrot.lane.b32.xlu0 %v5312, 32
        %v5381 = vpop.permute.xlu0 %5380
        %5382 = vrot.lane.b32.xlu0 %v5313, 32
        %v5383 = vpop.permute.xlu0 %5382
        %5384 = vrot.lane.b32.xlu0 %v5314, 32
        %v5385 = vpop.permute.xlu0 %5384
        %5386 = vrot.lane.b32.xlu0 %v5315, 32
        %v5387 = vpop.permute.xlu0 %5386
        %5388 = vrot.lane.b32.xlu0 %v5316, 32
        %v5389 = vpop.permute.xlu0 %5388
        %5390 = vrot.lane.b32.xlu0 %v5317, 32
        %v5391 = vpop.permute.xlu0 %5390
        %5392 = vrot.lane.b32.xlu0 %v5318, 32
        %v5393 = vpop.permute.xlu0 %5392
        %5394 = vrot.lane.b32.xlu0 %v5319, 32
        %v5395 = vpop.permute.xlu0 %5394
        %5396 = vrot.lane.b32.xlu0 %v5320, 32
        %v5397 = vpop.permute.xlu0 %5396
        %5398 = vrot.lane.b32.xlu0 %v5321, 32
        %v5399 = vpop.permute.xlu0 %5398
        %5400 = vrot.lane.b32.xlu0 %v5322, 32
        %v5401 = vpop.permute.xlu0 %5400
        %5402 = vrot.lane.b32.xlu0 %v5323, 32
        %v5403 = vpop.permute.xlu0 %5402
        %5404 = vrot.lane.b32.xlu0 %v5324, 32
        %v5405 = vpop.permute.xlu0 %5404
        %5406 = vrot.lane.b32.xlu0 %v5325, 32
        %v5407 = vpop.permute.xlu0 %5406
        %5408 = vrot.lane.b32.xlu0 %v5326, 32
        %v5409 = vpop.permute.xlu0 %5408
        %5410 = vrot.lane.b32.xlu0 %v5327, 32
        %v5411 = vpop.permute.xlu0 %5410
        %5412 = vrot.lane.b32.xlu0 %v5328, 32
        %v5413 = vpop.permute.xlu0 %5412
        %5414 = vrot.lane.b32.xlu0 %v5329, 32
        %v5415 = vpop.permute.xlu0 %5414
        %5416 = vrot.lane.b32.xlu0 %v5330, 32
        %v5417 = vpop.permute.xlu0 %5416
        %5418 = vrot.lane.b32.xlu0 %v5331, 32
        %v5419 = vpop.permute.xlu0 %5418
        %5420 = vrot.lane.b32.xlu0 %v5332, 32
        %v5421 = vpop.permute.xlu0 %5420
        %5422 = vrot.lane.b32.xlu0 %v5333, 32
        %v5423 = vpop.permute.xlu0 %5422
        %5424 = vrot.lane.b32.xlu0 %v5334, 32
        %v5425 = vpop.permute.xlu0 %5424
        %5426 = vrot.lane.b32.xlu0 %v5335, 32
        %v5427 = vpop.permute.xlu0 %5426
        %5428 = vrot.lane.b32.xlu0 %v5336, 32
        %v5429 = vpop.permute.xlu0 %5428
        %5430 = vrot.lane.b32.xlu0 %v5337, 32
        %v5431 = vpop.permute.xlu0 %5430
        %5432 = vrot.lane.b32.xlu0 %v5338, 32
        %v5433 = vpop.permute.xlu0 %5432
        %5434 = vrot.lane.b32.xlu0 %v5339, 32
        %v5435 = vpop.permute.xlu0 %5434
        %vm5468 = vcmask 326912
        %5469 = vst.msk [vmem:[#allocation6] sm:$0xff] %vm5468, %v5373
        %5470 = vst.msk [vmem:[#allocation6 + $0x8] sm:$0xff] %vm5468, %v5375
        %5471 = vst.msk [vmem:[#allocation6 + $0x10] sm:$0xff] %vm5468, %v5377
        %5472 = vst.msk [vmem:[#allocation6 + $0x18] sm:$0xff] %vm5468, %v5379
        %5473 = vst.msk [vmem:[#allocation6 + $0x20] sm:$0xff] %vm5468, %v5381
        %5474 = vst.msk [vmem:[#allocation6 + $0x28] sm:$0xff] %vm5468, %v5383
        %5475 = vst.msk [vmem:[#allocation6 + $0x30] sm:$0xff] %vm5468, %v5385
        %5476 = vst.msk [vmem:[#allocation6 + $0x38] sm:$0xff] %vm5468, %v5387
        %5477 = vst.msk [vmem:[#allocation6 + $0x40] sm:$0xff] %vm5468, %v5389
        %5478 = vst.msk [vmem:[#allocation6 + $0x48] sm:$0xff] %vm5468, %v5391
        %5479 = vst.msk [vmem:[#allocation6 + $0x50] sm:$0xff] %vm5468, %v5393
        %5480 = vst.msk [vmem:[#allocation6 + $0x58] sm:$0xff] %vm5468, %v5395
        %5481 = vst.msk [vmem:[#allocation6 + $0x60] sm:$0xff] %vm5468, %v5397
        %5482 = vst.msk [vmem:[#allocation6 + $0x68] sm:$0xff] %vm5468, %v5399
        %5483 = vst.msk [vmem:[#allocation6 + $0x70] sm:$0xff] %vm5468, %v5401
        %5484 = vst.msk [vmem:[#allocation6 + $0x78] sm:$0xff] %vm5468, %v5403
        %5485 = vst.msk [vmem:[#allocation6 + $0x80] sm:$0xff] %vm5468, %v5405
        %5486 = vst.msk [vmem:[#allocation6 + $0x88] sm:$0xff] %vm5468, %v5407
        %5487 = vst.msk [vmem:[#allocation6 + $0x90] sm:$0xff] %vm5468, %v5409
        %5488 = vst.msk [vmem:[#allocation6 + $0x98] sm:$0xff] %vm5468, %v5411
        %5489 = vst.msk [vmem:[#allocation6 + $0xa0] sm:$0xff] %vm5468, %v5413
        %5490 = vst.msk [vmem:[#allocation6 + $0xa8] sm:$0xff] %vm5468, %v5415
        %5491 = vst.msk [vmem:[#allocation6 + $0xb0] sm:$0xff] %vm5468, %v5417
        %5492 = vst.msk [vmem:[#allocation6 + $0xb8] sm:$0xff] %vm5468, %v5419
        %5493 = vst.msk [vmem:[#allocation6 + $0xc0] sm:$0xff] %vm5468, %v5421
        %5494 = vst.msk [vmem:[#allocation6 + $0xc8] sm:$0xff] %vm5468, %v5423
        %5495 = vst.msk [vmem:[#allocation6 + $0xd0] sm:$0xff] %vm5468, %v5425
        %5496 = vst.msk [vmem:[#allocation6 + $0xd8] sm:$0xff] %vm5468, %v5427
        %5497 = vst.msk [vmem:[#allocation6 + $0xe0] sm:$0xff] %vm5468, %v5429
        %5498 = vst.msk [vmem:[#allocation6 + $0xe8] sm:$0xff] %vm5468, %v5431
        %5499 = vst.msk [vmem:[#allocation6 + $0xf0] sm:$0xff] %vm5468, %v5433
        %5500 = vst.msk [vmem:[#allocation6 + $0xf8] sm:$0xff] %vm5468, %v5435
        %v5501 = vld [vmem:[#allocation3 + $0x19] sm:$0xff]
        %v5502 = vld [vmem:[#allocation3 + $0x21] sm:$0xff]
        %v5503 = vld [vmem:[#allocation3 + $0x29] sm:$0xff]
        %v5504 = vld [vmem:[#allocation3 + $0x31] sm:$0xff]
        %v5505 = vld [vmem:[#allocation3 + $0x39] sm:$0xff]
        %v5506 = vld [vmem:[#allocation3 + $0x41] sm:$0xff]
        %v5507 = vld [vmem:[#allocation3 + $0x49] sm:$0xff]
        %v5508 = vld [vmem:[#allocation3 + $0x51] sm:$0xff]
        %v5509 = vld [vmem:[#allocation3 + $0x59] sm:$0xff]
        %v5510 = vld [vmem:[#allocation3 + $0x61] sm:$0xff]
        %v5511 = vld [vmem:[#allocation3 + $0x69] sm:$0xff]
        %v5512 = vld [vmem:[#allocation3 + $0x71] sm:$0xff]
        %v5513 = vld [vmem:[#allocation3 + $0x79] sm:$0xff]
        %v5514 = vld [vmem:[#allocation3 + $0x81] sm:$0xff]
        %v5515 = vld [vmem:[#allocation3 + $0x89] sm:$0xff]
        %v5516 = vld [vmem:[#allocation3 + $0x91] sm:$0xff]
        %v5517 = vld [vmem:[#allocation3 + $0x99] sm:$0xff]
        %v5518 = vld [vmem:[#allocation3 + $0xa1] sm:$0xff]
        %v5519 = vld [vmem:[#allocation3 + $0xa9] sm:$0xff]
        %v5520 = vld [vmem:[#allocation3 + $0xb1] sm:$0xff]
        %v5521 = vld [vmem:[#allocation3 + $0xb9] sm:$0xff]
        %v5522 = vld [vmem:[#allocation3 + $0xc1] sm:$0xff]
        %v5523 = vld [vmem:[#allocation3 + $0xc9] sm:$0xff]
        %v5524 = vld [vmem:[#allocation3 + $0xd1] sm:$0xff]
        %v5525 = vld [vmem:[#allocation3 + $0xd9] sm:$0xff]
        %v5526 = vld [vmem:[#allocation3 + $0xe1] sm:$0xff]
        %v5527 = vld [vmem:[#allocation3 + $0xe9] sm:$0xff]
        %v5528 = vld [vmem:[#allocation3 + $0xf1] sm:$0xff]
        %v5529 = vld [vmem:[#allocation3 + $0xf9] sm:$0xff]
        %v5530 = vld [vmem:[#allocation3 + $0x101] sm:$0xff]
        %v5531 = vld [vmem:[#allocation3 + $0x109] sm:$0xff]
        %v5532 = vld [vmem:[#allocation3 + $0x111] sm:$0xff]
        %v5533 = vsel %vm2837, %v5501, 0.0
        %v5534 = vsel %vm2838, %v5502, 0.0
        %v5535 = vsel %vm2839, %v5503, 0.0
        %v5536 = vsel %vm2840, %v5504, 0.0
        %v5537 = vsel %vm2841, %v5505, 0.0
        %v5538 = vsel %vm2842, %v5506, 0.0
        %v5539 = vsel %vm2843, %v5507, 0.0
        %v5540 = vsel %vm2844, %v5508, 0.0
        %v5541 = vsel %vm2845, %v5509, 0.0
        %v5542 = vsel %vm2846, %v5510, 0.0
        %v5543 = vsel %vm2847, %v5511, 0.0
        %v5544 = vsel %vm2848, %v5512, 0.0
        %v5545 = vsel %vm2849, %v5513, 0.0
        %v5546 = vsel %vm2850, %v5514, 0.0
        %v5547 = vsel %vm2851, %v5515, 0.0
        %v5548 = vsel %vm2852, %v5516, 0.0
        %v5549 = vsel %vm2853, %v5517, 0.0
        %v5550 = vsel %vm2854, %v5518, 0.0
        %v5551 = vsel %vm2855, %v5519, 0.0
        %v5552 = vsel %vm2856, %v5520, 0.0
        %v5553 = vsel %vm2857, %v5521, 0.0
        %v5554 = vsel %vm2858, %v5522, 0.0
        %v5555 = vsel %vm2859, %v5523, 0.0
        %v5556 = vsel %vm2860, %v5524, 0.0
        %v5557 = vsel %vm2861, %v5525, 0.0
        %v5558 = vsel %vm2862, %v5526, 0.0
        %v5559 = vsel %vm2863, %v5527, 0.0
        %v5560 = vsel %vm2864, %v5528, 0.0
        %v5561 = vsel %vm2865, %v5529, 0.0
        %v5562 = vsel %vm2866, %v5530, 0.0
        %v5563 = vsel %vm2867, %v5531, 0.0
        %v5564 = vsel %vm2868, %v5532, 0.0
        %5597 = vrot.lane.b32.xlu0 %v5533, 40
        %v5598 = vpop.permute.xlu0 %5597
        %5599 = vrot.lane.b32.xlu0 %v5534, 40
        %v5600 = vpop.permute.xlu0 %5599
        %5601 = vrot.lane.b32.xlu0 %v5535, 40
        %v5602 = vpop.permute.xlu0 %5601
        %5603 = vrot.lane.b32.xlu0 %v5536, 40
        %v5604 = vpop.permute.xlu0 %5603
        %5605 = vrot.lane.b32.xlu0 %v5537, 40
        %v5606 = vpop.permute.xlu0 %5605
        %5607 = vrot.lane.b32.xlu0 %v5538, 40
        %v5608 = vpop.permute.xlu0 %5607
        %5609 = vrot.lane.b32.xlu0 %v5539, 40
        %v5610 = vpop.permute.xlu0 %5609
        %5611 = vrot.lane.b32.xlu0 %v5540, 40
        %v5612 = vpop.permute.xlu0 %5611
        %5613 = vrot.lane.b32.xlu0 %v5541, 40
        %v5614 = vpop.permute.xlu0 %5613
        %5615 = vrot.lane.b32.xlu0 %v5542, 40
        %v5616 = vpop.permute.xlu0 %5615
        %5617 = vrot.lane.b32.xlu0 %v5543, 40
        %v5618 = vpop.permute.xlu0 %5617
        %5619 = vrot.lane.b32.xlu0 %v5544, 40
        %v5620 = vpop.permute.xlu0 %5619
        %5621 = vrot.lane.b32.xlu0 %v5545, 40
        %v5622 = vpop.permute.xlu0 %5621
        %5623 = vrot.lane.b32.xlu0 %v5546, 40
        %v5624 = vpop.permute.xlu0 %5623
        %5625 = vrot.lane.b32.xlu0 %v5547, 40
        %v5626 = vpop.permute.xlu0 %5625
        %5627 = vrot.lane.b32.xlu0 %v5548, 40
        %v5628 = vpop.permute.xlu0 %5627
        %5629 = vrot.lane.b32.xlu0 %v5549, 40
        %v5630 = vpop.permute.xlu0 %5629
        %5631 = vrot.lane.b32.xlu0 %v5550, 40
        %v5632 = vpop.permute.xlu0 %5631
        %5633 = vrot.lane.b32.xlu0 %v5551, 40
        %v5634 = vpop.permute.xlu0 %5633
        %5635 = vrot.lane.b32.xlu0 %v5552, 40
        %v5636 = vpop.permute.xlu0 %5635
        %5637 = vrot.lane.b32.xlu0 %v5553, 40
        %v5638 = vpop.permute.xlu0 %5637
        %5639 = vrot.lane.b32.xlu0 %v5554, 40
        %v5640 = vpop.permute.xlu0 %5639
        %5641 = vrot.lane.b32.xlu0 %v5555, 40
        %v5642 = vpop.permute.xlu0 %5641
        %5643 = vrot.lane.b32.xlu0 %v5556, 40
        %v5644 = vpop.permute.xlu0 %5643
        %5645 = vrot.lane.b32.xlu0 %v5557, 40
        %v5646 = vpop.permute.xlu0 %5645
        %5647 = vrot.lane.b32.xlu0 %v5558, 40
        %v5648 = vpop.permute.xlu0 %5647
        %5649 = vrot.lane.b32.xlu0 %v5559, 40
        %v5650 = vpop.permute.xlu0 %5649
        %5651 = vrot.lane.b32.xlu0 %v5560, 40
        %v5652 = vpop.permute.xlu0 %5651
        %5653 = vrot.lane.b32.xlu0 %v5561, 40
        %v5654 = vpop.permute.xlu0 %5653
        %5655 = vrot.lane.b32.xlu0 %v5562, 40
        %v5656 = vpop.permute.xlu0 %5655
        %5657 = vrot.lane.b32.xlu0 %v5563, 40
        %v5658 = vpop.permute.xlu0 %5657
        %5659 = vrot.lane.b32.xlu0 %v5564, 40
        %v5660 = vpop.permute.xlu0 %5659
        %vm5693 = vcmask 392512
        %5694 = vst.msk [vmem:[#allocation6] sm:$0xff] %vm5693, %v5598
        %5695 = vst.msk [vmem:[#allocation6 + $0x8] sm:$0xff] %vm5693, %v5600
        %5696 = vst.msk [vmem:[#allocation6 + $0x10] sm:$0xff] %vm5693, %v5602
        %5697 = vst.msk [vmem:[#allocation6 + $0x18] sm:$0xff] %vm5693, %v5604
        %5698 = vst.msk [vmem:[#allocation6 + $0x20] sm:$0xff] %vm5693, %v5606
        %5699 = vst.msk [vmem:[#allocation6 + $0x28] sm:$0xff] %vm5693, %v5608
        %5700 = vst.msk [vmem:[#allocation6 + $0x30] sm:$0xff] %vm5693, %v5610
        %5701 = vst.msk [vmem:[#allocation6 + $0x38] sm:$0xff] %vm5693, %v5612
        %5702 = vst.msk [vmem:[#allocation6 + $0x40] sm:$0xff] %vm5693, %v5614
        %5703 = vst.msk [vmem:[#allocation6 + $0x48] sm:$0xff] %vm5693, %v5616
        %5704 = vst.msk [vmem:[#allocation6 + $0x50] sm:$0xff] %vm5693, %v5618
        %5705 = vst.msk [vmem:[#allocation6 + $0x58] sm:$0xff] %vm5693, %v5620
        %5706 = vst.msk [vmem:[#allocation6 + $0x60] sm:$0xff] %vm5693, %v5622
        %5707 = vst.msk [vmem:[#allocation6 + $0x68] sm:$0xff] %vm5693, %v5624
        %5708 = vst.msk [vmem:[#allocation6 + $0x70] sm:$0xff] %vm5693, %v5626
        %5709 = vst.msk [vmem:[#allocation6 + $0x78] sm:$0xff] %vm5693, %v5628
        %5710 = vst.msk [vmem:[#allocation6 + $0x80] sm:$0xff] %vm5693, %v5630
        %5711 = vst.msk [vmem:[#allocation6 + $0x88] sm:$0xff] %vm5693, %v5632
        %5712 = vst.msk [vmem:[#allocation6 + $0x90] sm:$0xff] %vm5693, %v5634
        %5713 = vst.msk [vmem:[#allocation6 + $0x98] sm:$0xff] %vm5693, %v5636
        %5714 = vst.msk [vmem:[#allocation6 + $0xa0] sm:$0xff] %vm5693, %v5638
        %5715 = vst.msk [vmem:[#allocation6 + $0xa8] sm:$0xff] %vm5693, %v5640
        %5716 = vst.msk [vmem:[#allocation6 + $0xb0] sm:$0xff] %vm5693, %v5642
        %5717 = vst.msk [vmem:[#allocation6 + $0xb8] sm:$0xff] %vm5693, %v5644
        %5718 = vst.msk [vmem:[#allocation6 + $0xc0] sm:$0xff] %vm5693, %v5646
        %5719 = vst.msk [vmem:[#allocation6 + $0xc8] sm:$0xff] %vm5693, %v5648
        %5720 = vst.msk [vmem:[#allocation6 + $0xd0] sm:$0xff] %vm5693, %v5650
        %5721 = vst.msk [vmem:[#allocation6 + $0xd8] sm:$0xff] %vm5693, %v5652
        %5722 = vst.msk [vmem:[#allocation6 + $0xe0] sm:$0xff] %vm5693, %v5654
        %5723 = vst.msk [vmem:[#allocation6 + $0xe8] sm:$0xff] %vm5693, %v5656
        %5724 = vst.msk [vmem:[#allocation6 + $0xf0] sm:$0xff] %vm5693, %v5658
        %5725 = vst.msk [vmem:[#allocation6 + $0xf8] sm:$0xff] %vm5693, %v5660
        %v5726 = vld [vmem:[#allocation3 + $0x27] sm:$0xff]
        %v5727 = vld [vmem:[#allocation3 + $0x2f] sm:$0xff]
        %v5728 = vld [vmem:[#allocation3 + $0x37] sm:$0xff]
        %v5729 = vld [vmem:[#allocation3 + $0x3f] sm:$0xff]
        %v5730 = vld [vmem:[#allocation3 + $0x47] sm:$0xff]
        %v5731 = vld [vmem:[#allocation3 + $0x4f] sm:$0xff]
        %v5732 = vld [vmem:[#allocation3 + $0x57] sm:$0xff]
        %v5733 = vld [vmem:[#allocation3 + $0x5f] sm:$0xff]
        %v5734 = vld [vmem:[#allocation3 + $0x67] sm:$0xff]
        %v5735 = vld [vmem:[#allocation3 + $0x6f] sm:$0xff]
        %v5736 = vld [vmem:[#allocation3 + $0x77] sm:$0xff]
        %v5737 = vld [vmem:[#allocation3 + $0x7f] sm:$0xff]
        %v5738 = vld [vmem:[#allocation3 + $0x87] sm:$0xff]
        %v5739 = vld [vmem:[#allocation3 + $0x8f] sm:$0xff]
        %v5740 = vld [vmem:[#allocation3 + $0x97] sm:$0xff]
        %v5741 = vld [vmem:[#allocation3 + $0x9f] sm:$0xff]
        %v5742 = vld [vmem:[#allocation3 + $0xa7] sm:$0xff]
        %v5743 = vld [vmem:[#allocation3 + $0xaf] sm:$0xff]
        %v5744 = vld [vmem:[#allocation3 + $0xb7] sm:$0xff]
        %v5745 = vld [vmem:[#allocation3 + $0xbf] sm:$0xff]
        %v5746 = vld [vmem:[#allocation3 + $0xc7] sm:$0xff]
        %v5747 = vld [vmem:[#allocation3 + $0xcf] sm:$0xff]
        %v5748 = vld [vmem:[#allocation3 + $0xd7] sm:$0xff]
        %v5749 = vld [vmem:[#allocation3 + $0xdf] sm:$0xff]
        %v5750 = vld [vmem:[#allocation3 + $0xe7] sm:$0xff]
        %v5751 = vld [vmem:[#allocation3 + $0xef] sm:$0xff]
        %v5752 = vld [vmem:[#allocation3 + $0xf7] sm:$0xff]
        %v5753 = vld [vmem:[#allocation3 + $0xff] sm:$0xff]
        %v5754 = vld [vmem:[#allocation3 + $0x107] sm:$0xff]
        %v5755 = vld [vmem:[#allocation3 + $0x10f] sm:$0xff]
        %v5756 = vld [vmem:[#allocation3 + $0x117] sm:$0xff]
        %v5757 = vld [vmem:[#allocation3 + $0x11f] sm:$0xff]
        %v5758 = vsel %vm3158, %v5726, 0.0
        %v5759 = vsel %vm3159, %v5727, 0.0
        %v5760 = vsel %vm3160, %v5728, 0.0
        %v5761 = vsel %vm3161, %v5729, 0.0
        %v5762 = vsel %vm3162, %v5730, 0.0
        %v5763 = vsel %vm3163, %v5731, 0.0
        %v5764 = vsel %vm3164, %v5732, 0.0
        %v5765 = vsel %vm3165, %v5733, 0.0
        %v5766 = vsel %vm3166, %v5734, 0.0
        %v5767 = vsel %vm3167, %v5735, 0.0
        %v5768 = vsel %vm3168, %v5736, 0.0
        %v5769 = vsel %vm3169, %v5737, 0.0
        %v5770 = vsel %vm3170, %v5738, 0.0
        %v5771 = vsel %vm3171, %v5739, 0.0
        %v5772 = vsel %vm3172, %v5740, 0.0
        %v5773 = vsel %vm3173, %v5741, 0.0
        %v5774 = vsel %vm3174, %v5742, 0.0
        %v5775 = vsel %vm3175, %v5743, 0.0
        %v5776 = vsel %vm3176, %v5744, 0.0
        %v5777 = vsel %vm3177, %v5745, 0.0
        %v5778 = vsel %vm3178, %v5746, 0.0
        %v5779 = vsel %vm3179, %v5747, 0.0
        %v5780 = vsel %vm3180, %v5748, 0.0
        %v5781 = vsel %vm3181, %v5749, 0.0
        %v5782 = vsel %vm3182, %v5750, 0.0
        %v5783 = vsel %vm3183, %v5751, 0.0
        %v5784 = vsel %vm3184, %v5752, 0.0
        %v5785 = vsel %vm3185, %v5753, 0.0
        %v5786 = vsel %vm3186, %v5754, 0.0
        %v5787 = vsel %vm3187, %v5755, 0.0
        %v5788 = vsel %vm3188, %v5756, 0.0
        %v5789 = vsel %vm3189, %v5757, 0.0
        %5822 = vrot.lane.b32.xlu0 %v5758, 48
        %v5823 = vpop.permute.xlu0 %5822
        %5824 = vrot.lane.b32.xlu0 %v5759, 48
        %v5825 = vpop.permute.xlu0 %5824
        %5826 = vrot.lane.b32.xlu0 %v5760, 48
        %v5827 = vpop.permute.xlu0 %5826
        %5828 = vrot.lane.b32.xlu0 %v5761, 48
        %v5829 = vpop.permute.xlu0 %5828
        %5830 = vrot.lane.b32.xlu0 %v5762, 48
        %v5831 = vpop.permute.xlu0 %5830
        %5832 = vrot.lane.b32.xlu0 %v5763, 48
        %v5833 = vpop.permute.xlu0 %5832
        %5834 = vrot.lane.b32.xlu0 %v5764, 48
        %v5835 = vpop.permute.xlu0 %5834
        %5836 = vrot.lane.b32.xlu0 %v5765, 48
        %v5837 = vpop.permute.xlu0 %5836
        %5838 = vrot.lane.b32.xlu0 %v5766, 48
        %v5839 = vpop.permute.xlu0 %5838
        %5840 = vrot.lane.b32.xlu0 %v5767, 48
        %v5841 = vpop.permute.xlu0 %5840
        %5842 = vrot.lane.b32.xlu0 %v5768, 48
        %v5843 = vpop.permute.xlu0 %5842
        %5844 = vrot.lane.b32.xlu0 %v5769, 48
        %v5845 = vpop.permute.xlu0 %5844
        %5846 = vrot.lane.b32.xlu0 %v5770, 48
        %v5847 = vpop.permute.xlu0 %5846
        %5848 = vrot.lane.b32.xlu0 %v5771, 48
        %v5849 = vpop.permute.xlu0 %5848
        %5850 = vrot.lane.b32.xlu0 %v5772, 48
        %v5851 = vpop.permute.xlu0 %5850
        %5852 = vrot.lane.b32.xlu0 %v5773, 48
        %v5853 = vpop.permute.xlu0 %5852
        %5854 = vrot.lane.b32.xlu0 %v5774, 48
        %v5855 = vpop.permute.xlu0 %5854
        %5856 = vrot.lane.b32.xlu0 %v5775, 48
        %v5857 = vpop.permute.xlu0 %5856
        %5858 = vrot.lane.b32.xlu0 %v5776, 48
        %v5859 = vpop.permute.xlu0 %5858
        %5860 = vrot.lane.b32.xlu0 %v5777, 48
        %v5861 = vpop.permute.xlu0 %5860
        %5862 = vrot.lane.b32.xlu0 %v5778, 48
        %v5863 = vpop.permute.xlu0 %5862
        %5864 = vrot.lane.b32.xlu0 %v5779, 48
        %v5865 = vpop.permute.xlu0 %5864
        %5866 = vrot.lane.b32.xlu0 %v5780, 48
        %v5867 = vpop.permute.xlu0 %5866
        %5868 = vrot.lane.b32.xlu0 %v5781, 48
        %v5869 = vpop.permute.xlu0 %5868
        %5870 = vrot.lane.b32.xlu0 %v5782, 48
        %v5871 = vpop.permute.xlu0 %5870
        %5872 = vrot.lane.b32.xlu0 %v5783, 48
        %v5873 = vpop.permute.xlu0 %5872
        %5874 = vrot.lane.b32.xlu0 %v5784, 48
        %v5875 = vpop.permute.xlu0 %5874
        %5876 = vrot.lane.b32.xlu0 %v5785, 48
        %v5877 = vpop.permute.xlu0 %5876
        %5878 = vrot.lane.b32.xlu0 %v5786, 48
        %v5879 = vpop.permute.xlu0 %5878
        %5880 = vrot.lane.b32.xlu0 %v5787, 48
        %v5881 = vpop.permute.xlu0 %5880
        %5882 = vrot.lane.b32.xlu0 %v5788, 48
        %v5883 = vpop.permute.xlu0 %5882
        %5884 = vrot.lane.b32.xlu0 %v5789, 48
        %v5885 = vpop.permute.xlu0 %5884
        %vm5918 = vcmask 458112
        %5919 = vst.msk [vmem:[#allocation6] sm:$0xff] %vm5918, %v5823
        %5920 = vst.msk [vmem:[#allocation6 + $0x8] sm:$0xff] %vm5918, %v5825
        %5921 = vst.msk [vmem:[#allocation6 + $0x10] sm:$0xff] %vm5918, %v5827
        %5922 = vst.msk [vmem:[#allocation6 + $0x18] sm:$0xff] %vm5918, %v5829
        %5923 = vst.msk [vmem:[#allocation6 + $0x20] sm:$0xff] %vm5918, %v5831
        %5924 = vst.msk [vmem:[#allocation6 + $0x28] sm:$0xff] %vm5918, %v5833
        %5925 = vst.msk [vmem:[#allocation6 + $0x30] sm:$0xff] %vm5918, %v5835
        %5926 = vst.msk [vmem:[#allocation6 + $0x38] sm:$0xff] %vm5918, %v5837
        %5927 = vst.msk [vmem:[#allocation6 + $0x40] sm:$0xff] %vm5918, %v5839
        %5928 = vst.msk [vmem:[#allocation6 + $0x48] sm:$0xff] %vm5918, %v5841
        %5929 = vst.msk [vmem:[#allocation6 + $0x50] sm:$0xff] %vm5918, %v5843
        %5930 = vst.msk [vmem:[#allocation6 + $0x58] sm:$0xff] %vm5918, %v5845
        %5931 = vst.msk [vmem:[#allocation6 + $0x60] sm:$0xff] %vm5918, %v5847
        %5932 = vst.msk [vmem:[#allocation6 + $0x68] sm:$0xff] %vm5918, %v5849
        %5933 = vst.msk [vmem:[#allocation6 + $0x70] sm:$0xff] %vm5918, %v5851
        %5934 = vst.msk [vmem:[#allocation6 + $0x78] sm:$0xff] %vm5918, %v5853
        %5935 = vst.msk [vmem:[#allocation6 + $0x80] sm:$0xff] %vm5918, %v5855
        %5936 = vst.msk [vmem:[#allocation6 + $0x88] sm:$0xff] %vm5918, %v5857
        %5937 = vst.msk [vmem:[#allocation6 + $0x90] sm:$0xff] %vm5918, %v5859
        %5938 = vst.msk [vmem:[#allocation6 + $0x98] sm:$0xff] %vm5918, %v5861
        %5939 = vst.msk [vmem:[#allocation6 + $0xa0] sm:$0xff] %vm5918, %v5863
        %5940 = vst.msk [vmem:[#allocation6 + $0xa8] sm:$0xff] %vm5918, %v5865
        %5941 = vst.msk [vmem:[#allocation6 + $0xb0] sm:$0xff] %vm5918, %v5867
        %5942 = vst.msk [vmem:[#allocation6 + $0xb8] sm:$0xff] %vm5918, %v5869
        %5943 = vst.msk [vmem:[#allocation6 + $0xc0] sm:$0xff] %vm5918, %v5871
        %5944 = vst.msk [vmem:[#allocation6 + $0xc8] sm:$0xff] %vm5918, %v5873
        %5945 = vst.msk [vmem:[#allocation6 + $0xd0] sm:$0xff] %vm5918, %v5875
        %5946 = vst.msk [vmem:[#allocation6 + $0xd8] sm:$0xff] %vm5918, %v5877
        %5947 = vst.msk [vmem:[#allocation6 + $0xe0] sm:$0xff] %vm5918, %v5879
        %5948 = vst.msk [vmem:[#allocation6 + $0xe8] sm:$0xff] %vm5918, %v5881
        %5949 = vst.msk [vmem:[#allocation6 + $0xf0] sm:$0xff] %vm5918, %v5883
        %5950 = vst.msk [vmem:[#allocation6 + $0xf8] sm:$0xff] %vm5918, %v5885
        %v5951 = vld [vmem:[#allocation3 + $0x28] sm:$0xff]
        %v5952 = vld [vmem:[#allocation3 + $0x30] sm:$0xff]
        %v5953 = vld [vmem:[#allocation3 + $0x38] sm:$0xff]
        %v5954 = vld [vmem:[#allocation3 + $0x40] sm:$0xff]
        %v5955 = vld [vmem:[#allocation3 + $0x48] sm:$0xff]
        %v5956 = vld [vmem:[#allocation3 + $0x50] sm:$0xff]
        %v5957 = vld [vmem:[#allocation3 + $0x58] sm:$0xff]
        %v5958 = vld [vmem:[#allocation3 + $0x60] sm:$0xff]
        %v5959 = vld [vmem:[#allocation3 + $0x68] sm:$0xff]
        %v5960 = vld [vmem:[#allocation3 + $0x70] sm:$0xff]
        %v5961 = vld [vmem:[#allocation3 + $0x78] sm:$0xff]
        %v5962 = vld [vmem:[#allocation3 + $0x80] sm:$0xff]
        %v5963 = vld [vmem:[#allocation3 + $0x88] sm:$0xff]
        %v5964 = vld [vmem:[#allocation3 + $0x90] sm:$0xff]
        %v5965 = vld [vmem:[#allocation3 + $0x98] sm:$0xff]
        %v5966 = vld [vmem:[#allocation3 + $0xa0] sm:$0xff]
        %v5967 = vld [vmem:[#allocation3 + $0xa8] sm:$0xff]
        %v5968 = vld [vmem:[#allocation3 + $0xb0] sm:$0xff]
        %v5969 = vld [vmem:[#allocation3 + $0xb8] sm:$0xff]
        %v5970 = vld [vmem:[#allocation3 + $0xc0] sm:$0xff]
        %v5971 = vld [vmem:[#allocation3 + $0xc8] sm:$0xff]
        %v5972 = vld [vmem:[#allocation3 + $0xd0] sm:$0xff]
        %v5973 = vld [vmem:[#allocation3 + $0xd8] sm:$0xff]
        %v5974 = vld [vmem:[#allocation3 + $0xe0] sm:$0xff]
        %v5975 = vld [vmem:[#allocation3 + $0xe8] sm:$0xff]
        %v5976 = vld [vmem:[#allocation3 + $0xf0] sm:$0xff]
        %v5977 = vld [vmem:[#allocation3 + $0xf8] sm:$0xff]
        %v5978 = vld [vmem:[#allocation3 + $0x100] sm:$0xff]
        %v5979 = vld [vmem:[#allocation3 + $0x108] sm:$0xff]
        %v5980 = vld [vmem:[#allocation3 + $0x110] sm:$0xff]
        %v5981 = vld [vmem:[#allocation3 + $0x118] sm:$0xff]
        %v5982 = vld [vmem:[#allocation3 + $0x120] sm:$0xff]
        %v5983 = vsel %vm3447, %v5951, 0.0
        %v5984 = vsel %vm3448, %v5952, 0.0
        %v5985 = vsel %vm3449, %v5953, 0.0
        %v5986 = vsel %vm3450, %v5954, 0.0
        %v5987 = vsel %vm3451, %v5955, 0.0
        %v5988 = vsel %vm3452, %v5956, 0.0
        %v5989 = vsel %vm3453, %v5957, 0.0
        %v5990 = vsel %vm3454, %v5958, 0.0
        %v5991 = vsel %vm3455, %v5959, 0.0
        %v5992 = vsel %vm3456, %v5960, 0.0
        %v5993 = vsel %vm3457, %v5961, 0.0
        %v5994 = vsel %vm3458, %v5962, 0.0
        %v5995 = vsel %vm3459, %v5963, 0.0
        %v5996 = vsel %vm3460, %v5964, 0.0
        %v5997 = vsel %vm3461, %v5965, 0.0
        %v5998 = vsel %vm3462, %v5966, 0.0
        %v5999 = vsel %vm3463, %v5967, 0.0
        %v6000 = vsel %vm3464, %v5968, 0.0
        %v6001 = vsel %vm3465, %v5969, 0.0
        %v6002 = vsel %vm3466, %v5970, 0.0
        %v6003 = vsel %vm3467, %v5971, 0.0
        %v6004 = vsel %vm3468, %v5972, 0.0
        %v6005 = vsel %vm3469, %v5973, 0.0
        %v6006 = vsel %vm3470, %v5974, 0.0
        %v6007 = vsel %vm3471, %v5975, 0.0
        %v6008 = vsel %vm3472, %v5976, 0.0
        %v6009 = vsel %vm3473, %v5977, 0.0
        %v6010 = vsel %vm3474, %v5978, 0.0
        %v6011 = vsel %vm3475, %v5979, 0.0
        %v6012 = vsel %vm3476, %v5980, 0.0
        %v6013 = vsel %vm3477, %v5981, 0.0
        %v6014 = vsel %vm3478, %v5982, 0.0
        %6047 = vrot.lane.b32.xlu0 %v5983, 56
        %v6048 = vpop.permute.xlu0 %6047
        %6049 = vrot.lane.b32.xlu0 %v5984, 56
        %v6050 = vpop.permute.xlu0 %6049
        %6051 = vrot.lane.b32.xlu0 %v5985, 56
        %v6052 = vpop.permute.xlu0 %6051
        %6053 = vrot.lane.b32.xlu0 %v5986, 56
        %v6054 = vpop.permute.xlu0 %6053
        %6055 = vrot.lane.b32.xlu0 %v5987, 56
        %v6056 = vpop.permute.xlu0 %6055
        %6057 = vrot.lane.b32.xlu0 %v5988, 56
        %v6058 = vpop.permute.xlu0 %6057
        %6059 = vrot.lane.b32.xlu0 %v5989, 56
        %v6060 = vpop.permute.xlu0 %6059
        %6061 = vrot.lane.b32.xlu0 %v5990, 56
        %v6062 = vpop.permute.xlu0 %6061
        %6063 = vrot.lane.b32.xlu0 %v5991, 56
        %v6064 = vpop.permute.xlu0 %6063
        %6065 = vrot.lane.b32.xlu0 %v5992, 56
        %v6066 = vpop.permute.xlu0 %6065
        %6067 = vrot.lane.b32.xlu0 %v5993, 56
        %v6068 = vpop.permute.xlu0 %6067
        %6069 = vrot.lane.b32.xlu0 %v5994, 56
        %v6070 = vpop.permute.xlu0 %6069
        %6071 = vrot.lane.b32.xlu0 %v5995, 56
        %v6072 = vpop.permute.xlu0 %6071
        %6073 = vrot.lane.b32.xlu0 %v5996, 56
        %v6074 = vpop.permute.xlu0 %6073
        %6075 = vrot.lane.b32.xlu0 %v5997, 56
        %v6076 = vpop.permute.xlu0 %6075
        %6077 = vrot.lane.b32.xlu0 %v5998, 56
        %v6078 = vpop.permute.xlu0 %6077
        %6079 = vrot.lane.b32.xlu0 %v5999, 56
        %v6080 = vpop.permute.xlu0 %6079
        %6081 = vrot.lane.b32.xlu0 %v6000, 56
        %v6082 = vpop.permute.xlu0 %6081
        %6083 = vrot.lane.b32.xlu0 %v6001, 56
        %v6084 = vpop.permute.xlu0 %6083
        %6085 = vrot.lane.b32.xlu0 %v6002, 56
        %v6086 = vpop.permute.xlu0 %6085
        %6087 = vrot.lane.b32.xlu0 %v6003, 56
        %v6088 = vpop.permute.xlu0 %6087
        %6089 = vrot.lane.b32.xlu0 %v6004, 56
        %v6090 = vpop.permute.xlu0 %6089
        %6091 = vrot.lane.b32.xlu0 %v6005, 56
        %v6092 = vpop.permute.xlu0 %6091
        %6093 = vrot.lane.b32.xlu0 %v6006, 56
        %v6094 = vpop.permute.xlu0 %6093
        %6095 = vrot.lane.b32.xlu0 %v6007, 56
        %v6096 = vpop.permute.xlu0 %6095
        %6097 = vrot.lane.b32.xlu0 %v6008, 56
        %v6098 = vpop.permute.xlu0 %6097
        %6099 = vrot.lane.b32.xlu0 %v6009, 56
        %v6100 = vpop.permute.xlu0 %6099
        %6101 = vrot.lane.b32.xlu0 %v6010, 56
        %v6102 = vpop.permute.xlu0 %6101
        %6103 = vrot.lane.b32.xlu0 %v6011, 56
        %v6104 = vpop.permute.xlu0 %6103
        %6105 = vrot.lane.b32.xlu0 %v6012, 56
        %v6106 = vpop.permute.xlu0 %6105
        %6107 = vrot.lane.b32.xlu0 %v6013, 56
        %v6108 = vpop.permute.xlu0 %6107
        %6109 = vrot.lane.b32.xlu0 %v6014, 56
        %v6110 = vpop.permute.xlu0 %6109
        %vm6143 = vcmask 523712
        %6144 = vst.msk [vmem:[#allocation6] sm:$0xff] %vm6143, %v6048
        %6145 = vst.msk [vmem:[#allocation6 + $0x8] sm:$0xff] %vm6143, %v6050
        %6146 = vst.msk [vmem:[#allocation6 + $0x10] sm:$0xff] %vm6143, %v6052
        %6147 = vst.msk [vmem:[#allocation6 + $0x18] sm:$0xff] %vm6143, %v6054
        %6148 = vst.msk [vmem:[#allocation6 + $0x20] sm:$0xff] %vm6143, %v6056
        %6149 = vst.msk [vmem:[#allocation6 + $0x28] sm:$0xff] %vm6143, %v6058
        %6150 = vst.msk [vmem:[#allocation6 + $0x30] sm:$0xff] %vm6143, %v6060
        %6151 = vst.msk [vmem:[#allocation6 + $0x38] sm:$0xff] %vm6143, %v6062
        %6152 = vst.msk [vmem:[#allocation6 + $0x40] sm:$0xff] %vm6143, %v6064
        %6153 = vst.msk [vmem:[#allocation6 + $0x48] sm:$0xff] %vm6143, %v6066
        %6154 = vst.msk [vmem:[#allocation6 + $0x50] sm:$0xff] %vm6143, %v6068
        %6155 = vst.msk [vmem:[#allocation6 + $0x58] sm:$0xff] %vm6143, %v6070
        %6156 = vst.msk [vmem:[#allocation6 + $0x60] sm:$0xff] %vm6143, %v6072
        %6157 = vst.msk [vmem:[#allocation6 + $0x68] sm:$0xff] %vm6143, %v6074
        %6158 = vst.msk [vmem:[#allocation6 + $0x70] sm:$0xff] %vm6143, %v6076
        %6159 = vst.msk [vmem:[#allocation6 + $0x78] sm:$0xff] %vm6143, %v6078
        %6160 = vst.msk [vmem:[#allocation6 + $0x80] sm:$0xff] %vm6143, %v6080
        %6161 = vst.msk [vmem:[#allocation6 + $0x88] sm:$0xff] %vm6143, %v6082
        %6162 = vst.msk [vmem:[#allocation6 + $0x90] sm:$0xff] %vm6143, %v6084
        %6163 = vst.msk [vmem:[#allocation6 + $0x98] sm:$0xff] %vm6143, %v6086
        %6164 = vst.msk [vmem:[#allocation6 + $0xa0] sm:$0xff] %vm6143, %v6088
        %6165 = vst.msk [vmem:[#allocation6 + $0xa8] sm:$0xff] %vm6143, %v6090
        %6166 = vst.msk [vmem:[#allocation6 + $0xb0] sm:$0xff] %vm6143, %v6092
        %6167 = vst.msk [vmem:[#allocation6 + $0xb8] sm:$0xff] %vm6143, %v6094
        %6168 = vst.msk [vmem:[#allocation6 + $0xc0] sm:$0xff] %vm6143, %v6096
        %6169 = vst.msk [vmem:[#allocation6 + $0xc8] sm:$0xff] %vm6143, %v6098
        %6170 = vst.msk [vmem:[#allocation6 + $0xd0] sm:$0xff] %vm6143, %v6100
        %6171 = vst.msk [vmem:[#allocation6 + $0xd8] sm:$0xff] %vm6143, %v6102
        %6172 = vst.msk [vmem:[#allocation6 + $0xe0] sm:$0xff] %vm6143, %v6104
        %6173 = vst.msk [vmem:[#allocation6 + $0xe8] sm:$0xff] %vm6143, %v6106
        %6174 = vst.msk [vmem:[#allocation6 + $0xf0] sm:$0xff] %vm6143, %v6108
        %6175 = vst.msk [vmem:[#allocation6 + $0xf8] sm:$0xff] %vm6143, %v6110
        %v6176 = vld [vmem:[#allocation3 + $0x29] sm:$0xff]
        %v6177 = vld [vmem:[#allocation3 + $0x31] sm:$0xff]
        %v6178 = vld [vmem:[#allocation3 + $0x39] sm:$0xff]
        %v6179 = vld [vmem:[#allocation3 + $0x41] sm:$0xff]
        %v6180 = vld [vmem:[#allocation3 + $0x49] sm:$0xff]
        %v6181 = vld [vmem:[#allocation3 + $0x51] sm:$0xff]
        %v6182 = vld [vmem:[#allocation3 + $0x59] sm:$0xff]
        %v6183 = vld [vmem:[#allocation3 + $0x61] sm:$0xff]
        %v6184 = vld [vmem:[#allocation3 + $0x69] sm:$0xff]
        %v6185 = vld [vmem:[#allocation3 + $0x71] sm:$0xff]
        %v6186 = vld [vmem:[#allocation3 + $0x79] sm:$0xff]
        %v6187 = vld [vmem:[#allocation3 + $0x81] sm:$0xff]
        %v6188 = vld [vmem:[#allocation3 + $0x89] sm:$0xff]
        %v6189 = vld [vmem:[#allocation3 + $0x91] sm:$0xff]
        %v6190 = vld [vmem:[#allocation3 + $0x99] sm:$0xff]
        %v6191 = vld [vmem:[#allocation3 + $0xa1] sm:$0xff]
        %v6192 = vld [vmem:[#allocation3 + $0xa9] sm:$0xff]
        %v6193 = vld [vmem:[#allocation3 + $0xb1] sm:$0xff]
        %v6194 = vld [vmem:[#allocation3 + $0xb9] sm:$0xff]
        %v6195 = vld [vmem:[#allocation3 + $0xc1] sm:$0xff]
        %v6196 = vld [vmem:[#allocation3 + $0xc9] sm:$0xff]
        %v6197 = vld [vmem:[#allocation3 + $0xd1] sm:$0xff]
        %v6198 = vld [vmem:[#allocation3 + $0xd9] sm:$0xff]
        %v6199 = vld [vmem:[#allocation3 + $0xe1] sm:$0xff]
        %v6200 = vld [vmem:[#allocation3 + $0xe9] sm:$0xff]
        %v6201 = vld [vmem:[#allocation3 + $0xf1] sm:$0xff]
        %v6202 = vld [vmem:[#allocation3 + $0xf9] sm:$0xff]
        %v6203 = vld [vmem:[#allocation3 + $0x101] sm:$0xff]
        %v6204 = vld [vmem:[#allocation3 + $0x109] sm:$0xff]
        %v6205 = vld [vmem:[#allocation3 + $0x111] sm:$0xff]
        %v6206 = vld [vmem:[#allocation3 + $0x119] sm:$0xff]
        %v6207 = vld [vmem:[#allocation3 + $0x121] sm:$0xff]
        %v6208 = vsel %vm3768, %v6176, 0.0
        %v6209 = vsel %vm3769, %v6177, 0.0
        %v6210 = vsel %vm3770, %v6178, 0.0
        %v6211 = vsel %vm3771, %v6179, 0.0
        %v6212 = vsel %vm3772, %v6180, 0.0
        %v6213 = vsel %vm3773, %v6181, 0.0
        %v6214 = vsel %vm3774, %v6182, 0.0
        %v6215 = vsel %vm3775, %v6183, 0.0
        %v6216 = vsel %vm3776, %v6184, 0.0
        %v6217 = vsel %vm3777, %v6185, 0.0
        %v6218 = vsel %vm3778, %v6186, 0.0
        %v6219 = vsel %vm3779, %v6187, 0.0
        %v6220 = vsel %vm3780, %v6188, 0.0
        %v6221 = vsel %vm3781, %v6189, 0.0
        %v6222 = vsel %vm3782, %v6190, 0.0
        %v6223 = vsel %vm3783, %v6191, 0.0
        %v6224 = vsel %vm3784, %v6192, 0.0
        %v6225 = vsel %vm3785, %v6193, 0.0
        %v6226 = vsel %vm3786, %v6194, 0.0
        %v6227 = vsel %vm3787, %v6195, 0.0
        %v6228 = vsel %vm3788, %v6196, 0.0
        %v6229 = vsel %vm3789, %v6197, 0.0
        %v6230 = vsel %vm3790, %v6198, 0.0
        %v6231 = vsel %vm3791, %v6199, 0.0
        %v6232 = vsel %vm3792, %v6200, 0.0
        %v6233 = vsel %vm3793, %v6201, 0.0
        %v6234 = vsel %vm3794, %v6202, 0.0
        %v6235 = vsel %vm3795, %v6203, 0.0
        %v6236 = vsel %vm3796, %v6204, 0.0
        %v6237 = vsel %vm3797, %v6205, 0.0
        %v6238 = vsel %vm3798, %v6206, 0.0
        %v6239 = vsel %vm3799, %v6207, 0.0
        %6272 = vrot.lane.b32.xlu0 %v6208, 64
        %v6273 = vpop.permute.xlu0 %6272
        %6274 = vrot.lane.b32.xlu0 %v6209, 64
        %v6275 = vpop.permute.xlu0 %6274
        %6276 = vrot.lane.b32.xlu0 %v6210, 64
        %v6277 = vpop.permute.xlu0 %6276
        %6278 = vrot.lane.b32.xlu0 %v6211, 64
        %v6279 = vpop.permute.xlu0 %6278
        %6280 = vrot.lane.b32.xlu0 %v6212, 64
        %v6281 = vpop.permute.xlu0 %6280
        %6282 = vrot.lane.b32.xlu0 %v6213, 64
        %v6283 = vpop.permute.xlu0 %6282
        %6284 = vrot.lane.b32.xlu0 %v6214, 64
        %v6285 = vpop.permute.xlu0 %6284
        %6286 = vrot.lane.b32.xlu0 %v6215, 64
        %v6287 = vpop.permute.xlu0 %6286
        %6288 = vrot.lane.b32.xlu0 %v6216, 64
        %v6289 = vpop.permute.xlu0 %6288
        %6290 = vrot.lane.b32.xlu0 %v6217, 64
        %v6291 = vpop.permute.xlu0 %6290
        %6292 = vrot.lane.b32.xlu0 %v6218, 64
        %v6293 = vpop.permute.xlu0 %6292
        %6294 = vrot.lane.b32.xlu0 %v6219, 64
        %v6295 = vpop.permute.xlu0 %6294
        %6296 = vrot.lane.b32.xlu0 %v6220, 64
        %v6297 = vpop.permute.xlu0 %6296
        %6298 = vrot.lane.b32.xlu0 %v6221, 64
        %v6299 = vpop.permute.xlu0 %6298
        %6300 = vrot.lane.b32.xlu0 %v6222, 64
        %v6301 = vpop.permute.xlu0 %6300
        %6302 = vrot.lane.b32.xlu0 %v6223, 64
        %v6303 = vpop.permute.xlu0 %6302
        %6304 = vrot.lane.b32.xlu0 %v6224, 64
        %v6305 = vpop.permute.xlu0 %6304
        %6306 = vrot.lane.b32.xlu0 %v6225, 64
        %v6307 = vpop.permute.xlu0 %6306
        %6308 = vrot.lane.b32.xlu0 %v6226, 64
        %v6309 = vpop.permute.xlu0 %6308
        %6310 = vrot.lane.b32.xlu0 %v6227, 64
        %v6311 = vpop.permute.xlu0 %6310
        %6312 = vrot.lane.b32.xlu0 %v6228, 64
        %v6313 = vpop.permute.xlu0 %6312
        %6314 = vrot.lane.b32.xlu0 %v6229, 64
        %v6315 = vpop.permute.xlu0 %6314
        %6316 = vrot.lane.b32.xlu0 %v6230, 64
        %v6317 = vpop.permute.xlu0 %6316
        %6318 = vrot.lane.b32.xlu0 %v6231, 64
        %v6319 = vpop.permute.xlu0 %6318
        %6320 = vrot.lane.b32.xlu0 %v6232, 64
        %v6321 = vpop.permute.xlu0 %6320
        %6322 = vrot.lane.b32.xlu0 %v6233, 64
        %v6323 = vpop.permute.xlu0 %6322
        %6324 = vrot.lane.b32.xlu0 %v6234, 64
        %v6325 = vpop.permute.xlu0 %6324
        %6326 = vrot.lane.b32.xlu0 %v6235, 64
        %v6327 = vpop.permute.xlu0 %6326
        %6328 = vrot.lane.b32.xlu0 %v6236, 64
        %v6329 = vpop.permute.xlu0 %6328
        %6330 = vrot.lane.b32.xlu0 %v6237, 64
        %v6331 = vpop.permute.xlu0 %6330
        %6332 = vrot.lane.b32.xlu0 %v6238, 64
        %v6333 = vpop.permute.xlu0 %6332
        %6334 = vrot.lane.b32.xlu0 %v6239, 64
        %v6335 = vpop.permute.xlu0 %6334
        %vm6368 = vcmask 589312
        %6369 = vst.msk [vmem:[#allocation6] sm:$0xff] %vm6368, %v6273
        %6370 = vst.msk [vmem:[#allocation6 + $0x8] sm:$0xff] %vm6368, %v6275
        %6371 = vst.msk [vmem:[#allocation6 + $0x10] sm:$0xff] %vm6368, %v6277
        %6372 = vst.msk [vmem:[#allocation6 + $0x18] sm:$0xff] %vm6368, %v6279
        %6373 = vst.msk [vmem:[#allocation6 + $0x20] sm:$0xff] %vm6368, %v6281
        %6374 = vst.msk [vmem:[#allocation6 + $0x28] sm:$0xff] %vm6368, %v6283
        %6375 = vst.msk [vmem:[#allocation6 + $0x30] sm:$0xff] %vm6368, %v6285
        %6376 = vst.msk [vmem:[#allocation6 + $0x38] sm:$0xff] %vm6368, %v6287
        %6377 = vst.msk [vmem:[#allocation6 + $0x40] sm:$0xff] %vm6368, %v6289
        %6378 = vst.msk [vmem:[#allocation6 + $0x48] sm:$0xff] %vm6368, %v6291
        %6379 = vst.msk [vmem:[#allocation6 + $0x50] sm:$0xff] %vm6368, %v6293
        %6380 = vst.msk [vmem:[#allocation6 + $0x58] sm:$0xff] %vm6368, %v6295
        %6381 = vst.msk [vmem:[#allocation6 + $0x60] sm:$0xff] %vm6368, %v6297
        %6382 = vst.msk [vmem:[#allocation6 + $0x68] sm:$0xff] %vm6368, %v6299
        %6383 = vst.msk [vmem:[#allocation6 + $0x70] sm:$0xff] %vm6368, %v6301
        %6384 = vst.msk [vmem:[#allocation6 + $0x78] sm:$0xff] %vm6368, %v6303
        %6385 = vst.msk [vmem:[#allocation6 + $0x80] sm:$0xff] %vm6368, %v6305
        %6386 = vst.msk [vmem:[#allocation6 + $0x88] sm:$0xff] %vm6368, %v6307
        %6387 = vst.msk [vmem:[#allocation6 + $0x90] sm:$0xff] %vm6368, %v6309
        %6388 = vst.msk [vmem:[#allocation6 + $0x98] sm:$0xff] %vm6368, %v6311
        %6389 = vst.msk [vmem:[#allocation6 + $0xa0] sm:$0xff] %vm6368, %v6313
        %6390 = vst.msk [vmem:[#allocation6 + $0xa8] sm:$0xff] %vm6368, %v6315
        %6391 = vst.msk [vmem:[#allocation6 + $0xb0] sm:$0xff] %vm6368, %v6317
        %6392 = vst.msk [vmem:[#allocation6 + $0xb8] sm:$0xff] %vm6368, %v6319
        %6393 = vst.msk [vmem:[#allocation6 + $0xc0] sm:$0xff] %vm6368, %v6321
        %6394 = vst.msk [vmem:[#allocation6 + $0xc8] sm:$0xff] %vm6368, %v6323
        %6395 = vst.msk [vmem:[#allocation6 + $0xd0] sm:$0xff] %vm6368, %v6325
        %6396 = vst.msk [vmem:[#allocation6 + $0xd8] sm:$0xff] %vm6368, %v6327
        %6397 = vst.msk [vmem:[#allocation6 + $0xe0] sm:$0xff] %vm6368, %v6329
        %6398 = vst.msk [vmem:[#allocation6 + $0xe8] sm:$0xff] %vm6368, %v6331
        %6399 = vst.msk [vmem:[#allocation6 + $0xf0] sm:$0xff] %vm6368, %v6333
        %6400 = vst.msk [vmem:[#allocation6 + $0xf8] sm:$0xff] %vm6368, %v6335
        %v6401 = vld [vmem:[%s10] sm:$0xff]
        %v6402 = vld [vmem:[%s10 + $0x8] sm:$0xff]
        %v6403 = vld [vmem:[%s10 + $0x10] sm:$0xff]
        %v6404 = vld [vmem:[%s10 + $0x18] sm:$0xff]
        %v6405 = vld [vmem:[%s10 + $0x20] sm:$0xff]
        %v6406 = vld [vmem:[%s10 + $0x28] sm:$0xff]
        %v6407 = vld [vmem:[%s10 + $0x30] sm:$0xff]
        %v6408 = vld [vmem:[%s10 + $0x38] sm:$0xff]
        %v6409 = vld [vmem:[%s10 + $0x40] sm:$0xff]
        %v6410 = vld [vmem:[%s10 + $0x48] sm:$0xff]
        %v6411 = vld [vmem:[%s10 + $0x50] sm:$0xff]
        %v6412 = vld [vmem:[%s10 + $0x58] sm:$0xff]
        %v6413 = vld [vmem:[%s10 + $0x60] sm:$0xff]
        %v6414 = vld [vmem:[%s10 + $0x68] sm:$0xff]
        %v6415 = vld [vmem:[%s10 + $0x70] sm:$0xff]
        %v6416 = vld [vmem:[%s10 + $0x78] sm:$0xff]
        %v6417 = vld [vmem:[#allocation6] sm:$0xff]
        %v6418 = vld [vmem:[#allocation6 + $0x8] sm:$0xff]
        %v6419 = vld [vmem:[#allocation6 + $0x10] sm:$0xff]
        %v6420 = vld [vmem:[#allocation6 + $0x18] sm:$0xff]
        %v6421 = vld [vmem:[#allocation6 + $0x20] sm:$0xff]
        %v6422 = vld [vmem:[#allocation6 + $0x28] sm:$0xff]
        %v6423 = vld [vmem:[#allocation6 + $0x30] sm:$0xff]
        %v6424 = vld [vmem:[#allocation6 + $0x38] sm:$0xff]
        %v6425 = vld [vmem:[#allocation6 + $0x40] sm:$0xff]
        %v6426 = vld [vmem:[#allocation6 + $0x48] sm:$0xff]
        %v6427 = vld [vmem:[#allocation6 + $0x50] sm:$0xff]
        %v6428 = vld [vmem:[#allocation6 + $0x58] sm:$0xff]
        %v6429 = vld [vmem:[#allocation6 + $0x60] sm:$0xff]
        %v6430 = vld [vmem:[#allocation6 + $0x68] sm:$0xff]
        %v6431 = vld [vmem:[#allocation6 + $0x70] sm:$0xff]
        %v6432 = vld [vmem:[#allocation6 + $0x78] sm:$0xff]
        %v6433 = vld [vmem:[#allocation6 + $0x80] sm:$0xff]
        %v6434 = vld [vmem:[#allocation6 + $0x88] sm:$0xff]
        %v6435 = vld [vmem:[#allocation6 + $0x90] sm:$0xff]
        %v6436 = vld [vmem:[#allocation6 + $0x98] sm:$0xff]
        %v6437 = vld [vmem:[#allocation6 + $0xa0] sm:$0xff]
        %v6438 = vld [vmem:[#allocation6 + $0xa8] sm:$0xff]
        %v6439 = vld [vmem:[#allocation6 + $0xb0] sm:$0xff]
        %v6440 = vld [vmem:[#allocation6 + $0xb8] sm:$0xff]
        %v6441 = vld [vmem:[#allocation6 + $0xc0] sm:$0xff]
        %v6442 = vld [vmem:[#allocation6 + $0xc8] sm:$0xff]
        %v6443 = vld [vmem:[#allocation6 + $0xd0] sm:$0xff]
        %v6444 = vld [vmem:[#allocation6 + $0xd8] sm:$0xff]
        %v6445 = vld [vmem:[#allocation6 + $0xe0] sm:$0xff]
        %v6446 = vld [vmem:[#allocation6 + $0xe8] sm:$0xff]
        %v6447 = vld [vmem:[#allocation6 + $0xf0] sm:$0xff]
        %v6448 = vld [vmem:[#allocation6 + $0xf8] sm:$0xff]
        %6449 = vmatprep.subr.mxu0 0.0
        %6450 = vmatpush1.msra.mxu0 %v6432
        %6451 = vmatprep.subr.mxu0 0.0
        %6452 = vmatpush1.msra.mxu0 %v6431
        %6453 = vmatprep.subr.mxu0 0.0
        %6454 = vmatpush1.msra.mxu0 %v6430
        %6455 = vmatprep.subr.mxu0 0.0
        %6456 = vmatpush1.msra.mxu0 %v6429
        %6457 = vmatprep.subr.mxu0 0.0
        %6458 = vmatpush1.msra.mxu0 %v6428
        %6459 = vmatprep.subr.mxu0 0.0
        %6460 = vmatpush1.msra.mxu0 %v6427
        %6461 = vmatprep.subr.mxu0 0.0
        %6462 = vmatpush1.msra.mxu0 %v6426
        %6463 = vmatprep.subr.mxu0 0.0
        %6464 = vmatpush1.msra.mxu0 %v6425
        %6465 = vmatprep.subr.mxu0 0.0
        %6466 = vmatpush1.msra.mxu0 %v6424
        %6467 = vmatprep.subr.mxu0 0.0
        %6468 = vmatpush1.msra.mxu0 %v6423
        %6469 = vmatprep.subr.mxu0 0.0
        %6470 = vmatpush1.msra.mxu0 %v6422
        %6471 = vmatprep.subr.mxu0 0.0
        %6472 = vmatpush1.msra.mxu0 %v6421
        %6473 = vmatprep.subr.mxu0 0.0
        %6474 = vmatpush1.msra.mxu0 %v6420
        %6475 = vmatprep.subr.mxu0 0.0
        %6476 = vmatpush1.msra.mxu0 %v6419
        %6477 = vmatprep.subr.mxu0 0.0
        %6478 = vmatpush1.msra.mxu0 %v6418
        %6479 = vmatprep.subr.mxu0 0.0
        %6480 = vmatpush1.msra.mxu0 %v6417
        %6481 = vmatprep.subr.mxu0 0.0
        %6482 = vmatpush2.msra.mxu0 %v6448
        %6483 = vmatprep.subr.mxu0 0.0
        %6484 = vmatpush2.msra.mxu0 %v6447
        %6485 = vmatprep.subr.mxu0 0.0
        %6486 = vmatpush2.msra.mxu0 %v6446
        %6487 = vmatprep.subr.mxu0 0.0
        %6488 = vmatpush2.msra.mxu0 %v6445
        %6489 = vmatprep.subr.mxu0 0.0
        %6490 = vmatpush2.msra.mxu0 %v6444
        %6491 = vmatprep.subr.mxu0 0.0
        %6492 = vmatpush2.msra.mxu0 %v6443
        %6493 = vmatprep.subr.mxu0 0.0
        %6494 = vmatpush2.msra.mxu0 %v6442
        %6495 = vmatprep.subr.mxu0 0.0
        %6496 = vmatpush2.msra.mxu0 %v6441
        %6497 = vmatprep.subr.mxu0 0.0
        %6498 = vmatpush2.msra.mxu0 %v6440
        %6499 = vmatprep.subr.mxu0 0.0
        %6500 = vmatpush2.msra.mxu0 %v6439
        %6501 = vmatprep.subr.mxu0 0.0
        %6502 = vmatpush2.msra.mxu0 %v6438
        %6503 = vmatprep.subr.mxu0 0.0
        %6504 = vmatpush2.msra.mxu0 %v6437
        %6505 = vmatprep.subr.mxu0 0.0
        %6506 = vmatpush2.msra.mxu0 %v6436
        %6507 = vmatprep.subr.mxu0 0.0
        %6508 = vmatpush2.msra.mxu0 %v6435
        %6509 = vmatprep.subr.mxu0 0.0
        %6510 = vmatpush2.msra.mxu0 %v6434
        %6511 = vmatprep.subr.mxu0 0.0
        %6512 = vmatpush2.msra.mxu0 %v6433
        %6513 = vmatprep.mubr.f32.mxu0 %v6402
        %6514 = vmatmul.mubr.f32.gmra.mxu0 %v6401
        %v6515 = vpop.f32.mrf.mxu0
        %v6516 = vadd.f32 0.0, %v6515
        %v6517 = vpop.f32.mrf.mxu0
        %6518 = vmatprep.mubr.f32.mxu0 %v6404
        %6519 = vmatmul.mubr.f32.gmra.mxu0 %v6403
        %v6520 = vpop.f32.mrf.mxu0
        %v6521 = vadd.f32 0.0, %v6520
        %v6522 = vpop.f32.mrf.mxu0
        %6523 = vmatprep.mubr.f32.mxu0 %v6406
        %6524 = vmatmul.mubr.f32.gmra.mxu0 %v6405
        %v6525 = vpop.f32.mrf.mxu0
        %v6526 = vadd.f32 0.0, %v6525
        %v6527 = vpop.f32.mrf.mxu0
        %6528 = vmatprep.mubr.f32.mxu0 %v6408
        %6529 = vmatmul.mubr.f32.gmra.mxu0 %v6407
        %v6530 = vpop.f32.mrf.mxu0
        %v6531 = vadd.f32 0.0, %v6530
        %v6532 = vpop.f32.mrf.mxu0
        %6533 = vmatprep.mubr.f32.mxu0 %v6410
        %6534 = vmatmul.mubr.f32.gmra.mxu0 %v6409
        %v6535 = vpop.f32.mrf.mxu0
        %v6536 = vadd.f32 0.0, %v6535
        %v6537 = vpop.f32.mrf.mxu0
        %6538 = vmatprep.mubr.f32.mxu0 %v6412
        %6539 = vmatmul.mubr.f32.gmra.mxu0 %v6411
        %v6540 = vpop.f32.mrf.mxu0
        %v6541 = vadd.f32 0.0, %v6540
        %v6542 = vpop.f32.mrf.mxu0
        %6543 = vmatprep.mubr.f32.mxu0 %v6414
        %6544 = vmatmul.mubr.f32.gmra.mxu0 %v6413
        %v6545 = vpop.f32.mrf.mxu0
        %v6546 = vadd.f32 0.0, %v6545
        %v6547 = vpop.f32.mrf.mxu0
        %6548 = vmatprep.mubr.f32.mxu0 %v6416
        %6549 = vmatmul.mubr.f32.gmra.mxu0 %v6415
        %v6550 = vpop.f32.mrf.mxu0
        %v6551 = vadd.f32 0.0, %v6550
        %v6552 = vpop.f32.mrf.mxu0
        %6553 = vdwg.mxu0
        %vm6554 = vcmask 588800
        %6555 = vst.msk [vmem:[#allocation8] sm:$0xff] %vm6554, %v6516
        %6556 = vst.msk [vmem:[#allocation8 + $0x8] sm:$0xff] %vm6554, %v6521
        %6557 = vst.msk [vmem:[#allocation8 + $0x10] sm:$0xff] %vm6554, %v6526
        %6558 = vst.msk [vmem:[#allocation8 + $0x18] sm:$0xff] %vm6554, %v6531
        %6559 = vst.msk [vmem:[#allocation8 + $0x20] sm:$0xff] %vm6554, %v6536
        %6560 = vst.msk [vmem:[#allocation8 + $0x28] sm:$0xff] %vm6554, %v6541
        %6561 = vst.msk [vmem:[#allocation8 + $0x30] sm:$0xff] %vm6554, %v6546
        %6562 = vst.msk [vmem:[#allocation8 + $0x38] sm:$0xff] %vm6554, %v6551
        %v6563 = vld [vmem:[#allocation8] sm:$0xff]
        %v6564 = vld [vmem:[#allocation8 + $0x8] sm:$0xff]
        %v6565 = vld [vmem:[#allocation8 + $0x10] sm:$0xff]
        %v6566 = vld [vmem:[#allocation8 + $0x18] sm:$0xff]
        %v6567 = vld [vmem:[#allocation8 + $0x20] sm:$0xff]
        %v6568 = vld [vmem:[#allocation8 + $0x28] sm:$0xff]
        %v6569 = vld [vmem:[#allocation8 + $0x30] sm:$0xff]
        %v6570 = vld [vmem:[#allocation8 + $0x38] sm:$0xff]
        %v6571 = vld [vmem:[%s2] sm:$0xff]
        %v6572 = vld [vmem:[%s2 + $0x8] sm:$0xff]
        %v6573 = vld [vmem:[%s2 + $0x10] sm:$0xff]
        %v6574 = vld [vmem:[%s2 + $0x18] sm:$0xff]
        %v6575 = vld [vmem:[%s2 + $0x20] sm:$0xff]
        %v6576 = vld [vmem:[%s2 + $0x28] sm:$0xff]
        %v6577 = vld [vmem:[%s2 + $0x30] sm:$0xff]
        %v6578 = vld [vmem:[%s2 + $0x38] sm:$0xff]
        %v6579 = vld [vmem:[%s2 + $0x40] sm:$0xff]
        %v6581 = vsel %vm6554, %v6563, 0
        %v6584 = vsel %vm6554, %v6564, 0
        %v6587 = vsel %vm6554, %v6565, 0
        %v6590 = vsel %vm6554, %v6566, 0
        %v6593 = vsel %vm6554, %v6567, 0
        %v6596 = vsel %vm6554, %v6568, 0
        %v6599 = vsel %vm6554, %v6569, 0
        %v6602 = vsel %vm6554, %v6570, 0
        %6604 = vmatprep.subr.mxu0 0.0
        %6605 = vmatpush1.msra.mxu0 0.0
        %6606 = vmatprep.subr.mxu0 0.0
        %6607 = vmatpush1.msra.mxu0 0.0
        %6608 = vmatprep.subr.mxu0 0.0
        %6609 = vmatpush1.msra.mxu0 0.0
        %6610 = vmatprep.subr.mxu0 0.0
        %6611 = vmatpush1.msra.mxu0 0.0
        %6612 = vmatprep.subr.mxu0 0.0
        %6613 = vmatpush1.msra.mxu0 0.0
        %6614 = vmatprep.subr.mxu0 0.0
        %6615 = vmatpush1.msra.mxu0 0.0
        %6616 = vmatprep.subr.mxu0 0.0
        %6617 = vmatpush1.msra.mxu0 0.0
        %6618 = vmatprep.subr.mxu0 0.0
        %6619 = vmatpush1.msra.mxu0 %v6579
        %6620 = vmatprep.subr.mxu0 0.0
        %6621 = vmatpush1.msra.mxu0 %v6578
        %6622 = vmatprep.subr.mxu0 0.0
        %6623 = vmatpush1.msra.mxu0 %v6577
        %6624 = vmatprep.subr.mxu0 0.0
        %6625 = vmatpush1.msra.mxu0 %v6576
        %6626 = vmatprep.subr.mxu0 0.0
        %6627 = vmatpush1.msra.mxu0 %v6575
        %6628 = vmatprep.subr.mxu0 0.0
        %6629 = vmatpush1.msra.mxu0 %v6574
        %6630 = vmatprep.subr.mxu0 0.0
        %6631 = vmatpush1.msra.mxu0 %v6573
        %6632 = vmatprep.subr.mxu0 0.0
        %6633 = vmatpush1.msra.mxu0 %v6572
        %6634 = vmatprep.subr.mxu0 0.0
        %6635 = vmatpush1.msra.mxu0 %v6571
        %6636 = vmatprep.subr.mxu0 0.0
        %6637 = vmatpush2.msra.mxu0 0.0
        %6638 = vmatprep.subr.mxu0 0.0
        %6639 = vmatpush2.msra.mxu0 0.0
        %6640 = vmatprep.subr.mxu0 0.0
        %6641 = vmatpush2.msra.mxu0 0.0
        %6642 = vmatprep.subr.mxu0 0.0
        %6643 = vmatpush2.msra.mxu0 0.0
        %6644 = vmatprep.subr.mxu0 0.0
        %6645 = vmatpush2.msra.mxu0 0.0
        %6646 = vmatprep.subr.mxu0 0.0
        %6647 = vmatpush2.msra.mxu0 0.0
        %6648 = vmatprep.subr.mxu0 0.0
        %6649 = vmatpush2.msra.mxu0 0.0
        %6650 = vmatprep.subr.mxu0 0.0
        %6651 = vmatpush2.msra.mxu0 0.0
        %6652 = vmatprep.subr.mxu0 0.0
        %6653 = vmatpush2.msra.mxu0 0.0
        %6654 = vmatprep.subr.mxu0 0.0
        %6655 = vmatpush2.msra.mxu0 0.0
        %6656 = vmatprep.subr.mxu0 0.0
        %6657 = vmatpush2.msra.mxu0 0.0
        %6658 = vmatprep.subr.mxu0 0.0
        %6659 = vmatpush2.msra.mxu0 0.0
        %6660 = vmatprep.subr.mxu0 0.0
        %6661 = vmatpush2.msra.mxu0 0.0
        %6662 = vmatprep.subr.mxu0 0.0
        %6663 = vmatpush2.msra.mxu0 0.0
        %6664 = vmatprep.subr.mxu0 0.0
        %6665 = vmatpush2.msra.mxu0 0.0
        %6666 = vmatprep.subr.mxu0 0.0
        %6667 = vmatpush2.msra.mxu0 0.0
        %6668 = vmatprep.mubr.f32.mxu0 0.0
        %6669 = vmatmul.mubr.f32.gmra.mxu0 %v6581
        %v6670 = vpop.f32.mrf.mxu0
        %v6671 = vadd.f32 0.0, %v6670
        %v6672 = vpop.f32.mrf.mxu0
        %6673 = vmatprep.mubr.f32.mxu0 0.0
        %6674 = vmatmul.mubr.f32.gmra.mxu0 %v6584
        %v6675 = vpop.f32.mrf.mxu0
        %v6676 = vadd.f32 0.0, %v6675
        %v6677 = vpop.f32.mrf.mxu0
        %6678 = vmatprep.mubr.f32.mxu0 0.0
        %6679 = vmatmul.mubr.f32.gmra.mxu0 %v6587
        %v6680 = vpop.f32.mrf.mxu0
        %v6681 = vadd.f32 0.0, %v6680
        %v6682 = vpop.f32.mrf.mxu0
        %6683 = vmatprep.mubr.f32.mxu0 0.0
        %6684 = vmatmul.mubr.f32.gmra.mxu0 %v6590
        %v6685 = vpop.f32.mrf.mxu0
        %v6686 = vadd.f32 0.0, %v6685
        %v6687 = vpop.f32.mrf.mxu0
        %6688 = vmatprep.mubr.f32.mxu0 0.0
        %6689 = vmatmul.mubr.f32.gmra.mxu0 %v6593
        %v6690 = vpop.f32.mrf.mxu0
        %v6691 = vadd.f32 0.0, %v6690
        %v6692 = vpop.f32.mrf.mxu0
        %6693 = vmatprep.mubr.f32.mxu0 0.0
        %6694 = vmatmul.mubr.f32.gmra.mxu0 %v6596
        %v6695 = vpop.f32.mrf.mxu0
        %v6696 = vadd.f32 0.0, %v6695
        %v6697 = vpop.f32.mrf.mxu0
        %6698 = vmatprep.mubr.f32.mxu0 0.0
        %6699 = vmatmul.mubr.f32.gmra.mxu0 %v6599
        %v6700 = vpop.f32.mrf.mxu0
        %v6701 = vadd.f32 0.0, %v6700
        %v6702 = vpop.f32.mrf.mxu0
        %6703 = vmatprep.mubr.f32.mxu0 0.0
        %6704 = vmatmul.mubr.f32.gmra.mxu0 %v6602
        %v6705 = vpop.f32.mrf.mxu0
        %v6706 = vadd.f32 0.0, %v6705
        %v6707 = vpop.f32.mrf.mxu0
        %6708 = vdwg.mxu0
        %v6709 = vld [vmem:[%s5] sm:$0x1]
        %v6711 = vlaneseq
        %v6712 = vshrl.u32 %v6711, 7
        %v6713 = vsub.s32 0, %v6712
        %v6714 = vrot.slane %v6709, %v6713
        %v6716 = vmul.f32 %v6671, %v6714
        %v6717 = vmul.f32 %v6676, %v6714
        %v6718 = vmul.f32 %v6681, %v6714
        %v6719 = vmul.f32 %v6686, %v6714
        %v6720 = vmul.f32 %v6691, %v6714
        %v6721 = vmul.f32 %v6696, %v6714
        %v6722 = vmul.f32 %v6701, %v6714
        %v6723 = vmul.f32 %v6706, %v6714
        %v6724 = vld [vmem:[%s8] sm:$0x1]
        %v6726 = vlaneseq
        %v6727 = vshrl.u32 %v6726, 7
        %v6728 = vsub.s32 0, %v6727
        %v6729 = vrot.slane %v6724, %v6728
        %v6731 = vadd.f32 %v6716, %v6729
        %v6732 = vadd.f32 %v6717, %v6729
        %v6733 = vadd.f32 %v6718, %v6729
        %v6734 = vadd.f32 %v6719, %v6729
        %v6735 = vadd.f32 %v6720, %v6729
        %v6736 = vadd.f32 %v6721, %v6729
        %v6737 = vadd.f32 %v6722, %v6729
        %v6738 = vadd.f32 %v6723, %v6729
        %v6739 = vmax.f32 %v6731, 0.0
        %v6740 = vmax.f32 %v6732, 0.0
        %v6741 = vmax.f32 %v6733, 0.0
        %v6742 = vmax.f32 %v6734, 0.0
        %v6743 = vmax.f32 %v6735, 0.0
        %v6744 = vmax.f32 %v6736, 0.0
        %v6745 = vmax.f32 %v6737, 0.0
        %v6746 = vmax.f32 %v6738, 0.0
        %6747 = vst [vmem:[%s472] sm:$0xff] %v6739
        %6748 = vst [vmem:[%s472 + $0x8] sm:$0xff] %v6740
        %6749 = vst [vmem:[%s472 + $0x10] sm:$0xff] %v6741
        %6750 = vst [vmem:[%s472 + $0x18] sm:$0xff] %v6742
        %6751 = vst [vmem:[%s472 + $0x20] sm:$0xff] %v6743
        %6752 = vst [vmem:[%s472 + $0x28] sm:$0xff] %v6744
        %6753 = vst [vmem:[%s472 + $0x30] sm:$0xff] %v6745
        %6754 = vst [vmem:[%s472 + $0x38] sm:$0xff] %v6746
        %vm6755 = vcmask 130048
        %6756 = vst.msk [vmem:[#allocation4] sm:$0xff] %vm6755, 0.0
        %6757 = vst.msk [vmem:[#allocation4 + $0x8] sm:$0xff] %vm6755, 0.0
        %6758 = vst.msk [vmem:[#allocation4 + $0x50] sm:$0xff] %vm6755, 0.0
        %6759 = vst.msk [vmem:[#allocation4 + $0x58] sm:$0xff] %vm6755, 0.0
        %6760 = vst.msk [vmem:[#allocation4 + $0x10] sm:$0xff] %vm6755, %v6739
        %6761 = vst.msk [vmem:[#allocation4 + $0x18] sm:$0xff] %vm6755, %v6740
        %6762 = vst.msk [vmem:[#allocation4 + $0x20] sm:$0xff] %vm6755, %v6741
        %6763 = vst.msk [vmem:[#allocation4 + $0x28] sm:$0xff] %vm6755, %v6742
        %6764 = vst.msk [vmem:[#allocation4 + $0x30] sm:$0xff] %vm6755, %v6743
        %6765 = vst.msk [vmem:[#allocation4 + $0x38] sm:$0xff] %vm6755, %v6744
        %6766 = vst.msk [vmem:[#allocation4 + $0x40] sm:$0xff] %vm6755, %v6745
        %6767 = vst.msk [vmem:[#allocation4 + $0x48] sm:$0xff] %vm6755, %v6746
        %vm6768 = vcmp.lt.s32.totalorder %v561, 0
        %v6769 = vsub.s32 0, %v561
        %v6770 = vsel %vm6768, %v6769, %v561
        %v6771 = vshrl.u32 %v6770, 6
        %v6772 = vand.u32 %v6770, 63
        %v6773 = vsub.s32 0, %v6772
        %v6774 = vsel %vm6768, %v6773, %v6772
        %vm6775 = vcmp.lt.s32.totalorder %v562, 0
        %v6776 = vsub.s32 0, %v562
        %v6777 = vsel %vm6775, %v6776, %v562
        %v6778 = vshrl.u32 %v6777, 6
        %v6779 = vand.u32 %v6777, 63
        %v6780 = vsub.s32 0, %v6779
        %v6781 = vsel %vm6775, %v6780, %v6779
        %vm6782 = vcmp.lt.s32.totalorder %v563, 0
        %v6783 = vsub.s32 0, %v563
        %v6784 = vsel %vm6782, %v6783, %v563
        %v6785 = vshrl.u32 %v6784, 6
        %v6786 = vand.u32 %v6784, 63
        %v6787 = vsub.s32 0, %v6786
        %v6788 = vsel %vm6782, %v6787, %v6786
        %vm6789 = vcmp.lt.s32.totalorder %v564, 0
        %v6790 = vsub.s32 0, %v564
        %v6791 = vsel %vm6789, %v6790, %v564
        %v6792 = vshrl.u32 %v6791, 6
        %v6793 = vand.u32 %v6791, 63
        %v6794 = vsub.s32 0, %v6793
        %v6795 = vsel %vm6789, %v6794, %v6793
        %vm6796 = vcmp.lt.s32.totalorder %v565, 0
        %v6797 = vsub.s32 0, %v565
        %v6798 = vsel %vm6796, %v6797, %v565
        %v6799 = vshrl.u32 %v6798, 6
        %v6800 = vand.u32 %v6798, 63
        %v6801 = vsub.s32 0, %v6800
        %v6802 = vsel %vm6796, %v6801, %v6800
        %vm6803 = vcmp.lt.s32.totalorder %v566, 0
        %v6804 = vsub.s32 0, %v566
        %v6805 = vsel %vm6803, %v6804, %v566
        %v6806 = vshrl.u32 %v6805, 6
        %v6807 = vand.u32 %v6805, 63
        %v6808 = vsub.s32 0, %v6807
        %v6809 = vsel %vm6803, %v6808, %v6807
        %vm6810 = vcmp.lt.s32.totalorder %v567, 0
        %v6811 = vsub.s32 0, %v567
        %v6812 = vsel %vm6810, %v6811, %v567
        %v6813 = vshrl.u32 %v6812, 6
        %v6814 = vand.u32 %v6812, 63
        %v6815 = vsub.s32 0, %v6814
        %v6816 = vsel %vm6810, %v6815, %v6814
        %vm6817 = vcmp.lt.s32.totalorder %v568, 0
        %v6818 = vsub.s32 0, %v568
        %v6819 = vsel %vm6817, %v6818, %v568
        %v6820 = vshrl.u32 %v6819, 6
        %v6821 = vand.u32 %v6819, 63
        %v6822 = vsub.s32 0, %v6821
        %v6823 = vsel %vm6817, %v6822, %v6821
        %vm6824 = vcmp.ne.s32.totalorder %v6774, 0
        %vm6825 = vcmp.ne.s32.totalorder %v6781, 0
        %vm6826 = vcmp.ne.s32.totalorder %v6788, 0
        %vm6827 = vcmp.ne.s32.totalorder %v6795, 0
        %vm6828 = vcmp.ne.s32.totalorder %v6802, 0
        %vm6829 = vcmp.ne.s32.totalorder %v6809, 0
        %vm6830 = vcmp.ne.s32.totalorder %v6816, 0
        %vm6831 = vcmp.ne.s32.totalorder %v6823, 0
        %vm6832 = vcmp.lt.s32.totalorder %v6774, 0
        %vm6833 = vcmp.lt.s32.totalorder %v6781, 0
        %vm6834 = vcmp.lt.s32.totalorder %v6788, 0
        %vm6835 = vcmp.lt.s32.totalorder %v6795, 0
        %vm6836 = vcmp.lt.s32.totalorder %v6802, 0
        %vm6837 = vcmp.lt.s32.totalorder %v6809, 0
        %vm6838 = vcmp.lt.s32.totalorder %v6816, 0
        %vm6839 = vcmp.lt.s32.totalorder %v6823, 0
        %vm6840 = vmand %vm6832, %vm6824
        %vm6841 = vmand %vm6833, %vm6825
        %vm6842 = vmand %vm6834, %vm6826
        %vm6843 = vmand %vm6835, %vm6827
        %vm6844 = vmand %vm6836, %vm6828
        %vm6845 = vmand %vm6837, %vm6829
        %vm6846 = vmand %vm6838, %vm6830
        %vm6847 = vmand %vm6839, %vm6831
        %v6848 = vadd.s32 %v6774, 64
        %v6849 = vadd.s32 %v6781, 64
        %v6850 = vadd.s32 %v6788, 64
        %v6851 = vadd.s32 %v6795, 64
        %v6852 = vadd.s32 %v6802, 64
        %v6853 = vadd.s32 %v6809, 64
        %v6854 = vadd.s32 %v6816, 64
        %v6855 = vadd.s32 %v6823, 64
        %v6856 = vsel %vm6840, %v6848, %v6774
        %v6857 = vsel %vm6841, %v6849, %v6781
        %v6858 = vsel %vm6842, %v6850, %v6788
        %v6859 = vsel %vm6843, %v6851, %v6795
        %v6860 = vsel %vm6844, %v6852, %v6802
        %v6861 = vsel %vm6845, %v6853, %v6809
        %v6862 = vsel %vm6846, %v6854, %v6816
        %v6863 = vsel %vm6847, %v6855, %v6823
        %vm6864 = vcmp.lt.s32.totalorder %v6856, 0
        %v6865 = vsub.s32 0, %v6856
        %v6866 = vsel %vm6864, %v6865, %v6856
        %v6867 = vshrl.u32 %v6866, 3
        %v6868 = vand.u32 %v6866, 7
        %v6869 = vsub.s32 0, %v6868
        %v6870 = vsel %vm6864, %v6869, %v6868
        %vm6871 = vcmp.lt.s32.totalorder %v6857, 0
        %v6872 = vsub.s32 0, %v6857
        %v6873 = vsel %vm6871, %v6872, %v6857
        %v6874 = vshrl.u32 %v6873, 3
        %v6875 = vand.u32 %v6873, 7
        %v6876 = vsub.s32 0, %v6875
        %v6877 = vsel %vm6871, %v6876, %v6875
        %vm6878 = vcmp.lt.s32.totalorder %v6858, 0
        %v6879 = vsub.s32 0, %v6858
        %v6880 = vsel %vm6878, %v6879, %v6858
        %v6881 = vshrl.u32 %v6880, 3
        %v6882 = vand.u32 %v6880, 7
        %v6883 = vsub.s32 0, %v6882
        %v6884 = vsel %vm6878, %v6883, %v6882
        %vm6885 = vcmp.lt.s32.totalorder %v6859, 0
        %v6886 = vsub.s32 0, %v6859
        %v6887 = vsel %vm6885, %v6886, %v6859
        %v6888 = vshrl.u32 %v6887, 3
        %v6889 = vand.u32 %v6887, 7
        %v6890 = vsub.s32 0, %v6889
        %v6891 = vsel %vm6885, %v6890, %v6889
        %vm6892 = vcmp.lt.s32.totalorder %v6860, 0
        %v6893 = vsub.s32 0, %v6860
        %v6894 = vsel %vm6892, %v6893, %v6860
        %v6895 = vshrl.u32 %v6894, 3
        %v6896 = vand.u32 %v6894, 7
        %v6897 = vsub.s32 0, %v6896
        %v6898 = vsel %vm6892, %v6897, %v6896
        %vm6899 = vcmp.lt.s32.totalorder %v6861, 0
        %v6900 = vsub.s32 0, %v6861
        %v6901 = vsel %vm6899, %v6900, %v6861
        %v6902 = vshrl.u32 %v6901, 3
        %v6903 = vand.u32 %v6901, 7
        %v6904 = vsub.s32 0, %v6903
        %v6905 = vsel %vm6899, %v6904, %v6903
        %vm6906 = vcmp.lt.s32.totalorder %v6862, 0
        %v6907 = vsub.s32 0, %v6862
        %v6908 = vsel %vm6906, %v6907, %v6862
        %v6909 = vshrl.u32 %v6908, 3
        %v6910 = vand.u32 %v6908, 7
        %v6911 = vsub.s32 0, %v6910
        %v6912 = vsel %vm6906, %v6911, %v6910
        %vm6913 = vcmp.lt.s32.totalorder %v6863, 0
        %v6914 = vsub.s32 0, %v6863
        %v6915 = vsel %vm6913, %v6914, %v6863
        %v6916 = vshrl.u32 %v6915, 3
        %v6917 = vand.u32 %v6915, 7
        %v6918 = vsub.s32 0, %v6917
        %v6919 = vsel %vm6913, %v6918, %v6917
        %vm6920 = vcmp.ne.s32.totalorder %v6870, 0
        %vm6921 = vcmp.ne.s32.totalorder %v6877, 0
        %vm6922 = vcmp.ne.s32.totalorder %v6884, 0
        %vm6923 = vcmp.ne.s32.totalorder %v6891, 0
        %vm6924 = vcmp.ne.s32.totalorder %v6898, 0
        %vm6925 = vcmp.ne.s32.totalorder %v6905, 0
        %vm6926 = vcmp.ne.s32.totalorder %v6912, 0
        %vm6927 = vcmp.ne.s32.totalorder %v6919, 0
        %vm6928 = vcmp.lt.s32.totalorder %v6870, 0
        %vm6929 = vcmp.lt.s32.totalorder %v6877, 0
        %vm6930 = vcmp.lt.s32.totalorder %v6884, 0
        %vm6931 = vcmp.lt.s32.totalorder %v6891, 0
        %vm6932 = vcmp.lt.s32.totalorder %v6898, 0
        %vm6933 = vcmp.lt.s32.totalorder %v6905, 0
        %vm6934 = vcmp.lt.s32.totalorder %v6912, 0
        %vm6935 = vcmp.lt.s32.totalorder %v6919, 0
        %vm6936 = vmand %vm6928, %vm6920
        %vm6937 = vmand %vm6929, %vm6921
        %vm6938 = vmand %vm6930, %vm6922
        %vm6939 = vmand %vm6931, %vm6923
        %vm6940 = vmand %vm6932, %vm6924
        %vm6941 = vmand %vm6933, %vm6925
        %vm6942 = vmand %vm6934, %vm6926
        %vm6943 = vmand %vm6935, %vm6927
        %v6944 = vadd.s32 %v6870, 8
        %v6945 = vadd.s32 %v6877, 8
        %v6946 = vadd.s32 %v6884, 8
        %v6947 = vadd.s32 %v6891, 8
        %v6948 = vadd.s32 %v6898, 8
        %v6949 = vadd.s32 %v6905, 8
        %v6950 = vadd.s32 %v6912, 8
        %v6951 = vadd.s32 %v6919, 8
        %v6952 = vsel %vm6936, %v6944, %v6870
        %v6953 = vsel %vm6937, %v6945, %v6877
        %v6954 = vsel %vm6938, %v6946, %v6884
        %v6955 = vsel %vm6939, %v6947, %v6891
        %v6956 = vsel %vm6940, %v6948, %v6898
        %v6957 = vsel %vm6941, %v6949, %v6905
        %v6958 = vsel %vm6942, %v6950, %v6912
        %v6959 = vsel %vm6943, %v6951, %v6919
        %vm6960 = vcmp.ge.s32.totalorder %v6952, 1
        %vm6961 = vcmp.ge.s32.totalorder %v6953, 1
        %vm6962 = vcmp.ge.s32.totalorder %v6954, 1
        %vm6963 = vcmp.ge.s32.totalorder %v6955, 1
        %vm6964 = vcmp.ge.s32.totalorder %v6956, 1
        %vm6965 = vcmp.ge.s32.totalorder %v6957, 1
        %vm6966 = vcmp.ge.s32.totalorder %v6958, 1
        %vm6967 = vcmp.ge.s32.totalorder %v6959, 1
        %vm6968 = vcmp.le.s32.totalorder %v6952, 6
        %vm6969 = vcmp.le.s32.totalorder %v6953, 6
        %vm6970 = vcmp.le.s32.totalorder %v6954, 6
        %vm6971 = vcmp.le.s32.totalorder %v6955, 6
        %vm6972 = vcmp.le.s32.totalorder %v6956, 6
        %vm6973 = vcmp.le.s32.totalorder %v6957, 6
        %vm6974 = vcmp.le.s32.totalorder %v6958, 6
        %vm6975 = vcmp.le.s32.totalorder %v6959, 6
        %vm6976 = vcmp.ge.s32.totalorder %v6856, 8
        %vm6977 = vcmp.ge.s32.totalorder %v6857, 8
        %vm6978 = vcmp.ge.s32.totalorder %v6858, 8
        %vm6979 = vcmp.ge.s32.totalorder %v6859, 8
        %vm6980 = vcmp.ge.s32.totalorder %v6860, 8
        %vm6981 = vcmp.ge.s32.totalorder %v6861, 8
        %vm6982 = vcmp.ge.s32.totalorder %v6862, 8
        %vm6983 = vcmp.ge.s32.totalorder %v6863, 8
        %vm6984 = vcmp.lt.s32.totalorder %v6856, 56
        %vm6985 = vcmp.lt.s32.totalorder %v6857, 56
        %vm6986 = vcmp.lt.s32.totalorder %v6858, 56
        %vm6987 = vcmp.lt.s32.totalorder %v6859, 56
        %vm6988 = vcmp.lt.s32.totalorder %v6860, 56
        %vm6989 = vcmp.lt.s32.totalorder %v6861, 56
        %vm6990 = vcmp.lt.s32.totalorder %v6862, 56
        %vm6991 = vcmp.lt.s32.totalorder %v6863, 56
        %v6992 = vld [vmem:[#allocation4 + $0x7] sm:$0xff]
        %v6993 = vld [vmem:[#allocation4 + $0xf] sm:$0xff]
        %v6994 = vld [vmem:[#allocation4 + $0x17] sm:$0xff]
        %v6995 = vld [vmem:[#allocation4 + $0x1f] sm:$0xff]
        %v6996 = vld [vmem:[#allocation4 + $0x27] sm:$0xff]
        %v6997 = vld [vmem:[#allocation4 + $0x2f] sm:$0xff]
        %v6998 = vld [vmem:[#allocation4 + $0x37] sm:$0xff]
        %v6999 = vld [vmem:[#allocation4 + $0x3f] sm:$0xff]
        %vm7000 = vmand %vm6976, %vm6960
        %vm7001 = vmand %vm6977, %vm6961
        %vm7002 = vmand %vm6978, %vm6962
        %vm7003 = vmand %vm6979, %vm6963
        %vm7004 = vmand %vm6980, %vm6964
        %vm7005 = vmand %vm6981, %vm6965
        %vm7006 = vmand %vm6982, %vm6966
        %vm7007 = vmand %vm6983, %vm6967
        %v7008 = vsel %vm7000, 1, 0
        %v7009 = vsel %vm7001, 1, 0
        %v7010 = vsel %vm7002, 1, 0
        %v7011 = vsel %vm7003, 1, 0
        %v7012 = vsel %vm7004, 1, 0
        %v7013 = vsel %vm7005, 1, 0
        %v7014 = vsel %vm7006, 1, 0
        %v7015 = vsel %vm7007, 1, 0
        %vm7016 = vcmp.eq.s32.totalorder %v7008, 1
        %vm7017 = vcmp.eq.s32.totalorder %v7009, 1
        %vm7018 = vcmp.eq.s32.totalorder %v7010, 1
        %vm7019 = vcmp.eq.s32.totalorder %v7011, 1
        %vm7020 = vcmp.eq.s32.totalorder %v7012, 1
        %vm7021 = vcmp.eq.s32.totalorder %v7013, 1
        %vm7022 = vcmp.eq.s32.totalorder %v7014, 1
        %vm7023 = vcmp.eq.s32.totalorder %v7015, 1
        %v7024 = vsel %vm7016, %v6992, 0.0
        %v7025 = vsel %vm7017, %v6993, 0.0
        %v7026 = vsel %vm7018, %v6994, 0.0
        %v7027 = vsel %vm7019, %v6995, 0.0
        %v7028 = vsel %vm7020, %v6996, 0.0
        %v7029 = vsel %vm7021, %v6997, 0.0
        %v7030 = vsel %vm7022, %v6998, 0.0
        %v7031 = vsel %vm7023, %v6999, 0.0
        %7032 = vst.msk [vmem:[#allocation7] sm:$0xff] %vm6755, %v7024
        %7033 = vst.msk [vmem:[#allocation7 + $0x10] sm:$0xff] %vm6755, %v7025
        %7034 = vst.msk [vmem:[#allocation7 + $0x20] sm:$0xff] %vm6755, %v7026
        %7035 = vst.msk [vmem:[#allocation7 + $0x30] sm:$0xff] %vm6755, %v7027
        %7036 = vst.msk [vmem:[#allocation7 + $0x40] sm:$0xff] %vm6755, %v7028
        %7037 = vst.msk [vmem:[#allocation7 + $0x50] sm:$0xff] %vm6755, %v7029
        %7038 = vst.msk [vmem:[#allocation7 + $0x60] sm:$0xff] %vm6755, %v7030
        %7039 = vst.msk [vmem:[#allocation7 + $0x70] sm:$0xff] %vm6755, %v7031
        %v7040 = vld [vmem:[#allocation4 + $0x8] sm:$0xff]
        %v7041 = vld [vmem:[#allocation4 + $0x10] sm:$0xff]
        %v7042 = vld [vmem:[#allocation4 + $0x18] sm:$0xff]
        %v7043 = vld [vmem:[#allocation4 + $0x20] sm:$0xff]
        %v7044 = vld [vmem:[#allocation4 + $0x28] sm:$0xff]
        %v7045 = vld [vmem:[#allocation4 + $0x30] sm:$0xff]
        %v7046 = vld [vmem:[#allocation4 + $0x38] sm:$0xff]
        %v7047 = vld [vmem:[#allocation4 + $0x40] sm:$0xff]
        %v7048 = vsel %vm6976, 1, 0
        %v7049 = vsel %vm6977, 1, 0
        %v7050 = vsel %vm6978, 1, 0
        %v7051 = vsel %vm6979, 1, 0
        %v7052 = vsel %vm6980, 1, 0
        %v7053 = vsel %vm6981, 1, 0
        %v7054 = vsel %vm6982, 1, 0
        %v7055 = vsel %vm6983, 1, 0
        %vm7056 = vcmp.eq.s32.totalorder %v7048, 1
        %vm7057 = vcmp.eq.s32.totalorder %v7049, 1
        %vm7058 = vcmp.eq.s32.totalorder %v7050, 1
        %vm7059 = vcmp.eq.s32.totalorder %v7051, 1
        %vm7060 = vcmp.eq.s32.totalorder %v7052, 1
        %vm7061 = vcmp.eq.s32.totalorder %v7053, 1
        %vm7062 = vcmp.eq.s32.totalorder %v7054, 1
        %vm7063 = vcmp.eq.s32.totalorder %v7055, 1
        %v7064 = vsel %vm7056, %v7040, 0.0
        %v7065 = vsel %vm7057, %v7041, 0.0
        %v7066 = vsel %vm7058, %v7042, 0.0
        %v7067 = vsel %vm7059, %v7043, 0.0
        %v7068 = vsel %vm7060, %v7044, 0.0
        %v7069 = vsel %vm7061, %v7045, 0.0
        %v7070 = vsel %vm7062, %v7046, 0.0
        %v7071 = vsel %vm7063, %v7047, 0.0
        %7080 = vrot.lane.b32.xlu0 %v7064, 16
        %v7081 = vpop.permute.xlu0 %7080
        %7082 = vrot.lane.b32.xlu0 %v7065, 16
        %v7083 = vpop.permute.xlu0 %7082
        %7084 = vrot.lane.b32.xlu0 %v7066, 16
        %v7085 = vpop.permute.xlu0 %7084
        %7086 = vrot.lane.b32.xlu0 %v7067, 16
        %v7087 = vpop.permute.xlu0 %7086
        %7088 = vrot.lane.b32.xlu0 %v7068, 16
        %v7089 = vpop.permute.xlu0 %7088
        %7090 = vrot.lane.b32.xlu0 %v7069, 16
        %v7091 = vpop.permute.xlu0 %7090
        %7092 = vrot.lane.b32.xlu0 %v7070, 16
        %v7093 = vpop.permute.xlu0 %7092
        %7094 = vrot.lane.b32.xlu0 %v7071, 16
        %v7095 = vpop.permute.xlu0 %7094
        %vm7104 = vcmask 261248
        %7105 = vst.msk [vmem:[#allocation7] sm:$0xff] %vm7104, %v7081
        %7106 = vst.msk [vmem:[#allocation7 + $0x10] sm:$0xff] %vm7104, %v7083
        %7107 = vst.msk [vmem:[#allocation7 + $0x20] sm:$0xff] %vm7104, %v7085
        %7108 = vst.msk [vmem:[#allocation7 + $0x30] sm:$0xff] %vm7104, %v7087
        %7109 = vst.msk [vmem:[#allocation7 + $0x40] sm:$0xff] %vm7104, %v7089
        %7110 = vst.msk [vmem:[#allocation7 + $0x50] sm:$0xff] %vm7104, %v7091
        %7111 = vst.msk [vmem:[#allocation7 + $0x60] sm:$0xff] %vm7104, %v7093
        %7112 = vst.msk [vmem:[#allocation7 + $0x70] sm:$0xff] %vm7104, %v7095
        %v7113 = vld [vmem:[#allocation4 + $0x9] sm:$0xff]
        %v7114 = vld [vmem:[#allocation4 + $0x11] sm:$0xff]
        %v7115 = vld [vmem:[#allocation4 + $0x19] sm:$0xff]
        %v7116 = vld [vmem:[#allocation4 + $0x21] sm:$0xff]
        %v7117 = vld [vmem:[#allocation4 + $0x29] sm:$0xff]
        %v7118 = vld [vmem:[#allocation4 + $0x31] sm:$0xff]
        %v7119 = vld [vmem:[#allocation4 + $0x39] sm:$0xff]
        %v7120 = vld [vmem:[#allocation4 + $0x41] sm:$0xff]
        %vm7121 = vmand %vm6976, %vm6968
        %vm7122 = vmand %vm6977, %vm6969
        %vm7123 = vmand %vm6978, %vm6970
        %vm7124 = vmand %vm6979, %vm6971
        %vm7125 = vmand %vm6980, %vm6972
        %vm7126 = vmand %vm6981, %vm6973
        %vm7127 = vmand %vm6982, %vm6974
        %vm7128 = vmand %vm6983, %vm6975
        %v7129 = vsel %vm7121, 1, 0
        %v7130 = vsel %vm7122, 1, 0
        %v7131 = vsel %vm7123, 1, 0
        %v7132 = vsel %vm7124, 1, 0
        %v7133 = vsel %vm7125, 1, 0
        %v7134 = vsel %vm7126, 1, 0
        %v7135 = vsel %vm7127, 1, 0
        %v7136 = vsel %vm7128, 1, 0
        %vm7137 = vcmp.eq.s32.totalorder %v7129, 1
        %vm7138 = vcmp.eq.s32.totalorder %v7130, 1
        %vm7139 = vcmp.eq.s32.totalorder %v7131, 1
        %vm7140 = vcmp.eq.s32.totalorder %v7132, 1
        %vm7141 = vcmp.eq.s32.totalorder %v7133, 1
        %vm7142 = vcmp.eq.s32.totalorder %v7134, 1
        %vm7143 = vcmp.eq.s32.totalorder %v7135, 1
        %vm7144 = vcmp.eq.s32.totalorder %v7136, 1
        %v7145 = vsel %vm7137, %v7113, 0.0
        %v7146 = vsel %vm7138, %v7114, 0.0
        %v7147 = vsel %vm7139, %v7115, 0.0
        %v7148 = vsel %vm7140, %v7116, 0.0
        %v7149 = vsel %vm7141, %v7117, 0.0
        %v7150 = vsel %vm7142, %v7118, 0.0
        %v7151 = vsel %vm7143, %v7119, 0.0
        %v7152 = vsel %vm7144, %v7120, 0.0
        %7161 = vrot.lane.b32.xlu0 %v7145, 32
        %v7162 = vpop.permute.xlu0 %7161
        %7163 = vrot.lane.b32.xlu0 %v7146, 32
        %v7164 = vpop.permute.xlu0 %7163
        %7165 = vrot.lane.b32.xlu0 %v7147, 32
        %v7166 = vpop.permute.xlu0 %7165
        %7167 = vrot.lane.b32.xlu0 %v7148, 32
        %v7168 = vpop.permute.xlu0 %7167
        %7169 = vrot.lane.b32.xlu0 %v7149, 32
        %v7170 = vpop.permute.xlu0 %7169
        %7171 = vrot.lane.b32.xlu0 %v7150, 32
        %v7172 = vpop.permute.xlu0 %7171
        %7173 = vrot.lane.b32.xlu0 %v7151, 32
        %v7174 = vpop.permute.xlu0 %7173
        %7175 = vrot.lane.b32.xlu0 %v7152, 32
        %v7176 = vpop.permute.xlu0 %7175
        %vm7185 = vcmask 392448
        %7186 = vst.msk [vmem:[#allocation7] sm:$0xff] %vm7185, %v7162
        %7187 = vst.msk [vmem:[#allocation7 + $0x10] sm:$0xff] %vm7185, %v7164
        %7188 = vst.msk [vmem:[#allocation7 + $0x20] sm:$0xff] %vm7185, %v7166
        %7189 = vst.msk [vmem:[#allocation7 + $0x30] sm:$0xff] %vm7185, %v7168
        %7190 = vst.msk [vmem:[#allocation7 + $0x40] sm:$0xff] %vm7185, %v7170
        %7191 = vst.msk [vmem:[#allocation7 + $0x50] sm:$0xff] %vm7185, %v7172
        %7192 = vst.msk [vmem:[#allocation7 + $0x60] sm:$0xff] %vm7185, %v7174
        %7193 = vst.msk [vmem:[#allocation7 + $0x70] sm:$0xff] %vm7185, %v7176
        %v7194 = vld [vmem:[#allocation4 + $0xf] sm:$0xff]
        %v7195 = vld [vmem:[#allocation4 + $0x17] sm:$0xff]
        %v7196 = vld [vmem:[#allocation4 + $0x1f] sm:$0xff]
        %v7197 = vld [vmem:[#allocation4 + $0x27] sm:$0xff]
        %v7198 = vld [vmem:[#allocation4 + $0x2f] sm:$0xff]
        %v7199 = vld [vmem:[#allocation4 + $0x37] sm:$0xff]
        %v7200 = vld [vmem:[#allocation4 + $0x3f] sm:$0xff]
        %v7201 = vld [vmem:[#allocation4 + $0x47] sm:$0xff]
        %v7202 = vsel %vm6960, 1, 0
        %v7203 = vsel %vm6961, 1, 0
        %v7204 = vsel %vm6962, 1, 0
        %v7205 = vsel %vm6963, 1, 0
        %v7206 = vsel %vm6964, 1, 0
        %v7207 = vsel %vm6965, 1, 0
        %v7208 = vsel %vm6966, 1, 0
        %v7209 = vsel %vm6967, 1, 0
        %vm7210 = vcmp.eq.s32.totalorder %v7202, 1
        %vm7211 = vcmp.eq.s32.totalorder %v7203, 1
        %vm7212 = vcmp.eq.s32.totalorder %v7204, 1
        %vm7213 = vcmp.eq.s32.totalorder %v7205, 1
        %vm7214 = vcmp.eq.s32.totalorder %v7206, 1
        %vm7215 = vcmp.eq.s32.totalorder %v7207, 1
        %vm7216 = vcmp.eq.s32.totalorder %v7208, 1
        %vm7217 = vcmp.eq.s32.totalorder %v7209, 1
        %v7218 = vsel %vm7210, %v7194, 0.0
        %v7219 = vsel %vm7211, %v7195, 0.0
        %v7220 = vsel %vm7212, %v7196, 0.0
        %v7221 = vsel %vm7213, %v7197, 0.0
        %v7222 = vsel %vm7214, %v7198, 0.0
        %v7223 = vsel %vm7215, %v7199, 0.0
        %v7224 = vsel %vm7216, %v7200, 0.0
        %v7225 = vsel %vm7217, %v7201, 0.0
        %7234 = vrot.lane.b32.xlu0 %v7218, 48
        %v7235 = vpop.permute.xlu0 %7234
        %7236 = vrot.lane.b32.xlu0 %v7219, 48
        %v7237 = vpop.permute.xlu0 %7236
        %7238 = vrot.lane.b32.xlu0 %v7220, 48
        %v7239 = vpop.permute.xlu0 %7238
        %7240 = vrot.lane.b32.xlu0 %v7221, 48
        %v7241 = vpop.permute.xlu0 %7240
        %7242 = vrot.lane.b32.xlu0 %v7222, 48
        %v7243 = vpop.permute.xlu0 %7242
        %7244 = vrot.lane.b32.xlu0 %v7223, 48
        %v7245 = vpop.permute.xlu0 %7244
        %7246 = vrot.lane.b32.xlu0 %v7224, 48
        %v7247 = vpop.permute.xlu0 %7246
        %7248 = vrot.lane.b32.xlu0 %v7225, 48
        %v7249 = vpop.permute.xlu0 %7248
        %vm7258 = vcmask 523648
        %7259 = vst.msk [vmem:[#allocation7] sm:$0xff] %vm7258, %v7235
        %7260 = vst.msk [vmem:[#allocation7 + $0x10] sm:$0xff] %vm7258, %v7237
        %7261 = vst.msk [vmem:[#allocation7 + $0x20] sm:$0xff] %vm7258, %v7239
        %7262 = vst.msk [vmem:[#allocation7 + $0x30] sm:$0xff] %vm7258, %v7241
        %7263 = vst.msk [vmem:[#allocation7 + $0x40] sm:$0xff] %vm7258, %v7243
        %7264 = vst.msk [vmem:[#allocation7 + $0x50] sm:$0xff] %vm7258, %v7245
        %7265 = vst.msk [vmem:[#allocation7 + $0x60] sm:$0xff] %vm7258, %v7247
        %7266 = vst.msk [vmem:[#allocation7 + $0x70] sm:$0xff] %vm7258, %v7249
        %v7267 = vld [vmem:[#allocation4 + $0x10] sm:$0xff]
        %v7268 = vld [vmem:[#allocation4 + $0x18] sm:$0xff]
        %v7269 = vld [vmem:[#allocation4 + $0x20] sm:$0xff]
        %v7270 = vld [vmem:[#allocation4 + $0x28] sm:$0xff]
        %v7271 = vld [vmem:[#allocation4 + $0x30] sm:$0xff]
        %v7272 = vld [vmem:[#allocation4 + $0x38] sm:$0xff]
        %v7273 = vld [vmem:[#allocation4 + $0x40] sm:$0xff]
        %v7274 = vld [vmem:[#allocation4 + $0x48] sm:$0xff]
        %7283 = vrot.lane.b32.xlu0 %v7267, 64
        %v7284 = vpop.permute.xlu0 %7283
        %7285 = vrot.lane.b32.xlu0 %v7268, 64
        %v7286 = vpop.permute.xlu0 %7285
        %7287 = vrot.lane.b32.xlu0 %v7269, 64
        %v7288 = vpop.permute.xlu0 %7287
        %7289 = vrot.lane.b32.xlu0 %v7270, 64
        %v7290 = vpop.permute.xlu0 %7289
        %7291 = vrot.lane.b32.xlu0 %v7271, 64
        %v7292 = vpop.permute.xlu0 %7291
        %7293 = vrot.lane.b32.xlu0 %v7272, 64
        %v7294 = vpop.permute.xlu0 %7293
        %7295 = vrot.lane.b32.xlu0 %v7273, 64
        %v7296 = vpop.permute.xlu0 %7295
        %7297 = vrot.lane.b32.xlu0 %v7274, 64
        %v7298 = vpop.permute.xlu0 %7297
        %vm7307 = vcmask 654848
        %7308 = vst.msk [vmem:[#allocation7] sm:$0xff] %vm7307, %v7284
        %7309 = vst.msk [vmem:[#allocation7 + $0x10] sm:$0xff] %vm7307, %v7286
        %7310 = vst.msk [vmem:[#allocation7 + $0x20] sm:$0xff] %vm7307, %v7288
        %7311 = vst.msk [vmem:[#allocation7 + $0x30] sm:$0xff] %vm7307, %v7290
        %7312 = vst.msk [vmem:[#allocation7 + $0x40] sm:$0xff] %vm7307, %v7292
        %7313 = vst.msk [vmem:[#allocation7 + $0x50] sm:$0xff] %vm7307, %v7294
        %7314 = vst.msk [vmem:[#allocation7 + $0x60] sm:$0xff] %vm7307, %v7296
        %7315 = vst.msk [vmem:[#allocation7 + $0x70] sm:$0xff] %vm7307, %v7298
        %v7316 = vld [vmem:[#allocation4 + $0x11] sm:$0xff]
        %v7317 = vld [vmem:[#allocation4 + $0x19] sm:$0xff]
        %v7318 = vld [vmem:[#allocation4 + $0x21] sm:$0xff]
        %v7319 = vld [vmem:[#allocation4 + $0x29] sm:$0xff]
        %v7320 = vld [vmem:[#allocation4 + $0x31] sm:$0xff]
        %v7321 = vld [vmem:[#allocation4 + $0x39] sm:$0xff]
        %v7322 = vld [vmem:[#allocation4 + $0x41] sm:$0xff]
        %v7323 = vld [vmem:[#allocation4 + $0x49] sm:$0xff]
        %v7324 = vsel %vm6968, 1, 0
        %v7325 = vsel %vm6969, 1, 0
        %v7326 = vsel %vm6970, 1, 0
        %v7327 = vsel %vm6971, 1, 0
        %v7328 = vsel %vm6972, 1, 0
        %v7329 = vsel %vm6973, 1, 0
        %v7330 = vsel %vm6974, 1, 0
        %v7331 = vsel %vm6975, 1, 0
        %vm7332 = vcmp.eq.s32.totalorder %v7324, 1
        %vm7333 = vcmp.eq.s32.totalorder %v7325, 1
        %vm7334 = vcmp.eq.s32.totalorder %v7326, 1
        %vm7335 = vcmp.eq.s32.totalorder %v7327, 1
        %vm7336 = vcmp.eq.s32.totalorder %v7328, 1
        %vm7337 = vcmp.eq.s32.totalorder %v7329, 1
        %vm7338 = vcmp.eq.s32.totalorder %v7330, 1
        %vm7339 = vcmp.eq.s32.totalorder %v7331, 1
        %v7340 = vsel %vm7332, %v7316, 0.0
        %v7341 = vsel %vm7333, %v7317, 0.0
        %v7342 = vsel %vm7334, %v7318, 0.0
        %v7343 = vsel %vm7335, %v7319, 0.0
        %v7344 = vsel %vm7336, %v7320, 0.0
        %v7345 = vsel %vm7337, %v7321, 0.0
        %v7346 = vsel %vm7338, %v7322, 0.0
        %v7347 = vsel %vm7339, %v7323, 0.0
        %7356 = vrot.lane.b32.xlu0 %v7340, 80
        %v7357 = vpop.permute.xlu0 %7356
        %7358 = vrot.lane.b32.xlu0 %v7341, 80
        %v7359 = vpop.permute.xlu0 %7358
        %7360 = vrot.lane.b32.xlu0 %v7342, 80
        %v7361 = vpop.permute.xlu0 %7360
        %7362 = vrot.lane.b32.xlu0 %v7343, 80
        %v7363 = vpop.permute.xlu0 %7362
        %7364 = vrot.lane.b32.xlu0 %v7344, 80
        %v7365 = vpop.permute.xlu0 %7364
        %7366 = vrot.lane.b32.xlu0 %v7345, 80
        %v7367 = vpop.permute.xlu0 %7366
        %7368 = vrot.lane.b32.xlu0 %v7346, 80
        %v7369 = vpop.permute.xlu0 %7368
        %7370 = vrot.lane.b32.xlu0 %v7347, 80
        %v7371 = vpop.permute.xlu0 %7370
        %vm7380 = vcmask 786048
        %7381 = vst.msk [vmem:[#allocation7] sm:$0xff] %vm7380, %v7357
        %7382 = vst.msk [vmem:[#allocation7 + $0x10] sm:$0xff] %vm7380, %v7359
        %7383 = vst.msk [vmem:[#allocation7 + $0x20] sm:$0xff] %vm7380, %v7361
        %7384 = vst.msk [vmem:[#allocation7 + $0x30] sm:$0xff] %vm7380, %v7363
        %7385 = vst.msk [vmem:[#allocation7 + $0x40] sm:$0xff] %vm7380, %v7365
        %7386 = vst.msk [vmem:[#allocation7 + $0x50] sm:$0xff] %vm7380, %v7367
        %7387 = vst.msk [vmem:[#allocation7 + $0x60] sm:$0xff] %vm7380, %v7369
        %7388 = vst.msk [vmem:[#allocation7 + $0x70] sm:$0xff] %vm7380, %v7371
        %v7389 = vld [vmem:[#allocation4 + $0x17] sm:$0xff]
        %v7390 = vld [vmem:[#allocation4 + $0x1f] sm:$0xff]
        %v7391 = vld [vmem:[#allocation4 + $0x27] sm:$0xff]
        %v7392 = vld [vmem:[#allocation4 + $0x2f] sm:$0xff]
        %v7393 = vld [vmem:[#allocation4 + $0x37] sm:$0xff]
        %v7394 = vld [vmem:[#allocation4 + $0x3f] sm:$0xff]
        %v7395 = vld [vmem:[#allocation4 + $0x47] sm:$0xff]
        %v7396 = vld [vmem:[#allocation4 + $0x4f] sm:$0xff]
        %vm7397 = vmand %vm6984, %vm6960
        %vm7398 = vmand %vm6985, %vm6961
        %vm7399 = vmand %vm6986, %vm6962
        %vm7400 = vmand %vm6987, %vm6963
        %vm7401 = vmand %vm6988, %vm6964
        %vm7402 = vmand %vm6989, %vm6965
        %vm7403 = vmand %vm6990, %vm6966
        %vm7404 = vmand %vm6991, %vm6967
        %v7405 = vsel %vm7397, 1, 0
        %v7406 = vsel %vm7398, 1, 0
        %v7407 = vsel %vm7399, 1, 0
        %v7408 = vsel %vm7400, 1, 0
        %v7409 = vsel %vm7401, 1, 0
        %v7410 = vsel %vm7402, 1, 0
        %v7411 = vsel %vm7403, 1, 0
        %v7412 = vsel %vm7404, 1, 0
        %vm7413 = vcmp.eq.s32.totalorder %v7405, 1
        %vm7414 = vcmp.eq.s32.totalorder %v7406, 1
        %vm7415 = vcmp.eq.s32.totalorder %v7407, 1
        %vm7416 = vcmp.eq.s32.totalorder %v7408, 1
        %vm7417 = vcmp.eq.s32.totalorder %v7409, 1
        %vm7418 = vcmp.eq.s32.totalorder %v7410, 1
        %vm7419 = vcmp.eq.s32.totalorder %v7411, 1
        %vm7420 = vcmp.eq.s32.totalorder %v7412, 1
        %v7421 = vsel %vm7413, %v7389, 0.0
        %v7422 = vsel %vm7414, %v7390, 0.0
        %v7423 = vsel %vm7415, %v7391, 0.0
        %v7424 = vsel %vm7416, %v7392, 0.0
        %v7425 = vsel %vm7417, %v7393, 0.0
        %v7426 = vsel %vm7418, %v7394, 0.0
        %v7427 = vsel %vm7419, %v7395, 0.0
        %v7428 = vsel %vm7420, %v7396, 0.0
        %7437 = vrot.lane.b32.xlu0 %v7421, 96
        %v7438 = vpop.permute.xlu0 %7437
        %7439 = vrot.lane.b32.xlu0 %v7422, 96
        %v7440 = vpop.permute.xlu0 %7439
        %7441 = vrot.lane.b32.xlu0 %v7423, 96
        %v7442 = vpop.permute.xlu0 %7441
        %7443 = vrot.lane.b32.xlu0 %v7424, 96
        %v7444 = vpop.permute.xlu0 %7443
        %7445 = vrot.lane.b32.xlu0 %v7425, 96
        %v7446 = vpop.permute.xlu0 %7445
        %7447 = vrot.lane.b32.xlu0 %v7426, 96
        %v7448 = vpop.permute.xlu0 %7447
        %7449 = vrot.lane.b32.xlu0 %v7427, 96
        %v7450 = vpop.permute.xlu0 %7449
        %7451 = vrot.lane.b32.xlu0 %v7428, 96
        %v7452 = vpop.permute.xlu0 %7451
        %vm7461 = vcmask 917248
        %7462 = vst.msk [vmem:[#allocation7] sm:$0xff] %vm7461, %v7438
        %7463 = vst.msk [vmem:[#allocation7 + $0x10] sm:$0xff] %vm7461, %v7440
        %7464 = vst.msk [vmem:[#allocation7 + $0x20] sm:$0xff] %vm7461, %v7442
        %7465 = vst.msk [vmem:[#allocation7 + $0x30] sm:$0xff] %vm7461, %v7444
        %7466 = vst.msk [vmem:[#allocation7 + $0x40] sm:$0xff] %vm7461, %v7446
        %7467 = vst.msk [vmem:[#allocation7 + $0x50] sm:$0xff] %vm7461, %v7448
        %7468 = vst.msk [vmem:[#allocation7 + $0x60] sm:$0xff] %vm7461, %v7450
        %7469 = vst.msk [vmem:[#allocation7 + $0x70] sm:$0xff] %vm7461, %v7452
        %v7470 = vld [vmem:[#allocation4 + $0x18] sm:$0xff]
        %v7471 = vld [vmem:[#allocation4 + $0x20] sm:$0xff]
        %v7472 = vld [vmem:[#allocation4 + $0x28] sm:$0xff]
        %v7473 = vld [vmem:[#allocation4 + $0x30] sm:$0xff]
        %v7474 = vld [vmem:[#allocation4 + $0x38] sm:$0xff]
        %v7475 = vld [vmem:[#allocation4 + $0x40] sm:$0xff]
        %v7476 = vld [vmem:[#allocation4 + $0x48] sm:$0xff]
        %v7477 = vld [vmem:[#allocation4 + $0x50] sm:$0xff]
        %v7478 = vsel %vm6984, 1, 0
        %v7479 = vsel %vm6985, 1, 0
        %v7480 = vsel %vm6986, 1, 0
        %v7481 = vsel %vm6987, 1, 0
        %v7482 = vsel %vm6988, 1, 0
        %v7483 = vsel %vm6989, 1, 0
        %v7484 = vsel %vm6990, 1, 0
        %v7485 = vsel %vm6991, 1, 0
        %vm7486 = vcmp.eq.s32.totalorder %v7478, 1
        %vm7487 = vcmp.eq.s32.totalorder %v7479, 1
        %vm7488 = vcmp.eq.s32.totalorder %v7480, 1
        %vm7489 = vcmp.eq.s32.totalorder %v7481, 1
        %vm7490 = vcmp.eq.s32.totalorder %v7482, 1
        %vm7491 = vcmp.eq.s32.totalorder %v7483, 1
        %vm7492 = vcmp.eq.s32.totalorder %v7484, 1
        %vm7493 = vcmp.eq.s32.totalorder %v7485, 1
        %v7494 = vsel %vm7486, %v7470, 0.0
        %v7495 = vsel %vm7487, %v7471, 0.0
        %v7496 = vsel %vm7488, %v7472, 0.0
        %v7497 = vsel %vm7489, %v7473, 0.0
        %v7498 = vsel %vm7490, %v7474, 0.0
        %v7499 = vsel %vm7491, %v7475, 0.0
        %v7500 = vsel %vm7492, %v7476, 0.0
        %v7501 = vsel %vm7493, %v7477, 0.0
        %7510 = vrot.lane.b32.xlu0 %v7494, 112
        %v7511 = vpop.permute.xlu0 %7510
        %7512 = vrot.lane.b32.xlu0 %v7495, 112
        %v7513 = vpop.permute.xlu0 %7512
        %7514 = vrot.lane.b32.xlu0 %v7496, 112
        %v7515 = vpop.permute.xlu0 %7514
        %7516 = vrot.lane.b32.xlu0 %v7497, 112
        %v7517 = vpop.permute.xlu0 %7516
        %7518 = vrot.lane.b32.xlu0 %v7498, 112
        %v7519 = vpop.permute.xlu0 %7518
        %7520 = vrot.lane.b32.xlu0 %v7499, 112
        %v7521 = vpop.permute.xlu0 %7520
        %7522 = vrot.lane.b32.xlu0 %v7500, 112
        %v7523 = vpop.permute.xlu0 %7522
        %7524 = vrot.lane.b32.xlu0 %v7501, 112
        %v7525 = vpop.permute.xlu0 %7524
        %vm7534 = vcmask 1048448
        %7535 = vst.msk [vmem:[#allocation7] sm:$0xff] %vm7534, %v7511
        %7536 = vst.msk [vmem:[#allocation7 + $0x10] sm:$0xff] %vm7534, %v7513
        %7537 = vst.msk [vmem:[#allocation7 + $0x20] sm:$0xff] %vm7534, %v7515
        %7538 = vst.msk [vmem:[#allocation7 + $0x30] sm:$0xff] %vm7534, %v7517
        %7539 = vst.msk [vmem:[#allocation7 + $0x40] sm:$0xff] %vm7534, %v7519
        %7540 = vst.msk [vmem:[#allocation7 + $0x50] sm:$0xff] %vm7534, %v7521
        %7541 = vst.msk [vmem:[#allocation7 + $0x60] sm:$0xff] %vm7534, %v7523
        %7542 = vst.msk [vmem:[#allocation7 + $0x70] sm:$0xff] %vm7534, %v7525
        %v7543 = vld [vmem:[#allocation4 + $0x19] sm:$0xff]
        %v7544 = vld [vmem:[#allocation4 + $0x21] sm:$0xff]
        %v7545 = vld [vmem:[#allocation4 + $0x29] sm:$0xff]
        %v7546 = vld [vmem:[#allocation4 + $0x31] sm:$0xff]
        %v7547 = vld [vmem:[#allocation4 + $0x39] sm:$0xff]
        %v7548 = vld [vmem:[#allocation4 + $0x41] sm:$0xff]
        %v7549 = vld [vmem:[#allocation4 + $0x49] sm:$0xff]
        %v7550 = vld [vmem:[#allocation4 + $0x51] sm:$0xff]
        %vm7551 = vmand %vm6984, %vm6968
        %vm7552 = vmand %vm6985, %vm6969
        %vm7553 = vmand %vm6986, %vm6970
        %vm7554 = vmand %vm6987, %vm6971
        %vm7555 = vmand %vm6988, %vm6972
        %vm7556 = vmand %vm6989, %vm6973
        %vm7557 = vmand %vm6990, %vm6974
        %vm7558 = vmand %vm6991, %vm6975
        %v7559 = vsel %vm7551, 1, 0
        %v7560 = vsel %vm7552, 1, 0
        %v7561 = vsel %vm7553, 1, 0
        %v7562 = vsel %vm7554, 1, 0
        %v7563 = vsel %vm7555, 1, 0
        %v7564 = vsel %vm7556, 1, 0
        %v7565 = vsel %vm7557, 1, 0
        %v7566 = vsel %vm7558, 1, 0
        %vm7567 = vcmp.eq.s32.totalorder %v7559, 1
        %vm7568 = vcmp.eq.s32.totalorder %v7560, 1
        %vm7569 = vcmp.eq.s32.totalorder %v7561, 1
        %vm7570 = vcmp.eq.s32.totalorder %v7562, 1
        %vm7571 = vcmp.eq.s32.totalorder %v7563, 1
        %vm7572 = vcmp.eq.s32.totalorder %v7564, 1
        %vm7573 = vcmp.eq.s32.totalorder %v7565, 1
        %vm7574 = vcmp.eq.s32.totalorder %v7566, 1
        %v7575 = vsel %vm7567, %v7543, 0.0
        %v7576 = vsel %vm7568, %v7544, 0.0
        %v7577 = vsel %vm7569, %v7545, 0.0
        %v7578 = vsel %vm7570, %v7546, 0.0
        %v7579 = vsel %vm7571, %v7547, 0.0
        %v7580 = vsel %vm7572, %v7548, 0.0
        %v7581 = vsel %vm7573, %v7549, 0.0
        %v7582 = vsel %vm7574, %v7550, 0.0
        %7583 = vst.msk [vmem:[#allocation7 + $0x8] sm:$0xff] %vm6755, %v7575
        %7584 = vst.msk [vmem:[#allocation7 + $0x18] sm:$0xff] %vm6755, %v7576
        %7585 = vst.msk [vmem:[#allocation7 + $0x28] sm:$0xff] %vm6755, %v7577
        %7586 = vst.msk [vmem:[#allocation7 + $0x38] sm:$0xff] %vm6755, %v7578
        %7587 = vst.msk [vmem:[#allocation7 + $0x48] sm:$0xff] %vm6755, %v7579
        %7588 = vst.msk [vmem:[#allocation7 + $0x58] sm:$0xff] %vm6755, %v7580
        %7589 = vst.msk [vmem:[#allocation7 + $0x68] sm:$0xff] %vm6755, %v7581
        %7590 = vst.msk [vmem:[#allocation7 + $0x78] sm:$0xff] %vm6755, %v7582
        %v7591 = vld [vmem:[%s11] sm:$0xff]
        %v7592 = vld [vmem:[%s11 + $0x8] sm:$0xff]
        %v7593 = vld [vmem:[#allocation7] sm:$0xff]
        %v7594 = vld [vmem:[#allocation7 + $0x8] sm:$0xff]
        %v7595 = vld [vmem:[#allocation7 + $0x10] sm:$0xff]
        %v7596 = vld [vmem:[#allocation7 + $0x18] sm:$0xff]
        %v7597 = vld [vmem:[#allocation7 + $0x20] sm:$0xff]
        %v7598 = vld [vmem:[#allocation7 + $0x28] sm:$0xff]
        %v7599 = vld [vmem:[#allocation7 + $0x30] sm:$0xff]
        %v7600 = vld [vmem:[#allocation7 + $0x38] sm:$0xff]
        %v7601 = vld [vmem:[#allocation7 + $0x40] sm:$0xff]
        %v7602 = vld [vmem:[#allocation7 + $0x48] sm:$0xff]
        %v7603 = vld [vmem:[#allocation7 + $0x50] sm:$0xff]
        %v7604 = vld [vmem:[#allocation7 + $0x58] sm:$0xff]
        %v7605 = vld [vmem:[#allocation7 + $0x60] sm:$0xff]
        %v7606 = vld [vmem:[#allocation7 + $0x68] sm:$0xff]
        %v7607 = vld [vmem:[#allocation7 + $0x70] sm:$0xff]
        %v7608 = vld [vmem:[#allocation7 + $0x78] sm:$0xff]
        %vm7609 = vcmask 523264
        %v7611 = vsel %vm7609, %v7591, 0
        %v7614 = vsel %vm7609, %v7592, 0
        %7616 = vmatprep.subr.mxu0 0.0
        %7617 = vmatpush1.msra.mxu0 0.0
        %7618 = vmatprep.subr.mxu0 0.0
        %7619 = vmatpush1.msra.mxu0 0.0
        %7620 = vmatprep.subr.mxu0 0.0
        %7621 = vmatpush1.msra.mxu0 0.0
        %7622 = vmatprep.subr.mxu0 0.0
        %7623 = vmatpush1.msra.mxu0 0.0
        %7624 = vmatprep.subr.mxu0 0.0
        %7625 = vmatpush1.msra.mxu0 0.0
        %7626 = vmatprep.subr.mxu0 0.0
        %7627 = vmatpush1.msra.mxu0 0.0
        %7628 = vmatprep.subr.mxu0 0.0
        %7629 = vmatpush1.msra.mxu0 0.0
        %7630 = vmatprep.subr.mxu0 0.0
        %7631 = vmatpush1.msra.mxu0 0.0
        %7632 = vmatprep.subr.mxu0 %v7608
        %7633 = vmatpush1.msra.mxu0 %v7607
        %7634 = vmatprep.subr.mxu0 %v7606
        %7635 = vmatpush1.msra.mxu0 %v7605
        %7636 = vmatprep.subr.mxu0 %v7604
        %7637 = vmatpush1.msra.mxu0 %v7603
        %7638 = vmatprep.subr.mxu0 %v7602
        %7639 = vmatpush1.msra.mxu0 %v7601
        %7640 = vmatprep.subr.mxu0 %v7600
        %7641 = vmatpush1.msra.mxu0 %v7599
        %7642 = vmatprep.subr.mxu0 %v7598
        %7643 = vmatpush1.msra.mxu0 %v7597
        %7644 = vmatprep.subr.mxu0 %v7596
        %7645 = vmatpush1.msra.mxu0 %v7595
        %7646 = vmatprep.subr.mxu0 %v7594
        %7647 = vmatpush1.msra.mxu0 %v7593
        %7648 = vmatprep.subr.mxu0 0.0
        %7649 = vmatpush2.msra.mxu0 0.0
        %7650 = vmatprep.subr.mxu0 0.0
        %7651 = vmatpush2.msra.mxu0 0.0
        %7652 = vmatprep.subr.mxu0 0.0
        %7653 = vmatpush2.msra.mxu0 0.0
        %7654 = vmatprep.subr.mxu0 0.0
        %7655 = vmatpush2.msra.mxu0 0.0
        %7656 = vmatprep.subr.mxu0 0.0
        %7657 = vmatpush2.msra.mxu0 0.0
        %7658 = vmatprep.subr.mxu0 0.0
        %7659 = vmatpush2.msra.mxu0 0.0
        %7660 = vmatprep.subr.mxu0 0.0
        %7661 = vmatpush2.msra.mxu0 0.0
        %7662 = vmatprep.subr.mxu0 0.0
        %7663 = vmatpush2.msra.mxu0 0.0
        %7664 = vmatprep.subr.mxu0 0.0
        %7665 = vmatpush2.msra.mxu0 0.0
        %7666 = vmatprep.subr.mxu0 0.0
        %7667 = vmatpush2.msra.mxu0 0.0
        %7668 = vmatprep.subr.mxu0 0.0
        %7669 = vmatpush2.msra.mxu0 0.0
        %7670 = vmatprep.subr.mxu0 0.0
        %7671 = vmatpush2.msra.mxu0 0.0
        %7672 = vmatprep.subr.mxu0 0.0
        %7673 = vmatpush2.msra.mxu0 0.0
        %7674 = vmatprep.subr.mxu0 0.0
        %7675 = vmatpush2.msra.mxu0 0.0
        %7676 = vmatprep.subr.mxu0 0.0
        %7677 = vmatpush2.msra.mxu0 0.0
        %7678 = vmatprep.subr.mxu0 0.0
        %7679 = vmatpush2.msra.mxu0 0.0
        %7680 = vmatprep.mubr.f32.mxu0 0.0
        %7681 = vmatmul.mubr.f32.gmra.mxu0 %v7611
        %v7682 = vpop.f32.mrf.mxu0
        %v7683 = vadd.f32 0.0, %v7682
        %v7684 = vpop.f32.mrf.mxu0
        %v7685 = vadd.f32 0.0, %v7684
        %7686 = vmatprep.mubr.f32.mxu0 0.0
        %7687 = vmatmul.mubr.f32.gmra.mxu0 %v7614
        %v7688 = vpop.f32.mrf.mxu0
        %v7689 = vadd.f32 0.0, %v7688
        %v7690 = vpop.f32.mrf.mxu0
        %v7691 = vadd.f32 0.0, %v7690
        %7692 = vdwg.mxu0
        %7693 = vst [vmem:[#allocation9] sm:$0xff] %v7683
        %7694 = vst.msk [vmem:[#allocation9 + $0x8] sm:$0xff] %vm6755, %v7685
        %7695 = vst [vmem:[#allocation9 + $0x10] sm:$0xff] %v7689
        %7696 = vst.msk [vmem:[#allocation9 + $0x18] sm:$0xff] %vm6755, %v7691
        %v7697 = vld [vmem:[#allocation9] sm:$0xff]
        %v7698 = vld [vmem:[#allocation9 + $0x8] sm:$0xff]
        %v7699 = vld [vmem:[#allocation9 + $0x10] sm:$0xff]
        %v7700 = vld [vmem:[#allocation9 + $0x18] sm:$0xff]
        %v7701 = vld [vmem:[%s3] sm:$0xff]
        %v7702 = vld [vmem:[%s3 + $0x8] sm:$0xff]
        %v7703 = vld [vmem:[%s3 + $0x10] sm:$0xff]
        %v7704 = vld [vmem:[%s3 + $0x18] sm:$0xff]
        %v7705 = vld [vmem:[%s3 + $0x20] sm:$0xff]
        %v7706 = vld [vmem:[%s3 + $0x28] sm:$0xff]
        %v7707 = vld [vmem:[%s3 + $0x30] sm:$0xff]
        %v7708 = vld [vmem:[%s3 + $0x38] sm:$0xff]
        %v7709 = vld [vmem:[%s3 + $0x40] sm:$0xff]
        %v7710 = vld [vmem:[%s3 + $0x48] sm:$0xff]
        %v7711 = vld [vmem:[%s3 + $0x50] sm:$0xff]
        %v7712 = vld [vmem:[%s3 + $0x58] sm:$0xff]
        %v7713 = vld [vmem:[%s3 + $0x60] sm:$0xff]
        %v7714 = vld [vmem:[%s3 + $0x68] sm:$0xff]
        %v7715 = vld [vmem:[%s3 + $0x70] sm:$0xff]
        %v7716 = vld [vmem:[%s3 + $0x78] sm:$0xff]
        %v7717 = vld [vmem:[%s3 + $0x80] sm:$0xff]
        %v7718 = vld [vmem:[%s3 + $0x88] sm:$0xff]
        %v7720 = vsel %vm6755, %v7698, 0
        %v7723 = vsel %vm6755, %v7700, 0
        %7725 = vmatprep.subr.mxu0 0.0
        %7726 = vmatpush1.msra.mxu0 %v7716
        %7727 = vmatprep.subr.mxu0 0.0
        %7728 = vmatpush1.msra.mxu0 %v7715
        %7729 = vmatprep.subr.mxu0 0.0
        %7730 = vmatpush1.msra.mxu0 %v7714
        %7731 = vmatprep.subr.mxu0 0.0
        %7732 = vmatpush1.msra.mxu0 %v7713
        %7733 = vmatprep.subr.mxu0 0.0
        %7734 = vmatpush1.msra.mxu0 %v7712
        %7735 = vmatprep.subr.mxu0 0.0
        %7736 = vmatpush1.msra.mxu0 %v7711
        %7737 = vmatprep.subr.mxu0 0.0
        %7738 = vmatpush1.msra.mxu0 %v7710
        %7739 = vmatprep.subr.mxu0 0.0
        %7740 = vmatpush1.msra.mxu0 %v7709
        %7741 = vmatprep.subr.mxu0 0.0
        %7742 = vmatpush1.msra.mxu0 %v7708
        %7743 = vmatprep.subr.mxu0 0.0
        %7744 = vmatpush1.msra.mxu0 %v7707
        %7745 = vmatprep.subr.mxu0 0.0
        %7746 = vmatpush1.msra.mxu0 %v7706
        %7747 = vmatprep.subr.mxu0 0.0
        %7748 = vmatpush1.msra.mxu0 %v7705
        %7749 = vmatprep.subr.mxu0 0.0
        %7750 = vmatpush1.msra.mxu0 %v7704
        %7751 = vmatprep.subr.mxu0 0.0
        %7752 = vmatpush1.msra.mxu0 %v7703
        %7753 = vmatprep.subr.mxu0 0.0
        %7754 = vmatpush1.msra.mxu0 %v7702
        %7755 = vmatprep.subr.mxu0 0.0
        %7756 = vmatpush1.msra.mxu0 %v7701
        %7757 = vmatprep.subr.mxu0 0.0
        %7758 = vmatpush2.msra.mxu0 0.0
        %7759 = vmatprep.subr.mxu0 0.0
        %7760 = vmatpush2.msra.mxu0 0.0
        %7761 = vmatprep.subr.mxu0 0.0
        %7762 = vmatpush2.msra.mxu0 0.0
        %7763 = vmatprep.subr.mxu0 0.0
        %7764 = vmatpush2.msra.mxu0 0.0
        %7765 = vmatprep.subr.mxu0 0.0
        %7766 = vmatpush2.msra.mxu0 0.0
        %7767 = vmatprep.subr.mxu0 0.0
        %7768 = vmatpush2.msra.mxu0 0.0
        %7769 = vmatprep.subr.mxu0 0.0
        %7770 = vmatpush2.msra.mxu0 0.0
        %7771 = vmatprep.subr.mxu0 0.0
        %7772 = vmatpush2.msra.mxu0 0.0
        %7773 = vmatprep.subr.mxu0 0.0
        %7774 = vmatpush2.msra.mxu0 0.0
        %7775 = vmatprep.subr.mxu0 0.0
        %7776 = vmatpush2.msra.mxu0 0.0
        %7777 = vmatprep.subr.mxu0 0.0
        %7778 = vmatpush2.msra.mxu0 0.0
        %7779 = vmatprep.subr.mxu0 0.0
        %7780 = vmatpush2.msra.mxu0 0.0
        %7781 = vmatprep.subr.mxu0 0.0
        %7782 = vmatpush2.msra.mxu0 0.0
        %7783 = vmatprep.subr.mxu0 0.0
        %7784 = vmatpush2.msra.mxu0 0.0
        %7785 = vmatprep.subr.mxu0 0.0
        %7786 = vmatpush2.msra.mxu0 %v7718
        %7787 = vmatprep.subr.mxu0 0.0
        %7788 = vmatpush2.msra.mxu0 %v7717
        %7789 = vmatprep.mubr.f32.mxu0 %v7720
        %7790 = vmatmul.mubr.f32.gmra.mxu0 %v7697
        %v7791 = vpop.f32.mrf.mxu0
        %v7792 = vadd.f32 0.0, %v7791
        %v7793 = vpop.f32.mrf.mxu0
        %7794 = vmatprep.mubr.f32.mxu0 %v7723
        %7795 = vmatmul.mubr.f32.gmra.mxu0 %v7699
        %v7796 = vpop.f32.mrf.mxu0
        %v7797 = vadd.f32 0.0, %v7796
        %v7798 = vpop.f32.mrf.mxu0
        %7799 = vdwg.mxu0
        %v7800 = vld [vmem:[%s6] sm:$0x1]
        %v7802 = vlaneseq
        %v7803 = vshrl.u32 %v7802, 7
        %v7804 = vsub.s32 0, %v7803
        %v7805 = vrot.slane %v7800, %v7804
        %v7807 = vmul.f32 %v7792, %v7805
        %v7808 = vmul.f32 %v7797, %v7805
        %v7809 = vld [vmem:[%s9] sm:$0x1]
        %v7811 = vlaneseq
        %v7812 = vshrl.u32 %v7811, 7
        %v7813 = vsub.s32 0, %v7812
        %v7814 = vrot.slane %v7809, %v7813
        %v7816 = vadd.f32 %v7807, %v7814
        %v7817 = vadd.f32 %v7808, %v7814
        %v7818 = vmax.f32 %v7816, 0.0
        %v7819 = vmax.f32 %v7817, 0.0
        %7820 = vst [vmem:[%s479] sm:$0xff] %v7818
        %7821 = vst [vmem:[%s479 + $0x8] sm:$0xff] %v7819
        %s7822 = sand.u32 %s297, 1
        %s7823 = scalar_lea.sflag [#allocation11], %s7822
        %s7824 = sand.u32 %s297, 1
        %s7825 = smul.addr %s7824, 256
        %s7826 = scalar_lea.vmem [#allocation10], %s7825
        %s7827 = sand.u32 %s32, 1
        %s7828 = scalar_lea.sflag [#allocation13], %s7827
        %s7829 = sand.u32 %s323, 1
        %s7830 = smul.addr %s7829, 64
        %s7831 = scalar_lea.vmem [#allocation12], %s7830
        %s7832 = sand.u32 %s32, 1
        %s7833 = scalar_lea.sflag [#allocation13], %s7832
        %s7834 = sand.u32 %s349, 1
        %s7835 = smul.addr %s7834, 16
        %s7836 = scalar_lea.vmem [#allocation14], %s7835
        // Predicated region
        $region69: #{tpu_custom_call.1} parent=67 // pred_check
          %p7837 = pneg %p307
        $region70: #{tpu_custom_call.1} parent=67 // pred_check_branch
          %7839 = sbr.rel (%p7837) target = $region72
        $region71: #{tpu_custom_call.1} parent=67 // pred_region
          %s7840 = smul.u32 32, %s32
          %s7842 = ssub.s32 4096, 4096
          %7843 = vsyncadd %s7823, %s7842
          %s7844 = smul.addr %s7840, 128
          %s7845 = scalar_lea.hbm %s12, %s7844
          %s7846 = sshll.u32 %s7826, 4
          %s7847 = int_to_ptr.vmem [resolvable:$true] %s7846
          %7852 = dma.vmem_to_hbm [thread:$0]  %s7847, 4096, %s7845, %s7823, 128, 128, 8
        $region72: #{tpu_custom_call.1} parent=67 // pred_fallthru
          _
        // Predicated region
        $region73: #{tpu_custom_call.1} parent=67 // pred_check
          %p7853 = pneg %p333
        $region74: #{tpu_custom_call.1} parent=67 // pred_check_branch
          %7855 = sbr.rel (%p7853) target = $region76
        $region75: #{tpu_custom_call.1} parent=67 // pred_region
          %s7856 = smul.u32 8, %s32
          %s7858 = ssub.s32 1024, 1024
          %7859 = vsyncadd %s7828, %s7858
          %s7860 = smul.addr %s7856, 128
          %s7861 = scalar_lea.hbm %s13, %s7860
          %s7862 = sshll.u32 %s7831, 4
          %s7863 = int_to_ptr.vmem [resolvable:$true] %s7862
          %7868 = dma.vmem_to_hbm [thread:$0]  %s7863, 1024, %s7861, %s7828, 128, 128, 8
        $region76: #{tpu_custom_call.1} parent=67 // pred_fallthru
          _
        // Predicated region
        $region77: #{tpu_custom_call.1} parent=67 // pred_check
          %p7869 = pneg %p359
        $region78: #{tpu_custom_call.1} parent=67 // pred_check_branch
          %7871 = sbr.rel (%p7869) target = $region80
        $region79: #{tpu_custom_call.1} parent=67 // pred_region
          %s7872 = smul.u32 2, %s32
          %s7874 = ssub.s32 256, 256
          %7875 = vsyncadd %s7833, %s7874
          %s7876 = smul.addr %s7872, 128
          %s7877 = scalar_lea.hbm %s14, %s7876
          %s7878 = sshll.u32 %s7836, 4
          %s7879 = int_to_ptr.vmem [resolvable:$true] %s7878
          %7884 = dma.vmem_to_hbm [thread:$0]  %s7879, 256, %s7877, %s7833, 128, 128, 8
        $region80: #{tpu_custom_call.1} parent=67 // pred_fallthru
          _
      $region68: #{tpu_custom_call.1} parent=5 // pred_fallthru
        _
      %p7885 = scmp.le.s32.totalorder 2, %s27
      // Predicated region
      $region81: #{tpu_custom_call.1} parent=5 // pred_check
        %p7886 = pneg %p7885
      $region82: #{tpu_custom_call.1} parent=5 // pred_check_branch
        %7888 = sbr.rel (%p7886) target = $region84
      $region83: #{tpu_custom_call.1} parent=5 // pred_region
        %s7889 = ssub.s32 %s27, 2
        // Predicated region
        $region85: #{tpu_custom_call.1} parent=83 // pred_check
          %p7890 = pneg %p313
        $region86: #{tpu_custom_call.1} parent=83 // pred_check_branch
          %7892 = sbr.rel (%p7890) target = $region88
        $region87: #{tpu_custom_call.1} parent=83 // pred_region
          %s7893 = sand.u32 %s298, 1
          %s7894 = scalar_lea.sflag [#allocation11], %s7893
          %s7895 = sand.u32 %s298, 1
          %s7896 = smul.addr %s7895, 256
          %s7897 = scalar_lea.vmem [#allocation10], %s7896
          %7898 = dma.done %s7894, 4096
        $region88: #{tpu_custom_call.1} parent=83 // pred_fallthru
          _
        // Predicated region
        $region89: #{tpu_custom_call.1} parent=83 // pred_check
          %p7899 = pneg %p339
        $region90: #{tpu_custom_call.1} parent=83 // pred_check_branch
          %7901 = sbr.rel (%p7899) target = $region92
        $region91: #{tpu_custom_call.1} parent=83 // pred_region
          %s7902 = sand.u32 %s33, 1
          %s7903 = scalar_lea.sflag [#allocation13], %s7902
          %s7904 = sand.u32 %s324, 1
          %s7905 = smul.addr %s7904, 64
          %s7906 = scalar_lea.vmem [#allocation12], %s7905
          %7907 = dma.done %s7903, 1024
        $region92: #{tpu_custom_call.1} parent=83 // pred_fallthru
          _
        // Predicated region
        $region93: #{tpu_custom_call.1} parent=83 // pred_check
          %p7908 = pneg %p365
        $region94: #{tpu_custom_call.1} parent=83 // pred_check_branch
          %7910 = sbr.rel (%p7908) target = $region96
        $region95: #{tpu_custom_call.1} parent=83 // pred_region
          %s7911 = sand.u32 %s33, 1
          %s7912 = scalar_lea.sflag [#allocation13], %s7911
          %s7913 = sand.u32 %s350, 1
          %s7914 = smul.addr %s7913, 16
          %s7915 = scalar_lea.vmem [#allocation14], %s7914
          %7916 = dma.done %s7912, 256
        $region96: #{tpu_custom_call.1} parent=83 // pred_fallthru
          _
      $region84: #{tpu_custom_call.1} parent=5 // pred_fallthru
        _
    $region6: #{tpu_custom_call.1} parent=1 // loop_footer
      %s31 = sadd.s32 1, %s27
    $region7: #{tpu_custom_call.1} parent=1 // loop_footer_branch
      %26 = sbr.rel target = $region3
    $region8: #{tpu_custom_call.1} parent=1 // loop_exit
      _
    %7917 = vsyncpa [#allocation11], 1
    %s7918 = scalar_lea.sflag [#allocation11], 1
    %7919 = vsyncpa %s7918, 1
    %7920 = vsyncpa [#allocation13], 1
    %s7921 = scalar_lea.sflag [#allocation13], 1
    %7922 = vsyncpa %s7921, 1

</llo_original>
